<compile_context>
chip_gen: v5e
topology: v5e:2x2
jax: 0.10.0
libtpu: 0.0.40
codegen_flags: <defaults>
</compile_context>

<pallas_src>
import functools

import jax
import jax.numpy as jnp
from jax.experimental import pallas as pl
from jax.experimental.pallas import tpu as pltpu

_LN_EPS = 1e-5                    # torch nn.LayerNorm default (module uses norm_layer=nn.LayerNorm)
_MATMUL_DTYPE = jnp.bfloat16      # MXU-native operand dtype; accumulation stays f32


# ---------------------------------------------------------------------------
# VMEM budget (re-derived per device: v7x = 64 MiB physical, v5e/v6e = 128 MiB)
# ---------------------------------------------------------------------------

def _derive_vmem_limit(default=48 * 1024 * 1024):
    try:
        cap = int(pltpu.get_tpu_info().vmem_capacity_bytes)
        return int(min(cap * 3 // 4, 96 * 1024 * 1024))
    except Exception:
        return default


_VMEM_LIMIT = _derive_vmem_limit()


# ---------------------------------------------------------------------------
# In-kernel helpers (f32 math for LN/softmax, bf16 matmul operands)
# ---------------------------------------------------------------------------

def _layernorm_f32(x, gamma, beta, eps):
    mu = jnp.mean(x, axis=-1, keepdims=True)
    xc = x - mu
    var = jnp.mean(xc * xc, axis=-1, keepdims=True)
    return xc * jax.lax.rsqrt(var + eps) * gamma + beta


def _mha_ctx_into(ctx_ref, xn, qkv_w, *, num_heads):
    """Multi-head attention context written head-by-head into ctx_ref (Bb, N, C) f32.

    The 1/sqrt(d) scale is pre-folded into the q columns of qkv_w (done once in the wrapper).
    One K=C qkv matmul; per-head QK^T / PV matmuls; storing each head's ctx into VMEM scratch
    bounds live ranges and lets the output projection run as ONE K=C matmul afterwards.
    """
    Bb, N, C = xn.shape
    d = C // num_heads
    mm = qkv_w.dtype
    qkv = jnp.einsum('bnc,cd->bnd', xn.astype(mm), qkv_w,
                     preferred_element_type=jnp.float32)            # (Bb, N, 3C) f32 acc
    for h in range(num_heads):
        q = qkv[:, :, h * d:(h + 1) * d].astype(mm)
        k = qkv[:, :, C + h * d:C + (h + 1) * d].astype(mm)
        v = qkv[:, :, 2 * C + h * d:2 * C + (h + 1) * d].astype(mm)
        s = jnp.einsum('bqd,bkd->bqk', q, k, preferred_element_type=jnp.float32)
        s = s - jnp.max(s, axis=-1, keepdims=True)
        e = jnp.exp(s)
        p = e * pl.reciprocal(jnp.sum(e, axis=-1, keepdims=True), approx=True)
        ctx_ref[:, :, h * d:(h + 1) * d] = jnp.einsum(
            'bqk,bkd->bqd', p.astype(mm), v, preferred_element_type=jnp.float32)


def _attn_project(ctx_ref, proj_w, proj_b):
    # single full-contraction (K=C) output projection over all heads at once
    return jnp.einsum('bnc,cd->bnd', ctx_ref[...].astype(proj_w.dtype), proj_w,
                      preferred_element_type=jnp.float32) + proj_b


# ---------------------------------------------------------------------------
# Pallas kernels
# ---------------------------------------------------------------------------

def _temporal_block_kernel(x_ref, g_ref, b_ref, qkv_w_ref, proj_w_ref, proj_b_ref,
                           fc_w_ref, fc_b_ref, o_ref, ctx_ref, *, num_heads, eps):
    # out = x + temporal_fc( attn( LN(x) ) )   (computed in the (b h w) t m layout)
    x = x_ref[...].astype(jnp.float32)
    xn = _layernorm_f32(x, g_ref[...], b_ref[...], eps)
    _mha_ctx_into(ctx_ref, xn, qkv_w_ref[...], num_heads=num_heads)
    y = _attn_project(ctx_ref, proj_w_ref[...], proj_b_ref[...])
    z = jnp.einsum('bnc,cd->bnd', y.astype(fc_w_ref.dtype), fc_w_ref[...],
                   preferred_element_type=jnp.float32) + fc_b_ref[...]
    o_ref[...] = (x + z).astype(o_ref.dtype)


def _spatial_block_kernel(x_ref, g_ref, b_ref, qkv_w_ref, proj_w_ref, proj_b_ref,
                          o_ref, ctx_ref, *, num_heads, eps):
    # out = attn( LN(x) )   (residual handled later: it needs the cls-token mean)
    x = x_ref[...].astype(jnp.float32)
    xn = _layernorm_f32(x, g_ref[...], b_ref[...], eps)
    _mha_ctx_into(ctx_ref, xn, qkv_w_ref[...], num_heads=num_heads)
    o_ref[...] = _attn_project(ctx_ref, proj_w_ref[...], proj_b_ref[...]).astype(o_ref.dtype)


def _add_ln_mlp_res_kernel(a_ref, b_ref, g_ref, beta_ref, w1_ref, b1_ref, w2_ref, b2_ref,
                           o_ref, *, eps):
    # out = (a + b) + fc2( GELU( fc1( LN(a + b) ) ) )    -- residual combine fused in
    x = a_ref[...].astype(jnp.float32) + b_ref[...].astype(jnp.float32)
    xn = _layernorm_f32(x, g_ref[...], beta_ref[...], eps)
    h = jnp.dot(xn.astype(w1_ref.dtype), w1_ref[...],
                preferred_element_type=jnp.float32) + b1_ref[...]
    h = jax.nn.gelu(h, approximate=False)           # matches torch nn.GELU (erf form)
    y = jnp.dot(h.astype(w2_ref.dtype), w2_ref[...],
                preferred_element_type=jnp.float32) + b2_ref[...]
    o_ref[...] = (x + y).astype(o_ref.dtype)


# ---------------------------------------------------------------------------
# Tiling heuristics (derived from the per-device VMEM budget)
# ---------------------------------------------------------------------------

def _pick_seq_block(Bn, N, C, weight_bytes):
    per_seq = 4 * (16 * N * C + 8 * N * N)              # conservative f32 residency / sequence
    budget = max(_VMEM_LIMIT - 2 * weight_bytes - (2 << 20), 1 << 20)
    bb = max(1, budget // max(per_seq, 1))
    bb = min(bb, 128, Bn)
    if Bn >= 2:
        bb = min(bb, -(-Bn // 2))                       # keep >=2 grid steps (v7x megacore)
    return int(max(1, bb))


def _pick_row_tile(M, C, Hd, weight_bytes):
    per_row = 4 * (8 * C + 4 * Hd)
    budget = max(_VMEM_LIMIT - 2 * weight_bytes - (2 << 20), 1 << 20)
    tm = min(budget // max(per_row, 1), 1024)
    if M >= 16:
        tm = min(tm, -(-M // 2))                        # keep >=2 grid steps
    if tm >= M:
        return int(M)
    return int(max(8, (tm // 8) * 8))


# ---------------------------------------------------------------------------
# Weight BlockSpecs: constant index_map + single-buffered when supported
# ---------------------------------------------------------------------------

def _const_spec(shape, single_buffer):
    nd = len(shape)
    idx = lambda i: (0,) * nd
    if single_buffer:
        # resident weights: avoid the pipeline's double-buffer duplication (helps v7x VMEM)
        return pl.BlockSpec(shape, idx, pipeline_mode=pl.Buffered(1))
    return pl.BlockSpec(shape, idx)


def _with_single_buffer_fallback(build):
    try:
        return build(True)
    except Exception:   # pl.Buffered(1) unsupported on this jax/libtpu -> default buffering
        return build(False)


# ---------------------------------------------------------------------------
# Wrappers
# ---------------------------------------------------------------------------

def fused_ln_attention(x, ln_w, ln_b, qkv_w, proj_w, proj_b, *, num_heads,
                       fc_w=None, fc_b=None, matmul_dtype=_MATMUL_DTYPE):
    """Fused LayerNorm + MHA (+ optional fc + residual) over blocks of sequences.

    x: (Bn, N, C); ln_*: (1, C); qkv_w: (C, 3C); proj_w: (C, C); proj_b: (1, C);
    fc_w/fc_b only for the temporal branch (also adds the x residual in-kernel).
    """
    Bn, N, C = x.shape
    scale = (C // num_heads) ** (-0.5)
    # fold 1/sqrt(d) into the q weight columns (once, outside the kernel; qkv has no bias),
    # store matmul weights in bf16 (halves HBM traffic and VMEM residency).
    qkv_w_m = jnp.concatenate([qkv_w[:, :C] * scale, qkv_w[:, C:]], axis=1).astype(matmul_dtype)
    proj_w_m = proj_w.astype(matmul_dtype)
    fc_w_m = fc_w.astype(matmul_dtype) if fc_w is not None else None

    weight_bytes = 2 * (qkv_w_m.size + proj_w_m.size +
                        (fc_w_m.size if fc_w_m is not None else 0))
    Bb = _pick_seq_block(Bn, N, C, weight_bytes)
    Bn_pad = Bb * (-(-Bn // Bb))                 # pad instead of shrinking to Bb=1
    xp = x if Bn_pad == Bn else jnp.pad(x, ((0, Bn_pad - Bn), (0, 0), (0, 0)))
    grid = (Bn_pad // Bb,)
    seq_spec = pl.BlockSpec((Bb, N, C), lambda i: (i, 0, 0))

    def build(single_buffer):
        ws = lambda shape: _const_spec(shape, single_buffer)
        in_specs = [seq_spec, ws((1, C)), ws((1, C)),
                    ws((C, 3 * C)), ws((C, C)), ws((1, C))]
        args = [xp, ln_w, ln_b, qkv_w_m, proj_w_m, proj_b]
        if fc_w is not None:
            in_specs += [ws((C, C)), ws((1, C))]
            args += [fc_w_m, fc_b]
            kernel = functools.partial(_temporal_block_kernel,
                                       num_heads=num_heads, eps=_LN_EPS)
        else:
            kernel = functools.partial(_spatial_block_kernel,
                                       num_heads=num_heads, eps=_LN_EPS)
        return pl.pallas_call(
            kernel,
            out_shape=jax.ShapeDtypeStruct((Bn_pad, N, C), x.dtype),
            grid=grid,
            in_specs=in_specs,
            out_specs=seq_spec,
            scratch_shapes=[pltpu.VMEM((Bb, N, C), jnp.float32)],
            compiler_params=pltpu.CompilerParams(
                dimension_semantics=("parallel",),
                vmem_limit_bytes=_VMEM_LIMIT),
        )(*args)

    out = _with_single_buffer_fallback(build)
    return out if Bn_pad == Bn else out[:Bn]


def fused_add_ln_mlp_residual(a2d, b2d, g, be, w1, b1, w2, b2, *, matmul_dtype=_MATMUL_DTYPE):
    """out = (a+b) + fc2(gelu(fc1(LN(a+b)))), tiled over rows. a2d/b2d: (M, C)."""
    M, C = a2d.shape
    Hd = w1.shape[1]
    w1_m = w1.astype(matmul_dtype)
    w2_m = w2.astype(matmul_dtype)
    weight_bytes = 2 * (w1_m.size + w2_m.size)
    tm = _pick_row_tile(M, C, Hd, weight_bytes)
    M_pad = tm * (-(-M // tm))
    if M_pad != M:
        a2d = jnp.pad(a2d, ((0, M_pad - M), (0, 0)))
        b2d = jnp.pad(b2d, ((0, M_pad - M), (0, 0)))
    grid = (M_pad // tm,)
    row_spec = pl.BlockSpec((tm, C), lambda i: (i, 0))

    def build(single_buffer):
        ws = lambda shape: _const_spec(shape, single_buffer)
        return pl.pallas_call(
            functools.partial(_add_ln_mlp_res_kernel, eps=_LN_EPS),
            out_shape=jax.ShapeDtypeStruct((M_pad, C), a2d.dtype),
            grid=grid,
            in_specs=[row_spec, row_spec,
                      ws((1, C)), ws((1, C)),
                      ws((C, Hd)), ws((1, Hd)),
                      ws((Hd, C)), ws((1, C))],
            out_specs=row_spec,
            compiler_params=pltpu.CompilerParams(
                dimension_semantics=("parallel",),
                vmem_limit_bytes=_VMEM_LIMIT),
        )(a2d, b2d, g, be, w1_m, b1, w2_m, b2)

    out = _with_single_buffer_fallback(build)
    return out if M_pad == M else out[:M]


# ---------------------------------------------------------------------------
# TrajectoryAttentionBlock forward ('divided_space_time' path, dropouts/DropPath = 0)
# ---------------------------------------------------------------------------

def trajectory_attention_block(params, x, thw, pt_mask=None, num_heads=4):
    # x: (B, N, C), N = 1 + H*W*T (leading cls token).
    # pt_mask is unused (use_pt_visibility=False, temporal attn use_mask=False).
    B, N, C = x.shape
    T, H, W = thw

    # ---- temporal branch (fused: LN + MHA + temporal_fc + residual) ----
    # 'b (h w t) m -> (b h w) t m'
    xt_r = x[:, 1:, :].reshape(B, H, W, T, C).reshape(B * H * W, T, C)
    xt2_r = fused_ln_attention(
        xt_r, params["tnorm_w"], params["tnorm_b"],
        params["tattn_qkv_w"], params["tattn_proj_w"], params["tattn_proj_b"],
        num_heads=num_heads, fc_w=params["tfc_w"], fc_b=params["tfc_b"])
    xt2 = xt2_r.reshape(B, H * W * T, C)   # '(b h w) t m -> b (h w t) m' (no transpose)

    # ---- spatial branch (fused: LN + MHA) ----
    init_cls_token = x[:, 0:1, :]
    cls_rep = jnp.broadcast_to(init_cls_token, (B, T, C)).reshape(B * T, 1, C)
    # TODO(synk): fold this HBM relayout (and its inverse below) into the temporal/spatial
    # kernels' out_spec / in_spec layouts to drop two memory-bound transpose passes.
    xs_tok = xt2_r.reshape(B, H, W, T, C).transpose(0, 3, 1, 2, 4).reshape(B * T, H * W, C)
    xs = jnp.concatenate([cls_rep, xs_tok], axis=1)                   # (B*T, 1+HW, C)
    res_spatial = fused_ln_attention(
        xs, params["norm1_w"], params["norm1_b"],
        params["attn_qkv_w"], params["attn_proj_w"], params["attn_proj_b"],
        num_heads=num_heads)
    cls_tok = jnp.mean(res_spatial[:, 0, :].reshape(B, T, C), axis=1, keepdims=True)
    res_sp = res_spatial[:, 1:, :].reshape(B, T, H, W, C).transpose(0, 2, 3, 1, 4)
    res_sp = res_sp.reshape(B, H * W * T, C)

    # ---- MLP branch: residual combine of the two streams is fused into the kernel ----
    stream_a = jnp.concatenate([init_cls_token, xt2], axis=1).reshape(B * N, C)
    stream_b = jnp.concatenate([cls_tok, res_sp], axis=1).reshape(B * N, C)
    x_out = fused_add_ln_mlp_residual(
        stream_a, stream_b, params["norm2_w"], params["norm2_b"],
        params["mlp_w1"], params["mlp_b1"], params["mlp_w2"], params["mlp_b2"])
    return x_out.reshape(B, N, C), thw


# ---------------------------------------------------------------------------
# Deterministic parameter init (synthetic; shapes follow the module __init__)
# ---------------------------------------------------------------------------

def init_params(key, dim, mlp_ratio=4.0, scale=0.02):
    hidden = int(dim * mlp_ratio)
    ks = jax.random.split(key, 12)

    def w(k, shape):
        return (scale * jax.random.normal(k, shape)).astype(jnp.float32)

    ones = jnp.ones((1, dim), jnp.float32)
    zeros = jnp.zeros((1, dim), jnp.float32)
    return dict(
        # temporal_norm1
        tnorm_w=ones, tnorm_b=zeros,
        # temporal_attn (qkv_bias=False -> no qkv bias; proj has bias)
        tattn_qkv_w=w(ks[0], (dim, 3 * dim)),
        tattn_proj_w=w(ks[1], (dim, dim)), tattn_proj_b=w(ks[2], (1, dim)),
        # temporal_fc
        tfc_w=w(ks[3], (dim, dim)), tfc_b=w(ks[4], (1, dim)),
        # norm1 + spatial attn
        norm1_w=ones, norm1_b=zeros,
        attn_qkv_w=w(ks[5], (dim, 3 * dim)),
        attn_proj_w=w(ks[6], (dim, dim)), attn_proj_b=w(ks[7], (1, dim)),
        # norm2 + mlp
        norm2_w=ones, norm2_b=zeros,
        mlp_w1=w(ks[8], (dim, hidden)), mlp_b1=w(ks[9], (1, hidden)),
        mlp_w2=w(ks[10], (hidden, dim)), mlp_b2=w(ks[11], (1, dim)),
    )


# ---------------------------------------------------------------------------

if __name__ == "__main__":
    dim = 32
    num_heads = 4
    B = 2
    T, H, W = 2, 4, 4
    N = 1 + H * W * T  # 33 tokens incl. cls

    key = jax.random.PRNGKey(0)
    kx, kp = jax.random.split(key)
    x = jax.random.normal(kx, (B, N, dim), dtype=jnp.float32)
    pt_mask = jnp.ones((B, N), dtype=bool)  # unused (use_pt_visibility=False)
    params = init_params(kp, dim)

    out, thw_out = trajectory_attention_block(params, x, (T, H, W),
                                              pt_mask=pt_mask, num_heads=num_heads)
    out = jax.block_until_ready(out)
    assert out.shape == (B, N, dim) and thw_out == (T, H, W)
    assert bool(jnp.all(jnp.isfinite(out)))
    print("KERNEL_OK")
</pallas_src>

<mosaic_0001>
module attributes {stable_mosaic.version = 11 : i64} {
  func.func @_temporal_block_kernel(%arg0: i32, %arg1: memref<16x2x32xf32, #tpu.memory_space<vmem>>, %arg2: memref<1x32xf32, #tpu.memory_space<vmem>>, %arg3: memref<1x32xf32, #tpu.memory_space<vmem>>, %arg4: memref<32x96xbf16, #tpu.memory_space<vmem>>, %arg5: memref<32x32xbf16, #tpu.memory_space<vmem>>, %arg6: memref<1x32xf32, #tpu.memory_space<vmem>>, %arg7: memref<32x32xbf16, #tpu.memory_space<vmem>>, %arg8: memref<1x32xf32, #tpu.memory_space<vmem>>, %arg9: memref<16x2x32xf32, #tpu.memory_space<vmem>>, %arg10: memref<16x2x32xf32, #tpu.memory_space<vmem>>) attributes {dimension_semantics = [#tpu.dimension_semantics<parallel>], iteration_bounds = array<i64: 2>, scalar_prefetch = 0 : i64, scratch_operands = 1 : i64, tpu.core_type = #tpu.core_type<tc>, window_params = [{transform_indices = @transform_0, window_bounds = array<i64: 16, 2, 32>}, {pipeline_mode = #tpu.pipeline_mode<synchronous>, transform_indices = @transform_1, window_bounds = array<i64: 1, 32>}, {pipeline_mode = #tpu.pipeline_mode<synchronous>, transform_indices = @transform_2, window_bounds = array<i64: 1, 32>}, {pipeline_mode = #tpu.pipeline_mode<synchronous>, transform_indices = @transform_3, window_bounds = array<i64: 32, 96>}, {pipeline_mode = #tpu.pipeline_mode<synchronous>, transform_indices = @transform_4, window_bounds = array<i64: 32, 32>}, {pipeline_mode = #tpu.pipeline_mode<synchronous>, transform_indices = @transform_5, window_bounds = array<i64: 1, 32>}, {pipeline_mode = #tpu.pipeline_mode<synchronous>, transform_indices = @transform_6, window_bounds = array<i64: 32, 32>}, {pipeline_mode = #tpu.pipeline_mode<synchronous>, transform_indices = @transform_7, window_bounds = array<i64: 1, 32>}, {transform_indices = @transform_8, window_bounds = array<i64: 16, 2, 32>}]} {
    %c0 = arith.constant 0 : index
    %c0_0 = arith.constant 0 : index
    %c0_1 = arith.constant 0 : index
    %0 = vector.load %arg1[%c0, %c0_0, %c0_1] : memref<16x2x32xf32, #tpu.memory_space<vmem>>, vector<16x2x32xf32>
    %c0_2 = arith.constant 0 : index
    %c0_3 = arith.constant 0 : index
    %1 = vector.load %arg2[%c0_2, %c0_3] : memref<1x32xf32, #tpu.memory_space<vmem>>, vector<1x32xf32>
    %c0_4 = arith.constant 0 : index
    %c0_5 = arith.constant 0 : index
    %2 = vector.load %arg3[%c0_4, %c0_5] : memref<1x32xf32, #tpu.memory_space<vmem>>, vector<1x32xf32>
    %cst = arith.constant dense<0.000000e+00> : vector<16x2xf32>
    %3 = vector.multi_reduction <add>, %0, %cst [2] : vector<16x2x32xf32> to vector<16x2xf32>
    %4 = vector.shape_cast %3 : vector<16x2xf32> to vector<16x2x1xf32>
    %cst_6 = arith.constant 3.200000e+01 : f32
    %5 = vector.broadcast %cst_6 : f32 to vector<16x2x1xf32>
    %6 = arith.divf %4, %5 : vector<16x2x1xf32>
    %7 = vector.broadcast %6 : vector<16x2x1xf32> to vector<16x2x32xf32>
    %8 = arith.subf %0, %7 : vector<16x2x32xf32>
    %9 = arith.mulf %8, %8 : vector<16x2x32xf32>
    %cst_7 = arith.constant dense<0.000000e+00> : vector<16x2xf32>
    %10 = vector.multi_reduction <add>, %9, %cst_7 [2] : vector<16x2x32xf32> to vector<16x2xf32>
    %11 = vector.shape_cast %10 : vector<16x2xf32> to vector<16x2x1xf32>
    %cst_8 = arith.constant 3.200000e+01 : f32
    %12 = vector.broadcast %cst_8 : f32 to vector<16x2x1xf32>
    %13 = arith.divf %11, %12 : vector<16x2x1xf32>
    %cst_9 = arith.constant 9.99999974E-6 : f32
    %14 = vector.broadcast %cst_9 : f32 to vector<16x2x1xf32>
    %15 = arith.addf %13, %14 : vector<16x2x1xf32>
    %16 = math.rsqrt %15 : vector<16x2x1xf32>
    %17 = vector.broadcast %16 : vector<16x2x1xf32> to vector<16x2x32xf32>
    %18 = arith.mulf %8, %17 : vector<16x2x32xf32>
    %19 = vector.shape_cast %1 : vector<1x32xf32> to vector<1x1x32xf32>
    %20 = vector.broadcast %19 : vector<1x1x32xf32> to vector<16x2x32xf32>
    %21 = arith.mulf %18, %20 : vector<16x2x32xf32>
    %22 = vector.shape_cast %2 : vector<1x32xf32> to vector<1x1x32xf32>
    %23 = vector.broadcast %22 : vector<1x1x32xf32> to vector<16x2x32xf32>
    %24 = arith.addf %21, %23 : vector<16x2x32xf32>
    %c0_10 = arith.constant 0 : index
    %c0_11 = arith.constant 0 : index
    %25 = vector.load %arg4[%c0_10, %c0_11] : memref<32x96xbf16, #tpu.memory_space<vmem>>, vector<32x96xbf16>
    %26 = arith.truncf %24 : vector<16x2x32xf32> to vector<16x2x32xbf16>
    "tpu.trace_start"() <{level = 10 : i32, message = "bnc,cd->bnd"}> : () -> ()
    %cst_12 = arith.constant dense<0.000000e+00> : vector<16x2x96xf32>
    %27 = tpu.matmul %26, %25, %cst_12 {dimension_numbers = #tpu.dot_dimension_numbers<[2], [0], [0, 1], [1], [0, 0, 0, 1, 1, 1], [], []>} : vector<16x2x32xbf16>, vector<32x96xbf16>, vector<16x2x96xf32> -> vector<16x2x96xf32>
    "tpu.trace_stop"() : () -> ()
    %28 = vector.extract_strided_slice %27 {offsets = [0, 0, 0], sizes = [16, 2, 8], strides = [1, 1, 1]} : vector<16x2x96xf32> to vector<16x2x8xf32>
    %29 = arith.truncf %28 : vector<16x2x8xf32> to vector<16x2x8xbf16>
    %30 = vector.extract_strided_slice %27 {offsets = [0, 0, 32], sizes = [16, 2, 8], strides = [1, 1, 1]} : vector<16x2x96xf32> to vector<16x2x8xf32>
    %31 = arith.truncf %30 : vector<16x2x8xf32> to vector<16x2x8xbf16>
    %32 = vector.extract_strided_slice %27 {offsets = [0, 0, 64], sizes = [16, 2, 8], strides = [1, 1, 1]} : vector<16x2x96xf32> to vector<16x2x8xf32>
    %33 = arith.truncf %32 : vector<16x2x8xf32> to vector<16x2x8xbf16>
    "tpu.trace_start"() <{level = 10 : i32, message = "bqd,bkd->bqk"}> : () -> ()
    %cst_13 = arith.constant dense<0.000000e+00> : vector<16x2x2xf32>
    %34 = tpu.matmul %29, %31, %cst_13 {dimension_numbers = #tpu.dot_dimension_numbers<[2], [2], [1], [1], [0, 0, 0, 1, 1, 1], [0], [0]>} : vector<16x2x8xbf16>, vector<16x2x8xbf16>, vector<16x2x2xf32> -> vector<16x2x2xf32>
    "tpu.trace_stop"() : () -> ()
    %cst_14 = arith.constant dense<0xFF800000> : vector<16x2xf32>
    %35 = vector.multi_reduction <maximumf>, %34, %cst_14 [2] : vector<16x2x2xf32> to vector<16x2xf32>
    %36 = vector.shape_cast %35 : vector<16x2xf32> to vector<16x2x1xf32>
    %37 = vector.broadcast %36 : vector<16x2x1xf32> to vector<16x2x2xf32>
    %38 = arith.subf %34, %37 : vector<16x2x2xf32>
    %39 = math.exp %38 : vector<16x2x2xf32>
    %cst_15 = arith.constant dense<0.000000e+00> : vector<16x2xf32>
    %40 = vector.multi_reduction <add>, %39, %cst_15 [2] : vector<16x2x2xf32> to vector<16x2xf32>
    %41 = vector.shape_cast %40 : vector<16x2xf32> to vector<16x2x1xf32>
    %42 = tpu.reciprocal %41 {approx = true} : vector<16x2x1xf32> -> vector<16x2x1xf32>
    %43 = vector.broadcast %42 : vector<16x2x1xf32> to vector<16x2x2xf32>
    %44 = arith.mulf %39, %43 : vector<16x2x2xf32>
    %45 = arith.truncf %44 : vector<16x2x2xf32> to vector<16x2x2xbf16>
    "tpu.trace_start"() <{level = 10 : i32, message = "bqk,bkd->bqd"}> : () -> ()
    %cst_16 = arith.constant dense<0.000000e+00> : vector<16x2x8xf32>
    %46 = tpu.matmul %45, %33, %cst_16 {dimension_numbers = #tpu.dot_dimension_numbers<[2], [1], [1], [2], [0, 0, 0, 1, 1, 2], [0], [0]>} : vector<16x2x2xbf16>, vector<16x2x8xbf16>, vector<16x2x8xf32> -> vector<16x2x8xf32>
    "tpu.trace_stop"() : () -> ()
    %c0_17 = arith.constant 0 : index
    %c0_18 = arith.constant 0 : index
    %c0_19 = arith.constant 0 : index
    %47 = vector.load %arg10[%c0_17, %c0_18, %c0_19] : memref<16x2x32xf32, #tpu.memory_space<vmem>>, vector<16x2x8xf32>
    tpu.vector_store %arg10[%c0_17, %c0_18, %c0_19], %46 {strides = array<i32>} : memref<16x2x32xf32, #tpu.memory_space<vmem>>, vector<16x2x8xf32>,
    %48 = vector.extract_strided_slice %27 {offsets = [0, 0, 8], sizes = [16, 2, 8], strides = [1, 1, 1]} : vector<16x2x96xf32> to vector<16x2x8xf32>
    %49 = arith.truncf %48 : vector<16x2x8xf32> to vector<16x2x8xbf16>
    %50 = vector.extract_strided_slice %27 {offsets = [0, 0, 40], sizes = [16, 2, 8], strides = [1, 1, 1]} : vector<16x2x96xf32> to vector<16x2x8xf32>
    %51 = arith.truncf %50 : vector<16x2x8xf32> to vector<16x2x8xbf16>
    %52 = vector.extract_strided_slice %27 {offsets = [0, 0, 72], sizes = [16, 2, 8], strides = [1, 1, 1]} : vector<16x2x96xf32> to vector<16x2x8xf32>
    %53 = arith.truncf %52 : vector<16x2x8xf32> to vector<16x2x8xbf16>
    "tpu.trace_start"() <{level = 10 : i32, message = "bqd,bkd->bqk"}> : () -> ()
    %cst_20 = arith.constant dense<0.000000e+00> : vector<16x2x2xf32>
    %54 = tpu.matmul %49, %51, %cst_20 {dimension_numbers = #tpu.dot_dimension_numbers<[2], [2], [1], [1], [0, 0, 0, 1, 1, 1], [0], [0]>} : vector<16x2x8xbf16>, vector<16x2x8xbf16>, vector<16x2x2xf32> -> vector<16x2x2xf32>
    "tpu.trace_stop"() : () -> ()
    %cst_21 = arith.constant dense<0xFF800000> : vector<16x2xf32>
    %55 = vector.multi_reduction <maximumf>, %54, %cst_21 [2] : vector<16x2x2xf32> to vector<16x2xf32>
    %56 = vector.shape_cast %55 : vector<16x2xf32> to vector<16x2x1xf32>
    %57 = vector.broadcast %56 : vector<16x2x1xf32> to vector<16x2x2xf32>
    %58 = arith.subf %54, %57 : vector<16x2x2xf32>
    %59 = math.exp %58 : vector<16x2x2xf32>
    %cst_22 = arith.constant dense<0.000000e+00> : vector<16x2xf32>
    %60 = vector.multi_reduction <add>, %59, %cst_22 [2] : vector<16x2x2xf32> to vector<16x2xf32>
    %61 = vector.shape_cast %60 : vector<16x2xf32> to vector<16x2x1xf32>
    %62 = tpu.reciprocal %61 {approx = true} : vector<16x2x1xf32> -> vector<16x2x1xf32>
    %63 = vector.broadcast %62 : vector<16x2x1xf32> to vector<16x2x2xf32>
    %64 = arith.mulf %59, %63 : vector<16x2x2xf32>
    %65 = arith.truncf %64 : vector<16x2x2xf32> to vector<16x2x2xbf16>
    "tpu.trace_start"() <{level = 10 : i32, message = "bqk,bkd->bqd"}> : () -> ()
    %cst_23 = arith.constant dense<0.000000e+00> : vector<16x2x8xf32>
    %66 = tpu.matmul %65, %53, %cst_23 {dimension_numbers = #tpu.dot_dimension_numbers<[2], [1], [1], [2], [0, 0, 0, 1, 1, 2], [0], [0]>} : vector<16x2x2xbf16>, vector<16x2x8xbf16>, vector<16x2x8xf32> -> vector<16x2x8xf32>
    "tpu.trace_stop"() : () -> ()
    %c0_24 = arith.constant 0 : index
    %c0_25 = arith.constant 0 : index
    %c8 = arith.constant 8 : index
    %67 = vector.load %arg10[%c0_24, %c0_25, %c8] : memref<16x2x32xf32, #tpu.memory_space<vmem>>, vector<16x2x8xf32>
    tpu.vector_store %arg10[%c0_24, %c0_25, %c8], %66 {strides = array<i32>} : memref<16x2x32xf32, #tpu.memory_space<vmem>>, vector<16x2x8xf32>,
    %68 = vector.extract_strided_slice %27 {offsets = [0, 0, 16], sizes = [16, 2, 8], strides = [1, 1, 1]} : vector<16x2x96xf32> to vector<16x2x8xf32>
    %69 = arith.truncf %68 : vector<16x2x8xf32> to vector<16x2x8xbf16>
    %70 = vector.extract_strided_slice %27 {offsets = [0, 0, 48], sizes = [16, 2, 8], strides = [1, 1, 1]} : vector<16x2x96xf32> to vector<16x2x8xf32>
    %71 = arith.truncf %70 : vector<16x2x8xf32> to vector<16x2x8xbf16>
    %72 = vector.extract_strided_slice %27 {offsets = [0, 0, 80], sizes = [16, 2, 8], strides = [1, 1, 1]} : vector<16x2x96xf32> to vector<16x2x8xf32>
    %73 = arith.truncf %72 : vector<16x2x8xf32> to vector<16x2x8xbf16>
    "tpu.trace_start"() <{level = 10 : i32, message = "bqd,bkd->bqk"}> : () -> ()
    %cst_26 = arith.constant dense<0.000000e+00> : vector<16x2x2xf32>
    %74 = tpu.matmul %69, %71, %cst_26 {dimension_numbers = #tpu.dot_dimension_numbers<[2], [2], [1], [1], [0, 0, 0, 1, 1, 1], [0], [0]>} : vector<16x2x8xbf16>, vector<16x2x8xbf16>, vector<16x2x2xf32> -> vector<16x2x2xf32>
    "tpu.trace_stop"() : () -> ()
    %cst_27 = arith.constant dense<0xFF800000> : vector<16x2xf32>
    %75 = vector.multi_reduction <maximumf>, %74, %cst_27 [2] : vector<16x2x2xf32> to vector<16x2xf32>
    %76 = vector.shape_cast %75 : vector<16x2xf32> to vector<16x2x1xf32>
    %77 = vector.broadcast %76 : vector<16x2x1xf32> to vector<16x2x2xf32>
    %78 = arith.subf %74, %77 : vector<16x2x2xf32>
    %79 = math.exp %78 : vector<16x2x2xf32>
    %cst_28 = arith.constant dense<0.000000e+00> : vector<16x2xf32>
    %80 = vector.multi_reduction <add>, %79, %cst_28 [2] : vector<16x2x2xf32> to vector<16x2xf32>
    %81 = vector.shape_cast %80 : vector<16x2xf32> to vector<16x2x1xf32>
    %82 = tpu.reciprocal %81 {approx = true} : vector<16x2x1xf32> -> vector<16x2x1xf32>
    %83 = vector.broadcast %82 : vector<16x2x1xf32> to vector<16x2x2xf32>
    %84 = arith.mulf %79, %83 : vector<16x2x2xf32>
    %85 = arith.truncf %84 : vector<16x2x2xf32> to vector<16x2x2xbf16>
    "tpu.trace_start"() <{level = 10 : i32, message = "bqk,bkd->bqd"}> : () -> ()
    %cst_29 = arith.constant dense<0.000000e+00> : vector<16x2x8xf32>
    %86 = tpu.matmul %85, %73, %cst_29 {dimension_numbers = #tpu.dot_dimension_numbers<[2], [1], [1], [2], [0, 0, 0, 1, 1, 2], [0], [0]>} : vector<16x2x2xbf16>, vector<16x2x8xbf16>, vector<16x2x8xf32> -> vector<16x2x8xf32>
    "tpu.trace_stop"() : () -> ()
    %c0_30 = arith.constant 0 : index
    %c0_31 = arith.constant 0 : index
    %c16 = arith.constant 16 : index
    %87 = vector.load %arg10[%c0_30, %c0_31, %c16] : memref<16x2x32xf32, #tpu.memory_space<vmem>>, vector<16x2x8xf32>
    tpu.vector_store %arg10[%c0_30, %c0_31, %c16], %86 {strides = array<i32>} : memref<16x2x32xf32, #tpu.memory_space<vmem>>, vector<16x2x8xf32>,
    %88 = vector.extract_strided_slice %27 {offsets = [0, 0, 24], sizes = [16, 2, 8], strides = [1, 1, 1]} : vector<16x2x96xf32> to vector<16x2x8xf32>
    %89 = arith.truncf %88 : vector<16x2x8xf32> to vector<16x2x8xbf16>
    %90 = vector.extract_strided_slice %27 {offsets = [0, 0, 56], sizes = [16, 2, 8], strides = [1, 1, 1]} : vector<16x2x96xf32> to vector<16x2x8xf32>
    %91 = arith.truncf %90 : vector<16x2x8xf32> to vector<16x2x8xbf16>
    %92 = vector.extract_strided_slice %27 {offsets = [0, 0, 88], sizes = [16, 2, 8], strides = [1, 1, 1]} : vector<16x2x96xf32> to vector<16x2x8xf32>
    %93 = arith.truncf %92 : vector<16x2x8xf32> to vector<16x2x8xbf16>
    "tpu.trace_start"() <{level = 10 : i32, message = "bqd,bkd->bqk"}> : () -> ()
    %cst_32 = arith.constant dense<0.000000e+00> : vector<16x2x2xf32>
    %94 = tpu.matmul %89, %91, %cst_32 {dimension_numbers = #tpu.dot_dimension_numbers<[2], [2], [1], [1], [0, 0, 0, 1, 1, 1], [0], [0]>} : vector<16x2x8xbf16>, vector<16x2x8xbf16>, vector<16x2x2xf32> -> vector<16x2x2xf32>
    "tpu.trace_stop"() : () -> ()
    %cst_33 = arith.constant dense<0xFF800000> : vector<16x2xf32>
    %95 = vector.multi_reduction <maximumf>, %94, %cst_33 [2] : vector<16x2x2xf32> to vector<16x2xf32>
    %96 = vector.shape_cast %95 : vector<16x2xf32> to vector<16x2x1xf32>
    %97 = vector.broadcast %96 : vector<16x2x1xf32> to vector<16x2x2xf32>
    %98 = arith.subf %94, %97 : vector<16x2x2xf32>
    %99 = math.exp %98 : vector<16x2x2xf32>
    %cst_34 = arith.constant dense<0.000000e+00> : vector<16x2xf32>
    %100 = vector.multi_reduction <add>, %99, %cst_34 [2] : vector<16x2x2xf32> to vector<16x2xf32>
    %101 = vector.shape_cast %100 : vector<16x2xf32> to vector<16x2x1xf32>
    %102 = tpu.reciprocal %101 {approx = true} : vector<16x2x1xf32> -> vector<16x2x1xf32>
    %103 = vector.broadcast %102 : vector<16x2x1xf32> to vector<16x2x2xf32>
    %104 = arith.mulf %99, %103 : vector<16x2x2xf32>
    %105 = arith.truncf %104 : vector<16x2x2xf32> to vector<16x2x2xbf16>
    "tpu.trace_start"() <{level = 10 : i32, message = "bqk,bkd->bqd"}> : () -> ()
    %cst_35 = arith.constant dense<0.000000e+00> : vector<16x2x8xf32>
    %106 = tpu.matmul %105, %93, %cst_35 {dimension_numbers = #tpu.dot_dimension_numbers<[2], [1], [1], [2], [0, 0, 0, 1, 1, 2], [0], [0]>} : vector<16x2x2xbf16>, vector<16x2x8xbf16>, vector<16x2x8xf32> -> vector<16x2x8xf32>
    "tpu.trace_stop"() : () -> ()
    %c0_36 = arith.constant 0 : index
    %c0_37 = arith.constant 0 : index
    %c24 = arith.constant 24 : index
    %107 = vector.load %arg10[%c0_36, %c0_37, %c24] : memref<16x2x32xf32, #tpu.memory_space<vmem>>, vector<16x2x8xf32>
    tpu.vector_store %arg10[%c0_36, %c0_37, %c24], %106 {strides = array<i32>} : memref<16x2x32xf32, #tpu.memory_space<vmem>>, vector<16x2x8xf32>,
    %c0_38 = arith.constant 0 : index
    %c0_39 = arith.constant 0 : index
    %108 = vector.load %arg5[%c0_38, %c0_39] : memref<32x32xbf16, #tpu.memory_space<vmem>>, vector<32x32xbf16>
    %c0_40 = arith.constant 0 : index
    %c0_41 = arith.constant 0 : index
    %109 = vector.load %arg6[%c0_40, %c0_41] : memref<1x32xf32, #tpu.memory_space<vmem>>, vector<1x32xf32>
    %c0_42 = arith.constant 0 : index
    %c0_43 = arith.constant 0 : index
    %c0_44 = arith.constant 0 : index
    %110 = vector.load %arg10[%c0_42, %c0_43, %c0_44] : memref<16x2x32xf32, #tpu.memory_space<vmem>>, vector<16x2x32xf32>
    %111 = arith.truncf %110 : vector<16x2x32xf32> to vector<16x2x32xbf16>
    "tpu.trace_start"() <{level = 10 : i32, message = "bnc,cd->bnd"}> : () -> ()
    %cst_45 = arith.constant dense<0.000000e+00> : vector<16x2x32xf32>
    %112 = tpu.matmul %111, %108, %cst_45 {dimension_numbers = #tpu.dot_dimension_numbers<[2], [0], [0, 1], [1], [0, 0, 0, 1, 1, 1], [], []>} : vector<16x2x32xbf16>, vector<32x32xbf16>, vector<16x2x32xf32> -> vector<16x2x32xf32>
    "tpu.trace_stop"() : () -> ()
    %113 = vector.shape_cast %109 : vector<1x32xf32> to vector<1x1x32xf32>
    %114 = vector.broadcast %113 : vector<1x1x32xf32> to vector<16x2x32xf32>
    %115 = arith.addf %112, %114 : vector<16x2x32xf32>
    %116 = arith.truncf %115 : vector<16x2x32xf32> to vector<16x2x32xbf16>
    %c0_46 = arith.constant 0 : index
    %c0_47 = arith.constant 0 : index
    %117 = vector.load %arg7[%c0_46, %c0_47] : memref<32x32xbf16, #tpu.memory_space<vmem>>, vector<32x32xbf16>
    "tpu.trace_start"() <{level = 10 : i32, message = "bnc,cd->bnd"}> : () -> ()
    %cst_48 = arith.constant dense<0.000000e+00> : vector<16x2x32xf32>
    %118 = tpu.matmul %116, %117, %cst_48 {dimension_numbers = #tpu.dot_dimension_numbers<[2], [0], [0, 1], [1], [0, 0, 0, 1, 1, 1], [], []>} : vector<16x2x32xbf16>, vector<32x32xbf16>, vector<16x2x32xf32> -> vector<16x2x32xf32>
    "tpu.trace_stop"() : () -> ()
    %c0_49 = arith.constant 0 : index
    %c0_50 = arith.constant 0 : index
    %119 = vector.load %arg8[%c0_49, %c0_50] : memref<1x32xf32, #tpu.memory_space<vmem>>, vector<1x32xf32>
    %120 = vector.shape_cast %119 : vector<1x32xf32> to vector<1x1x32xf32>
    %121 = vector.broadcast %120 : vector<1x1x32xf32> to vector<16x2x32xf32>
    %122 = arith.addf %118, %121 : vector<16x2x32xf32>
    %123 = arith.addf %0, %122 : vector<16x2x32xf32>
    %c0_51 = arith.constant 0 : index
    %c0_52 = arith.constant 0 : index
    %c0_53 = arith.constant 0 : index
    %124 = vector.load %arg9[%c0_51, %c0_52, %c0_53] : memref<16x2x32xf32, #tpu.memory_space<vmem>>, vector<16x2x32xf32>
    tpu.vector_store %arg9[%c0_51, %c0_52, %c0_53], %123 {strides = array<i32>} : memref<16x2x32xf32, #tpu.memory_space<vmem>>, vector<16x2x32xf32>,
    return
  }
  func.func @transform_0(%arg0: i32) -> (i32, i32, i32) {
    %c0_i32 = arith.constant 0 : i32
    %c0_i32_0 = arith.constant 0 : i32
    %c0_i32_1 = arith.constant 0 : i32
    return %arg0, %c0_i32, %c0_i32_0 : i32, i32, i32
  }
  func.func @transform_1(%arg0: i32) -> (i32, i32) {
    %c0_i32 = arith.constant 0 : i32
    %c0_i32_0 = arith.constant 0 : i32
    %c0_i32_1 = arith.constant 0 : i32
    return %c0_i32, %c0_i32_0 : i32, i32
  }
  func.func @transform_2(%arg0: i32) -> (i32, i32) {
    %c0_i32 = arith.constant 0 : i32
    %c0_i32_0 = arith.constant 0 : i32
    %c0_i32_1 = arith.constant 0 : i32
    return %c0_i32, %c0_i32_0 : i32, i32
  }
  func.func @transform_3(%arg0: i32) -> (i32, i32) {
    %c0_i32 = arith.constant 0 : i32
    %c0_i32_0 = arith.constant 0 : i32
    %c0_i32_1 = arith.constant 0 : i32
    return %c0_i32, %c0_i32_0 : i32, i32
  }
  func.func @transform_4(%arg0: i32) -> (i32, i32) {
    %c0_i32 = arith.constant 0 : i32
    %c0_i32_0 = arith.constant 0 : i32
    %c0_i32_1 = arith.constant 0 : i32
    return %c0_i32, %c0_i32_0 : i32, i32
  }
  func.func @transform_5(%arg0: i32) -> (i32, i32) {
    %c0_i32 = arith.constant 0 : i32
    %c0_i32_0 = arith.constant 0 : i32
    %c0_i32_1 = arith.constant 0 : i32
    return %c0_i32, %c0_i32_0 : i32, i32
  }
  func.func @transform_6(%arg0: i32) -> (i32, i32) {
    %c0_i32 = arith.constant 0 : i32
    %c0_i32_0 = arith.constant 0 : i32
    %c0_i32_1 = arith.constant 0 : i32
    return %c0_i32, %c0_i32_0 : i32, i32
  }
  func.func @transform_7(%arg0: i32) -> (i32, i32) {
    %c0_i32 = arith.constant 0 : i32
    %c0_i32_0 = arith.constant 0 : i32
    %c0_i32_1 = arith.constant 0 : i32
    return %c0_i32, %c0_i32_0 : i32, i32
  }
  func.func @transform_8(%arg0: i32) -> (i32, i32, i32) {
    %c0_i32 = arith.constant 0 : i32
    %c0_i32_0 = arith.constant 0 : i32
    %c0_i32_1 = arith.constant 0 : i32
    return %arg0, %c0_i32, %c0_i32_0 : i32, i32, i32
  }
}

module attributes {stable_mosaic.version = 11 : i64} {
  func.func @_temporal_block_kernel(%arg0: i32, %arg1: memref<16x2x32xf32, #tpu.memory_space<vmem>>, %arg2: memref<1x32xf32, #tpu.memory_space<vmem>>, %arg3: memref<1x32xf32, #tpu.memory_space<vmem>>, %arg4: memref<32x96xbf16, #tpu.memory_space<vmem>>, %arg5: memref<32x32xbf16, #tpu.memory_space<vmem>>, %arg6: memref<1x32xf32, #tpu.memory_space<vmem>>, %arg7: memref<32x32xbf16, #tpu.memory_space<vmem>>, %arg8: memref<1x32xf32, #tpu.memory_space<vmem>>, %arg9: memref<16x2x32xf32, #tpu.memory_space<vmem>>, %arg10: memref<16x2x32xf32, #tpu.memory_space<vmem>>) attributes {dimension_semantics = [#tpu.dimension_semantics<parallel>], iteration_bounds = array<i64: 2>, scalar_prefetch = 0 : i64, scratch_operands = 1 : i64, tpu.core_type = #tpu.core_type<tc>, window_params = [{transform_indices = @transform_0, window_bounds = array<i64: 16, 2, 32>}, {pipeline_mode = #tpu.pipeline_mode<synchronous>, transform_indices = @transform_1, window_bounds = array<i64: 1, 32>}, {pipeline_mode = #tpu.pipeline_mode<synchronous>, transform_indices = @transform_2, window_bounds = array<i64: 1, 32>}, {pipeline_mode = #tpu.pipeline_mode<synchronous>, transform_indices = @transform_3, window_bounds = array<i64: 32, 96>}, {pipeline_mode = #tpu.pipeline_mode<synchronous>, transform_indices = @transform_4, window_bounds = array<i64: 32, 32>}, {pipeline_mode = #tpu.pipeline_mode<synchronous>, transform_indices = @transform_5, window_bounds = array<i64: 1, 32>}, {pipeline_mode = #tpu.pipeline_mode<synchronous>, transform_indices = @transform_6, window_bounds = array<i64: 32, 32>}, {pipeline_mode = #tpu.pipeline_mode<synchronous>, transform_indices = @transform_7, window_bounds = array<i64: 1, 32>}, {transform_indices = @transform_8, window_bounds = array<i64: 16, 2, 32>}]} {
    %c0 = arith.constant 0 : index
    %c0_0 = arith.constant 0 : index
    %c0_1 = arith.constant 0 : index
    %0 = vector.load %arg1[%c0, %c0_0, %c0_1] : memref<16x2x32xf32, #tpu.memory_space<vmem>>, vector<16x2x32xf32>
    %c0_2 = arith.constant 0 : index
    %c0_3 = arith.constant 0 : index
    %1 = vector.load %arg2[%c0_2, %c0_3] : memref<1x32xf32, #tpu.memory_space<vmem>>, vector<1x32xf32>
    %c0_4 = arith.constant 0 : index
    %c0_5 = arith.constant 0 : index
    %2 = vector.load %arg3[%c0_4, %c0_5] : memref<1x32xf32, #tpu.memory_space<vmem>>, vector<1x32xf32>
    %cst = arith.constant dense<0.000000e+00> : vector<16x2xf32>
    %3 = vector.multi_reduction <add>, %0, %cst [2] : vector<16x2x32xf32> to vector<16x2xf32>
    %4 = vector.shape_cast %3 : vector<16x2xf32> to vector<16x2x1xf32>
    %cst_6 = arith.constant 3.200000e+01 : f32
    %5 = vector.broadcast %cst_6 : f32 to vector<16x2x1xf32>
    %6 = arith.divf %4, %5 : vector<16x2x1xf32>
    %7 = vector.broadcast %6 : vector<16x2x1xf32> to vector<16x2x32xf32>
    %8 = arith.subf %0, %7 : vector<16x2x32xf32>
    %9 = arith.mulf %8, %8 : vector<16x2x32xf32>
    %cst_7 = arith.constant dense<0.000000e+00> : vector<16x2xf32>
    %10 = vector.multi_reduction <add>, %9, %cst_7 [2] : vector<16x2x32xf32> to vector<16x2xf32>
    %11 = vector.shape_cast %10 : vector<16x2xf32> to vector<16x2x1xf32>
    %cst_8 = arith.constant 3.200000e+01 : f32
    %12 = vector.broadcast %cst_8 : f32 to vector<16x2x1xf32>
    %13 = arith.divf %11, %12 : vector<16x2x1xf32>
    %cst_9 = arith.constant 9.99999974E-6 : f32
    %14 = vector.broadcast %cst_9 : f32 to vector<16x2x1xf32>
    %15 = arith.addf %13, %14 : vector<16x2x1xf32>
    %16 = math.rsqrt %15 : vector<16x2x1xf32>
    %17 = vector.broadcast %16 : vector<16x2x1xf32> to vector<16x2x32xf32>
    %18 = arith.mulf %8, %17 : vector<16x2x32xf32>
    %19 = vector.shape_cast %1 : vector<1x32xf32> to vector<1x1x32xf32>
    %20 = vector.broadcast %19 : vector<1x1x32xf32> to vector<16x2x32xf32>
    %21 = arith.mulf %18, %20 : vector<16x2x32xf32>
    %22 = vector.shape_cast %2 : vector<1x32xf32> to vector<1x1x32xf32>
    %23 = vector.broadcast %22 : vector<1x1x32xf32> to vector<16x2x32xf32>
    %24 = arith.addf %21, %23 : vector<16x2x32xf32>
    %c0_10 = arith.constant 0 : index
    %c0_11 = arith.constant 0 : index
    %25 = vector.load %arg4[%c0_10, %c0_11] : memref<32x96xbf16, #tpu.memory_space<vmem>>, vector<32x96xbf16>
    %26 = arith.truncf %24 : vector<16x2x32xf32> to vector<16x2x32xbf16>
    "tpu.trace_start"() <{level = 10 : i32, message = "bnc,cd->bnd"}> : () -> ()
    %cst_12 = arith.constant dense<0.000000e+00> : vector<16x2x96xf32>
    %27 = tpu.matmul %26, %25, %cst_12 {dimension_numbers = #tpu.dot_dimension_numbers<[2], [0], [0, 1], [1], [0, 0, 0, 1, 1, 1], [], []>} : vector<16x2x32xbf16>, vector<32x96xbf16>, vector<16x2x96xf32> -> vector<16x2x96xf32>
    "tpu.trace_stop"() : () -> ()
    %28 = vector.extract_strided_slice %27 {offsets = [0, 0, 0], sizes = [16, 2, 8], strides = [1, 1, 1]} : vector<16x2x96xf32> to vector<16x2x8xf32>
    %29 = arith.truncf %28 : vector<16x2x8xf32> to vector<16x2x8xbf16>
    %30 = vector.extract_strided_slice %27 {offsets = [0, 0, 32], sizes = [16, 2, 8], strides = [1, 1, 1]} : vector<16x2x96xf32> to vector<16x2x8xf32>
    %31 = arith.truncf %30 : vector<16x2x8xf32> to vector<16x2x8xbf16>
    %32 = vector.extract_strided_slice %27 {offsets = [0, 0, 64], sizes = [16, 2, 8], strides = [1, 1, 1]} : vector<16x2x96xf32> to vector<16x2x8xf32>
    %33 = arith.truncf %32 : vector<16x2x8xf32> to vector<16x2x8xbf16>
    "tpu.trace_start"() <{level = 10 : i32, message = "bqd,bkd->bqk"}> : () -> ()
    %cst_13 = arith.constant dense<0.000000e+00> : vector<16x2x2xf32>
    %34 = tpu.matmul %29, %31, %cst_13 {dimension_numbers = #tpu.dot_dimension_numbers<[2], [2], [1], [1], [0, 0, 0, 1, 1, 1], [0], [0]>} : vector<16x2x8xbf16>, vector<16x2x8xbf16>, vector<16x2x2xf32> -> vector<16x2x2xf32>
    "tpu.trace_stop"() : () -> ()
    %cst_14 = arith.constant dense<0xFF800000> : vector<16x2xf32>
    %35 = vector.multi_reduction <maximumf>, %34, %cst_14 [2] : vector<16x2x2xf32> to vector<16x2xf32>
    %36 = vector.shape_cast %35 : vector<16x2xf32> to vector<16x2x1xf32>
    %37 = vector.broadcast %36 : vector<16x2x1xf32> to vector<16x2x2xf32>
    %38 = arith.subf %34, %37 : vector<16x2x2xf32>
    %39 = math.exp %38 : vector<16x2x2xf32>
    %cst_15 = arith.constant dense<0.000000e+00> : vector<16x2xf32>
    %40 = vector.multi_reduction <add>, %39, %cst_15 [2] : vector<16x2x2xf32> to vector<16x2xf32>
    %41 = vector.shape_cast %40 : vector<16x2xf32> to vector<16x2x1xf32>
    %42 = tpu.reciprocal %41 {approx = true} : vector<16x2x1xf32> -> vector<16x2x1xf32>
    %43 = vector.broadcast %42 : vector<16x2x1xf32> to vector<16x2x2xf32>
    %44 = arith.mulf %39, %43 : vector<16x2x2xf32>
    %45 = arith.truncf %44 : vector<16x2x2xf32> to vector<16x2x2xbf16>
    "tpu.trace_start"() <{level = 10 : i32, message = "bqk,bkd->bqd"}> : () -> ()
    %cst_16 = arith.constant dense<0.000000e+00> : vector<16x2x8xf32>
    %46 = tpu.matmul %45, %33, %cst_16 {dimension_numbers = #tpu.dot_dimension_numbers<[2], [1], [1], [2], [0, 0, 0, 1, 1, 2], [0], [0]>} : vector<16x2x2xbf16>, vector<16x2x8xbf16>, vector<16x2x8xf32> -> vector<16x2x8xf32>
    "tpu.trace_stop"() : () -> ()
    %c0_17 = arith.constant 0 : index
    %c0_18 = arith.constant 0 : index
    %c0_19 = arith.constant 0 : index
    %47 = vector.load %arg10[%c0_17, %c0_18, %c0_19] : memref<16x2x32xf32, #tpu.memory_space<vmem>>, vector<16x2x8xf32>
    tpu.vector_store %arg10[%c0_17, %c0_18, %c0_19], %46 {strides = array<i32>} : memref<16x2x32xf32, #tpu.memory_space<vmem>>, vector<16x2x8xf32>,
    %48 = vector.extract_strided_slice %27 {offsets = [0, 0, 8], sizes = [16, 2, 8], strides = [1, 1, 1]} : vector<16x2x96xf32> to vector<16x2x8xf32>
    %49 = arith.truncf %48 : vector<16x2x8xf32> to vector<16x2x8xbf16>
    %50 = vector.extract_strided_slice %27 {offsets = [0, 0, 40], sizes = [16, 2, 8], strides = [1, 1, 1]} : vector<16x2x96xf32> to vector<16x2x8xf32>
    %51 = arith.truncf %50 : vector<16x2x8xf32> to vector<16x2x8xbf16>
    %52 = vector.extract_strided_slice %27 {offsets = [0, 0, 72], sizes = [16, 2, 8], strides = [1, 1, 1]} : vector<16x2x96xf32> to vector<16x2x8xf32>
    %53 = arith.truncf %52 : vector<16x2x8xf32> to vector<16x2x8xbf16>
    "tpu.trace_start"() <{level = 10 : i32, message = "bqd,bkd->bqk"}> : () -> ()
    %cst_20 = arith.constant dense<0.000000e+00> : vector<16x2x2xf32>
    %54 = tpu.matmul %49, %51, %cst_20 {dimension_numbers = #tpu.dot_dimension_numbers<[2], [2], [1], [1], [0, 0, 0, 1, 1, 1], [0], [0]>} : vector<16x2x8xbf16>, vector<16x2x8xbf16>, vector<16x2x2xf32> -> vector<16x2x2xf32>
    "tpu.trace_stop"() : () -> ()
    %cst_21 = arith.constant dense<0xFF800000> : vector<16x2xf32>
    %55 = vector.multi_reduction <maximumf>, %54, %cst_21 [2] : vector<16x2x2xf32> to vector<16x2xf32>
    %56 = vector.shape_cast %55 : vector<16x2xf32> to vector<16x2x1xf32>
    %57 = vector.broadcast %56 : vector<16x2x1xf32> to vector<16x2x2xf32>
    %58 = arith.subf %54, %57 : vector<16x2x2xf32>
    %59 = math.exp %58 : vector<16x2x2xf32>
    %cst_22 = arith.constant dense<0.000000e+00> : vector<16x2xf32>
    %60 = vector.multi_reduction <add>, %59, %cst_22 [2] : vector<16x2x2xf32> to vector<16x2xf32>
    %61 = vector.shape_cast %60 : vector<16x2xf32> to vector<16x2x1xf32>
    %62 = tpu.reciprocal %61 {approx = true} : vector<16x2x1xf32> -> vector<16x2x1xf32>
    %63 = vector.broadcast %62 : vector<16x2x1xf32> to vector<16x2x2xf32>
    %64 = arith.mulf %59, %63 : vector<16x2x2xf32>
    %65 = arith.truncf %64 : vector<16x2x2xf32> to vector<16x2x2xbf16>
    "tpu.trace_start"() <{level = 10 : i32, message = "bqk,bkd->bqd"}> : () -> ()
    %cst_23 = arith.constant dense<0.000000e+00> : vector<16x2x8xf32>
    %66 = tpu.matmul %65, %53, %cst_23 {dimension_numbers = #tpu.dot_dimension_numbers<[2], [1], [1], [2], [0, 0, 0, 1, 1, 2], [0], [0]>} : vector<16x2x2xbf16>, vector<16x2x8xbf16>, vector<16x2x8xf32> -> vector<16x2x8xf32>
    "tpu.trace_stop"() : () -> ()
    %c0_24 = arith.constant 0 : index
    %c0_25 = arith.constant 0 : index
    %c8 = arith.constant 8 : index
    %67 = vector.load %arg10[%c0_24, %c0_25, %c8] : memref<16x2x32xf32, #tpu.memory_space<vmem>>, vector<16x2x8xf32>
    tpu.vector_store %arg10[%c0_24, %c0_25, %c8], %66 {strides = array<i32>} : memref<16x2x32xf32, #tpu.memory_space<vmem>>, vector<16x2x8xf32>,
    %68 = vector.extract_strided_slice %27 {offsets = [0, 0, 16], sizes = [16, 2, 8], strides = [1, 1, 1]} : vector<16x2x96xf32> to vector<16x2x8xf32>
    %69 = arith.truncf %68 : vector<16x2x8xf32> to vector<16x2x8xbf16>
    %70 = vector.extract_strided_slice %27 {offsets = [0, 0, 48], sizes = [16, 2, 8], strides = [1, 1, 1]} : vector<16x2x96xf32> to vector<16x2x8xf32>
    %71 = arith.truncf %70 : vector<16x2x8xf32> to vector<16x2x8xbf16>
    %72 = vector.extract_strided_slice %27 {offsets = [0, 0, 80], sizes = [16, 2, 8], strides = [1, 1, 1]} : vector<16x2x96xf32> to vector<16x2x8xf32>
    %73 = arith.truncf %72 : vector<16x2x8xf32> to vector<16x2x8xbf16>
    "tpu.trace_start"() <{level = 10 : i32, message = "bqd,bkd->bqk"}> : () -> ()
    %cst_26 = arith.constant dense<0.000000e+00> : vector<16x2x2xf32>
    %74 = tpu.matmul %69, %71, %cst_26 {dimension_numbers = #tpu.dot_dimension_numbers<[2], [2], [1], [1], [0, 0, 0, 1, 1, 1], [0], [0]>} : vector<16x2x8xbf16>, vector<16x2x8xbf16>, vector<16x2x2xf32> -> vector<16x2x2xf32>
    "tpu.trace_stop"() : () -> ()
    %cst_27 = arith.constant dense<0xFF800000> : vector<16x2xf32>
    %75 = vector.multi_reduction <maximumf>, %74, %cst_27 [2] : vector<16x2x2xf32> to vector<16x2xf32>
    %76 = vector.shape_cast %75 : vector<16x2xf32> to vector<16x2x1xf32>
    %77 = vector.broadcast %76 : vector<16x2x1xf32> to vector<16x2x2xf32>
    %78 = arith.subf %74, %77 : vector<16x2x2xf32>
    %79 = math.exp %78 : vector<16x2x2xf32>
    %cst_28 = arith.constant dense<0.000000e+00> : vector<16x2xf32>
    %80 = vector.multi_reduction <add>, %79, %cst_28 [2] : vector<16x2x2xf32> to vector<16x2xf32>
    %81 = vector.shape_cast %80 : vector<16x2xf32> to vector<16x2x1xf32>
    %82 = tpu.reciprocal %81 {approx = true} : vector<16x2x1xf32> -> vector<16x2x1xf32>
    %83 = vector.broadcast %82 : vector<16x2x1xf32> to vector<16x2x2xf32>
    %84 = arith.mulf %79, %83 : vector<16x2x2xf32>
    %85 = arith.truncf %84 : vector<16x2x2xf32> to vector<16x2x2xbf16>
    "tpu.trace_start"() <{level = 10 : i32, message = "bqk,bkd->bqd"}> : () -> ()
    %cst_29 = arith.constant dense<0.000000e+00> : vector<16x2x8xf32>
    %86 = tpu.matmul %85, %73, %cst_29 {dimension_numbers = #tpu.dot_dimension_numbers<[2], [1], [1], [2], [0, 0, 0, 1, 1, 2], [0], [0]>} : vector<16x2x2xbf16>, vector<16x2x8xbf16>, vector<16x2x8xf32> -> vector<16x2x8xf32>
    "tpu.trace_stop"() : () -> ()
    %c0_30 = arith.constant 0 : index
    %c0_31 = arith.constant 0 : index
    %c16 = arith.constant 16 : index
    %87 = vector.load %arg10[%c0_30, %c0_31, %c16] : memref<16x2x32xf32, #tpu.memory_space<vmem>>, vector<16x2x8xf32>
    tpu.vector_store %arg10[%c0_30, %c0_31, %c16], %86 {strides = array<i32>} : memref<16x2x32xf32, #tpu.memory_space<vmem>>, vector<16x2x8xf32>,
    %88 = vector.extract_strided_slice %27 {offsets = [0, 0, 24], sizes = [16, 2, 8], strides = [1, 1, 1]} : vector<16x2x96xf32> to vector<16x2x8xf32>
    %89 = arith.truncf %88 : vector<16x2x8xf32> to vector<16x2x8xbf16>
    %90 = vector.extract_strided_slice %27 {offsets = [0, 0, 56], sizes = [16, 2, 8], strides = [1, 1, 1]} : vector<16x2x96xf32> to vector<16x2x8xf32>
    %91 = arith.truncf %90 : vector<16x2x8xf32> to vector<16x2x8xbf16>
    %92 = vector.extract_strided_slice %27 {offsets = [0, 0, 88], sizes = [16, 2, 8], strides = [1, 1, 1]} : vector<16x2x96xf32> to vector<16x2x8xf32>
    %93 = arith.truncf %92 : vector<16x2x8xf32> to vector<16x2x8xbf16>
    "tpu.trace_start"() <{level = 10 : i32, message = "bqd,bkd->bqk"}> : () -> ()
    %cst_32 = arith.constant dense<0.000000e+00> : vector<16x2x2xf32>
    %94 = tpu.matmul %89, %91, %cst_32 {dimension_numbers = #tpu.dot_dimension_numbers<[2], [2], [1], [1], [0, 0, 0, 1, 1, 1], [0], [0]>} : vector<16x2x8xbf16>, vector<16x2x8xbf16>, vector<16x2x2xf32> -> vector<16x2x2xf32>
    "tpu.trace_stop"() : () -> ()
    %cst_33 = arith.constant dense<0xFF800000> : vector<16x2xf32>
    %95 = vector.multi_reduction <maximumf>, %94, %cst_33 [2] : vector<16x2x2xf32> to vector<16x2xf32>
    %96 = vector.shape_cast %95 : vector<16x2xf32> to vector<16x2x1xf32>
    %97 = vector.broadcast %96 : vector<16x2x1xf32> to vector<16x2x2xf32>
    %98 = arith.subf %94, %97 : vector<16x2x2xf32>
    %99 = math.exp %98 : vector<16x2x2xf32>
    %cst_34 = arith.constant dense<0.000000e+00> : vector<16x2xf32>
    %100 = vector.multi_reduction <add>, %99, %cst_34 [2] : vector<16x2x2xf32> to vector<16x2xf32>
    %101 = vector.shape_cast %100 : vector<16x2xf32> to vector<16x2x1xf32>
    %102 = tpu.reciprocal %101 {approx = true} : vector<16x2x1xf32> -> vector<16x2x1xf32>
    %103 = vector.broadcast %102 : vector<16x2x1xf32> to vector<16x2x2xf32>
    %104 = arith.mulf %99, %103 : vector<16x2x2xf32>
    %105 = arith.truncf %104 : vector<16x2x2xf32> to vector<16x2x2xbf16>
    "tpu.trace_start"() <{level = 10 : i32, message = "bqk,bkd->bqd"}> : () -> ()
    %cst_35 = arith.constant dense<0.000000e+00> : vector<16x2x8xf32>
    %106 = tpu.matmul %105, %93, %cst_35 {dimension_numbers = #tpu.dot_dimension_numbers<[2], [1], [1], [2], [0, 0, 0, 1, 1, 2], [0], [0]>} : vector<16x2x2xbf16>, vector<16x2x8xbf16>, vector<16x2x8xf32> -> vector<16x2x8xf32>
    "tpu.trace_stop"() : () -> ()
    %c0_36 = arith.constant 0 : index
    %c0_37 = arith.constant 0 : index
    %c24 = arith.constant 24 : index
    %107 = vector.load %arg10[%c0_36, %c0_37, %c24] : memref<16x2x32xf32, #tpu.memory_space<vmem>>, vector<16x2x8xf32>
    tpu.vector_store %arg10[%c0_36, %c0_37, %c24], %106 {strides = array<i32>} : memref<16x2x32xf32, #tpu.memory_space<vmem>>, vector<16x2x8xf32>,
    %c0_38 = arith.constant 0 : index
    %c0_39 = arith.constant 0 : index
    %108 = vector.load %arg5[%c0_38, %c0_39] : memref<32x32xbf16, #tpu.memory_space<vmem>>, vector<32x32xbf16>
    %c0_40 = arith.constant 0 : index
    %c0_41 = arith.constant 0 : index
    %109 = vector.load %arg6[%c0_40, %c0_41] : memref<1x32xf32, #tpu.memory_space<vmem>>, vector<1x32xf32>
    %c0_42 = arith.constant 0 : index
    %c0_43 = arith.constant 0 : index
    %c0_44 = arith.constant 0 : index
    %110 = vector.load %arg10[%c0_42, %c0_43, %c0_44] : memref<16x2x32xf32, #tpu.memory_space<vmem>>, vector<16x2x32xf32>
    %111 = arith.truncf %110 : vector<16x2x32xf32> to vector<16x2x32xbf16>
    "tpu.trace_start"() <{level = 10 : i32, message = "bnc,cd->bnd"}> : () -> ()
    %cst_45 = arith.constant dense<0.000000e+00> : vector<16x2x32xf32>
    %112 = tpu.matmul %111, %108, %cst_45 {dimension_numbers = #tpu.dot_dimension_numbers<[2], [0], [0, 1], [1], [0, 0, 0, 1, 1, 1], [], []>} : vector<16x2x32xbf16>, vector<32x32xbf16>, vector<16x2x32xf32> -> vector<16x2x32xf32>
    "tpu.trace_stop"() : () -> ()
    %113 = vector.shape_cast %109 : vector<1x32xf32> to vector<1x1x32xf32>
    %114 = vector.broadcast %113 : vector<1x1x32xf32> to vector<16x2x32xf32>
    %115 = arith.addf %112, %114 : vector<16x2x32xf32>
    %116 = arith.truncf %115 : vector<16x2x32xf32> to vector<16x2x32xbf16>
    %c0_46 = arith.constant 0 : index
    %c0_47 = arith.constant 0 : index
    %117 = vector.load %arg7[%c0_46, %c0_47] : memref<32x32xbf16, #tpu.memory_space<vmem>>, vector<32x32xbf16>
    "tpu.trace_start"() <{level = 10 : i32, message = "bnc,cd->bnd"}> : () -> ()
    %cst_48 = arith.constant dense<0.000000e+00> : vector<16x2x32xf32>
    %118 = tpu.matmul %116, %117, %cst_48 {dimension_numbers = #tpu.dot_dimension_numbers<[2], [0], [0, 1], [1], [0, 0, 0, 1, 1, 1], [], []>} : vector<16x2x32xbf16>, vector<32x32xbf16>, vector<16x2x32xf32> -> vector<16x2x32xf32>
    "tpu.trace_stop"() : () -> ()
    %c0_49 = arith.constant 0 : index
    %c0_50 = arith.constant 0 : index
    %119 = vector.load %arg8[%c0_49, %c0_50] : memref<1x32xf32, #tpu.memory_space<vmem>>, vector<1x32xf32>
    %120 = vector.shape_cast %119 : vector<1x32xf32> to vector<1x1x32xf32>
    %121 = vector.broadcast %120 : vector<1x1x32xf32> to vector<16x2x32xf32>
    %122 = arith.addf %118, %121 : vector<16x2x32xf32>
    %123 = arith.addf %0, %122 : vector<16x2x32xf32>
    %c0_51 = arith.constant 0 : index
    %c0_52 = arith.constant 0 : index
    %c0_53 = arith.constant 0 : index
    %124 = vector.load %arg9[%c0_51, %c0_52, %c0_53] : memref<16x2x32xf32, #tpu.memory_space<vmem>>, vector<16x2x32xf32>
    tpu.vector_store %arg9[%c0_51, %c0_52, %c0_53], %123 {strides = array<i32>} : memref<16x2x32xf32, #tpu.memory_space<vmem>>, vector<16x2x32xf32>,
    return
  }
  func.func @transform_0(%arg0: i32) -> (i32, i32, i32) {
    %c0_i32 = arith.constant 0 : i32
    %c0_i32_0 = arith.constant 0 : i32
    %c0_i32_1 = arith.constant 0 : i32
    return %arg0, %c0_i32, %c0_i32_0 : i32, i32, i32
  }
  func.func @transform_1(%arg0: i32) -> (i32, i32) {
    %c0_i32 = arith.constant 0 : i32
    %c0_i32_0 = arith.constant 0 : i32
    %c0_i32_1 = arith.constant 0 : i32
    return %c0_i32, %c0_i32_0 : i32, i32
  }
  func.func @transform_2(%arg0: i32) -> (i32, i32) {
    %c0_i32 = arith.constant 0 : i32
    %c0_i32_0 = arith.constant 0 : i32
    %c0_i32_1 = arith.constant 0 : i32
    return %c0_i32, %c0_i32_0 : i32, i32
  }
  func.func @transform_3(%arg0: i32) -> (i32, i32) {
    %c0_i32 = arith.constant 0 : i32
    %c0_i32_0 = arith.constant 0 : i32
    %c0_i32_1 = arith.constant 0 : i32
    return %c0_i32, %c0_i32_0 : i32, i32
  }
  func.func @transform_4(%arg0: i32) -> (i32, i32) {
    %c0_i32 = arith.constant 0 : i32
    %c0_i32_0 = arith.constant 0 : i32
    %c0_i32_1 = arith.constant 0 : i32
    return %c0_i32, %c0_i32_0 : i32, i32
  }
  func.func @transform_5(%arg0: i32) -> (i32, i32) {
    %c0_i32 = arith.constant 0 : i32
    %c0_i32_0 = arith.constant 0 : i32
    %c0_i32_1 = arith.constant 0 : i32
    return %c0_i32, %c0_i32_0 : i32, i32
  }
  func.func @transform_6(%arg0: i32) -> (i32, i32) {
    %c0_i32 = arith.constant 0 : i32
    %c0_i32_0 = arith.constant 0 : i32
    %c0_i32_1 = arith.constant 0 : i32
    return %c0_i32, %c0_i32_0 : i32, i32
  }
  func.func @transform_7(%arg0: i32) -> (i32, i32) {
    %c0_i32 = arith.constant 0 : i32
    %c0_i32_0 = arith.constant 0 : i32
    %c0_i32_1 = arith.constant 0 : i32
    return %c0_i32, %c0_i32_0 : i32, i32
  }
  func.func @transform_8(%arg0: i32) -> (i32, i32, i32) {
    %c0_i32 = arith.constant 0 : i32
    %c0_i32_0 = arith.constant 0 : i32
    %c0_i32_1 = arith.constant 0 : i32
    return %arg0, %c0_i32, %c0_i32_0 : i32, i32, i32
  }
}

</mosaic_0001>

<llo_original>
// kernel: tpu_custom_call.1
$region0: #{tpu_custom_call.1}
  #allocation0 [shape = 'u32[]', space=smem, size = 0x4, offset = 0x4, fixed_abs, tag = 'smem constant byte address 0x4 - core index']
  #allocation1 [shape = 'u32[72,128]{1,0:T(1,128)}', space=vmem, size = 0x9000, scoped, tag = 'internal scratch']
  #allocation2 [shape = 'f32[16,2,32]{2,1,0:T(2,128)}', space=vmem, size = 0x4000, scoped, tag = 'scratch operand']
  %s0 = inlined_call_operand.hbm [shape: f32[32,2,32], index: 0, kind: input, shape index: {}]
  %s1 = inlined_call_operand.hbm [shape: f32[1,32], index: 1, kind: input, shape index: {}]
  %s2 = inlined_call_operand.vmem [shape: f32[1,32], index: 2, kind: input, shape index: {}]
  %s3 = inlined_call_operand.hbm [shape: bf16[32,96], index: 3, kind: input, shape index: {}]
  %s4 = inlined_call_operand.hbm [shape: bf16[32,32], index: 4, kind: input, shape index: {}]
  %s5 = inlined_call_operand.vmem [shape: f32[1,32], index: 5, kind: input, shape index: {}]
  %s6 = inlined_call_operand.hbm [shape: bf16[32,32], index: 6, kind: input, shape index: {}]
  %s7 = inlined_call_operand.vmem [shape: f32[1,32], index: 7, kind: input, shape index: {}]
  %s8 = inlined_call_operand.hbm [shape: f32[32,2,32], index: 8, kind: output, shape index: {}]
  %s9 = sld [smem:[#allocation0]]
  $region85: #{tpu_custom_call.1} parent=0
    _
  %s11 = ssub.s32 1, %s9
  %s12 = scalar_select 0, %s11, %s9
  $region1: #{tpu_custom_call.1} parent=0
    #allocation3 [shape = 'u8[32768]{0}', space=vmem, size = 0x8000, scoped, tag = 'input window, operand 0']
    #allocation4 [shape = 's32[2]{0}', space=sflag, size = 0x8, scoped, tag = 'scoped memory for tpu_custom_call.1']
    #allocation5 [shape = 's32[2]{0}', space=sflag, size = 0x8, scoped, tag = 'scoped memory for tpu_custom_call.1']
    #allocation6 [shape = 'u8[512]{0}', space=vmem, size = 0x400, scoped, tag = 'input window, operand 1, single buffered']
    #allocation7 [shape = 's32[1]{0}', space=sflag, size = 0x4, scoped, tag = 'scoped memory for tpu_custom_call.1']
    #allocation8 [shape = 'u8[8192]{0}', space=vmem, size = 0x2000, scoped, tag = 'input window, operand 3, single buffered']
    #allocation9 [shape = 'u8[8192]{0}', space=vmem, size = 0x2000, scoped, tag = 'input window, operand 4, single buffered']
    #allocation10 [shape = 's32[1]{0}', space=sflag, size = 0x4, scoped, tag = 'scoped memory for tpu_custom_call.1']
    #allocation11 [shape = 'u8[8192]{0}', space=vmem, size = 0x2000, scoped, tag = 'input window, operand 6, single buffered']
    #allocation12 [shape = 'u8[32768]{0}', space=vmem, size = 0x8000, scoped, tag = 'output window, operand 0']
    %13 = vsyncpa [#allocation4], 0
    %s14 = scalar_lea.sflag [#allocation4], 1
    %15 = vsyncpa %s14, 0
    %16 = vsyncpa [#allocation7], 0
    %17 = vsyncpa [#allocation10], 0
    %18 = vsyncpa [#allocation5], 0
    %s19 = scalar_lea.sflag [#allocation5], 1
    %20 = vsyncpa %s19, 0
    loop: start=0, step=1, limit=4
    $region2: #{tpu_custom_call.1} parent=1 // loop_pre_header
      _
    $region3: #{tpu_custom_call.1} parent=1 // loop_header
      %s22 = sphi 0, %s26
      %p23 = scmp.ge.s32.totalorder %s22, 4
      %s32 = sphi 0, %s34
      %s35 = sphi 0, %s32
      %s36 = sphi 0, %s35
      %s52 = sphi 0, %s36
      %s56 = sphi 0, %s56
      %s58 = sphi 0, %s56
      %s59 = sphi 0, %s58
      %s73 = sphi 0, %s59
      %s77 = sphi 0, %s77
      %s79 = sphi 0, %s77
      %s80 = sphi 0, %s79
      %s94 = sphi 0, %s80
      %s98 = sphi 0, %s98
      %s100 = sphi 0, %s98
      %s101 = sphi 0, %s100
      %s115 = sphi 0, %s101
      %s119 = sphi 0, %s119
      %s121 = sphi 0, %s119
      %s122 = sphi 0, %s121
      %s136 = sphi 0, %s122
      %s140 = sphi 0, %s140
      %s142 = sphi 0, %s140
      %s143 = sphi 0, %s142
      %s157 = sphi 0, %s143
      %s161 = sphi 0, %s161
      %s163 = sphi 0, %s161
      %s164 = sphi 0, %s163
      %s178 = sphi 0, %s164
      %s182 = sphi 0, %s182
      %s184 = sphi 0, %s182
      %s185 = sphi 0, %s184
      %s199 = sphi 0, %s185
      %s205 = sphi 0, %s207
      %s208 = sphi 0, %s205
      %s209 = sphi 0, %s208
      %s225 = sphi 0, %s209
    $region4: #{tpu_custom_call.1} parent=1 // loop_header_branch
      %25 = sbr.rel (%p23) target = $region8
    $region5: #{tpu_custom_call.1} parent=1 // loop_body
      %s27 = ssub.s32 %s22, 1
      %s28 = ssub.s32 %s22, 2
      %s29 = sadd.s32 %s22, 1
      %s30 = ssub.s32 %s22, %s29
      %p31 = scmp.eq.s32.totalorder %s30, 0
      %s33 = sadd.s32 %s32, 1
      %s34 = scalar_select %p31, %s32, %s33
      %p37 = pneg %p31
      %p38 = scmp.eq.s32.totalorder %s22, 1
      %p39 = por %p37, %p38
      %p40 = scmp.ne.s32.totalorder %s32, %s35
      %p41 = scmp.eq.s32.totalorder %s22, 0
      %p42 = por %p40, %p41
      %p43 = scmp.ne.s32.totalorder %s32, %s35
      %p44 = scmp.eq.s32.totalorder %s27, 1
      %p45 = por %p43, %p44
      %p46 = scmp.ne.s32.totalorder %s35, %s36
      %p47 = scmp.eq.s32.totalorder %s27, 0
      %p48 = por %p46, %p47
      %p49 = scmp.ne.s32.totalorder %s35, %s36
      %p50 = scmp.eq.s32.totalorder %s28, 1
      %p51 = por %p49, %p50
      %p53 = scmp.ne.s32.totalorder %s36, %s52
      %p54 = scmp.eq.s32.totalorder %s28, 0
      %p55 = por %p53, %p54
      %s57 = sadd.s32 %s56, 1
      %p60 = scmp.eq.s32.totalorder %s22, 1
      %p61 = scmp.ne.s32.totalorder %s56, %s58
      %p62 = scmp.eq.s32.totalorder %s22, 0
      %p63 = por %p61, %p62
      %p64 = scmp.ne.s32.totalorder %s56, %s58
      %p65 = scmp.eq.s32.totalorder %s27, 1
      %p66 = por %p64, %p65
      %p67 = scmp.ne.s32.totalorder %s58, %s59
      %p68 = scmp.eq.s32.totalorder %s27, 0
      %p69 = por %p67, %p68
      %p70 = scmp.ne.s32.totalorder %s58, %s59
      %p71 = scmp.eq.s32.totalorder %s28, 1
      %p72 = por %p70, %p71
      %p74 = scmp.ne.s32.totalorder %s59, %s73
      %p75 = scmp.eq.s32.totalorder %s28, 0
      %p76 = por %p74, %p75
      %s78 = sadd.s32 %s77, 1
      %p81 = scmp.eq.s32.totalorder %s22, 1
      %p82 = scmp.ne.s32.totalorder %s77, %s79
      %p83 = scmp.eq.s32.totalorder %s22, 0
      %p84 = por %p82, %p83
      %p85 = scmp.ne.s32.totalorder %s77, %s79
      %p86 = scmp.eq.s32.totalorder %s27, 1
      %p87 = por %p85, %p86
      %p88 = scmp.ne.s32.totalorder %s79, %s80
      %p89 = scmp.eq.s32.totalorder %s27, 0
      %p90 = por %p88, %p89
      %p91 = scmp.ne.s32.totalorder %s79, %s80
      %p92 = scmp.eq.s32.totalorder %s28, 1
      %p93 = por %p91, %p92
      %p95 = scmp.ne.s32.totalorder %s80, %s94
      %p96 = scmp.eq.s32.totalorder %s28, 0
      %p97 = por %p95, %p96
      %s99 = sadd.s32 %s98, 1
      %p102 = scmp.eq.s32.totalorder %s22, 1
      %p103 = scmp.ne.s32.totalorder %s98, %s100
      %p104 = scmp.eq.s32.totalorder %s22, 0
      %p105 = por %p103, %p104
      %p106 = scmp.ne.s32.totalorder %s98, %s100
      %p107 = scmp.eq.s32.totalorder %s27, 1
      %p108 = por %p106, %p107
      %p109 = scmp.ne.s32.totalorder %s100, %s101
      %p110 = scmp.eq.s32.totalorder %s27, 0
      %p111 = por %p109, %p110
      %p112 = scmp.ne.s32.totalorder %s100, %s101
      %p113 = scmp.eq.s32.totalorder %s28, 1
      %p114 = por %p112, %p113
      %p116 = scmp.ne.s32.totalorder %s101, %s115
      %p117 = scmp.eq.s32.totalorder %s28, 0
      %p118 = por %p116, %p117
      %s120 = sadd.s32 %s119, 1
      %p123 = scmp.eq.s32.totalorder %s22, 1
      %p124 = scmp.ne.s32.totalorder %s119, %s121
      %p125 = scmp.eq.s32.totalorder %s22, 0
      %p126 = por %p124, %p125
      %p127 = scmp.ne.s32.totalorder %s119, %s121
      %p128 = scmp.eq.s32.totalorder %s27, 1
      %p129 = por %p127, %p128
      %p130 = scmp.ne.s32.totalorder %s121, %s122
      %p131 = scmp.eq.s32.totalorder %s27, 0
      %p132 = por %p130, %p131
      %p133 = scmp.ne.s32.totalorder %s121, %s122
      %p134 = scmp.eq.s32.totalorder %s28, 1
      %p135 = por %p133, %p134
      %p137 = scmp.ne.s32.totalorder %s122, %s136
      %p138 = scmp.eq.s32.totalorder %s28, 0
      %p139 = por %p137, %p138
      %s141 = sadd.s32 %s140, 1
      %p144 = scmp.eq.s32.totalorder %s22, 1
      %p145 = scmp.ne.s32.totalorder %s140, %s142
      %p146 = scmp.eq.s32.totalorder %s22, 0
      %p147 = por %p145, %p146
      %p148 = scmp.ne.s32.totalorder %s140, %s142
      %p149 = scmp.eq.s32.totalorder %s27, 1
      %p150 = por %p148, %p149
      %p151 = scmp.ne.s32.totalorder %s142, %s143
      %p152 = scmp.eq.s32.totalorder %s27, 0
      %p153 = por %p151, %p152
      %p154 = scmp.ne.s32.totalorder %s142, %s143
      %p155 = scmp.eq.s32.totalorder %s28, 1
      %p156 = por %p154, %p155
      %p158 = scmp.ne.s32.totalorder %s143, %s157
      %p159 = scmp.eq.s32.totalorder %s28, 0
      %p160 = por %p158, %p159
      %s162 = sadd.s32 %s161, 1
      %p165 = scmp.eq.s32.totalorder %s22, 1
      %p166 = scmp.ne.s32.totalorder %s161, %s163
      %p167 = scmp.eq.s32.totalorder %s22, 0
      %p168 = por %p166, %p167
      %p169 = scmp.ne.s32.totalorder %s161, %s163
      %p170 = scmp.eq.s32.totalorder %s27, 1
      %p171 = por %p169, %p170
      %p172 = scmp.ne.s32.totalorder %s163, %s164
      %p173 = scmp.eq.s32.totalorder %s27, 0
      %p174 = por %p172, %p173
      %p175 = scmp.ne.s32.totalorder %s163, %s164
      %p176 = scmp.eq.s32.totalorder %s28, 1
      %p177 = por %p175, %p176
      %p179 = scmp.ne.s32.totalorder %s164, %s178
      %p180 = scmp.eq.s32.totalorder %s28, 0
      %p181 = por %p179, %p180
      %s183 = sadd.s32 %s182, 1
      %p186 = scmp.eq.s32.totalorder %s22, 1
      %p187 = scmp.ne.s32.totalorder %s182, %s184
      %p188 = scmp.eq.s32.totalorder %s22, 0
      %p189 = por %p187, %p188
      %p190 = scmp.ne.s32.totalorder %s182, %s184
      %p191 = scmp.eq.s32.totalorder %s27, 1
      %p192 = por %p190, %p191
      %p193 = scmp.ne.s32.totalorder %s184, %s185
      %p194 = scmp.eq.s32.totalorder %s27, 0
      %p195 = por %p193, %p194
      %p196 = scmp.ne.s32.totalorder %s184, %s185
      %p197 = scmp.eq.s32.totalorder %s28, 1
      %p198 = por %p196, %p197
      %p200 = scmp.ne.s32.totalorder %s185, %s199
      %p201 = scmp.eq.s32.totalorder %s28, 0
      %p202 = por %p200, %p201
      %s203 = ssub.s32 %s22, %s29
      %p204 = scmp.eq.s32.totalorder %s203, 0
      %s206 = sadd.s32 %s205, 1
      %s207 = scalar_select %p204, %s205, %s206
      %p210 = pneg %p204
      %p211 = scmp.eq.s32.totalorder %s22, 1
      %p212 = por %p210, %p211
      %p213 = scmp.ne.s32.totalorder %s205, %s208
      %p214 = scmp.eq.s32.totalorder %s22, 0
      %p215 = por %p213, %p214
      %p216 = scmp.ne.s32.totalorder %s205, %s208
      %p217 = scmp.eq.s32.totalorder %s27, 1
      %p218 = por %p216, %p217
      %p219 = scmp.ne.s32.totalorder %s208, %s209
      %p220 = scmp.eq.s32.totalorder %s27, 0
      %p221 = por %p219, %p220
      %p222 = scmp.ne.s32.totalorder %s208, %s209
      %p223 = scmp.eq.s32.totalorder %s28, 1
      %p224 = por %p222, %p223
      %p226 = scmp.ne.s32.totalorder %s209, %s225
      %p227 = scmp.eq.s32.totalorder %s28, 0
      %p228 = por %p226, %p227
      %p229 = scmp.le.s32.totalorder 1, %s22
      %p230 = scmp.lt.s32.totalorder %s22, 3
      %p231 = pnand %p229, %p230
      %p232 = pneg %p231
      // Predicated region
      $region9: #{tpu_custom_call.1} parent=5 // pred_check
        _
      $region10: #{tpu_custom_call.1} parent=5 // pred_check_branch
        %234 = sbr.rel (%p231) target = $region12
      $region11: #{tpu_custom_call.1} parent=5 // pred_region
        %s235 = ssub.s32 %s22, 1
        // Predicated region
        $region13: #{tpu_custom_call.1} parent=11 // pred_check
          %p236 = pneg %p69
        $region14: #{tpu_custom_call.1} parent=11 // pred_check_branch
          %238 = sbr.rel (%p236) target = $region16
        $region15: #{tpu_custom_call.1} parent=11 // pred_region
          %240 = vsyncadd [#allocation7], 0
          %s242 = sshll.u32 %s1, 4
          %s243 = int_to_ptr.hbm [resolvable:$true] %s242
          %s244 = sshll.u32 [#allocation6], 4
          %s245 = int_to_ptr.vmem [resolvable:$true] %s244
          %247 = dma.hbm_to_vmem [thread:$0]  %s243, 16, %s245, [#allocation7]
        $region16: #{tpu_custom_call.1} parent=11 // pred_fallthru
          _
        // Predicated region
        $region17: #{tpu_custom_call.1} parent=11 // pred_check
          %p248 = pneg %p90
        $region18: #{tpu_custom_call.1} parent=11 // pred_check_branch
          %250 = sbr.rel (%p248) target = $region20
        $region19: #{tpu_custom_call.1} parent=11 // pred_region
          _
        $region20: #{tpu_custom_call.1} parent=11 // pred_fallthru
          _
        // Predicated region
        $region21: #{tpu_custom_call.1} parent=11 // pred_check
          %p251 = pneg %p111
        $region22: #{tpu_custom_call.1} parent=11 // pred_check_branch
          %253 = sbr.rel (%p251) target = $region24
        $region23: #{tpu_custom_call.1} parent=11 // pred_region
          %255 = vsyncadd [#allocation7], 0
          %s256 = sshll.u32 %s3, 4
          %s257 = int_to_ptr.hbm [resolvable:$true] %s256
          %s258 = sshll.u32 [#allocation8], 4
          %s259 = int_to_ptr.vmem [resolvable:$true] %s258
          %264 = dma.hbm_to_vmem [thread:$0]  %s257, 256, %s259, [#allocation7], 64, 64, 4
        $region24: #{tpu_custom_call.1} parent=11 // pred_fallthru
          _
        // Predicated region
        $region25: #{tpu_custom_call.1} parent=11 // pred_check
          %p265 = pneg %p132
        $region26: #{tpu_custom_call.1} parent=11 // pred_check_branch
          %267 = sbr.rel (%p265) target = $region28
        $region27: #{tpu_custom_call.1} parent=11 // pred_region
          %269 = vsyncadd [#allocation10], 0
          %s270 = sshll.u32 %s4, 4
          %s271 = int_to_ptr.hbm [resolvable:$true] %s270
          %s272 = sshll.u32 [#allocation9], 4
          %s273 = int_to_ptr.vmem [resolvable:$true] %s272
          %278 = dma.hbm_to_vmem [thread:$0]  %s271, 256, %s273, [#allocation10], 64, 64, 4
        $region28: #{tpu_custom_call.1} parent=11 // pred_fallthru
          _
        // Predicated region
        $region29: #{tpu_custom_call.1} parent=11 // pred_check
          %p279 = pneg %p153
        $region30: #{tpu_custom_call.1} parent=11 // pred_check_branch
          %281 = sbr.rel (%p279) target = $region32
        $region31: #{tpu_custom_call.1} parent=11 // pred_region
          _
        $region32: #{tpu_custom_call.1} parent=11 // pred_fallthru
          _
        // Predicated region
        $region33: #{tpu_custom_call.1} parent=11 // pred_check
          %p282 = pneg %p174
        $region34: #{tpu_custom_call.1} parent=11 // pred_check_branch
          %284 = sbr.rel (%p282) target = $region36
        $region35: #{tpu_custom_call.1} parent=11 // pred_region
          %286 = vsyncadd [#allocation10], 0
          %s287 = sshll.u32 %s6, 4
          %s288 = int_to_ptr.hbm [resolvable:$true] %s287
          %s289 = sshll.u32 [#allocation11], 4
          %s290 = int_to_ptr.vmem [resolvable:$true] %s289
          %295 = dma.hbm_to_vmem [thread:$0]  %s288, 256, %s290, [#allocation10], 64, 64, 4
        $region36: #{tpu_custom_call.1} parent=11 // pred_fallthru
          _
        // Predicated region
        $region37: #{tpu_custom_call.1} parent=11 // pred_check
          %p296 = pneg %p195
        $region38: #{tpu_custom_call.1} parent=11 // pred_check_branch
          %298 = sbr.rel (%p296) target = $region40
        $region39: #{tpu_custom_call.1} parent=11 // pred_region
          _
        $region40: #{tpu_custom_call.1} parent=11 // pred_fallthru
          _
      $region12: #{tpu_custom_call.1} parent=5 // pred_fallthru
        _
      %p299 = scmp.lt.s32.totalorder %s22, 2
      // Predicated region
      $region41: #{tpu_custom_call.1} parent=5 // pred_check
        %p300 = pneg %p299
      $region42: #{tpu_custom_call.1} parent=5 // pred_check_branch
        %302 = sbr.rel (%p300) target = $region44
      $region43: #{tpu_custom_call.1} parent=5 // pred_region
        // Predicated region
        $region45: #{tpu_custom_call.1} parent=43 // pred_check
          %p303 = pneg %p42
        $region46: #{tpu_custom_call.1} parent=43 // pred_check_branch
          %305 = sbr.rel (%p303) target = $region48
        $region47: #{tpu_custom_call.1} parent=43 // pred_region
          %s306 = sand.u32 %s32, 1
          %s307 = scalar_lea.sflag [#allocation4], %s306
          %s308 = sand.u32 %s32, 1
          %s309 = smul.addr %s308, 32
          %s310 = scalar_lea.vmem [#allocation3], %s309
          %s311 = smul.u32 16, %s22
          %313 = vsyncadd %s307, 0
          %s314 = smul.addr %s311, 2
          %s315 = scalar_lea.hbm %s0, %s314
          %s316 = sshll.u32 %s315, 4
          %s317 = int_to_ptr.hbm [resolvable:$true] %s316
          %s318 = sshll.u32 %s310, 4
          %s319 = int_to_ptr.vmem [resolvable:$true] %s318
          %324 = dma.hbm_to_vmem [thread:$0]  %s317, 512, %s319, %s307, 32, 32, 2
        $region48: #{tpu_custom_call.1} parent=43 // pred_fallthru
          _
      $region44: #{tpu_custom_call.1} parent=5 // pred_fallthru
        _
      %p325 = scmp.le.s32.totalorder 1, %s22
      %p326 = scmp.lt.s32.totalorder %s22, 3
      %p327 = pnand %p325, %p326
      %p328 = pneg %p327
      // Predicated region
      $region49: #{tpu_custom_call.1} parent=5 // pred_check
        _
      $region50: #{tpu_custom_call.1} parent=5 // pred_check_branch
        %330 = sbr.rel (%p327) target = $region52
      $region51: #{tpu_custom_call.1} parent=5 // pred_region
        %s331 = ssub.s32 %s22, 1
        %s332 = sand.u32 %s35, 1
        %s333 = scalar_lea.sflag [#allocation4], %s332
        %s334 = sand.u32 %s35, 1
        %s335 = smul.addr %s334, 32
        %s336 = scalar_lea.vmem [#allocation3], %s335
        // Predicated region
        $region53: #{tpu_custom_call.1} parent=51 // pred_check
          %p337 = pneg %p48
        $region54: #{tpu_custom_call.1} parent=51 // pred_check_branch
          %339 = sbr.rel (%p337) target = $region56
        $region55: #{tpu_custom_call.1} parent=51 // pred_region
          %341 = dma.done %s333, 512
        $region56: #{tpu_custom_call.1} parent=51 // pred_fallthru
          _
        // Predicated region
        $region57: #{tpu_custom_call.1} parent=51 // pred_check
          %p342 = pneg %p69
        $region58: #{tpu_custom_call.1} parent=51 // pred_check_branch
          %344 = sbr.rel (%p342) target = $region60
        $region59: #{tpu_custom_call.1} parent=51 // pred_region
          %346 = dma.done [#allocation7], 16
        $region60: #{tpu_custom_call.1} parent=51 // pred_fallthru
          _
        // Predicated region
        $region61: #{tpu_custom_call.1} parent=51 // pred_check
          %p347 = pneg %p111
        $region62: #{tpu_custom_call.1} parent=51 // pred_check_branch
          %349 = sbr.rel (%p347) target = $region64
        $region63: #{tpu_custom_call.1} parent=51 // pred_region
          %351 = dma.done [#allocation7], 256
        $region64: #{tpu_custom_call.1} parent=51 // pred_fallthru
          _
        // Predicated region
        $region65: #{tpu_custom_call.1} parent=51 // pred_check
          %p352 = pneg %p132
        $region66: #{tpu_custom_call.1} parent=51 // pred_check_branch
          %354 = sbr.rel (%p352) target = $region68
        $region67: #{tpu_custom_call.1} parent=51 // pred_region
          %356 = dma.done [#allocation10], 256
        $region68: #{tpu_custom_call.1} parent=51 // pred_fallthru
          _
        // Predicated region
        $region69: #{tpu_custom_call.1} parent=51 // pred_check
          %p357 = pneg %p174
        $region70: #{tpu_custom_call.1} parent=51 // pred_check_branch
          %359 = sbr.rel (%p357) target = $region72
        $region71: #{tpu_custom_call.1} parent=51 // pred_region
          %361 = dma.done [#allocation10], 256
        $region72: #{tpu_custom_call.1} parent=51 // pred_fallthru
          _
        %s362 = sand.u32 %s35, 1
        %s363 = scalar_lea.sflag [#allocation4], %s362
        %s364 = sand.u32 %s35, 1
        %s365 = smul.addr %s364, 32
        %s366 = scalar_lea.vmem [#allocation3], %s365
        %p367 = pneg %p48
        %p368 = pneg %p45
        %p369 = pneg %p69
        %p370 = pneg %p66
        %p371 = pneg %p90
        %p372 = pneg %p87
        %p373 = pneg %p111
        %p374 = pneg %p108
        %p375 = pneg %p132
        %p376 = pneg %p129
        %p377 = pneg %p153
        %p378 = pneg %p150
        %p379 = pneg %p174
        %p380 = pneg %p171
        %p381 = pneg %p195
        %p382 = pneg %p192
        %p383 = pneg %p221
        %p384 = pneg %p218
        %s385 = sand.u32 %s208, 1
        %s386 = scalar_lea.sflag [#allocation5], %s385
        %s387 = sand.u32 %s208, 1
        %s388 = smul.addr %s387, 32
        %s389 = scalar_lea.vmem [#allocation12], %s388
        %s390 = smul.u32 16, %s27
        %s391 = smul.u32 16, %s27
        %v393 = vld [vmem:[%s336] sm:$0x3]
        %v394 = vld [vmem:[%s336 + $0x2] sm:$0x3]
        %v395 = vld [vmem:[%s336 + $0x4] sm:$0x3]
        %v396 = vld [vmem:[%s336 + $0x6] sm:$0x3]
        %v397 = vld [vmem:[%s336 + $0x8] sm:$0x3]
        %v398 = vld [vmem:[%s336 + $0xa] sm:$0x3]
        %v399 = vld [vmem:[%s336 + $0xc] sm:$0x3]
        %v400 = vld [vmem:[%s336 + $0xe] sm:$0x3]
        %v401 = vld [vmem:[%s336 + $0x10] sm:$0x3]
        %v402 = vld [vmem:[%s336 + $0x12] sm:$0x3]
        %v403 = vld [vmem:[%s336 + $0x14] sm:$0x3]
        %v404 = vld [vmem:[%s336 + $0x16] sm:$0x3]
        %v405 = vld [vmem:[%s336 + $0x18] sm:$0x3]
        %v406 = vld [vmem:[%s336 + $0x1a] sm:$0x3]
        %v407 = vld [vmem:[%s336 + $0x1c] sm:$0x3]
        %v408 = vld [vmem:[%s336 + $0x1e] sm:$0x3]
        %v409 = vld [vmem:[#allocation6] sm:$0x1]
        %v410 = vld [vmem:[%s2] sm:$0x1]
        %vm411 = vcmask 254976
        %v412 = vsel %vm411, %v393, 0.0
        %413 = vadd.xlane.f32.xlu0 %v412
        %v414 = vpop.xlane.xlu0 %413
        %v415 = vsel %vm411, %v394, 0.0
        %416 = vadd.xlane.f32.xlu0 %v415
        %v417 = vpop.xlane.xlu0 %416
        %v418 = vsel %vm411, %v395, 0.0
        %419 = vadd.xlane.f32.xlu0 %v418
        %v420 = vpop.xlane.xlu0 %419
        %v421 = vsel %vm411, %v396, 0.0
        %422 = vadd.xlane.f32.xlu0 %v421
        %v423 = vpop.xlane.xlu0 %422
        %v424 = vsel %vm411, %v397, 0.0
        %425 = vadd.xlane.f32.xlu0 %v424
        %v426 = vpop.xlane.xlu0 %425
        %v427 = vsel %vm411, %v398, 0.0
        %428 = vadd.xlane.f32.xlu0 %v427
        %v429 = vpop.xlane.xlu0 %428
        %v430 = vsel %vm411, %v399, 0.0
        %431 = vadd.xlane.f32.xlu0 %v430
        %v432 = vpop.xlane.xlu0 %431
        %v433 = vsel %vm411, %v400, 0.0
        %434 = vadd.xlane.f32.xlu0 %v433
        %v435 = vpop.xlane.xlu0 %434
        %v436 = vsel %vm411, %v401, 0.0
        %437 = vadd.xlane.f32.xlu0 %v436
        %v438 = vpop.xlane.xlu0 %437
        %v439 = vsel %vm411, %v402, 0.0
        %440 = vadd.xlane.f32.xlu0 %v439
        %v441 = vpop.xlane.xlu0 %440
        %v442 = vsel %vm411, %v403, 0.0
        %443 = vadd.xlane.f32.xlu0 %v442
        %v444 = vpop.xlane.xlu0 %443
        %v445 = vsel %vm411, %v404, 0.0
        %446 = vadd.xlane.f32.xlu0 %v445
        %v447 = vpop.xlane.xlu0 %446
        %v448 = vsel %vm411, %v405, 0.0
        %449 = vadd.xlane.f32.xlu0 %v448
        %v450 = vpop.xlane.xlu0 %449
        %v451 = vsel %vm411, %v406, 0.0
        %452 = vadd.xlane.f32.xlu0 %v451
        %v453 = vpop.xlane.xlu0 %452
        %v454 = vsel %vm411, %v407, 0.0
        %455 = vadd.xlane.f32.xlu0 %v454
        %v456 = vpop.xlane.xlu0 %455
        %v457 = vsel %vm411, %v408, 0.0
        %458 = vadd.xlane.f32.xlu0 %v457
        %v459 = vpop.xlane.xlu0 %458
        %v460 = vrcp.pop 32.0
        %v461 = vmul.f32 32.0, %v460
        %v462 = vsub.f32 1.0, %v461
        %v463 = vmul.f32 %v460, %v462
        %v464 = vadd.f32 %v460, %v463
        %vm465 = vweird.f32 %v460
        %v466 = vsel %vm465, %v460, %v464
        %v467 = vmul.f32 %v414, %v466
        %v468 = vmul.f32 %v417, %v466
        %v469 = vmul.f32 %v420, %v466
        %v470 = vmul.f32 %v423, %v466
        %v471 = vmul.f32 %v426, %v466
        %v472 = vmul.f32 %v429, %v466
        %v473 = vmul.f32 %v432, %v466
        %v474 = vmul.f32 %v435, %v466
        %v475 = vmul.f32 %v438, %v466
        %v476 = vmul.f32 %v441, %v466
        %v477 = vmul.f32 %v444, %v466
        %v478 = vmul.f32 %v447, %v466
        %v479 = vmul.f32 %v450, %v466
        %v480 = vmul.f32 %v453, %v466
        %v481 = vmul.f32 %v456, %v466
        %v482 = vmul.f32 %v459, %v466
        %v483 = vsub.f32 %v393, %v467
        %v484 = vsub.f32 %v394, %v468
        %v485 = vsub.f32 %v395, %v469
        %v486 = vsub.f32 %v396, %v470
        %v487 = vsub.f32 %v397, %v471
        %v488 = vsub.f32 %v398, %v472
        %v489 = vsub.f32 %v399, %v473
        %v490 = vsub.f32 %v400, %v474
        %v491 = vsub.f32 %v401, %v475
        %v492 = vsub.f32 %v402, %v476
        %v493 = vsub.f32 %v403, %v477
        %v494 = vsub.f32 %v404, %v478
        %v495 = vsub.f32 %v405, %v479
        %v496 = vsub.f32 %v406, %v480
        %v497 = vsub.f32 %v407, %v481
        %v498 = vsub.f32 %v408, %v482
        %v499 = vmul.f32 %v483, %v483
        %v500 = vmul.f32 %v484, %v484
        %v501 = vmul.f32 %v485, %v485
        %v502 = vmul.f32 %v486, %v486
        %v503 = vmul.f32 %v487, %v487
        %v504 = vmul.f32 %v488, %v488
        %v505 = vmul.f32 %v489, %v489
        %v506 = vmul.f32 %v490, %v490
        %v507 = vmul.f32 %v491, %v491
        %v508 = vmul.f32 %v492, %v492
        %v509 = vmul.f32 %v493, %v493
        %v510 = vmul.f32 %v494, %v494
        %v511 = vmul.f32 %v495, %v495
        %v512 = vmul.f32 %v496, %v496
        %v513 = vmul.f32 %v497, %v497
        %v514 = vmul.f32 %v498, %v498
        %v515 = vsel %vm411, %v499, 0.0
        %516 = vadd.xlane.f32.xlu0 %v515
        %v517 = vpop.xlane.xlu0 %516
        %v518 = vsel %vm411, %v500, 0.0
        %519 = vadd.xlane.f32.xlu0 %v518
        %v520 = vpop.xlane.xlu0 %519
        %v521 = vsel %vm411, %v501, 0.0
        %522 = vadd.xlane.f32.xlu0 %v521
        %v523 = vpop.xlane.xlu0 %522
        %v524 = vsel %vm411, %v502, 0.0
        %525 = vadd.xlane.f32.xlu0 %v524
        %v526 = vpop.xlane.xlu0 %525
        %v527 = vsel %vm411, %v503, 0.0
        %528 = vadd.xlane.f32.xlu0 %v527
        %v529 = vpop.xlane.xlu0 %528
        %v530 = vsel %vm411, %v504, 0.0
        %531 = vadd.xlane.f32.xlu0 %v530
        %v532 = vpop.xlane.xlu0 %531
        %v533 = vsel %vm411, %v505, 0.0
        %534 = vadd.xlane.f32.xlu0 %v533
        %v535 = vpop.xlane.xlu0 %534
        %v536 = vsel %vm411, %v506, 0.0
        %537 = vadd.xlane.f32.xlu0 %v536
        %v538 = vpop.xlane.xlu0 %537
        %v539 = vsel %vm411, %v507, 0.0
        %540 = vadd.xlane.f32.xlu0 %v539
        %v541 = vpop.xlane.xlu0 %540
        %v542 = vsel %vm411, %v508, 0.0
        %543 = vadd.xlane.f32.xlu0 %v542
        %v544 = vpop.xlane.xlu0 %543
        %v545 = vsel %vm411, %v509, 0.0
        %546 = vadd.xlane.f32.xlu0 %v545
        %v547 = vpop.xlane.xlu0 %546
        %v548 = vsel %vm411, %v510, 0.0
        %549 = vadd.xlane.f32.xlu0 %v548
        %v550 = vpop.xlane.xlu0 %549
        %v551 = vsel %vm411, %v511, 0.0
        %552 = vadd.xlane.f32.xlu0 %v551
        %v553 = vpop.xlane.xlu0 %552
        %v554 = vsel %vm411, %v512, 0.0
        %555 = vadd.xlane.f32.xlu0 %v554
        %v556 = vpop.xlane.xlu0 %555
        %v557 = vsel %vm411, %v513, 0.0
        %558 = vadd.xlane.f32.xlu0 %v557
        %v559 = vpop.xlane.xlu0 %558
        %v560 = vsel %vm411, %v514, 0.0
        %561 = vadd.xlane.f32.xlu0 %v560
        %v562 = vpop.xlane.xlu0 %561
        %v563 = vmul.f32 %v517, %v466
        %v564 = vmul.f32 %v520, %v466
        %v565 = vmul.f32 %v523, %v466
        %v566 = vmul.f32 %v526, %v466
        %v567 = vmul.f32 %v529, %v466
        %v568 = vmul.f32 %v532, %v466
        %v569 = vmul.f32 %v535, %v466
        %v570 = vmul.f32 %v538, %v466
        %v571 = vmul.f32 %v541, %v466
        %v572 = vmul.f32 %v544, %v466
        %v573 = vmul.f32 %v547, %v466
        %v574 = vmul.f32 %v550, %v466
        %v575 = vmul.f32 %v553, %v466
        %v576 = vmul.f32 %v556, %v466
        %v577 = vmul.f32 %v559, %v466
        %v578 = vmul.f32 %v562, %v466
        %v579 = vadd.f32 %v563, 1e-05
        %v580 = vadd.f32 %v564, 1e-05
        %v581 = vadd.f32 %v565, 1e-05
        %v582 = vadd.f32 %v566, 1e-05
        %v583 = vadd.f32 %v567, 1e-05
        %v584 = vadd.f32 %v568, 1e-05
        %v585 = vadd.f32 %v569, 1e-05
        %v586 = vadd.f32 %v570, 1e-05
        %v587 = vadd.f32 %v571, 1e-05
        %v588 = vadd.f32 %v572, 1e-05
        %v589 = vadd.f32 %v573, 1e-05
        %v590 = vadd.f32 %v574, 1e-05
        %v591 = vadd.f32 %v575, 1e-05
        %v592 = vadd.f32 %v576, 1e-05
        %v593 = vadd.f32 %v577, 1e-05
        %v594 = vadd.f32 %v578, 1e-05
        %v595 = vrsqrt.pop %v579
        %v596 = vmul.f32 %v595, %v579
        %v597 = vmul.f32 %v596, %v595
        %v598 = vmul.f32 0.5, %v597
        %v599 = vsub.f32 1.5, %v598
        %v600 = vmul.f32 %v595, %v599
        %vm601 = vweird.f32 %v579
        %vm602 = vweird.f32 %v595
        %vm603 = vmor %vm601, %vm602
        %v604 = vsel %vm603, %v595, %v600
        %v605 = vrsqrt.pop %v580
        %v606 = vmul.f32 %v605, %v580
        %v607 = vmul.f32 %v606, %v605
        %v608 = vmul.f32 0.5, %v607
        %v609 = vsub.f32 1.5, %v608
        %v610 = vmul.f32 %v605, %v609
        %vm611 = vweird.f32 %v580
        %vm612 = vweird.f32 %v605
        %vm613 = vmor %vm611, %vm612
        %v614 = vsel %vm613, %v605, %v610
        %v615 = vrsqrt.pop %v581
        %v616 = vmul.f32 %v615, %v581
        %v617 = vmul.f32 %v616, %v615
        %v618 = vmul.f32 0.5, %v617
        %v619 = vsub.f32 1.5, %v618
        %v620 = vmul.f32 %v615, %v619
        %vm621 = vweird.f32 %v581
        %vm622 = vweird.f32 %v615
        %vm623 = vmor %vm621, %vm622
        %v624 = vsel %vm623, %v615, %v620
        %v625 = vrsqrt.pop %v582
        %v626 = vmul.f32 %v625, %v582
        %v627 = vmul.f32 %v626, %v625
        %v628 = vmul.f32 0.5, %v627
        %v629 = vsub.f32 1.5, %v628
        %v630 = vmul.f32 %v625, %v629
        %vm631 = vweird.f32 %v582
        %vm632 = vweird.f32 %v625
        %vm633 = vmor %vm631, %vm632
        %v634 = vsel %vm633, %v625, %v630
        %v635 = vrsqrt.pop %v583
        %v636 = vmul.f32 %v635, %v583
        %v637 = vmul.f32 %v636, %v635
        %v638 = vmul.f32 0.5, %v637
        %v639 = vsub.f32 1.5, %v638
        %v640 = vmul.f32 %v635, %v639
        %vm641 = vweird.f32 %v583
        %vm642 = vweird.f32 %v635
        %vm643 = vmor %vm641, %vm642
        %v644 = vsel %vm643, %v635, %v640
        %v645 = vrsqrt.pop %v584
        %v646 = vmul.f32 %v645, %v584
        %v647 = vmul.f32 %v646, %v645
        %v648 = vmul.f32 0.5, %v647
        %v649 = vsub.f32 1.5, %v648
        %v650 = vmul.f32 %v645, %v649
        %vm651 = vweird.f32 %v584
        %vm652 = vweird.f32 %v645
        %vm653 = vmor %vm651, %vm652
        %v654 = vsel %vm653, %v645, %v650
        %v655 = vrsqrt.pop %v585
        %v656 = vmul.f32 %v655, %v585
        %v657 = vmul.f32 %v656, %v655
        %v658 = vmul.f32 0.5, %v657
        %v659 = vsub.f32 1.5, %v658
        %v660 = vmul.f32 %v655, %v659
        %vm661 = vweird.f32 %v585
        %vm662 = vweird.f32 %v655
        %vm663 = vmor %vm661, %vm662
        %v664 = vsel %vm663, %v655, %v660
        %v665 = vrsqrt.pop %v586
        %v666 = vmul.f32 %v665, %v586
        %v667 = vmul.f32 %v666, %v665
        %v668 = vmul.f32 0.5, %v667
        %v669 = vsub.f32 1.5, %v668
        %v670 = vmul.f32 %v665, %v669
        %vm671 = vweird.f32 %v586
        %vm672 = vweird.f32 %v665
        %vm673 = vmor %vm671, %vm672
        %v674 = vsel %vm673, %v665, %v670
        %v675 = vrsqrt.pop %v587
        %v676 = vmul.f32 %v675, %v587
        %v677 = vmul.f32 %v676, %v675
        %v678 = vmul.f32 0.5, %v677
        %v679 = vsub.f32 1.5, %v678
        %v680 = vmul.f32 %v675, %v679
        %vm681 = vweird.f32 %v587
        %vm682 = vweird.f32 %v675
        %vm683 = vmor %vm681, %vm682
        %v684 = vsel %vm683, %v675, %v680
        %v685 = vrsqrt.pop %v588
        %v686 = vmul.f32 %v685, %v588
        %v687 = vmul.f32 %v686, %v685
        %v688 = vmul.f32 0.5, %v687
        %v689 = vsub.f32 1.5, %v688
        %v690 = vmul.f32 %v685, %v689
        %vm691 = vweird.f32 %v588
        %vm692 = vweird.f32 %v685
        %vm693 = vmor %vm691, %vm692
        %v694 = vsel %vm693, %v685, %v690
        %v695 = vrsqrt.pop %v589
        %v696 = vmul.f32 %v695, %v589
        %v697 = vmul.f32 %v696, %v695
        %v698 = vmul.f32 0.5, %v697
        %v699 = vsub.f32 1.5, %v698
        %v700 = vmul.f32 %v695, %v699
        %vm701 = vweird.f32 %v589
        %vm702 = vweird.f32 %v695
        %vm703 = vmor %vm701, %vm702
        %v704 = vsel %vm703, %v695, %v700
        %v705 = vrsqrt.pop %v590
        %v706 = vmul.f32 %v705, %v590
        %v707 = vmul.f32 %v706, %v705
        %v708 = vmul.f32 0.5, %v707
        %v709 = vsub.f32 1.5, %v708
        %v710 = vmul.f32 %v705, %v709
        %vm711 = vweird.f32 %v590
        %vm712 = vweird.f32 %v705
        %vm713 = vmor %vm711, %vm712
        %v714 = vsel %vm713, %v705, %v710
        %v715 = vrsqrt.pop %v591
        %v716 = vmul.f32 %v715, %v591
        %v717 = vmul.f32 %v716, %v715
        %v718 = vmul.f32 0.5, %v717
        %v719 = vsub.f32 1.5, %v718
        %v720 = vmul.f32 %v715, %v719
        %vm721 = vweird.f32 %v591
        %vm722 = vweird.f32 %v715
        %vm723 = vmor %vm721, %vm722
        %v724 = vsel %vm723, %v715, %v720
        %v725 = vrsqrt.pop %v592
        %v726 = vmul.f32 %v725, %v592
        %v727 = vmul.f32 %v726, %v725
        %v728 = vmul.f32 0.5, %v727
        %v729 = vsub.f32 1.5, %v728
        %v730 = vmul.f32 %v725, %v729
        %vm731 = vweird.f32 %v592
        %vm732 = vweird.f32 %v725
        %vm733 = vmor %vm731, %vm732
        %v734 = vsel %vm733, %v725, %v730
        %v735 = vrsqrt.pop %v593
        %v736 = vmul.f32 %v735, %v593
        %v737 = vmul.f32 %v736, %v735
        %v738 = vmul.f32 0.5, %v737
        %v739 = vsub.f32 1.5, %v738
        %v740 = vmul.f32 %v735, %v739
        %vm741 = vweird.f32 %v593
        %vm742 = vweird.f32 %v735
        %vm743 = vmor %vm741, %vm742
        %v744 = vsel %vm743, %v735, %v740
        %v745 = vrsqrt.pop %v594
        %v746 = vmul.f32 %v745, %v594
        %v747 = vmul.f32 %v746, %v745
        %v748 = vmul.f32 0.5, %v747
        %v749 = vsub.f32 1.5, %v748
        %v750 = vmul.f32 %v745, %v749
        %vm751 = vweird.f32 %v594
        %vm752 = vweird.f32 %v745
        %vm753 = vmor %vm751, %vm752
        %v754 = vsel %vm753, %v745, %v750
        %v755 = vmul.f32 %v483, %v604
        %v756 = vmul.f32 %v484, %v614
        %v757 = vmul.f32 %v485, %v624
        %v758 = vmul.f32 %v486, %v634
        %v759 = vmul.f32 %v487, %v644
        %v760 = vmul.f32 %v488, %v654
        %v761 = vmul.f32 %v489, %v664
        %v762 = vmul.f32 %v490, %v674
        %v763 = vmul.f32 %v491, %v684
        %v764 = vmul.f32 %v492, %v694
        %v765 = vmul.f32 %v493, %v704
        %v766 = vmul.f32 %v494, %v714
        %v767 = vmul.f32 %v495, %v724
        %v768 = vmul.f32 %v496, %v734
        %v769 = vmul.f32 %v497, %v744
        %v770 = vmul.f32 %v498, %v754
        %v772 = vperm.slane %v409, 0
        %v774 = vmul.f32 %v755, %v772
        %v775 = vmul.f32 %v756, %v772
        %v776 = vmul.f32 %v757, %v772
        %v777 = vmul.f32 %v758, %v772
        %v778 = vmul.f32 %v759, %v772
        %v779 = vmul.f32 %v760, %v772
        %v780 = vmul.f32 %v761, %v772
        %v781 = vmul.f32 %v762, %v772
        %v782 = vmul.f32 %v763, %v772
        %v783 = vmul.f32 %v764, %v772
        %v784 = vmul.f32 %v765, %v772
        %v785 = vmul.f32 %v766, %v772
        %v786 = vmul.f32 %v767, %v772
        %v787 = vmul.f32 %v768, %v772
        %v788 = vmul.f32 %v769, %v772
        %v789 = vmul.f32 %v770, %v772
        %v791 = vperm.slane %v410, 0
        %v793 = vadd.f32 %v774, %v791
        %v794 = vadd.f32 %v775, %v791
        %v795 = vadd.f32 %v776, %v791
        %v796 = vadd.f32 %v777, %v791
        %v797 = vadd.f32 %v778, %v791
        %v798 = vadd.f32 %v779, %v791
        %v799 = vadd.f32 %v780, %v791
        %v800 = vadd.f32 %v781, %v791
        %v801 = vadd.f32 %v782, %v791
        %v802 = vadd.f32 %v783, %v791
        %v803 = vadd.f32 %v784, %v791
        %v804 = vadd.f32 %v785, %v791
        %v805 = vadd.f32 %v786, %v791
        %v806 = vadd.f32 %v787, %v791
        %v807 = vadd.f32 %v788, %v791
        %v808 = vadd.f32 %v789, %v791
        %v809 = vld [vmem:[#allocation8] sm:$0xf]
        %v810 = vld [vmem:[#allocation8 + $0x4] sm:$0xf]
        %v811 = vld [vmem:[#allocation8 + $0x8] sm:$0xf]
        %v812 = vld [vmem:[#allocation8 + $0xc] sm:$0xf]
        %v813 = vpack.c.bf16 %v793, %v793
        %v814 = vpack.c.bf16 %v794, %v794
        %v815 = vpack.c.bf16 %v795, %v795
        %v816 = vpack.c.bf16 %v796, %v796
        %v817 = vpack.c.bf16 %v797, %v797
        %v818 = vpack.c.bf16 %v798, %v798
        %v819 = vpack.c.bf16 %v799, %v799
        %v820 = vpack.c.bf16 %v800, %v800
        %v821 = vpack.c.bf16 %v801, %v801
        %v822 = vpack.c.bf16 %v802, %v802
        %v823 = vpack.c.bf16 %v803, %v803
        %v824 = vpack.c.bf16 %v804, %v804
        %v825 = vpack.c.bf16 %v805, %v805
        %v826 = vpack.c.bf16 %v806, %v806
        %v827 = vpack.c.bf16 %v807, %v807
        %v828 = vpack.c.bf16 %v808, %v808
        %830 = vst [vmem:[#allocation1] ss:$9 sm:$0xff] %v813
        %s832 = scalar_lea.vmem [#allocation1], 1
        %833 = vst [vmem:[%s832] ss:$9 sm:$0xff] %v814
        %s835 = scalar_lea.vmem [#allocation1], 2
        %836 = vst [vmem:[%s835] ss:$9 sm:$0xff] %v815
        %s838 = scalar_lea.vmem [#allocation1], 3
        %839 = vst [vmem:[%s838] ss:$9 sm:$0xff] %v816
        %s841 = scalar_lea.vmem [#allocation1], 4
        %842 = vst [vmem:[%s841] ss:$9 sm:$0xff] %v817
        %s844 = scalar_lea.vmem [#allocation1], 5
        %845 = vst [vmem:[%s844] ss:$9 sm:$0xff] %v818
        %s847 = scalar_lea.vmem [#allocation1], 6
        %848 = vst [vmem:[%s847] ss:$9 sm:$0xff] %v819
        %s850 = scalar_lea.vmem [#allocation1], 7
        %851 = vst [vmem:[%s850] ss:$9 sm:$0xff] %v820
        %v852 = vld [vmem:[#allocation1] sm:$0xff]
        %854 = vst [vmem:[#allocation1] ss:$9 sm:$0xff] %v821
        %856 = vst [vmem:[%s832] ss:$9 sm:$0xff] %v822
        %858 = vst [vmem:[%s835] ss:$9 sm:$0xff] %v823
        %860 = vst [vmem:[%s838] ss:$9 sm:$0xff] %v824
        %862 = vst [vmem:[%s841] ss:$9 sm:$0xff] %v825
        %864 = vst [vmem:[%s844] ss:$9 sm:$0xff] %v826
        %866 = vst [vmem:[%s847] ss:$9 sm:$0xff] %v827
        %868 = vst [vmem:[%s850] ss:$9 sm:$0xff] %v828
        %v869 = vld [vmem:[#allocation1] sm:$0xff]
        %v874 = vunpack.c.l.b16 %v809
        %v875 = vunpack.c.l.b16 %v810
        %v876 = vunpack.c.l.b16 %v811
        %v877 = vunpack.c.l.b16 %v812
        %v878 = vpack.c.b16 %v875, %v874
        %v879 = vpack.c.b16 %v877, %v876
        %vm882 = vcmask 261120
        %v883 = vsel %vm882, %v852, 0
        %v885 = vsel %vm882, %v869, 0
        %887 = vmatpush.bf16.msra.mxu0 0
        %888 = vmatpush.bf16.msra.mxu0 0
        %889 = vmatpush.bf16.msra.mxu0 0
        %890 = vmatpush.bf16.msra.mxu0 0
        %891 = vmatpush.bf16.msra.mxu0 0
        %892 = vmatpush.bf16.msra.mxu0 0
        %893 = vmatpush.bf16.msra.mxu0 %v879
        %894 = vmatpush.bf16.msra.mxu0 %v878
        %895 = vmatmul.bf16.gmra.mxu0 %v883
        %v896 = vpop.f32.mrf.mxu0
        %v897 = vadd.f32 0.0, %v896
        %v898 = vpop.f32.mrf.mxu0
        %v899 = vadd.f32 0.0, %v898
        %900 = vmatmul.bf16.gmra.mxu0 %v885
        %v901 = vpop.f32.mrf.mxu0
        %v902 = vadd.f32 0.0, %v901
        %v903 = vpop.f32.mrf.mxu0
        %v904 = vadd.f32 0.0, %v903
        %905 = vdwg.mxu0
        %v910 = vrot.slane %v897, 2
        %v911 = vrot.slane %v897, 4
        %v912 = vrot.slane %v897, 6
        %v913 = vrot.slane %v899, 2
        %v914 = vrot.slane %v899, 4
        %v915 = vrot.slane %v899, 6
        %v916 = vrot.slane %v902, 2
        %v917 = vrot.slane %v902, 4
        %v918 = vrot.slane %v902, 6
        %v919 = vrot.slane %v904, 2
        %v920 = vrot.slane %v904, 4
        %v921 = vrot.slane %v904, 6
        %v934 = vpack.c.bf16 %v897, %v897
        %v935 = vpack.c.bf16 %v910, %v910
        %v936 = vpack.c.bf16 %v911, %v911
        %v937 = vpack.c.bf16 %v912, %v912
        %v938 = vpack.c.bf16 %v899, %v899
        %v939 = vpack.c.bf16 %v913, %v913
        %v940 = vpack.c.bf16 %v914, %v914
        %v941 = vpack.c.bf16 %v915, %v915
        %v942 = vpack.c.bf16 %v902, %v902
        %v943 = vpack.c.bf16 %v916, %v916
        %v944 = vpack.c.bf16 %v917, %v917
        %v945 = vpack.c.bf16 %v918, %v918
        %v946 = vpack.c.bf16 %v904, %v904
        %v947 = vpack.c.bf16 %v919, %v919
        %v948 = vpack.c.bf16 %v920, %v920
        %v949 = vpack.c.bf16 %v921, %v921
        %v951 = vunpack.c.l.b16 %v934
        %v952 = vpack.c.b16 %v951, %v951
        %953 = vrot.lane.b32.xlu0 %v952, 96
        %v954 = vpop.permute.xlu0 %953
        %vm955 = vcmask 64512
        %v957 = vsel %vm955, %v934, 0
        %v960 = vsel %vm955, %v954, 0
        %962 = vmatpush.bf16.xpose.msra.mxu0 0
        %963 = vmatpush.bf16.xpose.msra.mxu0 0
        %964 = vmatpush.bf16.xpose.msra.mxu0 0
        %965 = vmatpush.bf16.xpose.msra.mxu0 0
        %966 = vmatpush.bf16.xpose.msra.mxu0 0
        %967 = vmatpush.bf16.xpose.msra.mxu0 0
        %968 = vmatpush.bf16.xpose.msra.mxu0 0
        %969 = vmatpush.bf16.xpose.msra.mxu0 %v960
        %970 = vmatmul.bf16.gmra.mxu0 %v957
        %v971 = vpop.f32.mrf.mxu0
        %v972 = vadd.f32 0.0, %v971
        %v973 = vpop.f32.mrf.mxu0
        %974 = vdwg.mxu0
        %v976 = vunpack.c.l.b16 %v935
        %v977 = vpack.c.b16 %v976, %v976
        %978 = vrot.lane.b32.xlu0 %v977, 96
        %v979 = vpop.permute.xlu0 %978
        %v981 = vsel %vm955, %v935, 0
        %v984 = vsel %vm955, %v979, 0
        %986 = vmatpush.bf16.xpose.msra.mxu0 0
        %987 = vmatpush.bf16.xpose.msra.mxu0 0
        %988 = vmatpush.bf16.xpose.msra.mxu0 0
        %989 = vmatpush.bf16.xpose.msra.mxu0 0
        %990 = vmatpush.bf16.xpose.msra.mxu0 0
        %991 = vmatpush.bf16.xpose.msra.mxu0 0
        %992 = vmatpush.bf16.xpose.msra.mxu0 0
        %993 = vmatpush.bf16.xpose.msra.mxu0 %v984
        %994 = vmatmul.bf16.gmra.mxu0 %v981
        %v995 = vpop.f32.mrf.mxu0
        %v996 = vadd.f32 0.0, %v995
        %v997 = vpop.f32.mrf.mxu0
        %998 = vdwg.mxu0
        %v1000 = vunpack.c.l.b16 %v936
        %v1001 = vpack.c.b16 %v1000, %v1000
        %1002 = vrot.lane.b32.xlu0 %v1001, 96
        %v1003 = vpop.permute.xlu0 %1002
        %v1005 = vsel %vm955, %v936, 0
        %v1008 = vsel %vm955, %v1003, 0
        %1010 = vmatpush.bf16.xpose.msra.mxu0 0
        %1011 = vmatpush.bf16.xpose.msra.mxu0 0
        %1012 = vmatpush.bf16.xpose.msra.mxu0 0
        %1013 = vmatpush.bf16.xpose.msra.mxu0 0
        %1014 = vmatpush.bf16.xpose.msra.mxu0 0
        %1015 = vmatpush.bf16.xpose.msra.mxu0 0
        %1016 = vmatpush.bf16.xpose.msra.mxu0 0
        %1017 = vmatpush.bf16.xpose.msra.mxu0 %v1008
        %1018 = vmatmul.bf16.gmra.mxu0 %v1005
        %v1019 = vpop.f32.mrf.mxu0
        %v1020 = vadd.f32 0.0, %v1019
        %v1021 = vpop.f32.mrf.mxu0
        %1022 = vdwg.mxu0
        %v1024 = vunpack.c.l.b16 %v937
        %v1025 = vpack.c.b16 %v1024, %v1024
        %1026 = vrot.lane.b32.xlu0 %v1025, 96
        %v1027 = vpop.permute.xlu0 %1026
        %v1029 = vsel %vm955, %v937, 0
        %v1032 = vsel %vm955, %v1027, 0
        %1034 = vmatpush.bf16.xpose.msra.mxu0 0
        %1035 = vmatpush.bf16.xpose.msra.mxu0 0
        %1036 = vmatpush.bf16.xpose.msra.mxu0 0
        %1037 = vmatpush.bf16.xpose.msra.mxu0 0
        %1038 = vmatpush.bf16.xpose.msra.mxu0 0
        %1039 = vmatpush.bf16.xpose.msra.mxu0 0
        %1040 = vmatpush.bf16.xpose.msra.mxu0 0
        %1041 = vmatpush.bf16.xpose.msra.mxu0 %v1032
        %1042 = vmatmul.bf16.gmra.mxu0 %v1029
        %v1043 = vpop.f32.mrf.mxu0
        %v1044 = vadd.f32 0.0, %v1043
        %v1045 = vpop.f32.mrf.mxu0
        %1046 = vdwg.mxu0
        %v1048 = vunpack.c.l.b16 %v938
        %v1049 = vpack.c.b16 %v1048, %v1048
        %1050 = vrot.lane.b32.xlu0 %v1049, 96
        %v1051 = vpop.permute.xlu0 %1050
        %v1053 = vsel %vm955, %v938, 0
        %v1056 = vsel %vm955, %v1051, 0
        %1058 = vmatpush.bf16.xpose.msra.mxu0 0
        %1059 = vmatpush.bf16.xpose.msra.mxu0 0
        %1060 = vmatpush.bf16.xpose.msra.mxu0 0
        %1061 = vmatpush.bf16.xpose.msra.mxu0 0
        %1062 = vmatpush.bf16.xpose.msra.mxu0 0
        %1063 = vmatpush.bf16.xpose.msra.mxu0 0
        %1064 = vmatpush.bf16.xpose.msra.mxu0 0
        %1065 = vmatpush.bf16.xpose.msra.mxu0 %v1056
        %1066 = vmatmul.bf16.gmra.mxu0 %v1053
        %v1067 = vpop.f32.mrf.mxu0
        %v1068 = vadd.f32 0.0, %v1067
        %v1069 = vpop.f32.mrf.mxu0
        %1070 = vdwg.mxu0
        %v1072 = vunpack.c.l.b16 %v939
        %v1073 = vpack.c.b16 %v1072, %v1072
        %1074 = vrot.lane.b32.xlu0 %v1073, 96
        %v1075 = vpop.permute.xlu0 %1074
        %v1077 = vsel %vm955, %v939, 0
        %v1080 = vsel %vm955, %v1075, 0
        %1082 = vmatpush.bf16.xpose.msra.mxu0 0
        %1083 = vmatpush.bf16.xpose.msra.mxu0 0
        %1084 = vmatpush.bf16.xpose.msra.mxu0 0
        %1085 = vmatpush.bf16.xpose.msra.mxu0 0
        %1086 = vmatpush.bf16.xpose.msra.mxu0 0
        %1087 = vmatpush.bf16.xpose.msra.mxu0 0
        %1088 = vmatpush.bf16.xpose.msra.mxu0 0
        %1089 = vmatpush.bf16.xpose.msra.mxu0 %v1080
        %1090 = vmatmul.bf16.gmra.mxu0 %v1077
        %v1091 = vpop.f32.mrf.mxu0
        %v1092 = vadd.f32 0.0, %v1091
        %v1093 = vpop.f32.mrf.mxu0
        %1094 = vdwg.mxu0
        %v1096 = vunpack.c.l.b16 %v940
        %v1097 = vpack.c.b16 %v1096, %v1096
        %1098 = vrot.lane.b32.xlu0 %v1097, 96
        %v1099 = vpop.permute.xlu0 %1098
        %v1101 = vsel %vm955, %v940, 0
        %v1104 = vsel %vm955, %v1099, 0
        %1106 = vmatpush.bf16.xpose.msra.mxu0 0
        %1107 = vmatpush.bf16.xpose.msra.mxu0 0
        %1108 = vmatpush.bf16.xpose.msra.mxu0 0
        %1109 = vmatpush.bf16.xpose.msra.mxu0 0
        %1110 = vmatpush.bf16.xpose.msra.mxu0 0
        %1111 = vmatpush.bf16.xpose.msra.mxu0 0
        %1112 = vmatpush.bf16.xpose.msra.mxu0 0
        %1113 = vmatpush.bf16.xpose.msra.mxu0 %v1104
        %1114 = vmatmul.bf16.gmra.mxu0 %v1101
        %v1115 = vpop.f32.mrf.mxu0
        %v1116 = vadd.f32 0.0, %v1115
        %v1117 = vpop.f32.mrf.mxu0
        %1118 = vdwg.mxu0
        %v1120 = vunpack.c.l.b16 %v941
        %v1121 = vpack.c.b16 %v1120, %v1120
        %1122 = vrot.lane.b32.xlu0 %v1121, 96
        %v1123 = vpop.permute.xlu0 %1122
        %v1125 = vsel %vm955, %v941, 0
        %v1128 = vsel %vm955, %v1123, 0
        %1130 = vmatpush.bf16.xpose.msra.mxu0 0
        %1131 = vmatpush.bf16.xpose.msra.mxu0 0
        %1132 = vmatpush.bf16.xpose.msra.mxu0 0
        %1133 = vmatpush.bf16.xpose.msra.mxu0 0
        %1134 = vmatpush.bf16.xpose.msra.mxu0 0
        %1135 = vmatpush.bf16.xpose.msra.mxu0 0
        %1136 = vmatpush.bf16.xpose.msra.mxu0 0
        %1137 = vmatpush.bf16.xpose.msra.mxu0 %v1128
        %1138 = vmatmul.bf16.gmra.mxu0 %v1125
        %v1139 = vpop.f32.mrf.mxu0
        %v1140 = vadd.f32 0.0, %v1139
        %v1141 = vpop.f32.mrf.mxu0
        %1142 = vdwg.mxu0
        %v1144 = vunpack.c.l.b16 %v942
        %v1145 = vpack.c.b16 %v1144, %v1144
        %1146 = vrot.lane.b32.xlu0 %v1145, 96
        %v1147 = vpop.permute.xlu0 %1146
        %v1149 = vsel %vm955, %v942, 0
        %v1152 = vsel %vm955, %v1147, 0
        %1154 = vmatpush.bf16.xpose.msra.mxu0 0
        %1155 = vmatpush.bf16.xpose.msra.mxu0 0
        %1156 = vmatpush.bf16.xpose.msra.mxu0 0
        %1157 = vmatpush.bf16.xpose.msra.mxu0 0
        %1158 = vmatpush.bf16.xpose.msra.mxu0 0
        %1159 = vmatpush.bf16.xpose.msra.mxu0 0
        %1160 = vmatpush.bf16.xpose.msra.mxu0 0
        %1161 = vmatpush.bf16.xpose.msra.mxu0 %v1152
        %1162 = vmatmul.bf16.gmra.mxu0 %v1149
        %v1163 = vpop.f32.mrf.mxu0
        %v1164 = vadd.f32 0.0, %v1163
        %v1165 = vpop.f32.mrf.mxu0
        %1166 = vdwg.mxu0
        %v1168 = vunpack.c.l.b16 %v943
        %v1169 = vpack.c.b16 %v1168, %v1168
        %1170 = vrot.lane.b32.xlu0 %v1169, 96
        %v1171 = vpop.permute.xlu0 %1170
        %v1173 = vsel %vm955, %v943, 0
        %v1176 = vsel %vm955, %v1171, 0
        %1178 = vmatpush.bf16.xpose.msra.mxu0 0
        %1179 = vmatpush.bf16.xpose.msra.mxu0 0
        %1180 = vmatpush.bf16.xpose.msra.mxu0 0
        %1181 = vmatpush.bf16.xpose.msra.mxu0 0
        %1182 = vmatpush.bf16.xpose.msra.mxu0 0
        %1183 = vmatpush.bf16.xpose.msra.mxu0 0
        %1184 = vmatpush.bf16.xpose.msra.mxu0 0
        %1185 = vmatpush.bf16.xpose.msra.mxu0 %v1176
        %1186 = vmatmul.bf16.gmra.mxu0 %v1173
        %v1187 = vpop.f32.mrf.mxu0
        %v1188 = vadd.f32 0.0, %v1187
        %v1189 = vpop.f32.mrf.mxu0
        %1190 = vdwg.mxu0
        %v1192 = vunpack.c.l.b16 %v944
        %v1193 = vpack.c.b16 %v1192, %v1192
        %1194 = vrot.lane.b32.xlu0 %v1193, 96
        %v1195 = vpop.permute.xlu0 %1194
        %v1197 = vsel %vm955, %v944, 0
        %v1200 = vsel %vm955, %v1195, 0
        %1202 = vmatpush.bf16.xpose.msra.mxu0 0
        %1203 = vmatpush.bf16.xpose.msra.mxu0 0
        %1204 = vmatpush.bf16.xpose.msra.mxu0 0
        %1205 = vmatpush.bf16.xpose.msra.mxu0 0
        %1206 = vmatpush.bf16.xpose.msra.mxu0 0
        %1207 = vmatpush.bf16.xpose.msra.mxu0 0
        %1208 = vmatpush.bf16.xpose.msra.mxu0 0
        %1209 = vmatpush.bf16.xpose.msra.mxu0 %v1200
        %1210 = vmatmul.bf16.gmra.mxu0 %v1197
        %v1211 = vpop.f32.mrf.mxu0
        %v1212 = vadd.f32 0.0, %v1211
        %v1213 = vpop.f32.mrf.mxu0
        %1214 = vdwg.mxu0
        %v1216 = vunpack.c.l.b16 %v945
        %v1217 = vpack.c.b16 %v1216, %v1216
        %1218 = vrot.lane.b32.xlu0 %v1217, 96
        %v1219 = vpop.permute.xlu0 %1218
        %v1221 = vsel %vm955, %v945, 0
        %v1224 = vsel %vm955, %v1219, 0
        %1226 = vmatpush.bf16.xpose.msra.mxu0 0
        %1227 = vmatpush.bf16.xpose.msra.mxu0 0
        %1228 = vmatpush.bf16.xpose.msra.mxu0 0
        %1229 = vmatpush.bf16.xpose.msra.mxu0 0
        %1230 = vmatpush.bf16.xpose.msra.mxu0 0
        %1231 = vmatpush.bf16.xpose.msra.mxu0 0
        %1232 = vmatpush.bf16.xpose.msra.mxu0 0
        %1233 = vmatpush.bf16.xpose.msra.mxu0 %v1224
        %1234 = vmatmul.bf16.gmra.mxu0 %v1221
        %v1235 = vpop.f32.mrf.mxu0
        %v1236 = vadd.f32 0.0, %v1235
        %v1237 = vpop.f32.mrf.mxu0
        %1238 = vdwg.mxu0
        %v1240 = vunpack.c.l.b16 %v946
        %v1241 = vpack.c.b16 %v1240, %v1240
        %1242 = vrot.lane.b32.xlu0 %v1241, 96
        %v1243 = vpop.permute.xlu0 %1242
        %v1245 = vsel %vm955, %v946, 0
        %v1248 = vsel %vm955, %v1243, 0
        %1250 = vmatpush.bf16.xpose.msra.mxu0 0
        %1251 = vmatpush.bf16.xpose.msra.mxu0 0
        %1252 = vmatpush.bf16.xpose.msra.mxu0 0
        %1253 = vmatpush.bf16.xpose.msra.mxu0 0
        %1254 = vmatpush.bf16.xpose.msra.mxu0 0
        %1255 = vmatpush.bf16.xpose.msra.mxu0 0
        %1256 = vmatpush.bf16.xpose.msra.mxu0 0
        %1257 = vmatpush.bf16.xpose.msra.mxu0 %v1248
        %1258 = vmatmul.bf16.gmra.mxu0 %v1245
        %v1259 = vpop.f32.mrf.mxu0
        %v1260 = vadd.f32 0.0, %v1259
        %v1261 = vpop.f32.mrf.mxu0
        %1262 = vdwg.mxu0
        %v1264 = vunpack.c.l.b16 %v947
        %v1265 = vpack.c.b16 %v1264, %v1264
        %1266 = vrot.lane.b32.xlu0 %v1265, 96
        %v1267 = vpop.permute.xlu0 %1266
        %v1269 = vsel %vm955, %v947, 0
        %v1272 = vsel %vm955, %v1267, 0
        %1274 = vmatpush.bf16.xpose.msra.mxu0 0
        %1275 = vmatpush.bf16.xpose.msra.mxu0 0
        %1276 = vmatpush.bf16.xpose.msra.mxu0 0
        %1277 = vmatpush.bf16.xpose.msra.mxu0 0
        %1278 = vmatpush.bf16.xpose.msra.mxu0 0
        %1279 = vmatpush.bf16.xpose.msra.mxu0 0
        %1280 = vmatpush.bf16.xpose.msra.mxu0 0
        %1281 = vmatpush.bf16.xpose.msra.mxu0 %v1272
        %1282 = vmatmul.bf16.gmra.mxu0 %v1269
        %v1283 = vpop.f32.mrf.mxu0
        %v1284 = vadd.f32 0.0, %v1283
        %v1285 = vpop.f32.mrf.mxu0
        %1286 = vdwg.mxu0
        %v1288 = vunpack.c.l.b16 %v948
        %v1289 = vpack.c.b16 %v1288, %v1288
        %1290 = vrot.lane.b32.xlu0 %v1289, 96
        %v1291 = vpop.permute.xlu0 %1290
        %v1293 = vsel %vm955, %v948, 0
        %v1296 = vsel %vm955, %v1291, 0
        %1298 = vmatpush.bf16.xpose.msra.mxu0 0
        %1299 = vmatpush.bf16.xpose.msra.mxu0 0
        %1300 = vmatpush.bf16.xpose.msra.mxu0 0
        %1301 = vmatpush.bf16.xpose.msra.mxu0 0
        %1302 = vmatpush.bf16.xpose.msra.mxu0 0
        %1303 = vmatpush.bf16.xpose.msra.mxu0 0
        %1304 = vmatpush.bf16.xpose.msra.mxu0 0
        %1305 = vmatpush.bf16.xpose.msra.mxu0 %v1296
        %1306 = vmatmul.bf16.gmra.mxu0 %v1293
        %v1307 = vpop.f32.mrf.mxu0
        %v1308 = vadd.f32 0.0, %v1307
        %v1309 = vpop.f32.mrf.mxu0
        %1310 = vdwg.mxu0
        %v1312 = vunpack.c.l.b16 %v949
        %v1313 = vpack.c.b16 %v1312, %v1312
        %1314 = vrot.lane.b32.xlu0 %v1313, 96
        %v1315 = vpop.permute.xlu0 %1314
        %v1317 = vsel %vm955, %v949, 0
        %v1320 = vsel %vm955, %v1315, 0
        %1322 = vmatpush.bf16.xpose.msra.mxu0 0
        %1323 = vmatpush.bf16.xpose.msra.mxu0 0
        %1324 = vmatpush.bf16.xpose.msra.mxu0 0
        %1325 = vmatpush.bf16.xpose.msra.mxu0 0
        %1326 = vmatpush.bf16.xpose.msra.mxu0 0
        %1327 = vmatpush.bf16.xpose.msra.mxu0 0
        %1328 = vmatpush.bf16.xpose.msra.mxu0 0
        %1329 = vmatpush.bf16.xpose.msra.mxu0 %v1320
        %1330 = vmatmul.bf16.gmra.mxu0 %v1317
        %v1331 = vpop.f32.mrf.mxu0
        %v1332 = vadd.f32 0.0, %v1331
        %v1333 = vpop.f32.mrf.mxu0
        %1334 = vdwg.mxu0
        %vm1335 = vcmask 9216
        %v1336 = vsel %vm1335, %v972, -inf
        %1337 = vmax.xlane.f32.xlu0 %v1336
        %v1338 = vpop.xlane.xlu0 %1337
        %v1339 = vsel %vm1335, %v996, -inf
        %1340 = vmax.xlane.f32.xlu0 %v1339
        %v1341 = vpop.xlane.xlu0 %1340
        %v1342 = vsel %vm1335, %v1020, -inf
        %1343 = vmax.xlane.f32.xlu0 %v1342
        %v1344 = vpop.xlane.xlu0 %1343
        %v1345 = vsel %vm1335, %v1044, -inf
        %1346 = vmax.xlane.f32.xlu0 %v1345
        %v1347 = vpop.xlane.xlu0 %1346
        %v1348 = vsel %vm1335, %v1068, -inf
        %1349 = vmax.xlane.f32.xlu0 %v1348
        %v1350 = vpop.xlane.xlu0 %1349
        %v1351 = vsel %vm1335, %v1092, -inf
        %1352 = vmax.xlane.f32.xlu0 %v1351
        %v1353 = vpop.xlane.xlu0 %1352
        %v1354 = vsel %vm1335, %v1116, -inf
        %1355 = vmax.xlane.f32.xlu0 %v1354
        %v1356 = vpop.xlane.xlu0 %1355
        %v1357 = vsel %vm1335, %v1140, -inf
        %1358 = vmax.xlane.f32.xlu0 %v1357
        %v1359 = vpop.xlane.xlu0 %1358
        %v1360 = vsel %vm1335, %v1164, -inf
        %1361 = vmax.xlane.f32.xlu0 %v1360
        %v1362 = vpop.xlane.xlu0 %1361
        %v1363 = vsel %vm1335, %v1188, -inf
        %1364 = vmax.xlane.f32.xlu0 %v1363
        %v1365 = vpop.xlane.xlu0 %1364
        %v1366 = vsel %vm1335, %v1212, -inf
        %1367 = vmax.xlane.f32.xlu0 %v1366
        %v1368 = vpop.xlane.xlu0 %1367
        %v1369 = vsel %vm1335, %v1236, -inf
        %1370 = vmax.xlane.f32.xlu0 %v1369
        %v1371 = vpop.xlane.xlu0 %1370
        %v1372 = vsel %vm1335, %v1260, -inf
        %1373 = vmax.xlane.f32.xlu0 %v1372
        %v1374 = vpop.xlane.xlu0 %1373
        %v1375 = vsel %vm1335, %v1284, -inf
        %1376 = vmax.xlane.f32.xlu0 %v1375
        %v1377 = vpop.xlane.xlu0 %1376
        %v1378 = vsel %vm1335, %v1308, -inf
        %1379 = vmax.xlane.f32.xlu0 %v1378
        %v1380 = vpop.xlane.xlu0 %1379
        %v1381 = vsel %vm1335, %v1332, -inf
        %1382 = vmax.xlane.f32.xlu0 %v1381
        %v1383 = vpop.xlane.xlu0 %1382
        %v1384 = vsub.f32 %v972, %v1338
        %v1385 = vsub.f32 %v996, %v1341
        %v1386 = vsub.f32 %v1020, %v1344
        %v1387 = vsub.f32 %v1044, %v1347
        %v1388 = vsub.f32 %v1068, %v1350
        %v1389 = vsub.f32 %v1092, %v1353
        %v1390 = vsub.f32 %v1116, %v1356
        %v1391 = vsub.f32 %v1140, %v1359
        %v1392 = vsub.f32 %v1164, %v1362
        %v1393 = vsub.f32 %v1188, %v1365
        %v1394 = vsub.f32 %v1212, %v1368
        %v1395 = vsub.f32 %v1236, %v1371
        %v1396 = vsub.f32 %v1260, %v1374
        %v1397 = vsub.f32 %v1284, %v1377
        %v1398 = vsub.f32 %v1308, %v1380
        %v1399 = vsub.f32 %v1332, %v1383
        %v1400 = vmul.f32 %v1384, 1.442695
        %v1401 = vpow.pop %v1400
        %v1402 = vmul.f32 %v1385, 1.442695
        %v1403 = vpow.pop %v1402
        %v1404 = vmul.f32 %v1386, 1.442695
        %v1405 = vpow.pop %v1404
        %v1406 = vmul.f32 %v1387, 1.442695
        %v1407 = vpow.pop %v1406
        %v1408 = vmul.f32 %v1388, 1.442695
        %v1409 = vpow.pop %v1408
        %v1410 = vmul.f32 %v1389, 1.442695
        %v1411 = vpow.pop %v1410
        %v1412 = vmul.f32 %v1390, 1.442695
        %v1413 = vpow.pop %v1412
        %v1414 = vmul.f32 %v1391, 1.442695
        %v1415 = vpow.pop %v1414
        %v1416 = vmul.f32 %v1392, 1.442695
        %v1417 = vpow.pop %v1416
        %v1418 = vmul.f32 %v1393, 1.442695
        %v1419 = vpow.pop %v1418
        %v1420 = vmul.f32 %v1394, 1.442695
        %v1421 = vpow.pop %v1420
        %v1422 = vmul.f32 %v1395, 1.442695
        %v1423 = vpow.pop %v1422
        %v1424 = vmul.f32 %v1396, 1.442695
        %v1425 = vpow.pop %v1424
        %v1426 = vmul.f32 %v1397, 1.442695
        %v1427 = vpow.pop %v1426
        %v1428 = vmul.f32 %v1398, 1.442695
        %v1429 = vpow.pop %v1428
        %v1430 = vmul.f32 %v1399, 1.442695
        %v1431 = vpow.pop %v1430
        %v1432 = vsel %vm1335, %v1401, 0.0
        %1433 = vadd.xlane.f32.xlu0 %v1432
        %v1434 = vpop.xlane.xlu0 %1433
        %v1435 = vsel %vm1335, %v1403, 0.0
        %1436 = vadd.xlane.f32.xlu0 %v1435
        %v1437 = vpop.xlane.xlu0 %1436
        %v1438 = vsel %vm1335, %v1405, 0.0
        %1439 = vadd.xlane.f32.xlu0 %v1438
        %v1440 = vpop.xlane.xlu0 %1439
        %v1441 = vsel %vm1335, %v1407, 0.0
        %1442 = vadd.xlane.f32.xlu0 %v1441
        %v1443 = vpop.xlane.xlu0 %1442
        %v1444 = vsel %vm1335, %v1409, 0.0
        %1445 = vadd.xlane.f32.xlu0 %v1444
        %v1446 = vpop.xlane.xlu0 %1445
        %v1447 = vsel %vm1335, %v1411, 0.0
        %1448 = vadd.xlane.f32.xlu0 %v1447
        %v1449 = vpop.xlane.xlu0 %1448
        %v1450 = vsel %vm1335, %v1413, 0.0
        %1451 = vadd.xlane.f32.xlu0 %v1450
        %v1452 = vpop.xlane.xlu0 %1451
        %v1453 = vsel %vm1335, %v1415, 0.0
        %1454 = vadd.xlane.f32.xlu0 %v1453
        %v1455 = vpop.xlane.xlu0 %1454
        %v1456 = vsel %vm1335, %v1417, 0.0
        %1457 = vadd.xlane.f32.xlu0 %v1456
        %v1458 = vpop.xlane.xlu0 %1457
        %v1459 = vsel %vm1335, %v1419, 0.0
        %1460 = vadd.xlane.f32.xlu0 %v1459
        %v1461 = vpop.xlane.xlu0 %1460
        %v1462 = vsel %vm1335, %v1421, 0.0
        %1463 = vadd.xlane.f32.xlu0 %v1462
        %v1464 = vpop.xlane.xlu0 %1463
        %v1465 = vsel %vm1335, %v1423, 0.0
        %1466 = vadd.xlane.f32.xlu0 %v1465
        %v1467 = vpop.xlane.xlu0 %1466
        %v1468 = vsel %vm1335, %v1425, 0.0
        %1469 = vadd.xlane.f32.xlu0 %v1468
        %v1470 = vpop.xlane.xlu0 %1469
        %v1471 = vsel %vm1335, %v1427, 0.0
        %1472 = vadd.xlane.f32.xlu0 %v1471
        %v1473 = vpop.xlane.xlu0 %1472
        %v1474 = vsel %vm1335, %v1429, 0.0
        %1475 = vadd.xlane.f32.xlu0 %v1474
        %v1476 = vpop.xlane.xlu0 %1475
        %v1477 = vsel %vm1335, %v1431, 0.0
        %1478 = vadd.xlane.f32.xlu0 %v1477
        %v1479 = vpop.xlane.xlu0 %1478
        %v1480 = vrcp.pop %v1434
        %v1481 = vrcp.pop %v1437
        %v1482 = vrcp.pop %v1440
        %v1483 = vrcp.pop %v1443
        %v1484 = vrcp.pop %v1446
        %v1485 = vrcp.pop %v1449
        %v1486 = vrcp.pop %v1452
        %v1487 = vrcp.pop %v1455
        %v1488 = vrcp.pop %v1458
        %v1489 = vrcp.pop %v1461
        %v1490 = vrcp.pop %v1464
        %v1491 = vrcp.pop %v1467
        %v1492 = vrcp.pop %v1470
        %v1493 = vrcp.pop %v1473
        %v1494 = vrcp.pop %v1476
        %v1495 = vrcp.pop %v1479
        %v1496 = vmul.f32 %v1401, %v1480
        %v1497 = vmul.f32 %v1403, %v1481
        %v1498 = vmul.f32 %v1405, %v1482
        %v1499 = vmul.f32 %v1407, %v1483
        %v1500 = vmul.f32 %v1409, %v1484
        %v1501 = vmul.f32 %v1411, %v1485
        %v1502 = vmul.f32 %v1413, %v1486
        %v1503 = vmul.f32 %v1415, %v1487
        %v1504 = vmul.f32 %v1417, %v1488
        %v1505 = vmul.f32 %v1419, %v1489
        %v1506 = vmul.f32 %v1421, %v1490
        %v1507 = vmul.f32 %v1423, %v1491
        %v1508 = vmul.f32 %v1425, %v1492
        %v1509 = vmul.f32 %v1427, %v1493
        %v1510 = vmul.f32 %v1429, %v1494
        %v1511 = vmul.f32 %v1431, %v1495
        %v1512 = vpack.c.bf16 %v1496, %v1496
        %v1513 = vpack.c.bf16 %v1497, %v1497
        %v1514 = vpack.c.bf16 %v1498, %v1498
        %v1515 = vpack.c.bf16 %v1499, %v1499
        %v1516 = vpack.c.bf16 %v1500, %v1500
        %v1517 = vpack.c.bf16 %v1501, %v1501
        %v1518 = vpack.c.bf16 %v1502, %v1502
        %v1519 = vpack.c.bf16 %v1503, %v1503
        %v1520 = vpack.c.bf16 %v1504, %v1504
        %v1521 = vpack.c.bf16 %v1505, %v1505
        %v1522 = vpack.c.bf16 %v1506, %v1506
        %v1523 = vpack.c.bf16 %v1507, %v1507
        %v1524 = vpack.c.bf16 %v1508, %v1508
        %v1525 = vpack.c.bf16 %v1509, %v1509
        %v1526 = vpack.c.bf16 %v1510, %v1510
        %v1527 = vpack.c.bf16 %v1511, %v1511
        %1528 = vrot.lane.b32.xlu0 %v952, 64
        %v1529 = vpop.permute.xlu0 %1528
        %vm1530 = vcmask 15360
        %v1532 = vsel %vm1530, %v1512, 0
        %vm1534 = vcmask 1040384
        %v1536 = vsel %vm1534, %v1529, 0
        %1538 = vmatpush.bf16.msra.mxu0 0
        %1539 = vmatpush.bf16.msra.mxu0 0
        %1540 = vmatpush.bf16.msra.mxu0 0
        %1541 = vmatpush.bf16.msra.mxu0 0
        %1542 = vmatpush.bf16.msra.mxu0 0
        %1543 = vmatpush.bf16.msra.mxu0 0
        %1544 = vmatpush.bf16.msra.mxu0 0
        %1545 = vmatpush.bf16.msra.mxu0 %v1536
        %1546 = vmatmul.bf16.gmra.mxu0 %v1532
        %v1547 = vpop.f32.mrf.mxu0
        %v1548 = vadd.f32 0.0, %v1547
        %v1549 = vpop.f32.mrf.mxu0
        %1550 = vdwg.mxu0
        %1551 = vrot.lane.b32.xlu0 %v977, 64
        %v1552 = vpop.permute.xlu0 %1551
        %v1554 = vsel %vm1530, %v1513, 0
        %v1557 = vsel %vm1534, %v1552, 0
        %1559 = vmatpush.bf16.msra.mxu0 0
        %1560 = vmatpush.bf16.msra.mxu0 0
        %1561 = vmatpush.bf16.msra.mxu0 0
        %1562 = vmatpush.bf16.msra.mxu0 0
        %1563 = vmatpush.bf16.msra.mxu0 0
        %1564 = vmatpush.bf16.msra.mxu0 0
        %1565 = vmatpush.bf16.msra.mxu0 0
        %1566 = vmatpush.bf16.msra.mxu0 %v1557
        %1567 = vmatmul.bf16.gmra.mxu0 %v1554
        %v1568 = vpop.f32.mrf.mxu0
        %v1569 = vadd.f32 0.0, %v1568
        %v1570 = vpop.f32.mrf.mxu0
        %1571 = vdwg.mxu0
        %1572 = vrot.lane.b32.xlu0 %v1001, 64
        %v1573 = vpop.permute.xlu0 %1572
        %v1575 = vsel %vm1530, %v1514, 0
        %v1578 = vsel %vm1534, %v1573, 0
        %1580 = vmatpush.bf16.msra.mxu0 0
        %1581 = vmatpush.bf16.msra.mxu0 0
        %1582 = vmatpush.bf16.msra.mxu0 0
        %1583 = vmatpush.bf16.msra.mxu0 0
        %1584 = vmatpush.bf16.msra.mxu0 0
        %1585 = vmatpush.bf16.msra.mxu0 0
        %1586 = vmatpush.bf16.msra.mxu0 0
        %1587 = vmatpush.bf16.msra.mxu0 %v1578
        %1588 = vmatmul.bf16.gmra.mxu0 %v1575
        %v1589 = vpop.f32.mrf.mxu0
        %v1590 = vadd.f32 0.0, %v1589
        %v1591 = vpop.f32.mrf.mxu0
        %1592 = vdwg.mxu0
        %1593 = vrot.lane.b32.xlu0 %v1025, 64
        %v1594 = vpop.permute.xlu0 %1593
        %v1596 = vsel %vm1530, %v1515, 0
        %v1599 = vsel %vm1534, %v1594, 0
        %1601 = vmatpush.bf16.msra.mxu0 0
        %1602 = vmatpush.bf16.msra.mxu0 0
        %1603 = vmatpush.bf16.msra.mxu0 0
        %1604 = vmatpush.bf16.msra.mxu0 0
        %1605 = vmatpush.bf16.msra.mxu0 0
        %1606 = vmatpush.bf16.msra.mxu0 0
        %1607 = vmatpush.bf16.msra.mxu0 0
        %1608 = vmatpush.bf16.msra.mxu0 %v1599
        %1609 = vmatmul.bf16.gmra.mxu0 %v1596
        %v1610 = vpop.f32.mrf.mxu0
        %v1611 = vadd.f32 0.0, %v1610
        %v1612 = vpop.f32.mrf.mxu0
        %1613 = vdwg.mxu0
        %1614 = vrot.lane.b32.xlu0 %v1049, 64
        %v1615 = vpop.permute.xlu0 %1614
        %v1617 = vsel %vm1530, %v1516, 0
        %v1620 = vsel %vm1534, %v1615, 0
        %1622 = vmatpush.bf16.msra.mxu0 0
        %1623 = vmatpush.bf16.msra.mxu0 0
        %1624 = vmatpush.bf16.msra.mxu0 0
        %1625 = vmatpush.bf16.msra.mxu0 0
        %1626 = vmatpush.bf16.msra.mxu0 0
        %1627 = vmatpush.bf16.msra.mxu0 0
        %1628 = vmatpush.bf16.msra.mxu0 0
        %1629 = vmatpush.bf16.msra.mxu0 %v1620
        %1630 = vmatmul.bf16.gmra.mxu0 %v1617
        %v1631 = vpop.f32.mrf.mxu0
        %v1632 = vadd.f32 0.0, %v1631
        %v1633 = vpop.f32.mrf.mxu0
        %1634 = vdwg.mxu0
        %1635 = vrot.lane.b32.xlu0 %v1073, 64
        %v1636 = vpop.permute.xlu0 %1635
        %v1638 = vsel %vm1530, %v1517, 0
        %v1641 = vsel %vm1534, %v1636, 0
        %1643 = vmatpush.bf16.msra.mxu0 0
        %1644 = vmatpush.bf16.msra.mxu0 0
        %1645 = vmatpush.bf16.msra.mxu0 0
        %1646 = vmatpush.bf16.msra.mxu0 0
        %1647 = vmatpush.bf16.msra.mxu0 0
        %1648 = vmatpush.bf16.msra.mxu0 0
        %1649 = vmatpush.bf16.msra.mxu0 0
        %1650 = vmatpush.bf16.msra.mxu0 %v1641
        %1651 = vmatmul.bf16.gmra.mxu0 %v1638
        %v1652 = vpop.f32.mrf.mxu0
        %v1653 = vadd.f32 0.0, %v1652
        %v1654 = vpop.f32.mrf.mxu0
        %1655 = vdwg.mxu0
        %1656 = vrot.lane.b32.xlu0 %v1097, 64
        %v1657 = vpop.permute.xlu0 %1656
        %v1659 = vsel %vm1530, %v1518, 0
        %v1662 = vsel %vm1534, %v1657, 0
        %1664 = vmatpush.bf16.msra.mxu0 0
        %1665 = vmatpush.bf16.msra.mxu0 0
        %1666 = vmatpush.bf16.msra.mxu0 0
        %1667 = vmatpush.bf16.msra.mxu0 0
        %1668 = vmatpush.bf16.msra.mxu0 0
        %1669 = vmatpush.bf16.msra.mxu0 0
        %1670 = vmatpush.bf16.msra.mxu0 0
        %1671 = vmatpush.bf16.msra.mxu0 %v1662
        %1672 = vmatmul.bf16.gmra.mxu0 %v1659
        %v1673 = vpop.f32.mrf.mxu0
        %v1674 = vadd.f32 0.0, %v1673
        %v1675 = vpop.f32.mrf.mxu0
        %1676 = vdwg.mxu0
        %1677 = vrot.lane.b32.xlu0 %v1121, 64
        %v1678 = vpop.permute.xlu0 %1677
        %v1680 = vsel %vm1530, %v1519, 0
        %v1683 = vsel %vm1534, %v1678, 0
        %1685 = vmatpush.bf16.msra.mxu0 0
        %1686 = vmatpush.bf16.msra.mxu0 0
        %1687 = vmatpush.bf16.msra.mxu0 0
        %1688 = vmatpush.bf16.msra.mxu0 0
        %1689 = vmatpush.bf16.msra.mxu0 0
        %1690 = vmatpush.bf16.msra.mxu0 0
        %1691 = vmatpush.bf16.msra.mxu0 0
        %1692 = vmatpush.bf16.msra.mxu0 %v1683
        %1693 = vmatmul.bf16.gmra.mxu0 %v1680
        %v1694 = vpop.f32.mrf.mxu0
        %v1695 = vadd.f32 0.0, %v1694
        %v1696 = vpop.f32.mrf.mxu0
        %1697 = vdwg.mxu0
        %1698 = vrot.lane.b32.xlu0 %v1145, 64
        %v1699 = vpop.permute.xlu0 %1698
        %v1701 = vsel %vm1530, %v1520, 0
        %v1704 = vsel %vm1534, %v1699, 0
        %1706 = vmatpush.bf16.msra.mxu0 0
        %1707 = vmatpush.bf16.msra.mxu0 0
        %1708 = vmatpush.bf16.msra.mxu0 0
        %1709 = vmatpush.bf16.msra.mxu0 0
        %1710 = vmatpush.bf16.msra.mxu0 0
        %1711 = vmatpush.bf16.msra.mxu0 0
        %1712 = vmatpush.bf16.msra.mxu0 0
        %1713 = vmatpush.bf16.msra.mxu0 %v1704
        %1714 = vmatmul.bf16.gmra.mxu0 %v1701
        %v1715 = vpop.f32.mrf.mxu0
        %v1716 = vadd.f32 0.0, %v1715
        %v1717 = vpop.f32.mrf.mxu0
        %1718 = vdwg.mxu0
        %1719 = vrot.lane.b32.xlu0 %v1169, 64
        %v1720 = vpop.permute.xlu0 %1719
        %v1722 = vsel %vm1530, %v1521, 0
        %v1725 = vsel %vm1534, %v1720, 0
        %1727 = vmatpush.bf16.msra.mxu0 0
        %1728 = vmatpush.bf16.msra.mxu0 0
        %1729 = vmatpush.bf16.msra.mxu0 0
        %1730 = vmatpush.bf16.msra.mxu0 0
        %1731 = vmatpush.bf16.msra.mxu0 0
        %1732 = vmatpush.bf16.msra.mxu0 0
        %1733 = vmatpush.bf16.msra.mxu0 0
        %1734 = vmatpush.bf16.msra.mxu0 %v1725
        %1735 = vmatmul.bf16.gmra.mxu0 %v1722
        %v1736 = vpop.f32.mrf.mxu0
        %v1737 = vadd.f32 0.0, %v1736
        %v1738 = vpop.f32.mrf.mxu0
        %1739 = vdwg.mxu0
        %1740 = vrot.lane.b32.xlu0 %v1193, 64
        %v1741 = vpop.permute.xlu0 %1740
        %v1743 = vsel %vm1530, %v1522, 0
        %v1746 = vsel %vm1534, %v1741, 0
        %1748 = vmatpush.bf16.msra.mxu0 0
        %1749 = vmatpush.bf16.msra.mxu0 0
        %1750 = vmatpush.bf16.msra.mxu0 0
        %1751 = vmatpush.bf16.msra.mxu0 0
        %1752 = vmatpush.bf16.msra.mxu0 0
        %1753 = vmatpush.bf16.msra.mxu0 0
        %1754 = vmatpush.bf16.msra.mxu0 0
        %1755 = vmatpush.bf16.msra.mxu0 %v1746
        %1756 = vmatmul.bf16.gmra.mxu0 %v1743
        %v1757 = vpop.f32.mrf.mxu0
        %v1758 = vadd.f32 0.0, %v1757
        %v1759 = vpop.f32.mrf.mxu0
        %1760 = vdwg.mxu0
        %1761 = vrot.lane.b32.xlu0 %v1217, 64
        %v1762 = vpop.permute.xlu0 %1761
        %v1764 = vsel %vm1530, %v1523, 0
        %v1767 = vsel %vm1534, %v1762, 0
        %1769 = vmatpush.bf16.msra.mxu0 0
        %1770 = vmatpush.bf16.msra.mxu0 0
        %1771 = vmatpush.bf16.msra.mxu0 0
        %1772 = vmatpush.bf16.msra.mxu0 0
        %1773 = vmatpush.bf16.msra.mxu0 0
        %1774 = vmatpush.bf16.msra.mxu0 0
        %1775 = vmatpush.bf16.msra.mxu0 0
        %1776 = vmatpush.bf16.msra.mxu0 %v1767
        %1777 = vmatmul.bf16.gmra.mxu0 %v1764
        %v1778 = vpop.f32.mrf.mxu0
        %v1779 = vadd.f32 0.0, %v1778
        %v1780 = vpop.f32.mrf.mxu0
        %1781 = vdwg.mxu0
        %1782 = vrot.lane.b32.xlu0 %v1241, 64
        %v1783 = vpop.permute.xlu0 %1782
        %v1785 = vsel %vm1530, %v1524, 0
        %v1788 = vsel %vm1534, %v1783, 0
        %1790 = vmatpush.bf16.msra.mxu0 0
        %1791 = vmatpush.bf16.msra.mxu0 0
        %1792 = vmatpush.bf16.msra.mxu0 0
        %1793 = vmatpush.bf16.msra.mxu0 0
        %1794 = vmatpush.bf16.msra.mxu0 0
        %1795 = vmatpush.bf16.msra.mxu0 0
        %1796 = vmatpush.bf16.msra.mxu0 0
        %1797 = vmatpush.bf16.msra.mxu0 %v1788
        %1798 = vmatmul.bf16.gmra.mxu0 %v1785
        %v1799 = vpop.f32.mrf.mxu0
        %v1800 = vadd.f32 0.0, %v1799
        %v1801 = vpop.f32.mrf.mxu0
        %1802 = vdwg.mxu0
        %1803 = vrot.lane.b32.xlu0 %v1265, 64
        %v1804 = vpop.permute.xlu0 %1803
        %v1806 = vsel %vm1530, %v1525, 0
        %v1809 = vsel %vm1534, %v1804, 0
        %1811 = vmatpush.bf16.msra.mxu0 0
        %1812 = vmatpush.bf16.msra.mxu0 0
        %1813 = vmatpush.bf16.msra.mxu0 0
        %1814 = vmatpush.bf16.msra.mxu0 0
        %1815 = vmatpush.bf16.msra.mxu0 0
        %1816 = vmatpush.bf16.msra.mxu0 0
        %1817 = vmatpush.bf16.msra.mxu0 0
        %1818 = vmatpush.bf16.msra.mxu0 %v1809
        %1819 = vmatmul.bf16.gmra.mxu0 %v1806
        %v1820 = vpop.f32.mrf.mxu0
        %v1821 = vadd.f32 0.0, %v1820
        %v1822 = vpop.f32.mrf.mxu0
        %1823 = vdwg.mxu0
        %1824 = vrot.lane.b32.xlu0 %v1289, 64
        %v1825 = vpop.permute.xlu0 %1824
        %v1827 = vsel %vm1530, %v1526, 0
        %v1830 = vsel %vm1534, %v1825, 0
        %1832 = vmatpush.bf16.msra.mxu0 0
        %1833 = vmatpush.bf16.msra.mxu0 0
        %1834 = vmatpush.bf16.msra.mxu0 0
        %1835 = vmatpush.bf16.msra.mxu0 0
        %1836 = vmatpush.bf16.msra.mxu0 0
        %1837 = vmatpush.bf16.msra.mxu0 0
        %1838 = vmatpush.bf16.msra.mxu0 0
        %1839 = vmatpush.bf16.msra.mxu0 %v1830
        %1840 = vmatmul.bf16.gmra.mxu0 %v1827
        %v1841 = vpop.f32.mrf.mxu0
        %v1842 = vadd.f32 0.0, %v1841
        %v1843 = vpop.f32.mrf.mxu0
        %1844 = vdwg.mxu0
        %1845 = vrot.lane.b32.xlu0 %v1313, 64
        %v1846 = vpop.permute.xlu0 %1845
        %v1848 = vsel %vm1530, %v1527, 0
        %v1851 = vsel %vm1534, %v1846, 0
        %1853 = vmatpush.bf16.msra.mxu0 0
        %1854 = vmatpush.bf16.msra.mxu0 0
        %1855 = vmatpush.bf16.msra.mxu0 0
        %1856 = vmatpush.bf16.msra.mxu0 0
        %1857 = vmatpush.bf16.msra.mxu0 0
        %1858 = vmatpush.bf16.msra.mxu0 0
        %1859 = vmatpush.bf16.msra.mxu0 0
        %1860 = vmatpush.bf16.msra.mxu0 %v1851
        %1861 = vmatmul.bf16.gmra.mxu0 %v1848
        %v1862 = vpop.f32.mrf.mxu0
        %v1863 = vadd.f32 0.0, %v1862
        %v1864 = vpop.f32.mrf.mxu0
        %1865 = vdwg.mxu0
        %vm1866 = vcmask 58368
        %1867 = vst.msk [vmem:[#allocation2] sm:$0x3] %vm1866, %v1548
        %1868 = vst.msk [vmem:[#allocation2 + $0x2] sm:$0x3] %vm1866, %v1569
        %1869 = vst.msk [vmem:[#allocation2 + $0x4] sm:$0x3] %vm1866, %v1590
        %1870 = vst.msk [vmem:[#allocation2 + $0x6] sm:$0x3] %vm1866, %v1611
        %1871 = vst.msk [vmem:[#allocation2 + $0x8] sm:$0x3] %vm1866, %v1632
        %1872 = vst.msk [vmem:[#allocation2 + $0xa] sm:$0x3] %vm1866, %v1653
        %1873 = vst.msk [vmem:[#allocation2 + $0xc] sm:$0x3] %vm1866, %v1674
        %1874 = vst.msk [vmem:[#allocation2 + $0xe] sm:$0x3] %vm1866, %v1695
        %1875 = vst.msk [vmem:[#allocation2 + $0x10] sm:$0x3] %vm1866, %v1716
        %1876 = vst.msk [vmem:[#allocation2 + $0x12] sm:$0x3] %vm1866, %v1737
        %1877 = vst.msk [vmem:[#allocation2 + $0x14] sm:$0x3] %vm1866, %v1758
        %1878 = vst.msk [vmem:[#allocation2 + $0x16] sm:$0x3] %vm1866, %v1779
        %1879 = vst.msk [vmem:[#allocation2 + $0x18] sm:$0x3] %vm1866, %v1800
        %1880 = vst.msk [vmem:[#allocation2 + $0x1a] sm:$0x3] %vm1866, %v1821
        %1881 = vst.msk [vmem:[#allocation2 + $0x1c] sm:$0x3] %vm1866, %v1842
        %1882 = vst.msk [vmem:[#allocation2 + $0x1e] sm:$0x3] %vm1866, %v1863
        %1883 = vrot.lane.b32.xlu0 %v952, 120
        %v1884 = vpop.permute.xlu0 %1883
        %1885 = vrot.lane.b32.xlu0 %v952, 88
        %v1886 = vpop.permute.xlu0 %1885
        %v1888 = vsel %vm955, %v1884, 0
        %v1891 = vsel %vm955, %v1886, 0
        %1893 = vmatpush.bf16.xpose.msra.mxu0 0
        %1894 = vmatpush.bf16.xpose.msra.mxu0 0
        %1895 = vmatpush.bf16.xpose.msra.mxu0 0
        %1896 = vmatpush.bf16.xpose.msra.mxu0 0
        %1897 = vmatpush.bf16.xpose.msra.mxu0 0
        %1898 = vmatpush.bf16.xpose.msra.mxu0 0
        %1899 = vmatpush.bf16.xpose.msra.mxu0 0
        %1900 = vmatpush.bf16.xpose.msra.mxu0 %v1891
        %1901 = vmatmul.bf16.gmra.mxu0 %v1888
        %v1902 = vpop.f32.mrf.mxu0
        %v1903 = vadd.f32 0.0, %v1902
        %v1904 = vpop.f32.mrf.mxu0
        %1905 = vdwg.mxu0
        %1906 = vrot.lane.b32.xlu0 %v977, 120
        %v1907 = vpop.permute.xlu0 %1906
        %1908 = vrot.lane.b32.xlu0 %v977, 88
        %v1909 = vpop.permute.xlu0 %1908
        %v1911 = vsel %vm955, %v1907, 0
        %v1914 = vsel %vm955, %v1909, 0
        %1916 = vmatpush.bf16.xpose.msra.mxu0 0
        %1917 = vmatpush.bf16.xpose.msra.mxu0 0
        %1918 = vmatpush.bf16.xpose.msra.mxu0 0
        %1919 = vmatpush.bf16.xpose.msra.mxu0 0
        %1920 = vmatpush.bf16.xpose.msra.mxu0 0
        %1921 = vmatpush.bf16.xpose.msra.mxu0 0
        %1922 = vmatpush.bf16.xpose.msra.mxu0 0
        %1923 = vmatpush.bf16.xpose.msra.mxu0 %v1914
        %1924 = vmatmul.bf16.gmra.mxu0 %v1911
        %v1925 = vpop.f32.mrf.mxu0
        %v1926 = vadd.f32 0.0, %v1925
        %v1927 = vpop.f32.mrf.mxu0
        %1928 = vdwg.mxu0
        %1929 = vrot.lane.b32.xlu0 %v1001, 120
        %v1930 = vpop.permute.xlu0 %1929
        %1931 = vrot.lane.b32.xlu0 %v1001, 88
        %v1932 = vpop.permute.xlu0 %1931
        %v1934 = vsel %vm955, %v1930, 0
        %v1937 = vsel %vm955, %v1932, 0
        %1939 = vmatpush.bf16.xpose.msra.mxu0 0
        %1940 = vmatpush.bf16.xpose.msra.mxu0 0
        %1941 = vmatpush.bf16.xpose.msra.mxu0 0
        %1942 = vmatpush.bf16.xpose.msra.mxu0 0
        %1943 = vmatpush.bf16.xpose.msra.mxu0 0
        %1944 = vmatpush.bf16.xpose.msra.mxu0 0
        %1945 = vmatpush.bf16.xpose.msra.mxu0 0
        %1946 = vmatpush.bf16.xpose.msra.mxu0 %v1937
        %1947 = vmatmul.bf16.gmra.mxu0 %v1934
        %v1948 = vpop.f32.mrf.mxu0
        %v1949 = vadd.f32 0.0, %v1948
        %v1950 = vpop.f32.mrf.mxu0
        %1951 = vdwg.mxu0
        %1952 = vrot.lane.b32.xlu0 %v1025, 120
        %v1953 = vpop.permute.xlu0 %1952
        %1954 = vrot.lane.b32.xlu0 %v1025, 88
        %v1955 = vpop.permute.xlu0 %1954
        %v1957 = vsel %vm955, %v1953, 0
        %v1960 = vsel %vm955, %v1955, 0
        %1962 = vmatpush.bf16.xpose.msra.mxu0 0
        %1963 = vmatpush.bf16.xpose.msra.mxu0 0
        %1964 = vmatpush.bf16.xpose.msra.mxu0 0
        %1965 = vmatpush.bf16.xpose.msra.mxu0 0
        %1966 = vmatpush.bf16.xpose.msra.mxu0 0
        %1967 = vmatpush.bf16.xpose.msra.mxu0 0
        %1968 = vmatpush.bf16.xpose.msra.mxu0 0
        %1969 = vmatpush.bf16.xpose.msra.mxu0 %v1960
        %1970 = vmatmul.bf16.gmra.mxu0 %v1957
        %v1971 = vpop.f32.mrf.mxu0
        %v1972 = vadd.f32 0.0, %v1971
        %v1973 = vpop.f32.mrf.mxu0
        %1974 = vdwg.mxu0
        %1975 = vrot.lane.b32.xlu0 %v1049, 120
        %v1976 = vpop.permute.xlu0 %1975
        %1977 = vrot.lane.b32.xlu0 %v1049, 88
        %v1978 = vpop.permute.xlu0 %1977
        %v1980 = vsel %vm955, %v1976, 0
        %v1983 = vsel %vm955, %v1978, 0
        %1985 = vmatpush.bf16.xpose.msra.mxu0 0
        %1986 = vmatpush.bf16.xpose.msra.mxu0 0
        %1987 = vmatpush.bf16.xpose.msra.mxu0 0
        %1988 = vmatpush.bf16.xpose.msra.mxu0 0
        %1989 = vmatpush.bf16.xpose.msra.mxu0 0
        %1990 = vmatpush.bf16.xpose.msra.mxu0 0
        %1991 = vmatpush.bf16.xpose.msra.mxu0 0
        %1992 = vmatpush.bf16.xpose.msra.mxu0 %v1983
        %1993 = vmatmul.bf16.gmra.mxu0 %v1980
        %v1994 = vpop.f32.mrf.mxu0
        %v1995 = vadd.f32 0.0, %v1994
        %v1996 = vpop.f32.mrf.mxu0
        %1997 = vdwg.mxu0
        %1998 = vrot.lane.b32.xlu0 %v1073, 120
        %v1999 = vpop.permute.xlu0 %1998
        %2000 = vrot.lane.b32.xlu0 %v1073, 88
        %v2001 = vpop.permute.xlu0 %2000
        %v2003 = vsel %vm955, %v1999, 0
        %v2006 = vsel %vm955, %v2001, 0
        %2008 = vmatpush.bf16.xpose.msra.mxu0 0
        %2009 = vmatpush.bf16.xpose.msra.mxu0 0
        %2010 = vmatpush.bf16.xpose.msra.mxu0 0
        %2011 = vmatpush.bf16.xpose.msra.mxu0 0
        %2012 = vmatpush.bf16.xpose.msra.mxu0 0
        %2013 = vmatpush.bf16.xpose.msra.mxu0 0
        %2014 = vmatpush.bf16.xpose.msra.mxu0 0
        %2015 = vmatpush.bf16.xpose.msra.mxu0 %v2006
        %2016 = vmatmul.bf16.gmra.mxu0 %v2003
        %v2017 = vpop.f32.mrf.mxu0
        %v2018 = vadd.f32 0.0, %v2017
        %v2019 = vpop.f32.mrf.mxu0
        %2020 = vdwg.mxu0
        %2021 = vrot.lane.b32.xlu0 %v1097, 120
        %v2022 = vpop.permute.xlu0 %2021
        %2023 = vrot.lane.b32.xlu0 %v1097, 88
        %v2024 = vpop.permute.xlu0 %2023
        %v2026 = vsel %vm955, %v2022, 0
        %v2029 = vsel %vm955, %v2024, 0
        %2031 = vmatpush.bf16.xpose.msra.mxu0 0
        %2032 = vmatpush.bf16.xpose.msra.mxu0 0
        %2033 = vmatpush.bf16.xpose.msra.mxu0 0
        %2034 = vmatpush.bf16.xpose.msra.mxu0 0
        %2035 = vmatpush.bf16.xpose.msra.mxu0 0
        %2036 = vmatpush.bf16.xpose.msra.mxu0 0
        %2037 = vmatpush.bf16.xpose.msra.mxu0 0
        %2038 = vmatpush.bf16.xpose.msra.mxu0 %v2029
        %2039 = vmatmul.bf16.gmra.mxu0 %v2026
        %v2040 = vpop.f32.mrf.mxu0
        %v2041 = vadd.f32 0.0, %v2040
        %v2042 = vpop.f32.mrf.mxu0
        %2043 = vdwg.mxu0
        %2044 = vrot.lane.b32.xlu0 %v1121, 120
        %v2045 = vpop.permute.xlu0 %2044
        %2046 = vrot.lane.b32.xlu0 %v1121, 88
        %v2047 = vpop.permute.xlu0 %2046
        %v2049 = vsel %vm955, %v2045, 0
        %v2052 = vsel %vm955, %v2047, 0
        %2054 = vmatpush.bf16.xpose.msra.mxu0 0
        %2055 = vmatpush.bf16.xpose.msra.mxu0 0
        %2056 = vmatpush.bf16.xpose.msra.mxu0 0
        %2057 = vmatpush.bf16.xpose.msra.mxu0 0
        %2058 = vmatpush.bf16.xpose.msra.mxu0 0
        %2059 = vmatpush.bf16.xpose.msra.mxu0 0
        %2060 = vmatpush.bf16.xpose.msra.mxu0 0
        %2061 = vmatpush.bf16.xpose.msra.mxu0 %v2052
        %2062 = vmatmul.bf16.gmra.mxu0 %v2049
        %v2063 = vpop.f32.mrf.mxu0
        %v2064 = vadd.f32 0.0, %v2063
        %v2065 = vpop.f32.mrf.mxu0
        %2066 = vdwg.mxu0
        %2067 = vrot.lane.b32.xlu0 %v1145, 120
        %v2068 = vpop.permute.xlu0 %2067
        %2069 = vrot.lane.b32.xlu0 %v1145, 88
        %v2070 = vpop.permute.xlu0 %2069
        %v2072 = vsel %vm955, %v2068, 0
        %v2075 = vsel %vm955, %v2070, 0
        %2077 = vmatpush.bf16.xpose.msra.mxu0 0
        %2078 = vmatpush.bf16.xpose.msra.mxu0 0
        %2079 = vmatpush.bf16.xpose.msra.mxu0 0
        %2080 = vmatpush.bf16.xpose.msra.mxu0 0
        %2081 = vmatpush.bf16.xpose.msra.mxu0 0
        %2082 = vmatpush.bf16.xpose.msra.mxu0 0
        %2083 = vmatpush.bf16.xpose.msra.mxu0 0
        %2084 = vmatpush.bf16.xpose.msra.mxu0 %v2075
        %2085 = vmatmul.bf16.gmra.mxu0 %v2072
        %v2086 = vpop.f32.mrf.mxu0
        %v2087 = vadd.f32 0.0, %v2086
        %v2088 = vpop.f32.mrf.mxu0
        %2089 = vdwg.mxu0
        %2090 = vrot.lane.b32.xlu0 %v1169, 120
        %v2091 = vpop.permute.xlu0 %2090
        %2092 = vrot.lane.b32.xlu0 %v1169, 88
        %v2093 = vpop.permute.xlu0 %2092
        %v2095 = vsel %vm955, %v2091, 0
        %v2098 = vsel %vm955, %v2093, 0
        %2100 = vmatpush.bf16.xpose.msra.mxu0 0
        %2101 = vmatpush.bf16.xpose.msra.mxu0 0
        %2102 = vmatpush.bf16.xpose.msra.mxu0 0
        %2103 = vmatpush.bf16.xpose.msra.mxu0 0
        %2104 = vmatpush.bf16.xpose.msra.mxu0 0
        %2105 = vmatpush.bf16.xpose.msra.mxu0 0
        %2106 = vmatpush.bf16.xpose.msra.mxu0 0
        %2107 = vmatpush.bf16.xpose.msra.mxu0 %v2098
        %2108 = vmatmul.bf16.gmra.mxu0 %v2095
        %v2109 = vpop.f32.mrf.mxu0
        %v2110 = vadd.f32 0.0, %v2109
        %v2111 = vpop.f32.mrf.mxu0
        %2112 = vdwg.mxu0
        %2113 = vrot.lane.b32.xlu0 %v1193, 120
        %v2114 = vpop.permute.xlu0 %2113
        %2115 = vrot.lane.b32.xlu0 %v1193, 88
        %v2116 = vpop.permute.xlu0 %2115
        %v2118 = vsel %vm955, %v2114, 0
        %v2121 = vsel %vm955, %v2116, 0
        %2123 = vmatpush.bf16.xpose.msra.mxu0 0
        %2124 = vmatpush.bf16.xpose.msra.mxu0 0
        %2125 = vmatpush.bf16.xpose.msra.mxu0 0
        %2126 = vmatpush.bf16.xpose.msra.mxu0 0
        %2127 = vmatpush.bf16.xpose.msra.mxu0 0
        %2128 = vmatpush.bf16.xpose.msra.mxu0 0
        %2129 = vmatpush.bf16.xpose.msra.mxu0 0
        %2130 = vmatpush.bf16.xpose.msra.mxu0 %v2121
        %2131 = vmatmul.bf16.gmra.mxu0 %v2118
        %v2132 = vpop.f32.mrf.mxu0
        %v2133 = vadd.f32 0.0, %v2132
        %v2134 = vpop.f32.mrf.mxu0
        %2135 = vdwg.mxu0
        %2136 = vrot.lane.b32.xlu0 %v1217, 120
        %v2137 = vpop.permute.xlu0 %2136
        %2138 = vrot.lane.b32.xlu0 %v1217, 88
        %v2139 = vpop.permute.xlu0 %2138
        %v2141 = vsel %vm955, %v2137, 0
        %v2144 = vsel %vm955, %v2139, 0
        %2146 = vmatpush.bf16.xpose.msra.mxu0 0
        %2147 = vmatpush.bf16.xpose.msra.mxu0 0
        %2148 = vmatpush.bf16.xpose.msra.mxu0 0
        %2149 = vmatpush.bf16.xpose.msra.mxu0 0
        %2150 = vmatpush.bf16.xpose.msra.mxu0 0
        %2151 = vmatpush.bf16.xpose.msra.mxu0 0
        %2152 = vmatpush.bf16.xpose.msra.mxu0 0
        %2153 = vmatpush.bf16.xpose.msra.mxu0 %v2144
        %2154 = vmatmul.bf16.gmra.mxu0 %v2141
        %v2155 = vpop.f32.mrf.mxu0
        %v2156 = vadd.f32 0.0, %v2155
        %v2157 = vpop.f32.mrf.mxu0
        %2158 = vdwg.mxu0
        %2159 = vrot.lane.b32.xlu0 %v1241, 120
        %v2160 = vpop.permute.xlu0 %2159
        %2161 = vrot.lane.b32.xlu0 %v1241, 88
        %v2162 = vpop.permute.xlu0 %2161
        %v2164 = vsel %vm955, %v2160, 0
        %v2167 = vsel %vm955, %v2162, 0
        %2169 = vmatpush.bf16.xpose.msra.mxu0 0
        %2170 = vmatpush.bf16.xpose.msra.mxu0 0
        %2171 = vmatpush.bf16.xpose.msra.mxu0 0
        %2172 = vmatpush.bf16.xpose.msra.mxu0 0
        %2173 = vmatpush.bf16.xpose.msra.mxu0 0
        %2174 = vmatpush.bf16.xpose.msra.mxu0 0
        %2175 = vmatpush.bf16.xpose.msra.mxu0 0
        %2176 = vmatpush.bf16.xpose.msra.mxu0 %v2167
        %2177 = vmatmul.bf16.gmra.mxu0 %v2164
        %v2178 = vpop.f32.mrf.mxu0
        %v2179 = vadd.f32 0.0, %v2178
        %v2180 = vpop.f32.mrf.mxu0
        %2181 = vdwg.mxu0
        %2182 = vrot.lane.b32.xlu0 %v1265, 120
        %v2183 = vpop.permute.xlu0 %2182
        %2184 = vrot.lane.b32.xlu0 %v1265, 88
        %v2185 = vpop.permute.xlu0 %2184
        %v2187 = vsel %vm955, %v2183, 0
        %v2190 = vsel %vm955, %v2185, 0
        %2192 = vmatpush.bf16.xpose.msra.mxu0 0
        %2193 = vmatpush.bf16.xpose.msra.mxu0 0
        %2194 = vmatpush.bf16.xpose.msra.mxu0 0
        %2195 = vmatpush.bf16.xpose.msra.mxu0 0
        %2196 = vmatpush.bf16.xpose.msra.mxu0 0
        %2197 = vmatpush.bf16.xpose.msra.mxu0 0
        %2198 = vmatpush.bf16.xpose.msra.mxu0 0
        %2199 = vmatpush.bf16.xpose.msra.mxu0 %v2190
        %2200 = vmatmul.bf16.gmra.mxu0 %v2187
        %v2201 = vpop.f32.mrf.mxu0
        %v2202 = vadd.f32 0.0, %v2201
        %v2203 = vpop.f32.mrf.mxu0
        %2204 = vdwg.mxu0
        %2205 = vrot.lane.b32.xlu0 %v1289, 120
        %v2206 = vpop.permute.xlu0 %2205
        %2207 = vrot.lane.b32.xlu0 %v1289, 88
        %v2208 = vpop.permute.xlu0 %2207
        %v2210 = vsel %vm955, %v2206, 0
        %v2213 = vsel %vm955, %v2208, 0
        %2215 = vmatpush.bf16.xpose.msra.mxu0 0
        %2216 = vmatpush.bf16.xpose.msra.mxu0 0
        %2217 = vmatpush.bf16.xpose.msra.mxu0 0
        %2218 = vmatpush.bf16.xpose.msra.mxu0 0
        %2219 = vmatpush.bf16.xpose.msra.mxu0 0
        %2220 = vmatpush.bf16.xpose.msra.mxu0 0
        %2221 = vmatpush.bf16.xpose.msra.mxu0 0
        %2222 = vmatpush.bf16.xpose.msra.mxu0 %v2213
        %2223 = vmatmul.bf16.gmra.mxu0 %v2210
        %v2224 = vpop.f32.mrf.mxu0
        %v2225 = vadd.f32 0.0, %v2224
        %v2226 = vpop.f32.mrf.mxu0
        %2227 = vdwg.mxu0
        %2228 = vrot.lane.b32.xlu0 %v1313, 120
        %v2229 = vpop.permute.xlu0 %2228
        %2230 = vrot.lane.b32.xlu0 %v1313, 88
        %v2231 = vpop.permute.xlu0 %2230
        %v2233 = vsel %vm955, %v2229, 0
        %v2236 = vsel %vm955, %v2231, 0
        %2238 = vmatpush.bf16.xpose.msra.mxu0 0
        %2239 = vmatpush.bf16.xpose.msra.mxu0 0
        %2240 = vmatpush.bf16.xpose.msra.mxu0 0
        %2241 = vmatpush.bf16.xpose.msra.mxu0 0
        %2242 = vmatpush.bf16.xpose.msra.mxu0 0
        %2243 = vmatpush.bf16.xpose.msra.mxu0 0
        %2244 = vmatpush.bf16.xpose.msra.mxu0 0
        %2245 = vmatpush.bf16.xpose.msra.mxu0 %v2236
        %2246 = vmatmul.bf16.gmra.mxu0 %v2233
        %v2247 = vpop.f32.mrf.mxu0
        %v2248 = vadd.f32 0.0, %v2247
        %v2249 = vpop.f32.mrf.mxu0
        %2250 = vdwg.mxu0
        %v2251 = vsel %vm1335, %v1903, -inf
        %2252 = vmax.xlane.f32.xlu0 %v2251
        %v2253 = vpop.xlane.xlu0 %2252
        %v2254 = vsel %vm1335, %v1926, -inf
        %2255 = vmax.xlane.f32.xlu0 %v2254
        %v2256 = vpop.xlane.xlu0 %2255
        %v2257 = vsel %vm1335, %v1949, -inf
        %2258 = vmax.xlane.f32.xlu0 %v2257
        %v2259 = vpop.xlane.xlu0 %2258
        %v2260 = vsel %vm1335, %v1972, -inf
        %2261 = vmax.xlane.f32.xlu0 %v2260
        %v2262 = vpop.xlane.xlu0 %2261
        %v2263 = vsel %vm1335, %v1995, -inf
        %2264 = vmax.xlane.f32.xlu0 %v2263
        %v2265 = vpop.xlane.xlu0 %2264
        %v2266 = vsel %vm1335, %v2018, -inf
        %2267 = vmax.xlane.f32.xlu0 %v2266
        %v2268 = vpop.xlane.xlu0 %2267
        %v2269 = vsel %vm1335, %v2041, -inf
        %2270 = vmax.xlane.f32.xlu0 %v2269
        %v2271 = vpop.xlane.xlu0 %2270
        %v2272 = vsel %vm1335, %v2064, -inf
        %2273 = vmax.xlane.f32.xlu0 %v2272
        %v2274 = vpop.xlane.xlu0 %2273
        %v2275 = vsel %vm1335, %v2087, -inf
        %2276 = vmax.xlane.f32.xlu0 %v2275
        %v2277 = vpop.xlane.xlu0 %2276
        %v2278 = vsel %vm1335, %v2110, -inf
        %2279 = vmax.xlane.f32.xlu0 %v2278
        %v2280 = vpop.xlane.xlu0 %2279
        %v2281 = vsel %vm1335, %v2133, -inf
        %2282 = vmax.xlane.f32.xlu0 %v2281
        %v2283 = vpop.xlane.xlu0 %2282
        %v2284 = vsel %vm1335, %v2156, -inf
        %2285 = vmax.xlane.f32.xlu0 %v2284
        %v2286 = vpop.xlane.xlu0 %2285
        %v2287 = vsel %vm1335, %v2179, -inf
        %2288 = vmax.xlane.f32.xlu0 %v2287
        %v2289 = vpop.xlane.xlu0 %2288
        %v2290 = vsel %vm1335, %v2202, -inf
        %2291 = vmax.xlane.f32.xlu0 %v2290
        %v2292 = vpop.xlane.xlu0 %2291
        %v2293 = vsel %vm1335, %v2225, -inf
        %2294 = vmax.xlane.f32.xlu0 %v2293
        %v2295 = vpop.xlane.xlu0 %2294
        %v2296 = vsel %vm1335, %v2248, -inf
        %2297 = vmax.xlane.f32.xlu0 %v2296
        %v2298 = vpop.xlane.xlu0 %2297
        %v2299 = vsub.f32 %v1903, %v2253
        %v2300 = vsub.f32 %v1926, %v2256
        %v2301 = vsub.f32 %v1949, %v2259
        %v2302 = vsub.f32 %v1972, %v2262
        %v2303 = vsub.f32 %v1995, %v2265
        %v2304 = vsub.f32 %v2018, %v2268
        %v2305 = vsub.f32 %v2041, %v2271
        %v2306 = vsub.f32 %v2064, %v2274
        %v2307 = vsub.f32 %v2087, %v2277
        %v2308 = vsub.f32 %v2110, %v2280
        %v2309 = vsub.f32 %v2133, %v2283
        %v2310 = vsub.f32 %v2156, %v2286
        %v2311 = vsub.f32 %v2179, %v2289
        %v2312 = vsub.f32 %v2202, %v2292
        %v2313 = vsub.f32 %v2225, %v2295
        %v2314 = vsub.f32 %v2248, %v2298
        %v2315 = vmul.f32 %v2299, 1.442695
        %v2316 = vpow.pop %v2315
        %v2317 = vmul.f32 %v2300, 1.442695
        %v2318 = vpow.pop %v2317
        %v2319 = vmul.f32 %v2301, 1.442695
        %v2320 = vpow.pop %v2319
        %v2321 = vmul.f32 %v2302, 1.442695
        %v2322 = vpow.pop %v2321
        %v2323 = vmul.f32 %v2303, 1.442695
        %v2324 = vpow.pop %v2323
        %v2325 = vmul.f32 %v2304, 1.442695
        %v2326 = vpow.pop %v2325
        %v2327 = vmul.f32 %v2305, 1.442695
        %v2328 = vpow.pop %v2327
        %v2329 = vmul.f32 %v2306, 1.442695
        %v2330 = vpow.pop %v2329
        %v2331 = vmul.f32 %v2307, 1.442695
        %v2332 = vpow.pop %v2331
        %v2333 = vmul.f32 %v2308, 1.442695
        %v2334 = vpow.pop %v2333
        %v2335 = vmul.f32 %v2309, 1.442695
        %v2336 = vpow.pop %v2335
        %v2337 = vmul.f32 %v2310, 1.442695
        %v2338 = vpow.pop %v2337
        %v2339 = vmul.f32 %v2311, 1.442695
        %v2340 = vpow.pop %v2339
        %v2341 = vmul.f32 %v2312, 1.442695
        %v2342 = vpow.pop %v2341
        %v2343 = vmul.f32 %v2313, 1.442695
        %v2344 = vpow.pop %v2343
        %v2345 = vmul.f32 %v2314, 1.442695
        %v2346 = vpow.pop %v2345
        %v2347 = vsel %vm1335, %v2316, 0.0
        %2348 = vadd.xlane.f32.xlu0 %v2347
        %v2349 = vpop.xlane.xlu0 %2348
        %v2350 = vsel %vm1335, %v2318, 0.0
        %2351 = vadd.xlane.f32.xlu0 %v2350
        %v2352 = vpop.xlane.xlu0 %2351
        %v2353 = vsel %vm1335, %v2320, 0.0
        %2354 = vadd.xlane.f32.xlu0 %v2353
        %v2355 = vpop.xlane.xlu0 %2354
        %v2356 = vsel %vm1335, %v2322, 0.0
        %2357 = vadd.xlane.f32.xlu0 %v2356
        %v2358 = vpop.xlane.xlu0 %2357
        %v2359 = vsel %vm1335, %v2324, 0.0
        %2360 = vadd.xlane.f32.xlu0 %v2359
        %v2361 = vpop.xlane.xlu0 %2360
        %v2362 = vsel %vm1335, %v2326, 0.0
        %2363 = vadd.xlane.f32.xlu0 %v2362
        %v2364 = vpop.xlane.xlu0 %2363
        %v2365 = vsel %vm1335, %v2328, 0.0
        %2366 = vadd.xlane.f32.xlu0 %v2365
        %v2367 = vpop.xlane.xlu0 %2366
        %v2368 = vsel %vm1335, %v2330, 0.0
        %2369 = vadd.xlane.f32.xlu0 %v2368
        %v2370 = vpop.xlane.xlu0 %2369
        %v2371 = vsel %vm1335, %v2332, 0.0
        %2372 = vadd.xlane.f32.xlu0 %v2371
        %v2373 = vpop.xlane.xlu0 %2372
        %v2374 = vsel %vm1335, %v2334, 0.0
        %2375 = vadd.xlane.f32.xlu0 %v2374
        %v2376 = vpop.xlane.xlu0 %2375
        %v2377 = vsel %vm1335, %v2336, 0.0
        %2378 = vadd.xlane.f32.xlu0 %v2377
        %v2379 = vpop.xlane.xlu0 %2378
        %v2380 = vsel %vm1335, %v2338, 0.0
        %2381 = vadd.xlane.f32.xlu0 %v2380
        %v2382 = vpop.xlane.xlu0 %2381
        %v2383 = vsel %vm1335, %v2340, 0.0
        %2384 = vadd.xlane.f32.xlu0 %v2383
        %v2385 = vpop.xlane.xlu0 %2384
        %v2386 = vsel %vm1335, %v2342, 0.0
        %2387 = vadd.xlane.f32.xlu0 %v2386
        %v2388 = vpop.xlane.xlu0 %2387
        %v2389 = vsel %vm1335, %v2344, 0.0
        %2390 = vadd.xlane.f32.xlu0 %v2389
        %v2391 = vpop.xlane.xlu0 %2390
        %v2392 = vsel %vm1335, %v2346, 0.0
        %2393 = vadd.xlane.f32.xlu0 %v2392
        %v2394 = vpop.xlane.xlu0 %2393
        %v2395 = vrcp.pop %v2349
        %v2396 = vrcp.pop %v2352
        %v2397 = vrcp.pop %v2355
        %v2398 = vrcp.pop %v2358
        %v2399 = vrcp.pop %v2361
        %v2400 = vrcp.pop %v2364
        %v2401 = vrcp.pop %v2367
        %v2402 = vrcp.pop %v2370
        %v2403 = vrcp.pop %v2373
        %v2404 = vrcp.pop %v2376
        %v2405 = vrcp.pop %v2379
        %v2406 = vrcp.pop %v2382
        %v2407 = vrcp.pop %v2385
        %v2408 = vrcp.pop %v2388
        %v2409 = vrcp.pop %v2391
        %v2410 = vrcp.pop %v2394
        %v2411 = vmul.f32 %v2316, %v2395
        %v2412 = vmul.f32 %v2318, %v2396
        %v2413 = vmul.f32 %v2320, %v2397
        %v2414 = vmul.f32 %v2322, %v2398
        %v2415 = vmul.f32 %v2324, %v2399
        %v2416 = vmul.f32 %v2326, %v2400
        %v2417 = vmul.f32 %v2328, %v2401
        %v2418 = vmul.f32 %v2330, %v2402
        %v2419 = vmul.f32 %v2332, %v2403
        %v2420 = vmul.f32 %v2334, %v2404
        %v2421 = vmul.f32 %v2336, %v2405
        %v2422 = vmul.f32 %v2338, %v2406
        %v2423 = vmul.f32 %v2340, %v2407
        %v2424 = vmul.f32 %v2342, %v2408
        %v2425 = vmul.f32 %v2344, %v2409
        %v2426 = vmul.f32 %v2346, %v2410
        %v2427 = vpack.c.bf16 %v2411, %v2411
        %v2428 = vpack.c.bf16 %v2412, %v2412
        %v2429 = vpack.c.bf16 %v2413, %v2413
        %v2430 = vpack.c.bf16 %v2414, %v2414
        %v2431 = vpack.c.bf16 %v2415, %v2415
        %v2432 = vpack.c.bf16 %v2416, %v2416
        %v2433 = vpack.c.bf16 %v2417, %v2417
        %v2434 = vpack.c.bf16 %v2418, %v2418
        %v2435 = vpack.c.bf16 %v2419, %v2419
        %v2436 = vpack.c.bf16 %v2420, %v2420
        %v2437 = vpack.c.bf16 %v2421, %v2421
        %v2438 = vpack.c.bf16 %v2422, %v2422
        %v2439 = vpack.c.bf16 %v2423, %v2423
        %v2440 = vpack.c.bf16 %v2424, %v2424
        %v2441 = vpack.c.bf16 %v2425, %v2425
        %v2442 = vpack.c.bf16 %v2426, %v2426
        %2443 = vrot.lane.b32.xlu0 %v952, 56
        %v2444 = vpop.permute.xlu0 %2443
        %v2446 = vsel %vm1530, %v2427, 0
        %v2449 = vsel %vm1534, %v2444, 0
        %2451 = vmatpush.bf16.msra.mxu0 0
        %2452 = vmatpush.bf16.msra.mxu0 0
        %2453 = vmatpush.bf16.msra.mxu0 0
        %2454 = vmatpush.bf16.msra.mxu0 0
        %2455 = vmatpush.bf16.msra.mxu0 0
        %2456 = vmatpush.bf16.msra.mxu0 0
        %2457 = vmatpush.bf16.msra.mxu0 0
        %2458 = vmatpush.bf16.msra.mxu0 %v2449
        %2459 = vmatmul.bf16.gmra.mxu0 %v2446
        %v2460 = vpop.f32.mrf.mxu0
        %v2461 = vadd.f32 0.0, %v2460
        %v2462 = vpop.f32.mrf.mxu0
        %2463 = vdwg.mxu0
        %2464 = vrot.lane.b32.xlu0 %v977, 56
        %v2465 = vpop.permute.xlu0 %2464
        %v2467 = vsel %vm1530, %v2428, 0
        %v2470 = vsel %vm1534, %v2465, 0
        %2472 = vmatpush.bf16.msra.mxu0 0
        %2473 = vmatpush.bf16.msra.mxu0 0
        %2474 = vmatpush.bf16.msra.mxu0 0
        %2475 = vmatpush.bf16.msra.mxu0 0
        %2476 = vmatpush.bf16.msra.mxu0 0
        %2477 = vmatpush.bf16.msra.mxu0 0
        %2478 = vmatpush.bf16.msra.mxu0 0
        %2479 = vmatpush.bf16.msra.mxu0 %v2470
        %2480 = vmatmul.bf16.gmra.mxu0 %v2467
        %v2481 = vpop.f32.mrf.mxu0
        %v2482 = vadd.f32 0.0, %v2481
        %v2483 = vpop.f32.mrf.mxu0
        %2484 = vdwg.mxu0
        %2485 = vrot.lane.b32.xlu0 %v1001, 56
        %v2486 = vpop.permute.xlu0 %2485
        %v2488 = vsel %vm1530, %v2429, 0
        %v2491 = vsel %vm1534, %v2486, 0
        %2493 = vmatpush.bf16.msra.mxu0 0
        %2494 = vmatpush.bf16.msra.mxu0 0
        %2495 = vmatpush.bf16.msra.mxu0 0
        %2496 = vmatpush.bf16.msra.mxu0 0
        %2497 = vmatpush.bf16.msra.mxu0 0
        %2498 = vmatpush.bf16.msra.mxu0 0
        %2499 = vmatpush.bf16.msra.mxu0 0
        %2500 = vmatpush.bf16.msra.mxu0 %v2491
        %2501 = vmatmul.bf16.gmra.mxu0 %v2488
        %v2502 = vpop.f32.mrf.mxu0
        %v2503 = vadd.f32 0.0, %v2502
        %v2504 = vpop.f32.mrf.mxu0
        %2505 = vdwg.mxu0
        %2506 = vrot.lane.b32.xlu0 %v1025, 56
        %v2507 = vpop.permute.xlu0 %2506
        %v2509 = vsel %vm1530, %v2430, 0
        %v2512 = vsel %vm1534, %v2507, 0
        %2514 = vmatpush.bf16.msra.mxu0 0
        %2515 = vmatpush.bf16.msra.mxu0 0
        %2516 = vmatpush.bf16.msra.mxu0 0
        %2517 = vmatpush.bf16.msra.mxu0 0
        %2518 = vmatpush.bf16.msra.mxu0 0
        %2519 = vmatpush.bf16.msra.mxu0 0
        %2520 = vmatpush.bf16.msra.mxu0 0
        %2521 = vmatpush.bf16.msra.mxu0 %v2512
        %2522 = vmatmul.bf16.gmra.mxu0 %v2509
        %v2523 = vpop.f32.mrf.mxu0
        %v2524 = vadd.f32 0.0, %v2523
        %v2525 = vpop.f32.mrf.mxu0
        %2526 = vdwg.mxu0
        %2527 = vrot.lane.b32.xlu0 %v1049, 56
        %v2528 = vpop.permute.xlu0 %2527
        %v2530 = vsel %vm1530, %v2431, 0
        %v2533 = vsel %vm1534, %v2528, 0
        %2535 = vmatpush.bf16.msra.mxu0 0
        %2536 = vmatpush.bf16.msra.mxu0 0
        %2537 = vmatpush.bf16.msra.mxu0 0
        %2538 = vmatpush.bf16.msra.mxu0 0
        %2539 = vmatpush.bf16.msra.mxu0 0
        %2540 = vmatpush.bf16.msra.mxu0 0
        %2541 = vmatpush.bf16.msra.mxu0 0
        %2542 = vmatpush.bf16.msra.mxu0 %v2533
        %2543 = vmatmul.bf16.gmra.mxu0 %v2530
        %v2544 = vpop.f32.mrf.mxu0
        %v2545 = vadd.f32 0.0, %v2544
        %v2546 = vpop.f32.mrf.mxu0
        %2547 = vdwg.mxu0
        %2548 = vrot.lane.b32.xlu0 %v1073, 56
        %v2549 = vpop.permute.xlu0 %2548
        %v2551 = vsel %vm1530, %v2432, 0
        %v2554 = vsel %vm1534, %v2549, 0
        %2556 = vmatpush.bf16.msra.mxu0 0
        %2557 = vmatpush.bf16.msra.mxu0 0
        %2558 = vmatpush.bf16.msra.mxu0 0
        %2559 = vmatpush.bf16.msra.mxu0 0
        %2560 = vmatpush.bf16.msra.mxu0 0
        %2561 = vmatpush.bf16.msra.mxu0 0
        %2562 = vmatpush.bf16.msra.mxu0 0
        %2563 = vmatpush.bf16.msra.mxu0 %v2554
        %2564 = vmatmul.bf16.gmra.mxu0 %v2551
        %v2565 = vpop.f32.mrf.mxu0
        %v2566 = vadd.f32 0.0, %v2565
        %v2567 = vpop.f32.mrf.mxu0
        %2568 = vdwg.mxu0
        %2569 = vrot.lane.b32.xlu0 %v1097, 56
        %v2570 = vpop.permute.xlu0 %2569
        %v2572 = vsel %vm1530, %v2433, 0
        %v2575 = vsel %vm1534, %v2570, 0
        %2577 = vmatpush.bf16.msra.mxu0 0
        %2578 = vmatpush.bf16.msra.mxu0 0
        %2579 = vmatpush.bf16.msra.mxu0 0
        %2580 = vmatpush.bf16.msra.mxu0 0
        %2581 = vmatpush.bf16.msra.mxu0 0
        %2582 = vmatpush.bf16.msra.mxu0 0
        %2583 = vmatpush.bf16.msra.mxu0 0
        %2584 = vmatpush.bf16.msra.mxu0 %v2575
        %2585 = vmatmul.bf16.gmra.mxu0 %v2572
        %v2586 = vpop.f32.mrf.mxu0
        %v2587 = vadd.f32 0.0, %v2586
        %v2588 = vpop.f32.mrf.mxu0
        %2589 = vdwg.mxu0
        %2590 = vrot.lane.b32.xlu0 %v1121, 56
        %v2591 = vpop.permute.xlu0 %2590
        %v2593 = vsel %vm1530, %v2434, 0
        %v2596 = vsel %vm1534, %v2591, 0
        %2598 = vmatpush.bf16.msra.mxu0 0
        %2599 = vmatpush.bf16.msra.mxu0 0
        %2600 = vmatpush.bf16.msra.mxu0 0
        %2601 = vmatpush.bf16.msra.mxu0 0
        %2602 = vmatpush.bf16.msra.mxu0 0
        %2603 = vmatpush.bf16.msra.mxu0 0
        %2604 = vmatpush.bf16.msra.mxu0 0
        %2605 = vmatpush.bf16.msra.mxu0 %v2596
        %2606 = vmatmul.bf16.gmra.mxu0 %v2593
        %v2607 = vpop.f32.mrf.mxu0
        %v2608 = vadd.f32 0.0, %v2607
        %v2609 = vpop.f32.mrf.mxu0
        %2610 = vdwg.mxu0
        %2611 = vrot.lane.b32.xlu0 %v1145, 56
        %v2612 = vpop.permute.xlu0 %2611
        %v2614 = vsel %vm1530, %v2435, 0
        %v2617 = vsel %vm1534, %v2612, 0
        %2619 = vmatpush.bf16.msra.mxu0 0
        %2620 = vmatpush.bf16.msra.mxu0 0
        %2621 = vmatpush.bf16.msra.mxu0 0
        %2622 = vmatpush.bf16.msra.mxu0 0
        %2623 = vmatpush.bf16.msra.mxu0 0
        %2624 = vmatpush.bf16.msra.mxu0 0
        %2625 = vmatpush.bf16.msra.mxu0 0
        %2626 = vmatpush.bf16.msra.mxu0 %v2617
        %2627 = vmatmul.bf16.gmra.mxu0 %v2614
        %v2628 = vpop.f32.mrf.mxu0
        %v2629 = vadd.f32 0.0, %v2628
        %v2630 = vpop.f32.mrf.mxu0
        %2631 = vdwg.mxu0
        %2632 = vrot.lane.b32.xlu0 %v1169, 56
        %v2633 = vpop.permute.xlu0 %2632
        %v2635 = vsel %vm1530, %v2436, 0
        %v2638 = vsel %vm1534, %v2633, 0
        %2640 = vmatpush.bf16.msra.mxu0 0
        %2641 = vmatpush.bf16.msra.mxu0 0
        %2642 = vmatpush.bf16.msra.mxu0 0
        %2643 = vmatpush.bf16.msra.mxu0 0
        %2644 = vmatpush.bf16.msra.mxu0 0
        %2645 = vmatpush.bf16.msra.mxu0 0
        %2646 = vmatpush.bf16.msra.mxu0 0
        %2647 = vmatpush.bf16.msra.mxu0 %v2638
        %2648 = vmatmul.bf16.gmra.mxu0 %v2635
        %v2649 = vpop.f32.mrf.mxu0
        %v2650 = vadd.f32 0.0, %v2649
        %v2651 = vpop.f32.mrf.mxu0
        %2652 = vdwg.mxu0
        %2653 = vrot.lane.b32.xlu0 %v1193, 56
        %v2654 = vpop.permute.xlu0 %2653
        %v2656 = vsel %vm1530, %v2437, 0
        %v2659 = vsel %vm1534, %v2654, 0
        %2661 = vmatpush.bf16.msra.mxu0 0
        %2662 = vmatpush.bf16.msra.mxu0 0
        %2663 = vmatpush.bf16.msra.mxu0 0
        %2664 = vmatpush.bf16.msra.mxu0 0
        %2665 = vmatpush.bf16.msra.mxu0 0
        %2666 = vmatpush.bf16.msra.mxu0 0
        %2667 = vmatpush.bf16.msra.mxu0 0
        %2668 = vmatpush.bf16.msra.mxu0 %v2659
        %2669 = vmatmul.bf16.gmra.mxu0 %v2656
        %v2670 = vpop.f32.mrf.mxu0
        %v2671 = vadd.f32 0.0, %v2670
        %v2672 = vpop.f32.mrf.mxu0
        %2673 = vdwg.mxu0
        %2674 = vrot.lane.b32.xlu0 %v1217, 56
        %v2675 = vpop.permute.xlu0 %2674
        %v2677 = vsel %vm1530, %v2438, 0
        %v2680 = vsel %vm1534, %v2675, 0
        %2682 = vmatpush.bf16.msra.mxu0 0
        %2683 = vmatpush.bf16.msra.mxu0 0
        %2684 = vmatpush.bf16.msra.mxu0 0
        %2685 = vmatpush.bf16.msra.mxu0 0
        %2686 = vmatpush.bf16.msra.mxu0 0
        %2687 = vmatpush.bf16.msra.mxu0 0
        %2688 = vmatpush.bf16.msra.mxu0 0
        %2689 = vmatpush.bf16.msra.mxu0 %v2680
        %2690 = vmatmul.bf16.gmra.mxu0 %v2677
        %v2691 = vpop.f32.mrf.mxu0
        %v2692 = vadd.f32 0.0, %v2691
        %v2693 = vpop.f32.mrf.mxu0
        %2694 = vdwg.mxu0
        %2695 = vrot.lane.b32.xlu0 %v1241, 56
        %v2696 = vpop.permute.xlu0 %2695
        %v2698 = vsel %vm1530, %v2439, 0
        %v2701 = vsel %vm1534, %v2696, 0
        %2703 = vmatpush.bf16.msra.mxu0 0
        %2704 = vmatpush.bf16.msra.mxu0 0
        %2705 = vmatpush.bf16.msra.mxu0 0
        %2706 = vmatpush.bf16.msra.mxu0 0
        %2707 = vmatpush.bf16.msra.mxu0 0
        %2708 = vmatpush.bf16.msra.mxu0 0
        %2709 = vmatpush.bf16.msra.mxu0 0
        %2710 = vmatpush.bf16.msra.mxu0 %v2701
        %2711 = vmatmul.bf16.gmra.mxu0 %v2698
        %v2712 = vpop.f32.mrf.mxu0
        %v2713 = vadd.f32 0.0, %v2712
        %v2714 = vpop.f32.mrf.mxu0
        %2715 = vdwg.mxu0
        %2716 = vrot.lane.b32.xlu0 %v1265, 56
        %v2717 = vpop.permute.xlu0 %2716
        %v2719 = vsel %vm1530, %v2440, 0
        %v2722 = vsel %vm1534, %v2717, 0
        %2724 = vmatpush.bf16.msra.mxu0 0
        %2725 = vmatpush.bf16.msra.mxu0 0
        %2726 = vmatpush.bf16.msra.mxu0 0
        %2727 = vmatpush.bf16.msra.mxu0 0
        %2728 = vmatpush.bf16.msra.mxu0 0
        %2729 = vmatpush.bf16.msra.mxu0 0
        %2730 = vmatpush.bf16.msra.mxu0 0
        %2731 = vmatpush.bf16.msra.mxu0 %v2722
        %2732 = vmatmul.bf16.gmra.mxu0 %v2719
        %v2733 = vpop.f32.mrf.mxu0
        %v2734 = vadd.f32 0.0, %v2733
        %v2735 = vpop.f32.mrf.mxu0
        %2736 = vdwg.mxu0
        %2737 = vrot.lane.b32.xlu0 %v1289, 56
        %v2738 = vpop.permute.xlu0 %2737
        %v2740 = vsel %vm1530, %v2441, 0
        %v2743 = vsel %vm1534, %v2738, 0
        %2745 = vmatpush.bf16.msra.mxu0 0
        %2746 = vmatpush.bf16.msra.mxu0 0
        %2747 = vmatpush.bf16.msra.mxu0 0
        %2748 = vmatpush.bf16.msra.mxu0 0
        %2749 = vmatpush.bf16.msra.mxu0 0
        %2750 = vmatpush.bf16.msra.mxu0 0
        %2751 = vmatpush.bf16.msra.mxu0 0
        %2752 = vmatpush.bf16.msra.mxu0 %v2743
        %2753 = vmatmul.bf16.gmra.mxu0 %v2740
        %v2754 = vpop.f32.mrf.mxu0
        %v2755 = vadd.f32 0.0, %v2754
        %v2756 = vpop.f32.mrf.mxu0
        %2757 = vdwg.mxu0
        %2758 = vrot.lane.b32.xlu0 %v1313, 56
        %v2759 = vpop.permute.xlu0 %2758
        %v2761 = vsel %vm1530, %v2442, 0
        %v2764 = vsel %vm1534, %v2759, 0
        %2766 = vmatpush.bf16.msra.mxu0 0
        %2767 = vmatpush.bf16.msra.mxu0 0
        %2768 = vmatpush.bf16.msra.mxu0 0
        %2769 = vmatpush.bf16.msra.mxu0 0
        %2770 = vmatpush.bf16.msra.mxu0 0
        %2771 = vmatpush.bf16.msra.mxu0 0
        %2772 = vmatpush.bf16.msra.mxu0 0
        %2773 = vmatpush.bf16.msra.mxu0 %v2764
        %2774 = vmatmul.bf16.gmra.mxu0 %v2761
        %v2775 = vpop.f32.mrf.mxu0
        %v2776 = vadd.f32 0.0, %v2775
        %v2777 = vpop.f32.mrf.mxu0
        %2778 = vdwg.mxu0
        %2795 = vrot.lane.b32.xlu0 %v2461, 8
        %v2796 = vpop.permute.xlu0 %2795
        %2797 = vrot.lane.b32.xlu0 %v2482, 8
        %v2798 = vpop.permute.xlu0 %2797
        %2799 = vrot.lane.b32.xlu0 %v2503, 8
        %v2800 = vpop.permute.xlu0 %2799
        %2801 = vrot.lane.b32.xlu0 %v2524, 8
        %v2802 = vpop.permute.xlu0 %2801
        %2803 = vrot.lane.b32.xlu0 %v2545, 8
        %v2804 = vpop.permute.xlu0 %2803
        %2805 = vrot.lane.b32.xlu0 %v2566, 8
        %v2806 = vpop.permute.xlu0 %2805
        %2807 = vrot.lane.b32.xlu0 %v2587, 8
        %v2808 = vpop.permute.xlu0 %2807
        %2809 = vrot.lane.b32.xlu0 %v2608, 8
        %v2810 = vpop.permute.xlu0 %2809
        %2811 = vrot.lane.b32.xlu0 %v2629, 8
        %v2812 = vpop.permute.xlu0 %2811
        %2813 = vrot.lane.b32.xlu0 %v2650, 8
        %v2814 = vpop.permute.xlu0 %2813
        %2815 = vrot.lane.b32.xlu0 %v2671, 8
        %v2816 = vpop.permute.xlu0 %2815
        %2817 = vrot.lane.b32.xlu0 %v2692, 8
        %v2818 = vpop.permute.xlu0 %2817
        %2819 = vrot.lane.b32.xlu0 %v2713, 8
        %v2820 = vpop.permute.xlu0 %2819
        %2821 = vrot.lane.b32.xlu0 %v2734, 8
        %v2822 = vpop.permute.xlu0 %2821
        %2823 = vrot.lane.b32.xlu0 %v2755, 8
        %v2824 = vpop.permute.xlu0 %2823
        %2825 = vrot.lane.b32.xlu0 %v2776, 8
        %v2826 = vpop.permute.xlu0 %2825
        %vm2843 = vcmask 123968
        %2844 = vst.msk [vmem:[#allocation2] sm:$0x3] %vm2843, %v2796
        %2845 = vst.msk [vmem:[#allocation2 + $0x2] sm:$0x3] %vm2843, %v2798
        %2846 = vst.msk [vmem:[#allocation2 + $0x4] sm:$0x3] %vm2843, %v2800
        %2847 = vst.msk [vmem:[#allocation2 + $0x6] sm:$0x3] %vm2843, %v2802
        %2848 = vst.msk [vmem:[#allocation2 + $0x8] sm:$0x3] %vm2843, %v2804
        %2849 = vst.msk [vmem:[#allocation2 + $0xa] sm:$0x3] %vm2843, %v2806
        %2850 = vst.msk [vmem:[#allocation2 + $0xc] sm:$0x3] %vm2843, %v2808
        %2851 = vst.msk [vmem:[#allocation2 + $0xe] sm:$0x3] %vm2843, %v2810
        %2852 = vst.msk [vmem:[#allocation2 + $0x10] sm:$0x3] %vm2843, %v2812
        %2853 = vst.msk [vmem:[#allocation2 + $0x12] sm:$0x3] %vm2843, %v2814
        %2854 = vst.msk [vmem:[#allocation2 + $0x14] sm:$0x3] %vm2843, %v2816
        %2855 = vst.msk [vmem:[#allocation2 + $0x16] sm:$0x3] %vm2843, %v2818
        %2856 = vst.msk [vmem:[#allocation2 + $0x18] sm:$0x3] %vm2843, %v2820
        %2857 = vst.msk [vmem:[#allocation2 + $0x1a] sm:$0x3] %vm2843, %v2822
        %2858 = vst.msk [vmem:[#allocation2 + $0x1c] sm:$0x3] %vm2843, %v2824
        %2859 = vst.msk [vmem:[#allocation2 + $0x1e] sm:$0x3] %vm2843, %v2826
        %2860 = vrot.lane.b32.xlu0 %v952, 112
        %v2861 = vpop.permute.xlu0 %2860
        %2862 = vrot.lane.b32.xlu0 %v952, 80
        %v2863 = vpop.permute.xlu0 %2862
        %v2865 = vsel %vm955, %v2861, 0
        %v2868 = vsel %vm955, %v2863, 0
        %2870 = vmatpush.bf16.xpose.msra.mxu0 0
        %2871 = vmatpush.bf16.xpose.msra.mxu0 0
        %2872 = vmatpush.bf16.xpose.msra.mxu0 0
        %2873 = vmatpush.bf16.xpose.msra.mxu0 0
        %2874 = vmatpush.bf16.xpose.msra.mxu0 0
        %2875 = vmatpush.bf16.xpose.msra.mxu0 0
        %2876 = vmatpush.bf16.xpose.msra.mxu0 0
        %2877 = vmatpush.bf16.xpose.msra.mxu0 %v2868
        %2878 = vmatmul.bf16.gmra.mxu0 %v2865
        %v2879 = vpop.f32.mrf.mxu0
        %v2880 = vadd.f32 0.0, %v2879
        %v2881 = vpop.f32.mrf.mxu0
        %2882 = vdwg.mxu0
        %2883 = vrot.lane.b32.xlu0 %v977, 112
        %v2884 = vpop.permute.xlu0 %2883
        %2885 = vrot.lane.b32.xlu0 %v977, 80
        %v2886 = vpop.permute.xlu0 %2885
        %v2888 = vsel %vm955, %v2884, 0
        %v2891 = vsel %vm955, %v2886, 0
        %2893 = vmatpush.bf16.xpose.msra.mxu0 0
        %2894 = vmatpush.bf16.xpose.msra.mxu0 0
        %2895 = vmatpush.bf16.xpose.msra.mxu0 0
        %2896 = vmatpush.bf16.xpose.msra.mxu0 0
        %2897 = vmatpush.bf16.xpose.msra.mxu0 0
        %2898 = vmatpush.bf16.xpose.msra.mxu0 0
        %2899 = vmatpush.bf16.xpose.msra.mxu0 0
        %2900 = vmatpush.bf16.xpose.msra.mxu0 %v2891
        %2901 = vmatmul.bf16.gmra.mxu0 %v2888
        %v2902 = vpop.f32.mrf.mxu0
        %v2903 = vadd.f32 0.0, %v2902
        %v2904 = vpop.f32.mrf.mxu0
        %2905 = vdwg.mxu0
        %2906 = vrot.lane.b32.xlu0 %v1001, 112
        %v2907 = vpop.permute.xlu0 %2906
        %2908 = vrot.lane.b32.xlu0 %v1001, 80
        %v2909 = vpop.permute.xlu0 %2908
        %v2911 = vsel %vm955, %v2907, 0
        %v2914 = vsel %vm955, %v2909, 0
        %2916 = vmatpush.bf16.xpose.msra.mxu0 0
        %2917 = vmatpush.bf16.xpose.msra.mxu0 0
        %2918 = vmatpush.bf16.xpose.msra.mxu0 0
        %2919 = vmatpush.bf16.xpose.msra.mxu0 0
        %2920 = vmatpush.bf16.xpose.msra.mxu0 0
        %2921 = vmatpush.bf16.xpose.msra.mxu0 0
        %2922 = vmatpush.bf16.xpose.msra.mxu0 0
        %2923 = vmatpush.bf16.xpose.msra.mxu0 %v2914
        %2924 = vmatmul.bf16.gmra.mxu0 %v2911
        %v2925 = vpop.f32.mrf.mxu0
        %v2926 = vadd.f32 0.0, %v2925
        %v2927 = vpop.f32.mrf.mxu0
        %2928 = vdwg.mxu0
        %2929 = vrot.lane.b32.xlu0 %v1025, 112
        %v2930 = vpop.permute.xlu0 %2929
        %2931 = vrot.lane.b32.xlu0 %v1025, 80
        %v2932 = vpop.permute.xlu0 %2931
        %v2934 = vsel %vm955, %v2930, 0
        %v2937 = vsel %vm955, %v2932, 0
        %2939 = vmatpush.bf16.xpose.msra.mxu0 0
        %2940 = vmatpush.bf16.xpose.msra.mxu0 0
        %2941 = vmatpush.bf16.xpose.msra.mxu0 0
        %2942 = vmatpush.bf16.xpose.msra.mxu0 0
        %2943 = vmatpush.bf16.xpose.msra.mxu0 0
        %2944 = vmatpush.bf16.xpose.msra.mxu0 0
        %2945 = vmatpush.bf16.xpose.msra.mxu0 0
        %2946 = vmatpush.bf16.xpose.msra.mxu0 %v2937
        %2947 = vmatmul.bf16.gmra.mxu0 %v2934
        %v2948 = vpop.f32.mrf.mxu0
        %v2949 = vadd.f32 0.0, %v2948
        %v2950 = vpop.f32.mrf.mxu0
        %2951 = vdwg.mxu0
        %2952 = vrot.lane.b32.xlu0 %v1049, 112
        %v2953 = vpop.permute.xlu0 %2952
        %2954 = vrot.lane.b32.xlu0 %v1049, 80
        %v2955 = vpop.permute.xlu0 %2954
        %v2957 = vsel %vm955, %v2953, 0
        %v2960 = vsel %vm955, %v2955, 0
        %2962 = vmatpush.bf16.xpose.msra.mxu0 0
        %2963 = vmatpush.bf16.xpose.msra.mxu0 0
        %2964 = vmatpush.bf16.xpose.msra.mxu0 0
        %2965 = vmatpush.bf16.xpose.msra.mxu0 0
        %2966 = vmatpush.bf16.xpose.msra.mxu0 0
        %2967 = vmatpush.bf16.xpose.msra.mxu0 0
        %2968 = vmatpush.bf16.xpose.msra.mxu0 0
        %2969 = vmatpush.bf16.xpose.msra.mxu0 %v2960
        %2970 = vmatmul.bf16.gmra.mxu0 %v2957
        %v2971 = vpop.f32.mrf.mxu0
        %v2972 = vadd.f32 0.0, %v2971
        %v2973 = vpop.f32.mrf.mxu0
        %2974 = vdwg.mxu0
        %2975 = vrot.lane.b32.xlu0 %v1073, 112
        %v2976 = vpop.permute.xlu0 %2975
        %2977 = vrot.lane.b32.xlu0 %v1073, 80
        %v2978 = vpop.permute.xlu0 %2977
        %v2980 = vsel %vm955, %v2976, 0
        %v2983 = vsel %vm955, %v2978, 0
        %2985 = vmatpush.bf16.xpose.msra.mxu0 0
        %2986 = vmatpush.bf16.xpose.msra.mxu0 0
        %2987 = vmatpush.bf16.xpose.msra.mxu0 0
        %2988 = vmatpush.bf16.xpose.msra.mxu0 0
        %2989 = vmatpush.bf16.xpose.msra.mxu0 0
        %2990 = vmatpush.bf16.xpose.msra.mxu0 0
        %2991 = vmatpush.bf16.xpose.msra.mxu0 0
        %2992 = vmatpush.bf16.xpose.msra.mxu0 %v2983
        %2993 = vmatmul.bf16.gmra.mxu0 %v2980
        %v2994 = vpop.f32.mrf.mxu0
        %v2995 = vadd.f32 0.0, %v2994
        %v2996 = vpop.f32.mrf.mxu0
        %2997 = vdwg.mxu0
        %2998 = vrot.lane.b32.xlu0 %v1097, 112
        %v2999 = vpop.permute.xlu0 %2998
        %3000 = vrot.lane.b32.xlu0 %v1097, 80
        %v3001 = vpop.permute.xlu0 %3000
        %v3003 = vsel %vm955, %v2999, 0
        %v3006 = vsel %vm955, %v3001, 0
        %3008 = vmatpush.bf16.xpose.msra.mxu0 0
        %3009 = vmatpush.bf16.xpose.msra.mxu0 0
        %3010 = vmatpush.bf16.xpose.msra.mxu0 0
        %3011 = vmatpush.bf16.xpose.msra.mxu0 0
        %3012 = vmatpush.bf16.xpose.msra.mxu0 0
        %3013 = vmatpush.bf16.xpose.msra.mxu0 0
        %3014 = vmatpush.bf16.xpose.msra.mxu0 0
        %3015 = vmatpush.bf16.xpose.msra.mxu0 %v3006
        %3016 = vmatmul.bf16.gmra.mxu0 %v3003
        %v3017 = vpop.f32.mrf.mxu0
        %v3018 = vadd.f32 0.0, %v3017
        %v3019 = vpop.f32.mrf.mxu0
        %3020 = vdwg.mxu0
        %3021 = vrot.lane.b32.xlu0 %v1121, 112
        %v3022 = vpop.permute.xlu0 %3021
        %3023 = vrot.lane.b32.xlu0 %v1121, 80
        %v3024 = vpop.permute.xlu0 %3023
        %v3026 = vsel %vm955, %v3022, 0
        %v3029 = vsel %vm955, %v3024, 0
        %3031 = vmatpush.bf16.xpose.msra.mxu0 0
        %3032 = vmatpush.bf16.xpose.msra.mxu0 0
        %3033 = vmatpush.bf16.xpose.msra.mxu0 0
        %3034 = vmatpush.bf16.xpose.msra.mxu0 0
        %3035 = vmatpush.bf16.xpose.msra.mxu0 0
        %3036 = vmatpush.bf16.xpose.msra.mxu0 0
        %3037 = vmatpush.bf16.xpose.msra.mxu0 0
        %3038 = vmatpush.bf16.xpose.msra.mxu0 %v3029
        %3039 = vmatmul.bf16.gmra.mxu0 %v3026
        %v3040 = vpop.f32.mrf.mxu0
        %v3041 = vadd.f32 0.0, %v3040
        %v3042 = vpop.f32.mrf.mxu0
        %3043 = vdwg.mxu0
        %3044 = vrot.lane.b32.xlu0 %v1145, 112
        %v3045 = vpop.permute.xlu0 %3044
        %3046 = vrot.lane.b32.xlu0 %v1145, 80
        %v3047 = vpop.permute.xlu0 %3046
        %v3049 = vsel %vm955, %v3045, 0
        %v3052 = vsel %vm955, %v3047, 0
        %3054 = vmatpush.bf16.xpose.msra.mxu0 0
        %3055 = vmatpush.bf16.xpose.msra.mxu0 0
        %3056 = vmatpush.bf16.xpose.msra.mxu0 0
        %3057 = vmatpush.bf16.xpose.msra.mxu0 0
        %3058 = vmatpush.bf16.xpose.msra.mxu0 0
        %3059 = vmatpush.bf16.xpose.msra.mxu0 0
        %3060 = vmatpush.bf16.xpose.msra.mxu0 0
        %3061 = vmatpush.bf16.xpose.msra.mxu0 %v3052
        %3062 = vmatmul.bf16.gmra.mxu0 %v3049
        %v3063 = vpop.f32.mrf.mxu0
        %v3064 = vadd.f32 0.0, %v3063
        %v3065 = vpop.f32.mrf.mxu0
        %3066 = vdwg.mxu0
        %3067 = vrot.lane.b32.xlu0 %v1169, 112
        %v3068 = vpop.permute.xlu0 %3067
        %3069 = vrot.lane.b32.xlu0 %v1169, 80
        %v3070 = vpop.permute.xlu0 %3069
        %v3072 = vsel %vm955, %v3068, 0
        %v3075 = vsel %vm955, %v3070, 0
        %3077 = vmatpush.bf16.xpose.msra.mxu0 0
        %3078 = vmatpush.bf16.xpose.msra.mxu0 0
        %3079 = vmatpush.bf16.xpose.msra.mxu0 0
        %3080 = vmatpush.bf16.xpose.msra.mxu0 0
        %3081 = vmatpush.bf16.xpose.msra.mxu0 0
        %3082 = vmatpush.bf16.xpose.msra.mxu0 0
        %3083 = vmatpush.bf16.xpose.msra.mxu0 0
        %3084 = vmatpush.bf16.xpose.msra.mxu0 %v3075
        %3085 = vmatmul.bf16.gmra.mxu0 %v3072
        %v3086 = vpop.f32.mrf.mxu0
        %v3087 = vadd.f32 0.0, %v3086
        %v3088 = vpop.f32.mrf.mxu0
        %3089 = vdwg.mxu0
        %3090 = vrot.lane.b32.xlu0 %v1193, 112
        %v3091 = vpop.permute.xlu0 %3090
        %3092 = vrot.lane.b32.xlu0 %v1193, 80
        %v3093 = vpop.permute.xlu0 %3092
        %v3095 = vsel %vm955, %v3091, 0
        %v3098 = vsel %vm955, %v3093, 0
        %3100 = vmatpush.bf16.xpose.msra.mxu0 0
        %3101 = vmatpush.bf16.xpose.msra.mxu0 0
        %3102 = vmatpush.bf16.xpose.msra.mxu0 0
        %3103 = vmatpush.bf16.xpose.msra.mxu0 0
        %3104 = vmatpush.bf16.xpose.msra.mxu0 0
        %3105 = vmatpush.bf16.xpose.msra.mxu0 0
        %3106 = vmatpush.bf16.xpose.msra.mxu0 0
        %3107 = vmatpush.bf16.xpose.msra.mxu0 %v3098
        %3108 = vmatmul.bf16.gmra.mxu0 %v3095
        %v3109 = vpop.f32.mrf.mxu0
        %v3110 = vadd.f32 0.0, %v3109
        %v3111 = vpop.f32.mrf.mxu0
        %3112 = vdwg.mxu0
        %3113 = vrot.lane.b32.xlu0 %v1217, 112
        %v3114 = vpop.permute.xlu0 %3113
        %3115 = vrot.lane.b32.xlu0 %v1217, 80
        %v3116 = vpop.permute.xlu0 %3115
        %v3118 = vsel %vm955, %v3114, 0
        %v3121 = vsel %vm955, %v3116, 0
        %3123 = vmatpush.bf16.xpose.msra.mxu0 0
        %3124 = vmatpush.bf16.xpose.msra.mxu0 0
        %3125 = vmatpush.bf16.xpose.msra.mxu0 0
        %3126 = vmatpush.bf16.xpose.msra.mxu0 0
        %3127 = vmatpush.bf16.xpose.msra.mxu0 0
        %3128 = vmatpush.bf16.xpose.msra.mxu0 0
        %3129 = vmatpush.bf16.xpose.msra.mxu0 0
        %3130 = vmatpush.bf16.xpose.msra.mxu0 %v3121
        %3131 = vmatmul.bf16.gmra.mxu0 %v3118
        %v3132 = vpop.f32.mrf.mxu0
        %v3133 = vadd.f32 0.0, %v3132
        %v3134 = vpop.f32.mrf.mxu0
        %3135 = vdwg.mxu0
        %3136 = vrot.lane.b32.xlu0 %v1241, 112
        %v3137 = vpop.permute.xlu0 %3136
        %3138 = vrot.lane.b32.xlu0 %v1241, 80
        %v3139 = vpop.permute.xlu0 %3138
        %v3141 = vsel %vm955, %v3137, 0
        %v3144 = vsel %vm955, %v3139, 0
        %3146 = vmatpush.bf16.xpose.msra.mxu0 0
        %3147 = vmatpush.bf16.xpose.msra.mxu0 0
        %3148 = vmatpush.bf16.xpose.msra.mxu0 0
        %3149 = vmatpush.bf16.xpose.msra.mxu0 0
        %3150 = vmatpush.bf16.xpose.msra.mxu0 0
        %3151 = vmatpush.bf16.xpose.msra.mxu0 0
        %3152 = vmatpush.bf16.xpose.msra.mxu0 0
        %3153 = vmatpush.bf16.xpose.msra.mxu0 %v3144
        %3154 = vmatmul.bf16.gmra.mxu0 %v3141
        %v3155 = vpop.f32.mrf.mxu0
        %v3156 = vadd.f32 0.0, %v3155
        %v3157 = vpop.f32.mrf.mxu0
        %3158 = vdwg.mxu0
        %3159 = vrot.lane.b32.xlu0 %v1265, 112
        %v3160 = vpop.permute.xlu0 %3159
        %3161 = vrot.lane.b32.xlu0 %v1265, 80
        %v3162 = vpop.permute.xlu0 %3161
        %v3164 = vsel %vm955, %v3160, 0
        %v3167 = vsel %vm955, %v3162, 0
        %3169 = vmatpush.bf16.xpose.msra.mxu0 0
        %3170 = vmatpush.bf16.xpose.msra.mxu0 0
        %3171 = vmatpush.bf16.xpose.msra.mxu0 0
        %3172 = vmatpush.bf16.xpose.msra.mxu0 0
        %3173 = vmatpush.bf16.xpose.msra.mxu0 0
        %3174 = vmatpush.bf16.xpose.msra.mxu0 0
        %3175 = vmatpush.bf16.xpose.msra.mxu0 0
        %3176 = vmatpush.bf16.xpose.msra.mxu0 %v3167
        %3177 = vmatmul.bf16.gmra.mxu0 %v3164
        %v3178 = vpop.f32.mrf.mxu0
        %v3179 = vadd.f32 0.0, %v3178
        %v3180 = vpop.f32.mrf.mxu0
        %3181 = vdwg.mxu0
        %3182 = vrot.lane.b32.xlu0 %v1289, 112
        %v3183 = vpop.permute.xlu0 %3182
        %3184 = vrot.lane.b32.xlu0 %v1289, 80
        %v3185 = vpop.permute.xlu0 %3184
        %v3187 = vsel %vm955, %v3183, 0
        %v3190 = vsel %vm955, %v3185, 0
        %3192 = vmatpush.bf16.xpose.msra.mxu0 0
        %3193 = vmatpush.bf16.xpose.msra.mxu0 0
        %3194 = vmatpush.bf16.xpose.msra.mxu0 0
        %3195 = vmatpush.bf16.xpose.msra.mxu0 0
        %3196 = vmatpush.bf16.xpose.msra.mxu0 0
        %3197 = vmatpush.bf16.xpose.msra.mxu0 0
        %3198 = vmatpush.bf16.xpose.msra.mxu0 0
        %3199 = vmatpush.bf16.xpose.msra.mxu0 %v3190
        %3200 = vmatmul.bf16.gmra.mxu0 %v3187
        %v3201 = vpop.f32.mrf.mxu0
        %v3202 = vadd.f32 0.0, %v3201
        %v3203 = vpop.f32.mrf.mxu0
        %3204 = vdwg.mxu0
        %3205 = vrot.lane.b32.xlu0 %v1313, 112
        %v3206 = vpop.permute.xlu0 %3205
        %3207 = vrot.lane.b32.xlu0 %v1313, 80
        %v3208 = vpop.permute.xlu0 %3207
        %v3210 = vsel %vm955, %v3206, 0
        %v3213 = vsel %vm955, %v3208, 0
        %3215 = vmatpush.bf16.xpose.msra.mxu0 0
        %3216 = vmatpush.bf16.xpose.msra.mxu0 0
        %3217 = vmatpush.bf16.xpose.msra.mxu0 0
        %3218 = vmatpush.bf16.xpose.msra.mxu0 0
        %3219 = vmatpush.bf16.xpose.msra.mxu0 0
        %3220 = vmatpush.bf16.xpose.msra.mxu0 0
        %3221 = vmatpush.bf16.xpose.msra.mxu0 0
        %3222 = vmatpush.bf16.xpose.msra.mxu0 %v3213
        %3223 = vmatmul.bf16.gmra.mxu0 %v3210
        %v3224 = vpop.f32.mrf.mxu0
        %v3225 = vadd.f32 0.0, %v3224
        %v3226 = vpop.f32.mrf.mxu0
        %3227 = vdwg.mxu0
        %v3228 = vsel %vm1335, %v2880, -inf
        %3229 = vmax.xlane.f32.xlu0 %v3228
        %v3230 = vpop.xlane.xlu0 %3229
        %v3231 = vsel %vm1335, %v2903, -inf
        %3232 = vmax.xlane.f32.xlu0 %v3231
        %v3233 = vpop.xlane.xlu0 %3232
        %v3234 = vsel %vm1335, %v2926, -inf
        %3235 = vmax.xlane.f32.xlu0 %v3234
        %v3236 = vpop.xlane.xlu0 %3235
        %v3237 = vsel %vm1335, %v2949, -inf
        %3238 = vmax.xlane.f32.xlu0 %v3237
        %v3239 = vpop.xlane.xlu0 %3238
        %v3240 = vsel %vm1335, %v2972, -inf
        %3241 = vmax.xlane.f32.xlu0 %v3240
        %v3242 = vpop.xlane.xlu0 %3241
        %v3243 = vsel %vm1335, %v2995, -inf
        %3244 = vmax.xlane.f32.xlu0 %v3243
        %v3245 = vpop.xlane.xlu0 %3244
        %v3246 = vsel %vm1335, %v3018, -inf
        %3247 = vmax.xlane.f32.xlu0 %v3246
        %v3248 = vpop.xlane.xlu0 %3247
        %v3249 = vsel %vm1335, %v3041, -inf
        %3250 = vmax.xlane.f32.xlu0 %v3249
        %v3251 = vpop.xlane.xlu0 %3250
        %v3252 = vsel %vm1335, %v3064, -inf
        %3253 = vmax.xlane.f32.xlu0 %v3252
        %v3254 = vpop.xlane.xlu0 %3253
        %v3255 = vsel %vm1335, %v3087, -inf
        %3256 = vmax.xlane.f32.xlu0 %v3255
        %v3257 = vpop.xlane.xlu0 %3256
        %v3258 = vsel %vm1335, %v3110, -inf
        %3259 = vmax.xlane.f32.xlu0 %v3258
        %v3260 = vpop.xlane.xlu0 %3259
        %v3261 = vsel %vm1335, %v3133, -inf
        %3262 = vmax.xlane.f32.xlu0 %v3261
        %v3263 = vpop.xlane.xlu0 %3262
        %v3264 = vsel %vm1335, %v3156, -inf
        %3265 = vmax.xlane.f32.xlu0 %v3264
        %v3266 = vpop.xlane.xlu0 %3265
        %v3267 = vsel %vm1335, %v3179, -inf
        %3268 = vmax.xlane.f32.xlu0 %v3267
        %v3269 = vpop.xlane.xlu0 %3268
        %v3270 = vsel %vm1335, %v3202, -inf
        %3271 = vmax.xlane.f32.xlu0 %v3270
        %v3272 = vpop.xlane.xlu0 %3271
        %v3273 = vsel %vm1335, %v3225, -inf
        %3274 = vmax.xlane.f32.xlu0 %v3273
        %v3275 = vpop.xlane.xlu0 %3274
        %v3276 = vsub.f32 %v2880, %v3230
        %v3277 = vsub.f32 %v2903, %v3233
        %v3278 = vsub.f32 %v2926, %v3236
        %v3279 = vsub.f32 %v2949, %v3239
        %v3280 = vsub.f32 %v2972, %v3242
        %v3281 = vsub.f32 %v2995, %v3245
        %v3282 = vsub.f32 %v3018, %v3248
        %v3283 = vsub.f32 %v3041, %v3251
        %v3284 = vsub.f32 %v3064, %v3254
        %v3285 = vsub.f32 %v3087, %v3257
        %v3286 = vsub.f32 %v3110, %v3260
        %v3287 = vsub.f32 %v3133, %v3263
        %v3288 = vsub.f32 %v3156, %v3266
        %v3289 = vsub.f32 %v3179, %v3269
        %v3290 = vsub.f32 %v3202, %v3272
        %v3291 = vsub.f32 %v3225, %v3275
        %v3292 = vmul.f32 %v3276, 1.442695
        %v3293 = vpow.pop %v3292
        %v3294 = vmul.f32 %v3277, 1.442695
        %v3295 = vpow.pop %v3294
        %v3296 = vmul.f32 %v3278, 1.442695
        %v3297 = vpow.pop %v3296
        %v3298 = vmul.f32 %v3279, 1.442695
        %v3299 = vpow.pop %v3298
        %v3300 = vmul.f32 %v3280, 1.442695
        %v3301 = vpow.pop %v3300
        %v3302 = vmul.f32 %v3281, 1.442695
        %v3303 = vpow.pop %v3302
        %v3304 = vmul.f32 %v3282, 1.442695
        %v3305 = vpow.pop %v3304
        %v3306 = vmul.f32 %v3283, 1.442695
        %v3307 = vpow.pop %v3306
        %v3308 = vmul.f32 %v3284, 1.442695
        %v3309 = vpow.pop %v3308
        %v3310 = vmul.f32 %v3285, 1.442695
        %v3311 = vpow.pop %v3310
        %v3312 = vmul.f32 %v3286, 1.442695
        %v3313 = vpow.pop %v3312
        %v3314 = vmul.f32 %v3287, 1.442695
        %v3315 = vpow.pop %v3314
        %v3316 = vmul.f32 %v3288, 1.442695
        %v3317 = vpow.pop %v3316
        %v3318 = vmul.f32 %v3289, 1.442695
        %v3319 = vpow.pop %v3318
        %v3320 = vmul.f32 %v3290, 1.442695
        %v3321 = vpow.pop %v3320
        %v3322 = vmul.f32 %v3291, 1.442695
        %v3323 = vpow.pop %v3322
        %v3324 = vsel %vm1335, %v3293, 0.0
        %3325 = vadd.xlane.f32.xlu0 %v3324
        %v3326 = vpop.xlane.xlu0 %3325
        %v3327 = vsel %vm1335, %v3295, 0.0
        %3328 = vadd.xlane.f32.xlu0 %v3327
        %v3329 = vpop.xlane.xlu0 %3328
        %v3330 = vsel %vm1335, %v3297, 0.0
        %3331 = vadd.xlane.f32.xlu0 %v3330
        %v3332 = vpop.xlane.xlu0 %3331
        %v3333 = vsel %vm1335, %v3299, 0.0
        %3334 = vadd.xlane.f32.xlu0 %v3333
        %v3335 = vpop.xlane.xlu0 %3334
        %v3336 = vsel %vm1335, %v3301, 0.0
        %3337 = vadd.xlane.f32.xlu0 %v3336
        %v3338 = vpop.xlane.xlu0 %3337
        %v3339 = vsel %vm1335, %v3303, 0.0
        %3340 = vadd.xlane.f32.xlu0 %v3339
        %v3341 = vpop.xlane.xlu0 %3340
        %v3342 = vsel %vm1335, %v3305, 0.0
        %3343 = vadd.xlane.f32.xlu0 %v3342
        %v3344 = vpop.xlane.xlu0 %3343
        %v3345 = vsel %vm1335, %v3307, 0.0
        %3346 = vadd.xlane.f32.xlu0 %v3345
        %v3347 = vpop.xlane.xlu0 %3346
        %v3348 = vsel %vm1335, %v3309, 0.0
        %3349 = vadd.xlane.f32.xlu0 %v3348
        %v3350 = vpop.xlane.xlu0 %3349
        %v3351 = vsel %vm1335, %v3311, 0.0
        %3352 = vadd.xlane.f32.xlu0 %v3351
        %v3353 = vpop.xlane.xlu0 %3352
        %v3354 = vsel %vm1335, %v3313, 0.0
        %3355 = vadd.xlane.f32.xlu0 %v3354
        %v3356 = vpop.xlane.xlu0 %3355
        %v3357 = vsel %vm1335, %v3315, 0.0
        %3358 = vadd.xlane.f32.xlu0 %v3357
        %v3359 = vpop.xlane.xlu0 %3358
        %v3360 = vsel %vm1335, %v3317, 0.0
        %3361 = vadd.xlane.f32.xlu0 %v3360
        %v3362 = vpop.xlane.xlu0 %3361
        %v3363 = vsel %vm1335, %v3319, 0.0
        %3364 = vadd.xlane.f32.xlu0 %v3363
        %v3365 = vpop.xlane.xlu0 %3364
        %v3366 = vsel %vm1335, %v3321, 0.0
        %3367 = vadd.xlane.f32.xlu0 %v3366
        %v3368 = vpop.xlane.xlu0 %3367
        %v3369 = vsel %vm1335, %v3323, 0.0
        %3370 = vadd.xlane.f32.xlu0 %v3369
        %v3371 = vpop.xlane.xlu0 %3370
        %v3372 = vrcp.pop %v3326
        %v3373 = vrcp.pop %v3329
        %v3374 = vrcp.pop %v3332
        %v3375 = vrcp.pop %v3335
        %v3376 = vrcp.pop %v3338
        %v3377 = vrcp.pop %v3341
        %v3378 = vrcp.pop %v3344
        %v3379 = vrcp.pop %v3347
        %v3380 = vrcp.pop %v3350
        %v3381 = vrcp.pop %v3353
        %v3382 = vrcp.pop %v3356
        %v3383 = vrcp.pop %v3359
        %v3384 = vrcp.pop %v3362
        %v3385 = vrcp.pop %v3365
        %v3386 = vrcp.pop %v3368
        %v3387 = vrcp.pop %v3371
        %v3388 = vmul.f32 %v3293, %v3372
        %v3389 = vmul.f32 %v3295, %v3373
        %v3390 = vmul.f32 %v3297, %v3374
        %v3391 = vmul.f32 %v3299, %v3375
        %v3392 = vmul.f32 %v3301, %v3376
        %v3393 = vmul.f32 %v3303, %v3377
        %v3394 = vmul.f32 %v3305, %v3378
        %v3395 = vmul.f32 %v3307, %v3379
        %v3396 = vmul.f32 %v3309, %v3380
        %v3397 = vmul.f32 %v3311, %v3381
        %v3398 = vmul.f32 %v3313, %v3382
        %v3399 = vmul.f32 %v3315, %v3383
        %v3400 = vmul.f32 %v3317, %v3384
        %v3401 = vmul.f32 %v3319, %v3385
        %v3402 = vmul.f32 %v3321, %v3386
        %v3403 = vmul.f32 %v3323, %v3387
        %v3404 = vpack.c.bf16 %v3388, %v3388
        %v3405 = vpack.c.bf16 %v3389, %v3389
        %v3406 = vpack.c.bf16 %v3390, %v3390
        %v3407 = vpack.c.bf16 %v3391, %v3391
        %v3408 = vpack.c.bf16 %v3392, %v3392
        %v3409 = vpack.c.bf16 %v3393, %v3393
        %v3410 = vpack.c.bf16 %v3394, %v3394
        %v3411 = vpack.c.bf16 %v3395, %v3395
        %v3412 = vpack.c.bf16 %v3396, %v3396
        %v3413 = vpack.c.bf16 %v3397, %v3397
        %v3414 = vpack.c.bf16 %v3398, %v3398
        %v3415 = vpack.c.bf16 %v3399, %v3399
        %v3416 = vpack.c.bf16 %v3400, %v3400
        %v3417 = vpack.c.bf16 %v3401, %v3401
        %v3418 = vpack.c.bf16 %v3402, %v3402
        %v3419 = vpack.c.bf16 %v3403, %v3403
        %3420 = vrot.lane.b32.xlu0 %v952, 48
        %v3421 = vpop.permute.xlu0 %3420
        %v3423 = vsel %vm1530, %v3404, 0
        %v3426 = vsel %vm1534, %v3421, 0
        %3428 = vmatpush.bf16.msra.mxu0 0
        %3429 = vmatpush.bf16.msra.mxu0 0
        %3430 = vmatpush.bf16.msra.mxu0 0
        %3431 = vmatpush.bf16.msra.mxu0 0
        %3432 = vmatpush.bf16.msra.mxu0 0
        %3433 = vmatpush.bf16.msra.mxu0 0
        %3434 = vmatpush.bf16.msra.mxu0 0
        %3435 = vmatpush.bf16.msra.mxu0 %v3426
        %3436 = vmatmul.bf16.gmra.mxu0 %v3423
        %v3437 = vpop.f32.mrf.mxu0
        %v3438 = vadd.f32 0.0, %v3437
        %v3439 = vpop.f32.mrf.mxu0
        %3440 = vdwg.mxu0
        %3441 = vrot.lane.b32.xlu0 %v977, 48
        %v3442 = vpop.permute.xlu0 %3441
        %v3444 = vsel %vm1530, %v3405, 0
        %v3447 = vsel %vm1534, %v3442, 0
        %3449 = vmatpush.bf16.msra.mxu0 0
        %3450 = vmatpush.bf16.msra.mxu0 0
        %3451 = vmatpush.bf16.msra.mxu0 0
        %3452 = vmatpush.bf16.msra.mxu0 0
        %3453 = vmatpush.bf16.msra.mxu0 0
        %3454 = vmatpush.bf16.msra.mxu0 0
        %3455 = vmatpush.bf16.msra.mxu0 0
        %3456 = vmatpush.bf16.msra.mxu0 %v3447
        %3457 = vmatmul.bf16.gmra.mxu0 %v3444
        %v3458 = vpop.f32.mrf.mxu0
        %v3459 = vadd.f32 0.0, %v3458
        %v3460 = vpop.f32.mrf.mxu0
        %3461 = vdwg.mxu0
        %3462 = vrot.lane.b32.xlu0 %v1001, 48
        %v3463 = vpop.permute.xlu0 %3462
        %v3465 = vsel %vm1530, %v3406, 0
        %v3468 = vsel %vm1534, %v3463, 0
        %3470 = vmatpush.bf16.msra.mxu0 0
        %3471 = vmatpush.bf16.msra.mxu0 0
        %3472 = vmatpush.bf16.msra.mxu0 0
        %3473 = vmatpush.bf16.msra.mxu0 0
        %3474 = vmatpush.bf16.msra.mxu0 0
        %3475 = vmatpush.bf16.msra.mxu0 0
        %3476 = vmatpush.bf16.msra.mxu0 0
        %3477 = vmatpush.bf16.msra.mxu0 %v3468
        %3478 = vmatmul.bf16.gmra.mxu0 %v3465
        %v3479 = vpop.f32.mrf.mxu0
        %v3480 = vadd.f32 0.0, %v3479
        %v3481 = vpop.f32.mrf.mxu0
        %3482 = vdwg.mxu0
        %3483 = vrot.lane.b32.xlu0 %v1025, 48
        %v3484 = vpop.permute.xlu0 %3483
        %v3486 = vsel %vm1530, %v3407, 0
        %v3489 = vsel %vm1534, %v3484, 0
        %3491 = vmatpush.bf16.msra.mxu0 0
        %3492 = vmatpush.bf16.msra.mxu0 0
        %3493 = vmatpush.bf16.msra.mxu0 0
        %3494 = vmatpush.bf16.msra.mxu0 0
        %3495 = vmatpush.bf16.msra.mxu0 0
        %3496 = vmatpush.bf16.msra.mxu0 0
        %3497 = vmatpush.bf16.msra.mxu0 0
        %3498 = vmatpush.bf16.msra.mxu0 %v3489
        %3499 = vmatmul.bf16.gmra.mxu0 %v3486
        %v3500 = vpop.f32.mrf.mxu0
        %v3501 = vadd.f32 0.0, %v3500
        %v3502 = vpop.f32.mrf.mxu0
        %3503 = vdwg.mxu0
        %3504 = vrot.lane.b32.xlu0 %v1049, 48
        %v3505 = vpop.permute.xlu0 %3504
        %v3507 = vsel %vm1530, %v3408, 0
        %v3510 = vsel %vm1534, %v3505, 0
        %3512 = vmatpush.bf16.msra.mxu0 0
        %3513 = vmatpush.bf16.msra.mxu0 0
        %3514 = vmatpush.bf16.msra.mxu0 0
        %3515 = vmatpush.bf16.msra.mxu0 0
        %3516 = vmatpush.bf16.msra.mxu0 0
        %3517 = vmatpush.bf16.msra.mxu0 0
        %3518 = vmatpush.bf16.msra.mxu0 0
        %3519 = vmatpush.bf16.msra.mxu0 %v3510
        %3520 = vmatmul.bf16.gmra.mxu0 %v3507
        %v3521 = vpop.f32.mrf.mxu0
        %v3522 = vadd.f32 0.0, %v3521
        %v3523 = vpop.f32.mrf.mxu0
        %3524 = vdwg.mxu0
        %3525 = vrot.lane.b32.xlu0 %v1073, 48
        %v3526 = vpop.permute.xlu0 %3525
        %v3528 = vsel %vm1530, %v3409, 0
        %v3531 = vsel %vm1534, %v3526, 0
        %3533 = vmatpush.bf16.msra.mxu0 0
        %3534 = vmatpush.bf16.msra.mxu0 0
        %3535 = vmatpush.bf16.msra.mxu0 0
        %3536 = vmatpush.bf16.msra.mxu0 0
        %3537 = vmatpush.bf16.msra.mxu0 0
        %3538 = vmatpush.bf16.msra.mxu0 0
        %3539 = vmatpush.bf16.msra.mxu0 0
        %3540 = vmatpush.bf16.msra.mxu0 %v3531
        %3541 = vmatmul.bf16.gmra.mxu0 %v3528
        %v3542 = vpop.f32.mrf.mxu0
        %v3543 = vadd.f32 0.0, %v3542
        %v3544 = vpop.f32.mrf.mxu0
        %3545 = vdwg.mxu0
        %3546 = vrot.lane.b32.xlu0 %v1097, 48
        %v3547 = vpop.permute.xlu0 %3546
        %v3549 = vsel %vm1530, %v3410, 0
        %v3552 = vsel %vm1534, %v3547, 0
        %3554 = vmatpush.bf16.msra.mxu0 0
        %3555 = vmatpush.bf16.msra.mxu0 0
        %3556 = vmatpush.bf16.msra.mxu0 0
        %3557 = vmatpush.bf16.msra.mxu0 0
        %3558 = vmatpush.bf16.msra.mxu0 0
        %3559 = vmatpush.bf16.msra.mxu0 0
        %3560 = vmatpush.bf16.msra.mxu0 0
        %3561 = vmatpush.bf16.msra.mxu0 %v3552
        %3562 = vmatmul.bf16.gmra.mxu0 %v3549
        %v3563 = vpop.f32.mrf.mxu0
        %v3564 = vadd.f32 0.0, %v3563
        %v3565 = vpop.f32.mrf.mxu0
        %3566 = vdwg.mxu0
        %3567 = vrot.lane.b32.xlu0 %v1121, 48
        %v3568 = vpop.permute.xlu0 %3567
        %v3570 = vsel %vm1530, %v3411, 0
        %v3573 = vsel %vm1534, %v3568, 0
        %3575 = vmatpush.bf16.msra.mxu0 0
        %3576 = vmatpush.bf16.msra.mxu0 0
        %3577 = vmatpush.bf16.msra.mxu0 0
        %3578 = vmatpush.bf16.msra.mxu0 0
        %3579 = vmatpush.bf16.msra.mxu0 0
        %3580 = vmatpush.bf16.msra.mxu0 0
        %3581 = vmatpush.bf16.msra.mxu0 0
        %3582 = vmatpush.bf16.msra.mxu0 %v3573
        %3583 = vmatmul.bf16.gmra.mxu0 %v3570
        %v3584 = vpop.f32.mrf.mxu0
        %v3585 = vadd.f32 0.0, %v3584
        %v3586 = vpop.f32.mrf.mxu0
        %3587 = vdwg.mxu0
        %3588 = vrot.lane.b32.xlu0 %v1145, 48
        %v3589 = vpop.permute.xlu0 %3588
        %v3591 = vsel %vm1530, %v3412, 0
        %v3594 = vsel %vm1534, %v3589, 0
        %3596 = vmatpush.bf16.msra.mxu0 0
        %3597 = vmatpush.bf16.msra.mxu0 0
        %3598 = vmatpush.bf16.msra.mxu0 0
        %3599 = vmatpush.bf16.msra.mxu0 0
        %3600 = vmatpush.bf16.msra.mxu0 0
        %3601 = vmatpush.bf16.msra.mxu0 0
        %3602 = vmatpush.bf16.msra.mxu0 0
        %3603 = vmatpush.bf16.msra.mxu0 %v3594
        %3604 = vmatmul.bf16.gmra.mxu0 %v3591
        %v3605 = vpop.f32.mrf.mxu0
        %v3606 = vadd.f32 0.0, %v3605
        %v3607 = vpop.f32.mrf.mxu0
        %3608 = vdwg.mxu0
        %3609 = vrot.lane.b32.xlu0 %v1169, 48
        %v3610 = vpop.permute.xlu0 %3609
        %v3612 = vsel %vm1530, %v3413, 0
        %v3615 = vsel %vm1534, %v3610, 0
        %3617 = vmatpush.bf16.msra.mxu0 0
        %3618 = vmatpush.bf16.msra.mxu0 0
        %3619 = vmatpush.bf16.msra.mxu0 0
        %3620 = vmatpush.bf16.msra.mxu0 0
        %3621 = vmatpush.bf16.msra.mxu0 0
        %3622 = vmatpush.bf16.msra.mxu0 0
        %3623 = vmatpush.bf16.msra.mxu0 0
        %3624 = vmatpush.bf16.msra.mxu0 %v3615
        %3625 = vmatmul.bf16.gmra.mxu0 %v3612
        %v3626 = vpop.f32.mrf.mxu0
        %v3627 = vadd.f32 0.0, %v3626
        %v3628 = vpop.f32.mrf.mxu0
        %3629 = vdwg.mxu0
        %3630 = vrot.lane.b32.xlu0 %v1193, 48
        %v3631 = vpop.permute.xlu0 %3630
        %v3633 = vsel %vm1530, %v3414, 0
        %v3636 = vsel %vm1534, %v3631, 0
        %3638 = vmatpush.bf16.msra.mxu0 0
        %3639 = vmatpush.bf16.msra.mxu0 0
        %3640 = vmatpush.bf16.msra.mxu0 0
        %3641 = vmatpush.bf16.msra.mxu0 0
        %3642 = vmatpush.bf16.msra.mxu0 0
        %3643 = vmatpush.bf16.msra.mxu0 0
        %3644 = vmatpush.bf16.msra.mxu0 0
        %3645 = vmatpush.bf16.msra.mxu0 %v3636
        %3646 = vmatmul.bf16.gmra.mxu0 %v3633
        %v3647 = vpop.f32.mrf.mxu0
        %v3648 = vadd.f32 0.0, %v3647
        %v3649 = vpop.f32.mrf.mxu0
        %3650 = vdwg.mxu0
        %3651 = vrot.lane.b32.xlu0 %v1217, 48
        %v3652 = vpop.permute.xlu0 %3651
        %v3654 = vsel %vm1530, %v3415, 0
        %v3657 = vsel %vm1534, %v3652, 0
        %3659 = vmatpush.bf16.msra.mxu0 0
        %3660 = vmatpush.bf16.msra.mxu0 0
        %3661 = vmatpush.bf16.msra.mxu0 0
        %3662 = vmatpush.bf16.msra.mxu0 0
        %3663 = vmatpush.bf16.msra.mxu0 0
        %3664 = vmatpush.bf16.msra.mxu0 0
        %3665 = vmatpush.bf16.msra.mxu0 0
        %3666 = vmatpush.bf16.msra.mxu0 %v3657
        %3667 = vmatmul.bf16.gmra.mxu0 %v3654
        %v3668 = vpop.f32.mrf.mxu0
        %v3669 = vadd.f32 0.0, %v3668
        %v3670 = vpop.f32.mrf.mxu0
        %3671 = vdwg.mxu0
        %3672 = vrot.lane.b32.xlu0 %v1241, 48
        %v3673 = vpop.permute.xlu0 %3672
        %v3675 = vsel %vm1530, %v3416, 0
        %v3678 = vsel %vm1534, %v3673, 0
        %3680 = vmatpush.bf16.msra.mxu0 0
        %3681 = vmatpush.bf16.msra.mxu0 0
        %3682 = vmatpush.bf16.msra.mxu0 0
        %3683 = vmatpush.bf16.msra.mxu0 0
        %3684 = vmatpush.bf16.msra.mxu0 0
        %3685 = vmatpush.bf16.msra.mxu0 0
        %3686 = vmatpush.bf16.msra.mxu0 0
        %3687 = vmatpush.bf16.msra.mxu0 %v3678
        %3688 = vmatmul.bf16.gmra.mxu0 %v3675
        %v3689 = vpop.f32.mrf.mxu0
        %v3690 = vadd.f32 0.0, %v3689
        %v3691 = vpop.f32.mrf.mxu0
        %3692 = vdwg.mxu0
        %3693 = vrot.lane.b32.xlu0 %v1265, 48
        %v3694 = vpop.permute.xlu0 %3693
        %v3696 = vsel %vm1530, %v3417, 0
        %v3699 = vsel %vm1534, %v3694, 0
        %3701 = vmatpush.bf16.msra.mxu0 0
        %3702 = vmatpush.bf16.msra.mxu0 0
        %3703 = vmatpush.bf16.msra.mxu0 0
        %3704 = vmatpush.bf16.msra.mxu0 0
        %3705 = vmatpush.bf16.msra.mxu0 0
        %3706 = vmatpush.bf16.msra.mxu0 0
        %3707 = vmatpush.bf16.msra.mxu0 0
        %3708 = vmatpush.bf16.msra.mxu0 %v3699
        %3709 = vmatmul.bf16.gmra.mxu0 %v3696
        %v3710 = vpop.f32.mrf.mxu0
        %v3711 = vadd.f32 0.0, %v3710
        %v3712 = vpop.f32.mrf.mxu0
        %3713 = vdwg.mxu0
        %3714 = vrot.lane.b32.xlu0 %v1289, 48
        %v3715 = vpop.permute.xlu0 %3714
        %v3717 = vsel %vm1530, %v3418, 0
        %v3720 = vsel %vm1534, %v3715, 0
        %3722 = vmatpush.bf16.msra.mxu0 0
        %3723 = vmatpush.bf16.msra.mxu0 0
        %3724 = vmatpush.bf16.msra.mxu0 0
        %3725 = vmatpush.bf16.msra.mxu0 0
        %3726 = vmatpush.bf16.msra.mxu0 0
        %3727 = vmatpush.bf16.msra.mxu0 0
        %3728 = vmatpush.bf16.msra.mxu0 0
        %3729 = vmatpush.bf16.msra.mxu0 %v3720
        %3730 = vmatmul.bf16.gmra.mxu0 %v3717
        %v3731 = vpop.f32.mrf.mxu0
        %v3732 = vadd.f32 0.0, %v3731
        %v3733 = vpop.f32.mrf.mxu0
        %3734 = vdwg.mxu0
        %3735 = vrot.lane.b32.xlu0 %v1313, 48
        %v3736 = vpop.permute.xlu0 %3735
        %v3738 = vsel %vm1530, %v3419, 0
        %v3741 = vsel %vm1534, %v3736, 0
        %3743 = vmatpush.bf16.msra.mxu0 0
        %3744 = vmatpush.bf16.msra.mxu0 0
        %3745 = vmatpush.bf16.msra.mxu0 0
        %3746 = vmatpush.bf16.msra.mxu0 0
        %3747 = vmatpush.bf16.msra.mxu0 0
        %3748 = vmatpush.bf16.msra.mxu0 0
        %3749 = vmatpush.bf16.msra.mxu0 0
        %3750 = vmatpush.bf16.msra.mxu0 %v3741
        %3751 = vmatmul.bf16.gmra.mxu0 %v3738
        %v3752 = vpop.f32.mrf.mxu0
        %v3753 = vadd.f32 0.0, %v3752
        %v3754 = vpop.f32.mrf.mxu0
        %3755 = vdwg.mxu0
        %3772 = vrot.lane.b32.xlu0 %v3438, 16
        %v3773 = vpop.permute.xlu0 %3772
        %3774 = vrot.lane.b32.xlu0 %v3459, 16
        %v3775 = vpop.permute.xlu0 %3774
        %3776 = vrot.lane.b32.xlu0 %v3480, 16
        %v3777 = vpop.permute.xlu0 %3776
        %3778 = vrot.lane.b32.xlu0 %v3501, 16
        %v3779 = vpop.permute.xlu0 %3778
        %3780 = vrot.lane.b32.xlu0 %v3522, 16
        %v3781 = vpop.permute.xlu0 %3780
        %3782 = vrot.lane.b32.xlu0 %v3543, 16
        %v3783 = vpop.permute.xlu0 %3782
        %3784 = vrot.lane.b32.xlu0 %v3564, 16
        %v3785 = vpop.permute.xlu0 %3784
        %3786 = vrot.lane.b32.xlu0 %v3585, 16
        %v3787 = vpop.permute.xlu0 %3786
        %3788 = vrot.lane.b32.xlu0 %v3606, 16
        %v3789 = vpop.permute.xlu0 %3788
        %3790 = vrot.lane.b32.xlu0 %v3627, 16
        %v3791 = vpop.permute.xlu0 %3790
        %3792 = vrot.lane.b32.xlu0 %v3648, 16
        %v3793 = vpop.permute.xlu0 %3792
        %3794 = vrot.lane.b32.xlu0 %v3669, 16
        %v3795 = vpop.permute.xlu0 %3794
        %3796 = vrot.lane.b32.xlu0 %v3690, 16
        %v3797 = vpop.permute.xlu0 %3796
        %3798 = vrot.lane.b32.xlu0 %v3711, 16
        %v3799 = vpop.permute.xlu0 %3798
        %3800 = vrot.lane.b32.xlu0 %v3732, 16
        %v3801 = vpop.permute.xlu0 %3800
        %3802 = vrot.lane.b32.xlu0 %v3753, 16
        %v3803 = vpop.permute.xlu0 %3802
        %vm3820 = vcmask 189568
        %3821 = vst.msk [vmem:[#allocation2] sm:$0x3] %vm3820, %v3773
        %3822 = vst.msk [vmem:[#allocation2 + $0x2] sm:$0x3] %vm3820, %v3775
        %3823 = vst.msk [vmem:[#allocation2 + $0x4] sm:$0x3] %vm3820, %v3777
        %3824 = vst.msk [vmem:[#allocation2 + $0x6] sm:$0x3] %vm3820, %v3779
        %3825 = vst.msk [vmem:[#allocation2 + $0x8] sm:$0x3] %vm3820, %v3781
        %3826 = vst.msk [vmem:[#allocation2 + $0xa] sm:$0x3] %vm3820, %v3783
        %3827 = vst.msk [vmem:[#allocation2 + $0xc] sm:$0x3] %vm3820, %v3785
        %3828 = vst.msk [vmem:[#allocation2 + $0xe] sm:$0x3] %vm3820, %v3787
        %3829 = vst.msk [vmem:[#allocation2 + $0x10] sm:$0x3] %vm3820, %v3789
        %3830 = vst.msk [vmem:[#allocation2 + $0x12] sm:$0x3] %vm3820, %v3791
        %3831 = vst.msk [vmem:[#allocation2 + $0x14] sm:$0x3] %vm3820, %v3793
        %3832 = vst.msk [vmem:[#allocation2 + $0x16] sm:$0x3] %vm3820, %v3795
        %3833 = vst.msk [vmem:[#allocation2 + $0x18] sm:$0x3] %vm3820, %v3797
        %3834 = vst.msk [vmem:[#allocation2 + $0x1a] sm:$0x3] %vm3820, %v3799
        %3835 = vst.msk [vmem:[#allocation2 + $0x1c] sm:$0x3] %vm3820, %v3801
        %3836 = vst.msk [vmem:[#allocation2 + $0x1e] sm:$0x3] %vm3820, %v3803
        %3837 = vrot.lane.b32.xlu0 %v952, 104
        %v3838 = vpop.permute.xlu0 %3837
        %3839 = vrot.lane.b32.xlu0 %v952, 72
        %v3840 = vpop.permute.xlu0 %3839
        %v3842 = vsel %vm955, %v3838, 0
        %v3845 = vsel %vm955, %v3840, 0
        %3847 = vmatpush.bf16.xpose.msra.mxu0 0
        %3848 = vmatpush.bf16.xpose.msra.mxu0 0
        %3849 = vmatpush.bf16.xpose.msra.mxu0 0
        %3850 = vmatpush.bf16.xpose.msra.mxu0 0
        %3851 = vmatpush.bf16.xpose.msra.mxu0 0
        %3852 = vmatpush.bf16.xpose.msra.mxu0 0
        %3853 = vmatpush.bf16.xpose.msra.mxu0 0
        %3854 = vmatpush.bf16.xpose.msra.mxu0 %v3845
        %3855 = vmatmul.bf16.gmra.mxu0 %v3842
        %v3856 = vpop.f32.mrf.mxu0
        %v3857 = vadd.f32 0.0, %v3856
        %v3858 = vpop.f32.mrf.mxu0
        %3859 = vdwg.mxu0
        %3860 = vrot.lane.b32.xlu0 %v977, 104
        %v3861 = vpop.permute.xlu0 %3860
        %3862 = vrot.lane.b32.xlu0 %v977, 72
        %v3863 = vpop.permute.xlu0 %3862
        %v3865 = vsel %vm955, %v3861, 0
        %v3868 = vsel %vm955, %v3863, 0
        %3870 = vmatpush.bf16.xpose.msra.mxu0 0
        %3871 = vmatpush.bf16.xpose.msra.mxu0 0
        %3872 = vmatpush.bf16.xpose.msra.mxu0 0
        %3873 = vmatpush.bf16.xpose.msra.mxu0 0
        %3874 = vmatpush.bf16.xpose.msra.mxu0 0
        %3875 = vmatpush.bf16.xpose.msra.mxu0 0
        %3876 = vmatpush.bf16.xpose.msra.mxu0 0
        %3877 = vmatpush.bf16.xpose.msra.mxu0 %v3868
        %3878 = vmatmul.bf16.gmra.mxu0 %v3865
        %v3879 = vpop.f32.mrf.mxu0
        %v3880 = vadd.f32 0.0, %v3879
        %v3881 = vpop.f32.mrf.mxu0
        %3882 = vdwg.mxu0
        %3883 = vrot.lane.b32.xlu0 %v1001, 104
        %v3884 = vpop.permute.xlu0 %3883
        %3885 = vrot.lane.b32.xlu0 %v1001, 72
        %v3886 = vpop.permute.xlu0 %3885
        %v3888 = vsel %vm955, %v3884, 0
        %v3891 = vsel %vm955, %v3886, 0
        %3893 = vmatpush.bf16.xpose.msra.mxu0 0
        %3894 = vmatpush.bf16.xpose.msra.mxu0 0
        %3895 = vmatpush.bf16.xpose.msra.mxu0 0
        %3896 = vmatpush.bf16.xpose.msra.mxu0 0
        %3897 = vmatpush.bf16.xpose.msra.mxu0 0
        %3898 = vmatpush.bf16.xpose.msra.mxu0 0
        %3899 = vmatpush.bf16.xpose.msra.mxu0 0
        %3900 = vmatpush.bf16.xpose.msra.mxu0 %v3891
        %3901 = vmatmul.bf16.gmra.mxu0 %v3888
        %v3902 = vpop.f32.mrf.mxu0
        %v3903 = vadd.f32 0.0, %v3902
        %v3904 = vpop.f32.mrf.mxu0
        %3905 = vdwg.mxu0
        %3906 = vrot.lane.b32.xlu0 %v1025, 104
        %v3907 = vpop.permute.xlu0 %3906
        %3908 = vrot.lane.b32.xlu0 %v1025, 72
        %v3909 = vpop.permute.xlu0 %3908
        %v3911 = vsel %vm955, %v3907, 0
        %v3914 = vsel %vm955, %v3909, 0
        %3916 = vmatpush.bf16.xpose.msra.mxu0 0
        %3917 = vmatpush.bf16.xpose.msra.mxu0 0
        %3918 = vmatpush.bf16.xpose.msra.mxu0 0
        %3919 = vmatpush.bf16.xpose.msra.mxu0 0
        %3920 = vmatpush.bf16.xpose.msra.mxu0 0
        %3921 = vmatpush.bf16.xpose.msra.mxu0 0
        %3922 = vmatpush.bf16.xpose.msra.mxu0 0
        %3923 = vmatpush.bf16.xpose.msra.mxu0 %v3914
        %3924 = vmatmul.bf16.gmra.mxu0 %v3911
        %v3925 = vpop.f32.mrf.mxu0
        %v3926 = vadd.f32 0.0, %v3925
        %v3927 = vpop.f32.mrf.mxu0
        %3928 = vdwg.mxu0
        %3929 = vrot.lane.b32.xlu0 %v1049, 104
        %v3930 = vpop.permute.xlu0 %3929
        %3931 = vrot.lane.b32.xlu0 %v1049, 72
        %v3932 = vpop.permute.xlu0 %3931
        %v3934 = vsel %vm955, %v3930, 0
        %v3937 = vsel %vm955, %v3932, 0
        %3939 = vmatpush.bf16.xpose.msra.mxu0 0
        %3940 = vmatpush.bf16.xpose.msra.mxu0 0
        %3941 = vmatpush.bf16.xpose.msra.mxu0 0
        %3942 = vmatpush.bf16.xpose.msra.mxu0 0
        %3943 = vmatpush.bf16.xpose.msra.mxu0 0
        %3944 = vmatpush.bf16.xpose.msra.mxu0 0
        %3945 = vmatpush.bf16.xpose.msra.mxu0 0
        %3946 = vmatpush.bf16.xpose.msra.mxu0 %v3937
        %3947 = vmatmul.bf16.gmra.mxu0 %v3934
        %v3948 = vpop.f32.mrf.mxu0
        %v3949 = vadd.f32 0.0, %v3948
        %v3950 = vpop.f32.mrf.mxu0
        %3951 = vdwg.mxu0
        %3952 = vrot.lane.b32.xlu0 %v1073, 104
        %v3953 = vpop.permute.xlu0 %3952
        %3954 = vrot.lane.b32.xlu0 %v1073, 72
        %v3955 = vpop.permute.xlu0 %3954
        %v3957 = vsel %vm955, %v3953, 0
        %v3960 = vsel %vm955, %v3955, 0
        %3962 = vmatpush.bf16.xpose.msra.mxu0 0
        %3963 = vmatpush.bf16.xpose.msra.mxu0 0
        %3964 = vmatpush.bf16.xpose.msra.mxu0 0
        %3965 = vmatpush.bf16.xpose.msra.mxu0 0
        %3966 = vmatpush.bf16.xpose.msra.mxu0 0
        %3967 = vmatpush.bf16.xpose.msra.mxu0 0
        %3968 = vmatpush.bf16.xpose.msra.mxu0 0
        %3969 = vmatpush.bf16.xpose.msra.mxu0 %v3960
        %3970 = vmatmul.bf16.gmra.mxu0 %v3957
        %v3971 = vpop.f32.mrf.mxu0
        %v3972 = vadd.f32 0.0, %v3971
        %v3973 = vpop.f32.mrf.mxu0
        %3974 = vdwg.mxu0
        %3975 = vrot.lane.b32.xlu0 %v1097, 104
        %v3976 = vpop.permute.xlu0 %3975
        %3977 = vrot.lane.b32.xlu0 %v1097, 72
        %v3978 = vpop.permute.xlu0 %3977
        %v3980 = vsel %vm955, %v3976, 0
        %v3983 = vsel %vm955, %v3978, 0
        %3985 = vmatpush.bf16.xpose.msra.mxu0 0
        %3986 = vmatpush.bf16.xpose.msra.mxu0 0
        %3987 = vmatpush.bf16.xpose.msra.mxu0 0
        %3988 = vmatpush.bf16.xpose.msra.mxu0 0
        %3989 = vmatpush.bf16.xpose.msra.mxu0 0
        %3990 = vmatpush.bf16.xpose.msra.mxu0 0
        %3991 = vmatpush.bf16.xpose.msra.mxu0 0
        %3992 = vmatpush.bf16.xpose.msra.mxu0 %v3983
        %3993 = vmatmul.bf16.gmra.mxu0 %v3980
        %v3994 = vpop.f32.mrf.mxu0
        %v3995 = vadd.f32 0.0, %v3994
        %v3996 = vpop.f32.mrf.mxu0
        %3997 = vdwg.mxu0
        %3998 = vrot.lane.b32.xlu0 %v1121, 104
        %v3999 = vpop.permute.xlu0 %3998
        %4000 = vrot.lane.b32.xlu0 %v1121, 72
        %v4001 = vpop.permute.xlu0 %4000
        %v4003 = vsel %vm955, %v3999, 0
        %v4006 = vsel %vm955, %v4001, 0
        %4008 = vmatpush.bf16.xpose.msra.mxu0 0
        %4009 = vmatpush.bf16.xpose.msra.mxu0 0
        %4010 = vmatpush.bf16.xpose.msra.mxu0 0
        %4011 = vmatpush.bf16.xpose.msra.mxu0 0
        %4012 = vmatpush.bf16.xpose.msra.mxu0 0
        %4013 = vmatpush.bf16.xpose.msra.mxu0 0
        %4014 = vmatpush.bf16.xpose.msra.mxu0 0
        %4015 = vmatpush.bf16.xpose.msra.mxu0 %v4006
        %4016 = vmatmul.bf16.gmra.mxu0 %v4003
        %v4017 = vpop.f32.mrf.mxu0
        %v4018 = vadd.f32 0.0, %v4017
        %v4019 = vpop.f32.mrf.mxu0
        %4020 = vdwg.mxu0
        %4021 = vrot.lane.b32.xlu0 %v1145, 104
        %v4022 = vpop.permute.xlu0 %4021
        %4023 = vrot.lane.b32.xlu0 %v1145, 72
        %v4024 = vpop.permute.xlu0 %4023
        %v4026 = vsel %vm955, %v4022, 0
        %v4029 = vsel %vm955, %v4024, 0
        %4031 = vmatpush.bf16.xpose.msra.mxu0 0
        %4032 = vmatpush.bf16.xpose.msra.mxu0 0
        %4033 = vmatpush.bf16.xpose.msra.mxu0 0
        %4034 = vmatpush.bf16.xpose.msra.mxu0 0
        %4035 = vmatpush.bf16.xpose.msra.mxu0 0
        %4036 = vmatpush.bf16.xpose.msra.mxu0 0
        %4037 = vmatpush.bf16.xpose.msra.mxu0 0
        %4038 = vmatpush.bf16.xpose.msra.mxu0 %v4029
        %4039 = vmatmul.bf16.gmra.mxu0 %v4026
        %v4040 = vpop.f32.mrf.mxu0
        %v4041 = vadd.f32 0.0, %v4040
        %v4042 = vpop.f32.mrf.mxu0
        %4043 = vdwg.mxu0
        %4044 = vrot.lane.b32.xlu0 %v1169, 104
        %v4045 = vpop.permute.xlu0 %4044
        %4046 = vrot.lane.b32.xlu0 %v1169, 72
        %v4047 = vpop.permute.xlu0 %4046
        %v4049 = vsel %vm955, %v4045, 0
        %v4052 = vsel %vm955, %v4047, 0
        %4054 = vmatpush.bf16.xpose.msra.mxu0 0
        %4055 = vmatpush.bf16.xpose.msra.mxu0 0
        %4056 = vmatpush.bf16.xpose.msra.mxu0 0
        %4057 = vmatpush.bf16.xpose.msra.mxu0 0
        %4058 = vmatpush.bf16.xpose.msra.mxu0 0
        %4059 = vmatpush.bf16.xpose.msra.mxu0 0
        %4060 = vmatpush.bf16.xpose.msra.mxu0 0
        %4061 = vmatpush.bf16.xpose.msra.mxu0 %v4052
        %4062 = vmatmul.bf16.gmra.mxu0 %v4049
        %v4063 = vpop.f32.mrf.mxu0
        %v4064 = vadd.f32 0.0, %v4063
        %v4065 = vpop.f32.mrf.mxu0
        %4066 = vdwg.mxu0
        %4067 = vrot.lane.b32.xlu0 %v1193, 104
        %v4068 = vpop.permute.xlu0 %4067
        %4069 = vrot.lane.b32.xlu0 %v1193, 72
        %v4070 = vpop.permute.xlu0 %4069
        %v4072 = vsel %vm955, %v4068, 0
        %v4075 = vsel %vm955, %v4070, 0
        %4077 = vmatpush.bf16.xpose.msra.mxu0 0
        %4078 = vmatpush.bf16.xpose.msra.mxu0 0
        %4079 = vmatpush.bf16.xpose.msra.mxu0 0
        %4080 = vmatpush.bf16.xpose.msra.mxu0 0
        %4081 = vmatpush.bf16.xpose.msra.mxu0 0
        %4082 = vmatpush.bf16.xpose.msra.mxu0 0
        %4083 = vmatpush.bf16.xpose.msra.mxu0 0
        %4084 = vmatpush.bf16.xpose.msra.mxu0 %v4075
        %4085 = vmatmul.bf16.gmra.mxu0 %v4072
        %v4086 = vpop.f32.mrf.mxu0
        %v4087 = vadd.f32 0.0, %v4086
        %v4088 = vpop.f32.mrf.mxu0
        %4089 = vdwg.mxu0
        %4090 = vrot.lane.b32.xlu0 %v1217, 104
        %v4091 = vpop.permute.xlu0 %4090
        %4092 = vrot.lane.b32.xlu0 %v1217, 72
        %v4093 = vpop.permute.xlu0 %4092
        %v4095 = vsel %vm955, %v4091, 0
        %v4098 = vsel %vm955, %v4093, 0
        %4100 = vmatpush.bf16.xpose.msra.mxu0 0
        %4101 = vmatpush.bf16.xpose.msra.mxu0 0
        %4102 = vmatpush.bf16.xpose.msra.mxu0 0
        %4103 = vmatpush.bf16.xpose.msra.mxu0 0
        %4104 = vmatpush.bf16.xpose.msra.mxu0 0
        %4105 = vmatpush.bf16.xpose.msra.mxu0 0
        %4106 = vmatpush.bf16.xpose.msra.mxu0 0
        %4107 = vmatpush.bf16.xpose.msra.mxu0 %v4098
        %4108 = vmatmul.bf16.gmra.mxu0 %v4095
        %v4109 = vpop.f32.mrf.mxu0
        %v4110 = vadd.f32 0.0, %v4109
        %v4111 = vpop.f32.mrf.mxu0
        %4112 = vdwg.mxu0
        %4113 = vrot.lane.b32.xlu0 %v1241, 104
        %v4114 = vpop.permute.xlu0 %4113
        %4115 = vrot.lane.b32.xlu0 %v1241, 72
        %v4116 = vpop.permute.xlu0 %4115
        %v4118 = vsel %vm955, %v4114, 0
        %v4121 = vsel %vm955, %v4116, 0
        %4123 = vmatpush.bf16.xpose.msra.mxu0 0
        %4124 = vmatpush.bf16.xpose.msra.mxu0 0
        %4125 = vmatpush.bf16.xpose.msra.mxu0 0
        %4126 = vmatpush.bf16.xpose.msra.mxu0 0
        %4127 = vmatpush.bf16.xpose.msra.mxu0 0
        %4128 = vmatpush.bf16.xpose.msra.mxu0 0
        %4129 = vmatpush.bf16.xpose.msra.mxu0 0
        %4130 = vmatpush.bf16.xpose.msra.mxu0 %v4121
        %4131 = vmatmul.bf16.gmra.mxu0 %v4118
        %v4132 = vpop.f32.mrf.mxu0
        %v4133 = vadd.f32 0.0, %v4132
        %v4134 = vpop.f32.mrf.mxu0
        %4135 = vdwg.mxu0
        %4136 = vrot.lane.b32.xlu0 %v1265, 104
        %v4137 = vpop.permute.xlu0 %4136
        %4138 = vrot.lane.b32.xlu0 %v1265, 72
        %v4139 = vpop.permute.xlu0 %4138
        %v4141 = vsel %vm955, %v4137, 0
        %v4144 = vsel %vm955, %v4139, 0
        %4146 = vmatpush.bf16.xpose.msra.mxu0 0
        %4147 = vmatpush.bf16.xpose.msra.mxu0 0
        %4148 = vmatpush.bf16.xpose.msra.mxu0 0
        %4149 = vmatpush.bf16.xpose.msra.mxu0 0
        %4150 = vmatpush.bf16.xpose.msra.mxu0 0
        %4151 = vmatpush.bf16.xpose.msra.mxu0 0
        %4152 = vmatpush.bf16.xpose.msra.mxu0 0
        %4153 = vmatpush.bf16.xpose.msra.mxu0 %v4144
        %4154 = vmatmul.bf16.gmra.mxu0 %v4141
        %v4155 = vpop.f32.mrf.mxu0
        %v4156 = vadd.f32 0.0, %v4155
        %v4157 = vpop.f32.mrf.mxu0
        %4158 = vdwg.mxu0
        %4159 = vrot.lane.b32.xlu0 %v1289, 104
        %v4160 = vpop.permute.xlu0 %4159
        %4161 = vrot.lane.b32.xlu0 %v1289, 72
        %v4162 = vpop.permute.xlu0 %4161
        %v4164 = vsel %vm955, %v4160, 0
        %v4167 = vsel %vm955, %v4162, 0
        %4169 = vmatpush.bf16.xpose.msra.mxu0 0
        %4170 = vmatpush.bf16.xpose.msra.mxu0 0
        %4171 = vmatpush.bf16.xpose.msra.mxu0 0
        %4172 = vmatpush.bf16.xpose.msra.mxu0 0
        %4173 = vmatpush.bf16.xpose.msra.mxu0 0
        %4174 = vmatpush.bf16.xpose.msra.mxu0 0
        %4175 = vmatpush.bf16.xpose.msra.mxu0 0
        %4176 = vmatpush.bf16.xpose.msra.mxu0 %v4167
        %4177 = vmatmul.bf16.gmra.mxu0 %v4164
        %v4178 = vpop.f32.mrf.mxu0
        %v4179 = vadd.f32 0.0, %v4178
        %v4180 = vpop.f32.mrf.mxu0
        %4181 = vdwg.mxu0
        %4182 = vrot.lane.b32.xlu0 %v1313, 104
        %v4183 = vpop.permute.xlu0 %4182
        %4184 = vrot.lane.b32.xlu0 %v1313, 72
        %v4185 = vpop.permute.xlu0 %4184
        %v4187 = vsel %vm955, %v4183, 0
        %v4190 = vsel %vm955, %v4185, 0
        %4192 = vmatpush.bf16.xpose.msra.mxu0 0
        %4193 = vmatpush.bf16.xpose.msra.mxu0 0
        %4194 = vmatpush.bf16.xpose.msra.mxu0 0
        %4195 = vmatpush.bf16.xpose.msra.mxu0 0
        %4196 = vmatpush.bf16.xpose.msra.mxu0 0
        %4197 = vmatpush.bf16.xpose.msra.mxu0 0
        %4198 = vmatpush.bf16.xpose.msra.mxu0 0
        %4199 = vmatpush.bf16.xpose.msra.mxu0 %v4190
        %4200 = vmatmul.bf16.gmra.mxu0 %v4187
        %v4201 = vpop.f32.mrf.mxu0
        %v4202 = vadd.f32 0.0, %v4201
        %v4203 = vpop.f32.mrf.mxu0
        %4204 = vdwg.mxu0
        %v4205 = vsel %vm1335, %v3857, -inf
        %4206 = vmax.xlane.f32.xlu0 %v4205
        %v4207 = vpop.xlane.xlu0 %4206
        %v4208 = vsel %vm1335, %v3880, -inf
        %4209 = vmax.xlane.f32.xlu0 %v4208
        %v4210 = vpop.xlane.xlu0 %4209
        %v4211 = vsel %vm1335, %v3903, -inf
        %4212 = vmax.xlane.f32.xlu0 %v4211
        %v4213 = vpop.xlane.xlu0 %4212
        %v4214 = vsel %vm1335, %v3926, -inf
        %4215 = vmax.xlane.f32.xlu0 %v4214
        %v4216 = vpop.xlane.xlu0 %4215
        %v4217 = vsel %vm1335, %v3949, -inf
        %4218 = vmax.xlane.f32.xlu0 %v4217
        %v4219 = vpop.xlane.xlu0 %4218
        %v4220 = vsel %vm1335, %v3972, -inf
        %4221 = vmax.xlane.f32.xlu0 %v4220
        %v4222 = vpop.xlane.xlu0 %4221
        %v4223 = vsel %vm1335, %v3995, -inf
        %4224 = vmax.xlane.f32.xlu0 %v4223
        %v4225 = vpop.xlane.xlu0 %4224
        %v4226 = vsel %vm1335, %v4018, -inf
        %4227 = vmax.xlane.f32.xlu0 %v4226
        %v4228 = vpop.xlane.xlu0 %4227
        %v4229 = vsel %vm1335, %v4041, -inf
        %4230 = vmax.xlane.f32.xlu0 %v4229
        %v4231 = vpop.xlane.xlu0 %4230
        %v4232 = vsel %vm1335, %v4064, -inf
        %4233 = vmax.xlane.f32.xlu0 %v4232
        %v4234 = vpop.xlane.xlu0 %4233
        %v4235 = vsel %vm1335, %v4087, -inf
        %4236 = vmax.xlane.f32.xlu0 %v4235
        %v4237 = vpop.xlane.xlu0 %4236
        %v4238 = vsel %vm1335, %v4110, -inf
        %4239 = vmax.xlane.f32.xlu0 %v4238
        %v4240 = vpop.xlane.xlu0 %4239
        %v4241 = vsel %vm1335, %v4133, -inf
        %4242 = vmax.xlane.f32.xlu0 %v4241
        %v4243 = vpop.xlane.xlu0 %4242
        %v4244 = vsel %vm1335, %v4156, -inf
        %4245 = vmax.xlane.f32.xlu0 %v4244
        %v4246 = vpop.xlane.xlu0 %4245
        %v4247 = vsel %vm1335, %v4179, -inf
        %4248 = vmax.xlane.f32.xlu0 %v4247
        %v4249 = vpop.xlane.xlu0 %4248
        %v4250 = vsel %vm1335, %v4202, -inf
        %4251 = vmax.xlane.f32.xlu0 %v4250
        %v4252 = vpop.xlane.xlu0 %4251
        %v4253 = vsub.f32 %v3857, %v4207
        %v4254 = vsub.f32 %v3880, %v4210
        %v4255 = vsub.f32 %v3903, %v4213
        %v4256 = vsub.f32 %v3926, %v4216
        %v4257 = vsub.f32 %v3949, %v4219
        %v4258 = vsub.f32 %v3972, %v4222
        %v4259 = vsub.f32 %v3995, %v4225
        %v4260 = vsub.f32 %v4018, %v4228
        %v4261 = vsub.f32 %v4041, %v4231
        %v4262 = vsub.f32 %v4064, %v4234
        %v4263 = vsub.f32 %v4087, %v4237
        %v4264 = vsub.f32 %v4110, %v4240
        %v4265 = vsub.f32 %v4133, %v4243
        %v4266 = vsub.f32 %v4156, %v4246
        %v4267 = vsub.f32 %v4179, %v4249
        %v4268 = vsub.f32 %v4202, %v4252
        %v4269 = vmul.f32 %v4253, 1.442695
        %v4270 = vpow.pop %v4269
        %v4271 = vmul.f32 %v4254, 1.442695
        %v4272 = vpow.pop %v4271
        %v4273 = vmul.f32 %v4255, 1.442695
        %v4274 = vpow.pop %v4273
        %v4275 = vmul.f32 %v4256, 1.442695
        %v4276 = vpow.pop %v4275
        %v4277 = vmul.f32 %v4257, 1.442695
        %v4278 = vpow.pop %v4277
        %v4279 = vmul.f32 %v4258, 1.442695
        %v4280 = vpow.pop %v4279
        %v4281 = vmul.f32 %v4259, 1.442695
        %v4282 = vpow.pop %v4281
        %v4283 = vmul.f32 %v4260, 1.442695
        %v4284 = vpow.pop %v4283
        %v4285 = vmul.f32 %v4261, 1.442695
        %v4286 = vpow.pop %v4285
        %v4287 = vmul.f32 %v4262, 1.442695
        %v4288 = vpow.pop %v4287
        %v4289 = vmul.f32 %v4263, 1.442695
        %v4290 = vpow.pop %v4289
        %v4291 = vmul.f32 %v4264, 1.442695
        %v4292 = vpow.pop %v4291
        %v4293 = vmul.f32 %v4265, 1.442695
        %v4294 = vpow.pop %v4293
        %v4295 = vmul.f32 %v4266, 1.442695
        %v4296 = vpow.pop %v4295
        %v4297 = vmul.f32 %v4267, 1.442695
        %v4298 = vpow.pop %v4297
        %v4299 = vmul.f32 %v4268, 1.442695
        %v4300 = vpow.pop %v4299
        %v4301 = vsel %vm1335, %v4270, 0.0
        %4302 = vadd.xlane.f32.xlu0 %v4301
        %v4303 = vpop.xlane.xlu0 %4302
        %v4304 = vsel %vm1335, %v4272, 0.0
        %4305 = vadd.xlane.f32.xlu0 %v4304
        %v4306 = vpop.xlane.xlu0 %4305
        %v4307 = vsel %vm1335, %v4274, 0.0
        %4308 = vadd.xlane.f32.xlu0 %v4307
        %v4309 = vpop.xlane.xlu0 %4308
        %v4310 = vsel %vm1335, %v4276, 0.0
        %4311 = vadd.xlane.f32.xlu0 %v4310
        %v4312 = vpop.xlane.xlu0 %4311
        %v4313 = vsel %vm1335, %v4278, 0.0
        %4314 = vadd.xlane.f32.xlu0 %v4313
        %v4315 = vpop.xlane.xlu0 %4314
        %v4316 = vsel %vm1335, %v4280, 0.0
        %4317 = vadd.xlane.f32.xlu0 %v4316
        %v4318 = vpop.xlane.xlu0 %4317
        %v4319 = vsel %vm1335, %v4282, 0.0
        %4320 = vadd.xlane.f32.xlu0 %v4319
        %v4321 = vpop.xlane.xlu0 %4320
        %v4322 = vsel %vm1335, %v4284, 0.0
        %4323 = vadd.xlane.f32.xlu0 %v4322
        %v4324 = vpop.xlane.xlu0 %4323
        %v4325 = vsel %vm1335, %v4286, 0.0
        %4326 = vadd.xlane.f32.xlu0 %v4325
        %v4327 = vpop.xlane.xlu0 %4326
        %v4328 = vsel %vm1335, %v4288, 0.0
        %4329 = vadd.xlane.f32.xlu0 %v4328
        %v4330 = vpop.xlane.xlu0 %4329
        %v4331 = vsel %vm1335, %v4290, 0.0
        %4332 = vadd.xlane.f32.xlu0 %v4331
        %v4333 = vpop.xlane.xlu0 %4332
        %v4334 = vsel %vm1335, %v4292, 0.0
        %4335 = vadd.xlane.f32.xlu0 %v4334
        %v4336 = vpop.xlane.xlu0 %4335
        %v4337 = vsel %vm1335, %v4294, 0.0
        %4338 = vadd.xlane.f32.xlu0 %v4337
        %v4339 = vpop.xlane.xlu0 %4338
        %v4340 = vsel %vm1335, %v4296, 0.0
        %4341 = vadd.xlane.f32.xlu0 %v4340
        %v4342 = vpop.xlane.xlu0 %4341
        %v4343 = vsel %vm1335, %v4298, 0.0
        %4344 = vadd.xlane.f32.xlu0 %v4343
        %v4345 = vpop.xlane.xlu0 %4344
        %v4346 = vsel %vm1335, %v4300, 0.0
        %4347 = vadd.xlane.f32.xlu0 %v4346
        %v4348 = vpop.xlane.xlu0 %4347
        %v4349 = vrcp.pop %v4303
        %v4350 = vrcp.pop %v4306
        %v4351 = vrcp.pop %v4309
        %v4352 = vrcp.pop %v4312
        %v4353 = vrcp.pop %v4315
        %v4354 = vrcp.pop %v4318
        %v4355 = vrcp.pop %v4321
        %v4356 = vrcp.pop %v4324
        %v4357 = vrcp.pop %v4327
        %v4358 = vrcp.pop %v4330
        %v4359 = vrcp.pop %v4333
        %v4360 = vrcp.pop %v4336
        %v4361 = vrcp.pop %v4339
        %v4362 = vrcp.pop %v4342
        %v4363 = vrcp.pop %v4345
        %v4364 = vrcp.pop %v4348
        %v4365 = vmul.f32 %v4270, %v4349
        %v4366 = vmul.f32 %v4272, %v4350
        %v4367 = vmul.f32 %v4274, %v4351
        %v4368 = vmul.f32 %v4276, %v4352
        %v4369 = vmul.f32 %v4278, %v4353
        %v4370 = vmul.f32 %v4280, %v4354
        %v4371 = vmul.f32 %v4282, %v4355
        %v4372 = vmul.f32 %v4284, %v4356
        %v4373 = vmul.f32 %v4286, %v4357
        %v4374 = vmul.f32 %v4288, %v4358
        %v4375 = vmul.f32 %v4290, %v4359
        %v4376 = vmul.f32 %v4292, %v4360
        %v4377 = vmul.f32 %v4294, %v4361
        %v4378 = vmul.f32 %v4296, %v4362
        %v4379 = vmul.f32 %v4298, %v4363
        %v4380 = vmul.f32 %v4300, %v4364
        %v4381 = vpack.c.bf16 %v4365, %v4365
        %v4382 = vpack.c.bf16 %v4366, %v4366
        %v4383 = vpack.c.bf16 %v4367, %v4367
        %v4384 = vpack.c.bf16 %v4368, %v4368
        %v4385 = vpack.c.bf16 %v4369, %v4369
        %v4386 = vpack.c.bf16 %v4370, %v4370
        %v4387 = vpack.c.bf16 %v4371, %v4371
        %v4388 = vpack.c.bf16 %v4372, %v4372
        %v4389 = vpack.c.bf16 %v4373, %v4373
        %v4390 = vpack.c.bf16 %v4374, %v4374
        %v4391 = vpack.c.bf16 %v4375, %v4375
        %v4392 = vpack.c.bf16 %v4376, %v4376
        %v4393 = vpack.c.bf16 %v4377, %v4377
        %v4394 = vpack.c.bf16 %v4378, %v4378
        %v4395 = vpack.c.bf16 %v4379, %v4379
        %v4396 = vpack.c.bf16 %v4380, %v4380
        %4397 = vrot.lane.b32.xlu0 %v952, 40
        %v4398 = vpop.permute.xlu0 %4397
        %v4400 = vsel %vm1530, %v4381, 0
        %v4403 = vsel %vm1534, %v4398, 0
        %4405 = vmatpush.bf16.msra.mxu0 0
        %4406 = vmatpush.bf16.msra.mxu0 0
        %4407 = vmatpush.bf16.msra.mxu0 0
        %4408 = vmatpush.bf16.msra.mxu0 0
        %4409 = vmatpush.bf16.msra.mxu0 0
        %4410 = vmatpush.bf16.msra.mxu0 0
        %4411 = vmatpush.bf16.msra.mxu0 0
        %4412 = vmatpush.bf16.msra.mxu0 %v4403
        %4413 = vmatmul.bf16.gmra.mxu0 %v4400
        %v4414 = vpop.f32.mrf.mxu0
        %v4415 = vadd.f32 0.0, %v4414
        %v4416 = vpop.f32.mrf.mxu0
        %4417 = vdwg.mxu0
        %4418 = vrot.lane.b32.xlu0 %v977, 40
        %v4419 = vpop.permute.xlu0 %4418
        %v4421 = vsel %vm1530, %v4382, 0
        %v4424 = vsel %vm1534, %v4419, 0
        %4426 = vmatpush.bf16.msra.mxu0 0
        %4427 = vmatpush.bf16.msra.mxu0 0
        %4428 = vmatpush.bf16.msra.mxu0 0
        %4429 = vmatpush.bf16.msra.mxu0 0
        %4430 = vmatpush.bf16.msra.mxu0 0
        %4431 = vmatpush.bf16.msra.mxu0 0
        %4432 = vmatpush.bf16.msra.mxu0 0
        %4433 = vmatpush.bf16.msra.mxu0 %v4424
        %4434 = vmatmul.bf16.gmra.mxu0 %v4421
        %v4435 = vpop.f32.mrf.mxu0
        %v4436 = vadd.f32 0.0, %v4435
        %v4437 = vpop.f32.mrf.mxu0
        %4438 = vdwg.mxu0
        %4439 = vrot.lane.b32.xlu0 %v1001, 40
        %v4440 = vpop.permute.xlu0 %4439
        %v4442 = vsel %vm1530, %v4383, 0
        %v4445 = vsel %vm1534, %v4440, 0
        %4447 = vmatpush.bf16.msra.mxu0 0
        %4448 = vmatpush.bf16.msra.mxu0 0
        %4449 = vmatpush.bf16.msra.mxu0 0
        %4450 = vmatpush.bf16.msra.mxu0 0
        %4451 = vmatpush.bf16.msra.mxu0 0
        %4452 = vmatpush.bf16.msra.mxu0 0
        %4453 = vmatpush.bf16.msra.mxu0 0
        %4454 = vmatpush.bf16.msra.mxu0 %v4445
        %4455 = vmatmul.bf16.gmra.mxu0 %v4442
        %v4456 = vpop.f32.mrf.mxu0
        %v4457 = vadd.f32 0.0, %v4456
        %v4458 = vpop.f32.mrf.mxu0
        %4459 = vdwg.mxu0
        %4460 = vrot.lane.b32.xlu0 %v1025, 40
        %v4461 = vpop.permute.xlu0 %4460
        %v4463 = vsel %vm1530, %v4384, 0
        %v4466 = vsel %vm1534, %v4461, 0
        %4468 = vmatpush.bf16.msra.mxu0 0
        %4469 = vmatpush.bf16.msra.mxu0 0
        %4470 = vmatpush.bf16.msra.mxu0 0
        %4471 = vmatpush.bf16.msra.mxu0 0
        %4472 = vmatpush.bf16.msra.mxu0 0
        %4473 = vmatpush.bf16.msra.mxu0 0
        %4474 = vmatpush.bf16.msra.mxu0 0
        %4475 = vmatpush.bf16.msra.mxu0 %v4466
        %4476 = vmatmul.bf16.gmra.mxu0 %v4463
        %v4477 = vpop.f32.mrf.mxu0
        %v4478 = vadd.f32 0.0, %v4477
        %v4479 = vpop.f32.mrf.mxu0
        %4480 = vdwg.mxu0
        %4481 = vrot.lane.b32.xlu0 %v1049, 40
        %v4482 = vpop.permute.xlu0 %4481
        %v4484 = vsel %vm1530, %v4385, 0
        %v4487 = vsel %vm1534, %v4482, 0
        %4489 = vmatpush.bf16.msra.mxu0 0
        %4490 = vmatpush.bf16.msra.mxu0 0
        %4491 = vmatpush.bf16.msra.mxu0 0
        %4492 = vmatpush.bf16.msra.mxu0 0
        %4493 = vmatpush.bf16.msra.mxu0 0
        %4494 = vmatpush.bf16.msra.mxu0 0
        %4495 = vmatpush.bf16.msra.mxu0 0
        %4496 = vmatpush.bf16.msra.mxu0 %v4487
        %4497 = vmatmul.bf16.gmra.mxu0 %v4484
        %v4498 = vpop.f32.mrf.mxu0
        %v4499 = vadd.f32 0.0, %v4498
        %v4500 = vpop.f32.mrf.mxu0
        %4501 = vdwg.mxu0
        %4502 = vrot.lane.b32.xlu0 %v1073, 40
        %v4503 = vpop.permute.xlu0 %4502
        %v4505 = vsel %vm1530, %v4386, 0
        %v4508 = vsel %vm1534, %v4503, 0
        %4510 = vmatpush.bf16.msra.mxu0 0
        %4511 = vmatpush.bf16.msra.mxu0 0
        %4512 = vmatpush.bf16.msra.mxu0 0
        %4513 = vmatpush.bf16.msra.mxu0 0
        %4514 = vmatpush.bf16.msra.mxu0 0
        %4515 = vmatpush.bf16.msra.mxu0 0
        %4516 = vmatpush.bf16.msra.mxu0 0
        %4517 = vmatpush.bf16.msra.mxu0 %v4508
        %4518 = vmatmul.bf16.gmra.mxu0 %v4505
        %v4519 = vpop.f32.mrf.mxu0
        %v4520 = vadd.f32 0.0, %v4519
        %v4521 = vpop.f32.mrf.mxu0
        %4522 = vdwg.mxu0
        %4523 = vrot.lane.b32.xlu0 %v1097, 40
        %v4524 = vpop.permute.xlu0 %4523
        %v4526 = vsel %vm1530, %v4387, 0
        %v4529 = vsel %vm1534, %v4524, 0
        %4531 = vmatpush.bf16.msra.mxu0 0
        %4532 = vmatpush.bf16.msra.mxu0 0
        %4533 = vmatpush.bf16.msra.mxu0 0
        %4534 = vmatpush.bf16.msra.mxu0 0
        %4535 = vmatpush.bf16.msra.mxu0 0
        %4536 = vmatpush.bf16.msra.mxu0 0
        %4537 = vmatpush.bf16.msra.mxu0 0
        %4538 = vmatpush.bf16.msra.mxu0 %v4529
        %4539 = vmatmul.bf16.gmra.mxu0 %v4526
        %v4540 = vpop.f32.mrf.mxu0
        %v4541 = vadd.f32 0.0, %v4540
        %v4542 = vpop.f32.mrf.mxu0
        %4543 = vdwg.mxu0
        %4544 = vrot.lane.b32.xlu0 %v1121, 40
        %v4545 = vpop.permute.xlu0 %4544
        %v4547 = vsel %vm1530, %v4388, 0
        %v4550 = vsel %vm1534, %v4545, 0
        %4552 = vmatpush.bf16.msra.mxu0 0
        %4553 = vmatpush.bf16.msra.mxu0 0
        %4554 = vmatpush.bf16.msra.mxu0 0
        %4555 = vmatpush.bf16.msra.mxu0 0
        %4556 = vmatpush.bf16.msra.mxu0 0
        %4557 = vmatpush.bf16.msra.mxu0 0
        %4558 = vmatpush.bf16.msra.mxu0 0
        %4559 = vmatpush.bf16.msra.mxu0 %v4550
        %4560 = vmatmul.bf16.gmra.mxu0 %v4547
        %v4561 = vpop.f32.mrf.mxu0
        %v4562 = vadd.f32 0.0, %v4561
        %v4563 = vpop.f32.mrf.mxu0
        %4564 = vdwg.mxu0
        %4565 = vrot.lane.b32.xlu0 %v1145, 40
        %v4566 = vpop.permute.xlu0 %4565
        %v4568 = vsel %vm1530, %v4389, 0
        %v4571 = vsel %vm1534, %v4566, 0
        %4573 = vmatpush.bf16.msra.mxu0 0
        %4574 = vmatpush.bf16.msra.mxu0 0
        %4575 = vmatpush.bf16.msra.mxu0 0
        %4576 = vmatpush.bf16.msra.mxu0 0
        %4577 = vmatpush.bf16.msra.mxu0 0
        %4578 = vmatpush.bf16.msra.mxu0 0
        %4579 = vmatpush.bf16.msra.mxu0 0
        %4580 = vmatpush.bf16.msra.mxu0 %v4571
        %4581 = vmatmul.bf16.gmra.mxu0 %v4568
        %v4582 = vpop.f32.mrf.mxu0
        %v4583 = vadd.f32 0.0, %v4582
        %v4584 = vpop.f32.mrf.mxu0
        %4585 = vdwg.mxu0
        %4586 = vrot.lane.b32.xlu0 %v1169, 40
        %v4587 = vpop.permute.xlu0 %4586
        %v4589 = vsel %vm1530, %v4390, 0
        %v4592 = vsel %vm1534, %v4587, 0
        %4594 = vmatpush.bf16.msra.mxu0 0
        %4595 = vmatpush.bf16.msra.mxu0 0
        %4596 = vmatpush.bf16.msra.mxu0 0
        %4597 = vmatpush.bf16.msra.mxu0 0
        %4598 = vmatpush.bf16.msra.mxu0 0
        %4599 = vmatpush.bf16.msra.mxu0 0
        %4600 = vmatpush.bf16.msra.mxu0 0
        %4601 = vmatpush.bf16.msra.mxu0 %v4592
        %4602 = vmatmul.bf16.gmra.mxu0 %v4589
        %v4603 = vpop.f32.mrf.mxu0
        %v4604 = vadd.f32 0.0, %v4603
        %v4605 = vpop.f32.mrf.mxu0
        %4606 = vdwg.mxu0
        %4607 = vrot.lane.b32.xlu0 %v1193, 40
        %v4608 = vpop.permute.xlu0 %4607
        %v4610 = vsel %vm1530, %v4391, 0
        %v4613 = vsel %vm1534, %v4608, 0
        %4615 = vmatpush.bf16.msra.mxu0 0
        %4616 = vmatpush.bf16.msra.mxu0 0
        %4617 = vmatpush.bf16.msra.mxu0 0
        %4618 = vmatpush.bf16.msra.mxu0 0
        %4619 = vmatpush.bf16.msra.mxu0 0
        %4620 = vmatpush.bf16.msra.mxu0 0
        %4621 = vmatpush.bf16.msra.mxu0 0
        %4622 = vmatpush.bf16.msra.mxu0 %v4613
        %4623 = vmatmul.bf16.gmra.mxu0 %v4610
        %v4624 = vpop.f32.mrf.mxu0
        %v4625 = vadd.f32 0.0, %v4624
        %v4626 = vpop.f32.mrf.mxu0
        %4627 = vdwg.mxu0
        %4628 = vrot.lane.b32.xlu0 %v1217, 40
        %v4629 = vpop.permute.xlu0 %4628
        %v4631 = vsel %vm1530, %v4392, 0
        %v4634 = vsel %vm1534, %v4629, 0
        %4636 = vmatpush.bf16.msra.mxu0 0
        %4637 = vmatpush.bf16.msra.mxu0 0
        %4638 = vmatpush.bf16.msra.mxu0 0
        %4639 = vmatpush.bf16.msra.mxu0 0
        %4640 = vmatpush.bf16.msra.mxu0 0
        %4641 = vmatpush.bf16.msra.mxu0 0
        %4642 = vmatpush.bf16.msra.mxu0 0
        %4643 = vmatpush.bf16.msra.mxu0 %v4634
        %4644 = vmatmul.bf16.gmra.mxu0 %v4631
        %v4645 = vpop.f32.mrf.mxu0
        %v4646 = vadd.f32 0.0, %v4645
        %v4647 = vpop.f32.mrf.mxu0
        %4648 = vdwg.mxu0
        %4649 = vrot.lane.b32.xlu0 %v1241, 40
        %v4650 = vpop.permute.xlu0 %4649
        %v4652 = vsel %vm1530, %v4393, 0
        %v4655 = vsel %vm1534, %v4650, 0
        %4657 = vmatpush.bf16.msra.mxu0 0
        %4658 = vmatpush.bf16.msra.mxu0 0
        %4659 = vmatpush.bf16.msra.mxu0 0
        %4660 = vmatpush.bf16.msra.mxu0 0
        %4661 = vmatpush.bf16.msra.mxu0 0
        %4662 = vmatpush.bf16.msra.mxu0 0
        %4663 = vmatpush.bf16.msra.mxu0 0
        %4664 = vmatpush.bf16.msra.mxu0 %v4655
        %4665 = vmatmul.bf16.gmra.mxu0 %v4652
        %v4666 = vpop.f32.mrf.mxu0
        %v4667 = vadd.f32 0.0, %v4666
        %v4668 = vpop.f32.mrf.mxu0
        %4669 = vdwg.mxu0
        %4670 = vrot.lane.b32.xlu0 %v1265, 40
        %v4671 = vpop.permute.xlu0 %4670
        %v4673 = vsel %vm1530, %v4394, 0
        %v4676 = vsel %vm1534, %v4671, 0
        %4678 = vmatpush.bf16.msra.mxu0 0
        %4679 = vmatpush.bf16.msra.mxu0 0
        %4680 = vmatpush.bf16.msra.mxu0 0
        %4681 = vmatpush.bf16.msra.mxu0 0
        %4682 = vmatpush.bf16.msra.mxu0 0
        %4683 = vmatpush.bf16.msra.mxu0 0
        %4684 = vmatpush.bf16.msra.mxu0 0
        %4685 = vmatpush.bf16.msra.mxu0 %v4676
        %4686 = vmatmul.bf16.gmra.mxu0 %v4673
        %v4687 = vpop.f32.mrf.mxu0
        %v4688 = vadd.f32 0.0, %v4687
        %v4689 = vpop.f32.mrf.mxu0
        %4690 = vdwg.mxu0
        %4691 = vrot.lane.b32.xlu0 %v1289, 40
        %v4692 = vpop.permute.xlu0 %4691
        %v4694 = vsel %vm1530, %v4395, 0
        %v4697 = vsel %vm1534, %v4692, 0
        %4699 = vmatpush.bf16.msra.mxu0 0
        %4700 = vmatpush.bf16.msra.mxu0 0
        %4701 = vmatpush.bf16.msra.mxu0 0
        %4702 = vmatpush.bf16.msra.mxu0 0
        %4703 = vmatpush.bf16.msra.mxu0 0
        %4704 = vmatpush.bf16.msra.mxu0 0
        %4705 = vmatpush.bf16.msra.mxu0 0
        %4706 = vmatpush.bf16.msra.mxu0 %v4697
        %4707 = vmatmul.bf16.gmra.mxu0 %v4694
        %v4708 = vpop.f32.mrf.mxu0
        %v4709 = vadd.f32 0.0, %v4708
        %v4710 = vpop.f32.mrf.mxu0
        %4711 = vdwg.mxu0
        %4712 = vrot.lane.b32.xlu0 %v1313, 40
        %v4713 = vpop.permute.xlu0 %4712
        %v4715 = vsel %vm1530, %v4396, 0
        %v4718 = vsel %vm1534, %v4713, 0
        %4720 = vmatpush.bf16.msra.mxu0 0
        %4721 = vmatpush.bf16.msra.mxu0 0
        %4722 = vmatpush.bf16.msra.mxu0 0
        %4723 = vmatpush.bf16.msra.mxu0 0
        %4724 = vmatpush.bf16.msra.mxu0 0
        %4725 = vmatpush.bf16.msra.mxu0 0
        %4726 = vmatpush.bf16.msra.mxu0 0
        %4727 = vmatpush.bf16.msra.mxu0 %v4718
        %4728 = vmatmul.bf16.gmra.mxu0 %v4715
        %v4729 = vpop.f32.mrf.mxu0
        %v4730 = vadd.f32 0.0, %v4729
        %v4731 = vpop.f32.mrf.mxu0
        %4732 = vdwg.mxu0
        %4749 = vrot.lane.b32.xlu0 %v4415, 24
        %v4750 = vpop.permute.xlu0 %4749
        %4751 = vrot.lane.b32.xlu0 %v4436, 24
        %v4752 = vpop.permute.xlu0 %4751
        %4753 = vrot.lane.b32.xlu0 %v4457, 24
        %v4754 = vpop.permute.xlu0 %4753
        %4755 = vrot.lane.b32.xlu0 %v4478, 24
        %v4756 = vpop.permute.xlu0 %4755
        %4757 = vrot.lane.b32.xlu0 %v4499, 24
        %v4758 = vpop.permute.xlu0 %4757
        %4759 = vrot.lane.b32.xlu0 %v4520, 24
        %v4760 = vpop.permute.xlu0 %4759
        %4761 = vrot.lane.b32.xlu0 %v4541, 24
        %v4762 = vpop.permute.xlu0 %4761
        %4763 = vrot.lane.b32.xlu0 %v4562, 24
        %v4764 = vpop.permute.xlu0 %4763
        %4765 = vrot.lane.b32.xlu0 %v4583, 24
        %v4766 = vpop.permute.xlu0 %4765
        %4767 = vrot.lane.b32.xlu0 %v4604, 24
        %v4768 = vpop.permute.xlu0 %4767
        %4769 = vrot.lane.b32.xlu0 %v4625, 24
        %v4770 = vpop.permute.xlu0 %4769
        %4771 = vrot.lane.b32.xlu0 %v4646, 24
        %v4772 = vpop.permute.xlu0 %4771
        %4773 = vrot.lane.b32.xlu0 %v4667, 24
        %v4774 = vpop.permute.xlu0 %4773
        %4775 = vrot.lane.b32.xlu0 %v4688, 24
        %v4776 = vpop.permute.xlu0 %4775
        %4777 = vrot.lane.b32.xlu0 %v4709, 24
        %v4778 = vpop.permute.xlu0 %4777
        %4779 = vrot.lane.b32.xlu0 %v4730, 24
        %v4780 = vpop.permute.xlu0 %4779
        %vm4797 = vcmask 255168
        %4798 = vst.msk [vmem:[#allocation2] sm:$0x3] %vm4797, %v4750
        %4799 = vst.msk [vmem:[#allocation2 + $0x2] sm:$0x3] %vm4797, %v4752
        %4800 = vst.msk [vmem:[#allocation2 + $0x4] sm:$0x3] %vm4797, %v4754
        %4801 = vst.msk [vmem:[#allocation2 + $0x6] sm:$0x3] %vm4797, %v4756
        %4802 = vst.msk [vmem:[#allocation2 + $0x8] sm:$0x3] %vm4797, %v4758
        %4803 = vst.msk [vmem:[#allocation2 + $0xa] sm:$0x3] %vm4797, %v4760
        %4804 = vst.msk [vmem:[#allocation2 + $0xc] sm:$0x3] %vm4797, %v4762
        %4805 = vst.msk [vmem:[#allocation2 + $0xe] sm:$0x3] %vm4797, %v4764
        %4806 = vst.msk [vmem:[#allocation2 + $0x10] sm:$0x3] %vm4797, %v4766
        %4807 = vst.msk [vmem:[#allocation2 + $0x12] sm:$0x3] %vm4797, %v4768
        %4808 = vst.msk [vmem:[#allocation2 + $0x14] sm:$0x3] %vm4797, %v4770
        %4809 = vst.msk [vmem:[#allocation2 + $0x16] sm:$0x3] %vm4797, %v4772
        %4810 = vst.msk [vmem:[#allocation2 + $0x18] sm:$0x3] %vm4797, %v4774
        %4811 = vst.msk [vmem:[#allocation2 + $0x1a] sm:$0x3] %vm4797, %v4776
        %4812 = vst.msk [vmem:[#allocation2 + $0x1c] sm:$0x3] %vm4797, %v4778
        %4813 = vst.msk [vmem:[#allocation2 + $0x1e] sm:$0x3] %vm4797, %v4780
        %v4814 = vld [vmem:[#allocation9] sm:$0xf]
        %v4815 = vld [vmem:[#allocation9 + $0x4] sm:$0xf]
        %v4816 = vld [vmem:[#allocation9 + $0x8] sm:$0xf]
        %v4817 = vld [vmem:[#allocation9 + $0xc] sm:$0xf]
        %v4818 = vld [vmem:[%s5] sm:$0x1]
        %v4819 = vld [vmem:[#allocation2] sm:$0x3]
        %v4820 = vld [vmem:[#allocation2 + $0x2] sm:$0x3]
        %v4821 = vld [vmem:[#allocation2 + $0x4] sm:$0x3]
        %v4822 = vld [vmem:[#allocation2 + $0x6] sm:$0x3]
        %v4823 = vld [vmem:[#allocation2 + $0x8] sm:$0x3]
        %v4824 = vld [vmem:[#allocation2 + $0xa] sm:$0x3]
        %v4825 = vld [vmem:[#allocation2 + $0xc] sm:$0x3]
        %v4826 = vld [vmem:[#allocation2 + $0xe] sm:$0x3]
        %v4827 = vld [vmem:[#allocation2 + $0x10] sm:$0x3]
        %v4828 = vld [vmem:[#allocation2 + $0x12] sm:$0x3]
        %v4829 = vld [vmem:[#allocation2 + $0x14] sm:$0x3]
        %v4830 = vld [vmem:[#allocation2 + $0x16] sm:$0x3]
        %v4831 = vld [vmem:[#allocation2 + $0x18] sm:$0x3]
        %v4832 = vld [vmem:[#allocation2 + $0x1a] sm:$0x3]
        %v4833 = vld [vmem:[#allocation2 + $0x1c] sm:$0x3]
        %v4834 = vld [vmem:[#allocation2 + $0x1e] sm:$0x3]
        %v4835 = vpack.c.bf16 %v4819, %v4819
        %v4836 = vpack.c.bf16 %v4820, %v4820
        %v4837 = vpack.c.bf16 %v4821, %v4821
        %v4838 = vpack.c.bf16 %v4822, %v4822
        %v4839 = vpack.c.bf16 %v4823, %v4823
        %v4840 = vpack.c.bf16 %v4824, %v4824
        %v4841 = vpack.c.bf16 %v4825, %v4825
        %v4842 = vpack.c.bf16 %v4826, %v4826
        %v4843 = vpack.c.bf16 %v4827, %v4827
        %v4844 = vpack.c.bf16 %v4828, %v4828
        %v4845 = vpack.c.bf16 %v4829, %v4829
        %v4846 = vpack.c.bf16 %v4830, %v4830
        %v4847 = vpack.c.bf16 %v4831, %v4831
        %v4848 = vpack.c.bf16 %v4832, %v4832
        %v4849 = vpack.c.bf16 %v4833, %v4833
        %v4850 = vpack.c.bf16 %v4834, %v4834
        %v4852 = vperm.slane %v4818, 0
        %4854 = vst [vmem:[#allocation1] ss:$9 sm:$0xff] %v4835
        %s4856 = scalar_lea.vmem [#allocation1], 1
        %4857 = vst [vmem:[%s4856] ss:$9 sm:$0xff] %v4836
        %s4859 = scalar_lea.vmem [#allocation1], 2
        %4860 = vst [vmem:[%s4859] ss:$9 sm:$0xff] %v4837
        %s4862 = scalar_lea.vmem [#allocation1], 3
        %4863 = vst [vmem:[%s4862] ss:$9 sm:$0xff] %v4838
        %s4865 = scalar_lea.vmem [#allocation1], 4
        %4866 = vst [vmem:[%s4865] ss:$9 sm:$0xff] %v4839
        %s4868 = scalar_lea.vmem [#allocation1], 5
        %4869 = vst [vmem:[%s4868] ss:$9 sm:$0xff] %v4840
        %s4871 = scalar_lea.vmem [#allocation1], 6
        %4872 = vst [vmem:[%s4871] ss:$9 sm:$0xff] %v4841
        %s4874 = scalar_lea.vmem [#allocation1], 7
        %4875 = vst [vmem:[%s4874] ss:$9 sm:$0xff] %v4842
        %v4876 = vld [vmem:[#allocation1] sm:$0xff]
        %4878 = vst [vmem:[#allocation1] ss:$9 sm:$0xff] %v4843
        %4880 = vst [vmem:[%s4856] ss:$9 sm:$0xff] %v4844
        %4882 = vst [vmem:[%s4859] ss:$9 sm:$0xff] %v4845
        %4884 = vst [vmem:[%s4862] ss:$9 sm:$0xff] %v4846
        %4886 = vst [vmem:[%s4865] ss:$9 sm:$0xff] %v4847
        %4888 = vst [vmem:[%s4868] ss:$9 sm:$0xff] %v4848
        %4890 = vst [vmem:[%s4871] ss:$9 sm:$0xff] %v4849
        %4892 = vst [vmem:[%s4874] ss:$9 sm:$0xff] %v4850
        %v4893 = vld [vmem:[#allocation1] sm:$0xff]
        %v4898 = vunpack.c.l.b16 %v4814
        %v4899 = vunpack.c.l.b16 %v4815
        %v4900 = vunpack.c.l.b16 %v4816
        %v4901 = vunpack.c.l.b16 %v4817
        %v4902 = vpack.c.b16 %v4899, %v4898
        %v4903 = vpack.c.b16 %v4901, %v4900
        %4906 = vst [vmem:[#allocation1] ss:$4 sm:$0xff] %v4852
        %s4907 = scalar_lea.vmem [#allocation1], 1
        %4908 = vst [vmem:[%s4907] ss:$4 sm:$0xff] %v4852
        %s4909 = scalar_lea.vmem [#allocation1], 2
        %4910 = vst [vmem:[%s4909] ss:$4 sm:$0xff] %v4852
        %s4911 = scalar_lea.vmem [#allocation1], 3
        %4912 = vst [vmem:[%s4911] ss:$4 sm:$0xff] %v4852
        %s4913 = scalar_lea.vmem [#allocation1], 32
        %4914 = vst [vmem:[%s4913] ss:$4 sm:$0xff] %v4852
        %s4915 = scalar_lea.vmem [#allocation1], 33
        %4916 = vst [vmem:[%s4915] ss:$4 sm:$0xff] %v4852
        %s4917 = scalar_lea.vmem [#allocation1], 34
        %4918 = vst [vmem:[%s4917] ss:$4 sm:$0xff] %v4852
        %s4919 = scalar_lea.vmem [#allocation1], 35
        %4920 = vst [vmem:[%s4919] ss:$4 sm:$0xff] %v4852
        %v4921 = vld.sshfl [vmem:[#allocation1] sm:$0xff pattern:$0x73625140]
        %v4922 = vld.sshfl [vmem:[#allocation1 + $0x20] sm:$0xff pattern:$0x73625140]
        %4923 = vst [vmem:[#allocation1] ss:$4 sm:$0xff] %v4852
        %4924 = vst [vmem:[%s4907] ss:$4 sm:$0xff] %v4852
        %4925 = vst [vmem:[%s4909] ss:$4 sm:$0xff] %v4852
        %4926 = vst [vmem:[%s4911] ss:$4 sm:$0xff] %v4852
        %4927 = vst [vmem:[%s4913] ss:$4 sm:$0xff] %v4852
        %4928 = vst [vmem:[%s4915] ss:$4 sm:$0xff] %v4852
        %4929 = vst [vmem:[%s4917] ss:$4 sm:$0xff] %v4852
        %4930 = vst [vmem:[%s4919] ss:$4 sm:$0xff] %v4852
        %v4931 = vld.sshfl [vmem:[#allocation1] sm:$0xff pattern:$0x73625140]
        %v4932 = vld.sshfl [vmem:[#allocation1 + $0x20] sm:$0xff pattern:$0x73625140]
        %v4937 = vsel %vm882, %v4876, 0
        %v4939 = vsel %vm882, %v4893, 0
        %4941 = vmatpush.bf16.msra.mxu0 0
        %4942 = vmatpush.bf16.msra.mxu0 0
        %4943 = vmatpush.bf16.msra.mxu0 0
        %4944 = vmatpush.bf16.msra.mxu0 0
        %4945 = vmatpush.bf16.msra.mxu0 0
        %4946 = vmatpush.bf16.msra.mxu0 0
        %4947 = vmatpush.bf16.msra.mxu0 %v4903
        %4948 = vmatpush.bf16.msra.mxu0 %v4902
        %4949 = vmatmul.bf16.gmra.mxu0 %v4937
        %v4950 = vpop.f32.mrf.mxu0
        %v4951 = vadd.f32 %v4921, %v4950
        %v4952 = vpop.f32.mrf.mxu0
        %v4953 = vadd.f32 %v4922, %v4952
        %4954 = vmatmul.bf16.gmra.mxu0 %v4939
        %v4955 = vpop.f32.mrf.mxu0
        %v4956 = vadd.f32 %v4931, %v4955
        %v4957 = vpop.f32.mrf.mxu0
        %v4958 = vadd.f32 %v4932, %v4957
        %4959 = vdwg.mxu0
        %v4964 = vrot.slane %v4951, 2
        %v4965 = vrot.slane %v4951, 4
        %v4966 = vrot.slane %v4951, 6
        %v4967 = vrot.slane %v4953, 2
        %v4968 = vrot.slane %v4953, 4
        %v4969 = vrot.slane %v4953, 6
        %v4970 = vrot.slane %v4956, 2
        %v4971 = vrot.slane %v4956, 4
        %v4972 = vrot.slane %v4956, 6
        %v4973 = vrot.slane %v4958, 2
        %v4974 = vrot.slane %v4958, 4
        %v4975 = vrot.slane %v4958, 6
        %v4988 = vpack.c.bf16 %v4951, %v4951
        %v4989 = vpack.c.bf16 %v4964, %v4964
        %v4990 = vpack.c.bf16 %v4965, %v4965
        %v4991 = vpack.c.bf16 %v4966, %v4966
        %v4992 = vpack.c.bf16 %v4953, %v4953
        %v4993 = vpack.c.bf16 %v4967, %v4967
        %v4994 = vpack.c.bf16 %v4968, %v4968
        %v4995 = vpack.c.bf16 %v4969, %v4969
        %v4996 = vpack.c.bf16 %v4956, %v4956
        %v4997 = vpack.c.bf16 %v4970, %v4970
        %v4998 = vpack.c.bf16 %v4971, %v4971
        %v4999 = vpack.c.bf16 %v4972, %v4972
        %v5000 = vpack.c.bf16 %v4958, %v4958
        %v5001 = vpack.c.bf16 %v4973, %v4973
        %v5002 = vpack.c.bf16 %v4974, %v4974
        %v5003 = vpack.c.bf16 %v4975, %v4975
        %v5004 = vld [vmem:[#allocation11] sm:$0xf]
        %v5005 = vld [vmem:[#allocation11 + $0x4] sm:$0xf]
        %v5006 = vld [vmem:[#allocation11 + $0x8] sm:$0xf]
        %v5007 = vld [vmem:[#allocation11 + $0xc] sm:$0xf]
        %v5008 = vld [vmem:[%s7] sm:$0x1]
        %v5010 = vperm.slane %v5008, 0
        %5012 = vst [vmem:[#allocation1] ss:$9 sm:$0xff] %v4988
        %s5014 = scalar_lea.vmem [#allocation1], 1
        %5015 = vst [vmem:[%s5014] ss:$9 sm:$0xff] %v4989
        %s5017 = scalar_lea.vmem [#allocation1], 2
        %5018 = vst [vmem:[%s5017] ss:$9 sm:$0xff] %v4990
        %s5020 = scalar_lea.vmem [#allocation1], 3
        %5021 = vst [vmem:[%s5020] ss:$9 sm:$0xff] %v4991
        %s5023 = scalar_lea.vmem [#allocation1], 4
        %5024 = vst [vmem:[%s5023] ss:$9 sm:$0xff] %v4992
        %s5026 = scalar_lea.vmem [#allocation1], 5
        %5027 = vst [vmem:[%s5026] ss:$9 sm:$0xff] %v4993
        %s5029 = scalar_lea.vmem [#allocation1], 6
        %5030 = vst [vmem:[%s5029] ss:$9 sm:$0xff] %v4994
        %s5032 = scalar_lea.vmem [#allocation1], 7
        %5033 = vst [vmem:[%s5032] ss:$9 sm:$0xff] %v4995
        %v5034 = vld [vmem:[#allocation1] sm:$0xff]
        %5036 = vst [vmem:[#allocation1] ss:$9 sm:$0xff] %v4996
        %5038 = vst [vmem:[%s5014] ss:$9 sm:$0xff] %v4997
        %5040 = vst [vmem:[%s5017] ss:$9 sm:$0xff] %v4998
        %5042 = vst [vmem:[%s5020] ss:$9 sm:$0xff] %v4999
        %5044 = vst [vmem:[%s5023] ss:$9 sm:$0xff] %v5000
        %5046 = vst [vmem:[%s5026] ss:$9 sm:$0xff] %v5001
        %5048 = vst [vmem:[%s5029] ss:$9 sm:$0xff] %v5002
        %5050 = vst [vmem:[%s5032] ss:$9 sm:$0xff] %v5003
        %v5051 = vld [vmem:[#allocation1] sm:$0xff]
        %v5056 = vunpack.c.l.b16 %v5004
        %v5057 = vunpack.c.l.b16 %v5005
        %v5058 = vunpack.c.l.b16 %v5006
        %v5059 = vunpack.c.l.b16 %v5007
        %v5060 = vpack.c.b16 %v5057, %v5056
        %v5061 = vpack.c.b16 %v5059, %v5058
        %5064 = vst [vmem:[#allocation1] ss:$4 sm:$0xff] %v5010
        %s5065 = scalar_lea.vmem [#allocation1], 1
        %5066 = vst [vmem:[%s5065] ss:$4 sm:$0xff] %v5010
        %s5067 = scalar_lea.vmem [#allocation1], 2
        %5068 = vst [vmem:[%s5067] ss:$4 sm:$0xff] %v5010
        %s5069 = scalar_lea.vmem [#allocation1], 3
        %5070 = vst [vmem:[%s5069] ss:$4 sm:$0xff] %v5010
        %s5071 = scalar_lea.vmem [#allocation1], 32
        %5072 = vst [vmem:[%s5071] ss:$4 sm:$0xff] %v5010
        %s5073 = scalar_lea.vmem [#allocation1], 33
        %5074 = vst [vmem:[%s5073] ss:$4 sm:$0xff] %v5010
        %s5075 = scalar_lea.vmem [#allocation1], 34
        %5076 = vst [vmem:[%s5075] ss:$4 sm:$0xff] %v5010
        %s5077 = scalar_lea.vmem [#allocation1], 35
        %5078 = vst [vmem:[%s5077] ss:$4 sm:$0xff] %v5010
        %v5079 = vld.sshfl [vmem:[#allocation1] sm:$0xff pattern:$0x73625140]
        %v5080 = vld.sshfl [vmem:[#allocation1 + $0x20] sm:$0xff pattern:$0x73625140]
        %5081 = vst [vmem:[#allocation1] ss:$4 sm:$0xff] %v5010
        %5082 = vst [vmem:[%s5065] ss:$4 sm:$0xff] %v5010
        %5083 = vst [vmem:[%s5067] ss:$4 sm:$0xff] %v5010
        %5084 = vst [vmem:[%s5069] ss:$4 sm:$0xff] %v5010
        %5085 = vst [vmem:[%s5071] ss:$4 sm:$0xff] %v5010
        %5086 = vst [vmem:[%s5073] ss:$4 sm:$0xff] %v5010
        %5087 = vst [vmem:[%s5075] ss:$4 sm:$0xff] %v5010
        %5088 = vst [vmem:[%s5077] ss:$4 sm:$0xff] %v5010
        %v5089 = vld.sshfl [vmem:[#allocation1] sm:$0xff pattern:$0x73625140]
        %v5090 = vld.sshfl [vmem:[#allocation1 + $0x20] sm:$0xff pattern:$0x73625140]
        %v5095 = vsel %vm882, %v5034, 0
        %v5097 = vsel %vm882, %v5051, 0
        %5099 = vmatpush.bf16.msra.mxu0 0
        %5100 = vmatpush.bf16.msra.mxu0 0
        %5101 = vmatpush.bf16.msra.mxu0 0
        %5102 = vmatpush.bf16.msra.mxu0 0
        %5103 = vmatpush.bf16.msra.mxu0 0
        %5104 = vmatpush.bf16.msra.mxu0 0
        %5105 = vmatpush.bf16.msra.mxu0 %v5061
        %5106 = vmatpush.bf16.msra.mxu0 %v5060
        %5107 = vmatmul.bf16.gmra.mxu0 %v5095
        %v5108 = vpop.f32.mrf.mxu0
        %v5109 = vadd.f32 %v5079, %v5108
        %v5110 = vpop.f32.mrf.mxu0
        %v5111 = vadd.f32 %v5080, %v5110
        %5112 = vmatmul.bf16.gmra.mxu0 %v5097
        %v5113 = vpop.f32.mrf.mxu0
        %v5114 = vadd.f32 %v5089, %v5113
        %v5115 = vpop.f32.mrf.mxu0
        %v5116 = vadd.f32 %v5090, %v5115
        %5117 = vdwg.mxu0
        %v5122 = vrot.slane %v5109, 2
        %v5123 = vrot.slane %v5109, 4
        %v5124 = vrot.slane %v5109, 6
        %v5125 = vrot.slane %v5111, 2
        %v5126 = vrot.slane %v5111, 4
        %v5127 = vrot.slane %v5111, 6
        %v5128 = vrot.slane %v5114, 2
        %v5129 = vrot.slane %v5114, 4
        %v5130 = vrot.slane %v5114, 6
        %v5131 = vrot.slane %v5116, 2
        %v5132 = vrot.slane %v5116, 4
        %v5133 = vrot.slane %v5116, 6
        %v5146 = vadd.f32 %v393, %v5109
        %v5147 = vadd.f32 %v394, %v5122
        %v5148 = vadd.f32 %v395, %v5123
        %v5149 = vadd.f32 %v396, %v5124
        %v5150 = vadd.f32 %v397, %v5111
        %v5151 = vadd.f32 %v398, %v5125
        %v5152 = vadd.f32 %v399, %v5126
        %v5153 = vadd.f32 %v400, %v5127
        %v5154 = vadd.f32 %v401, %v5114
        %v5155 = vadd.f32 %v402, %v5128
        %v5156 = vadd.f32 %v403, %v5129
        %v5157 = vadd.f32 %v404, %v5130
        %v5158 = vadd.f32 %v405, %v5116
        %v5159 = vadd.f32 %v406, %v5131
        %v5160 = vadd.f32 %v407, %v5132
        %v5161 = vadd.f32 %v408, %v5133
        %5162 = vst.msk [vmem:[%s389] sm:$0x3] %vm411, %v5146
        %5163 = vst.msk [vmem:[%s389 + $0x2] sm:$0x3] %vm411, %v5147
        %5164 = vst.msk [vmem:[%s389 + $0x4] sm:$0x3] %vm411, %v5148
        %5165 = vst.msk [vmem:[%s389 + $0x6] sm:$0x3] %vm411, %v5149
        %5166 = vst.msk [vmem:[%s389 + $0x8] sm:$0x3] %vm411, %v5150
        %5167 = vst.msk [vmem:[%s389 + $0xa] sm:$0x3] %vm411, %v5151
        %5168 = vst.msk [vmem:[%s389 + $0xc] sm:$0x3] %vm411, %v5152
        %5169 = vst.msk [vmem:[%s389 + $0xe] sm:$0x3] %vm411, %v5153
        %5170 = vst.msk [vmem:[%s389 + $0x10] sm:$0x3] %vm411, %v5154
        %5171 = vst.msk [vmem:[%s389 + $0x12] sm:$0x3] %vm411, %v5155
        %5172 = vst.msk [vmem:[%s389 + $0x14] sm:$0x3] %vm411, %v5156
        %5173 = vst.msk [vmem:[%s389 + $0x16] sm:$0x3] %vm411, %v5157
        %5174 = vst.msk [vmem:[%s389 + $0x18] sm:$0x3] %vm411, %v5158
        %5175 = vst.msk [vmem:[%s389 + $0x1a] sm:$0x3] %vm411, %v5159
        %5176 = vst.msk [vmem:[%s389 + $0x1c] sm:$0x3] %vm411, %v5160
        %5177 = vst.msk [vmem:[%s389 + $0x1e] sm:$0x3] %vm411, %v5161
        %s5178 = sand.u32 %s208, 1
        %s5179 = scalar_lea.sflag [#allocation5], %s5178
        %s5180 = sand.u32 %s208, 1
        %s5181 = smul.addr %s5180, 32
        %s5182 = scalar_lea.vmem [#allocation12], %s5181
        // Predicated region
        $region73: #{tpu_custom_call.1} parent=51 // pred_check
          %p5183 = pneg %p218
        $region74: #{tpu_custom_call.1} parent=51 // pred_check_branch
          %5185 = sbr.rel (%p5183) target = $region76
        $region75: #{tpu_custom_call.1} parent=51 // pred_region
          %s5186 = smul.u32 16, %s27
          %5188 = vsyncadd %s5179, 0
          %s5189 = smul.addr %s5186, 2
          %s5190 = scalar_lea.hbm %s8, %s5189
          %s5191 = sshll.u32 %s5182, 4
          %s5192 = int_to_ptr.vmem [resolvable:$true] %s5191
          %s5193 = sshll.u32 %s5190, 4
          %s5194 = int_to_ptr.hbm [resolvable:$true] %s5193
          %5199 = dma.vmem_to_hbm [thread:$0]  %s5192, 512, %s5194, %s5179, 32, 32, 2
        $region76: #{tpu_custom_call.1} parent=51 // pred_fallthru
          _
      $region52: #{tpu_custom_call.1} parent=5 // pred_fallthru
        _
      %p5200 = scmp.le.s32.totalorder 2, %s22
      // Predicated region
      $region77: #{tpu_custom_call.1} parent=5 // pred_check
        %p5201 = pneg %p5200
      $region78: #{tpu_custom_call.1} parent=5 // pred_check_branch
        %5203 = sbr.rel (%p5201) target = $region80
      $region79: #{tpu_custom_call.1} parent=5 // pred_region
        %s5204 = ssub.s32 %s22, 2
        // Predicated region
        $region81: #{tpu_custom_call.1} parent=79 // pred_check
          %p5205 = pneg %p224
        $region82: #{tpu_custom_call.1} parent=79 // pred_check_branch
          %5207 = sbr.rel (%p5205) target = $region84
        $region83: #{tpu_custom_call.1} parent=79 // pred_region
          %s5208 = sand.u32 %s209, 1
          %s5209 = scalar_lea.sflag [#allocation5], %s5208
          %s5210 = sand.u32 %s209, 1
          %s5211 = smul.addr %s5210, 32
          %s5212 = scalar_lea.vmem [#allocation12], %s5211
          %5214 = dma.done %s5209, 512
        $region84: #{tpu_custom_call.1} parent=79 // pred_fallthru
          _
      $region80: #{tpu_custom_call.1} parent=5 // pred_fallthru
        _
    $region6: #{tpu_custom_call.1} parent=1 // loop_footer
      %s26 = sadd.s32 1, %s22
    $region7: #{tpu_custom_call.1} parent=1 // loop_footer_branch
      %21 = sbr.rel target = $region3
    $region8: #{tpu_custom_call.1} parent=1 // loop_exit
      _
    %5215 = vsyncpa [#allocation4], 1
    %s5216 = scalar_lea.sflag [#allocation4], 1
    %5217 = vsyncpa %s5216, 1
    %5218 = vsyncpa [#allocation7], 1
    %5219 = vsyncpa [#allocation10], 1
    %5220 = vsyncpa [#allocation5], 1
    %s5221 = scalar_lea.sflag [#allocation5], 1
    %5222 = vsyncpa %s5221, 1

// kernel: tpu_custom_call.1
$region0: #{tpu_custom_call.1}
  #allocation0 [shape = 'u32[]', space=smem, size = 0x4, offset = 0x4, fixed_abs, tag = 'smem constant byte address 0x4 - core index']
  #allocation1 [shape = 'u32[72,128]{1,0:T(1,128)}', space=vmem, size = 0x9000, scoped, tag = 'internal scratch']
  #allocation2 [shape = 'f32[16,2,32]{2,1,0:T(2,128)}', space=vmem, size = 0x4000, scoped, tag = 'scratch operand']
  %s0 = inlined_call_operand.hbm [shape: f32[32,2,32], index: 0, kind: input, shape index: {}]
  %s1 = inlined_call_operand.hbm [shape: f32[1,32], index: 1, kind: input, shape index: {}]
  %s2 = inlined_call_operand.vmem [shape: f32[1,32], index: 2, kind: input, shape index: {}]
  %s3 = inlined_call_operand.hbm [shape: bf16[32,96], index: 3, kind: input, shape index: {}]
  %s4 = inlined_call_operand.hbm [shape: bf16[32,32], index: 4, kind: input, shape index: {}]
  %s5 = inlined_call_operand.vmem [shape: f32[1,32], index: 5, kind: input, shape index: {}]
  %s6 = inlined_call_operand.hbm [shape: bf16[32,32], index: 6, kind: input, shape index: {}]
  %s7 = inlined_call_operand.vmem [shape: f32[1,32], index: 7, kind: input, shape index: {}]
  %s8 = inlined_call_operand.hbm [shape: f32[32,2,32], index: 8, kind: output, shape index: {}]
  %s9 = sld [smem:[#allocation0]]
  $region85: #{tpu_custom_call.1} parent=0
    _
  %s11 = ssub.s32 1, %s9
  %s12 = scalar_select 0, %s11, %s9
  $region1: #{tpu_custom_call.1} parent=0
    #allocation3 [shape = 'u8[32768]{0}', space=vmem, size = 0x8000, scoped, tag = 'input window, operand 0']
    #allocation4 [shape = 's32[2]{0}', space=sflag, size = 0x8, scoped, tag = 'scoped memory for tpu_custom_call.1']
    #allocation5 [shape = 's32[2]{0}', space=sflag, size = 0x8, scoped, tag = 'scoped memory for tpu_custom_call.1']
    #allocation6 [shape = 'u8[512]{0}', space=vmem, size = 0x400, scoped, tag = 'input window, operand 1, single buffered']
    #allocation7 [shape = 's32[1]{0}', space=sflag, size = 0x4, scoped, tag = 'scoped memory for tpu_custom_call.1']
    #allocation8 [shape = 'u8[8192]{0}', space=vmem, size = 0x2000, scoped, tag = 'input window, operand 3, single buffered']
    #allocation9 [shape = 'u8[8192]{0}', space=vmem, size = 0x2000, scoped, tag = 'input window, operand 4, single buffered']
    #allocation10 [shape = 's32[1]{0}', space=sflag, size = 0x4, scoped, tag = 'scoped memory for tpu_custom_call.1']
    #allocation11 [shape = 'u8[8192]{0}', space=vmem, size = 0x2000, scoped, tag = 'input window, operand 6, single buffered']
    #allocation12 [shape = 'u8[32768]{0}', space=vmem, size = 0x8000, scoped, tag = 'output window, operand 0']
    %13 = vsyncpa [#allocation4], 0
    %s14 = scalar_lea.sflag [#allocation4], 1
    %15 = vsyncpa %s14, 0
    %16 = vsyncpa [#allocation7], 0
    %17 = vsyncpa [#allocation10], 0
    %18 = vsyncpa [#allocation5], 0
    %s19 = scalar_lea.sflag [#allocation5], 1
    %20 = vsyncpa %s19, 0
    loop: start=0, step=1, limit=4
    $region2: #{tpu_custom_call.1} parent=1 // loop_pre_header
      _
    $region3: #{tpu_custom_call.1} parent=1 // loop_header
      %s22 = sphi 0, %s26
      %p23 = scmp.ge.s32.totalorder %s22, 4
      %s32 = sphi 0, %s34
      %s35 = sphi 0, %s32
      %s36 = sphi 0, %s35
      %s52 = sphi 0, %s36
      %s56 = sphi 0, %s56
      %s58 = sphi 0, %s56
      %s59 = sphi 0, %s58
      %s73 = sphi 0, %s59
      %s77 = sphi 0, %s77
      %s79 = sphi 0, %s77
      %s80 = sphi 0, %s79
      %s94 = sphi 0, %s80
      %s98 = sphi 0, %s98
      %s100 = sphi 0, %s98
      %s101 = sphi 0, %s100
      %s115 = sphi 0, %s101
      %s119 = sphi 0, %s119
      %s121 = sphi 0, %s119
      %s122 = sphi 0, %s121
      %s136 = sphi 0, %s122
      %s140 = sphi 0, %s140
      %s142 = sphi 0, %s140
      %s143 = sphi 0, %s142
      %s157 = sphi 0, %s143
      %s161 = sphi 0, %s161
      %s163 = sphi 0, %s161
      %s164 = sphi 0, %s163
      %s178 = sphi 0, %s164
      %s182 = sphi 0, %s182
      %s184 = sphi 0, %s182
      %s185 = sphi 0, %s184
      %s199 = sphi 0, %s185
      %s205 = sphi 0, %s207
      %s208 = sphi 0, %s205
      %s209 = sphi 0, %s208
      %s225 = sphi 0, %s209
    $region4: #{tpu_custom_call.1} parent=1 // loop_header_branch
      %25 = sbr.rel (%p23) target = $region8
    $region5: #{tpu_custom_call.1} parent=1 // loop_body
      %s27 = ssub.s32 %s22, 1
      %s28 = ssub.s32 %s22, 2
      %s29 = sadd.s32 %s22, 1
      %s30 = ssub.s32 %s22, %s29
      %p31 = scmp.eq.s32.totalorder %s30, 0
      %s33 = sadd.s32 %s32, 1
      %s34 = scalar_select %p31, %s32, %s33
      %p37 = pneg %p31
      %p38 = scmp.eq.s32.totalorder %s22, 1
      %p39 = por %p37, %p38
      %p40 = scmp.ne.s32.totalorder %s32, %s35
      %p41 = scmp.eq.s32.totalorder %s22, 0
      %p42 = por %p40, %p41
      %p43 = scmp.ne.s32.totalorder %s32, %s35
      %p44 = scmp.eq.s32.totalorder %s27, 1
      %p45 = por %p43, %p44
      %p46 = scmp.ne.s32.totalorder %s35, %s36
      %p47 = scmp.eq.s32.totalorder %s27, 0
      %p48 = por %p46, %p47
      %p49 = scmp.ne.s32.totalorder %s35, %s36
      %p50 = scmp.eq.s32.totalorder %s28, 1
      %p51 = por %p49, %p50
      %p53 = scmp.ne.s32.totalorder %s36, %s52
      %p54 = scmp.eq.s32.totalorder %s28, 0
      %p55 = por %p53, %p54
      %s57 = sadd.s32 %s56, 1
      %p60 = scmp.eq.s32.totalorder %s22, 1
      %p61 = scmp.ne.s32.totalorder %s56, %s58
      %p62 = scmp.eq.s32.totalorder %s22, 0
      %p63 = por %p61, %p62
      %p64 = scmp.ne.s32.totalorder %s56, %s58
      %p65 = scmp.eq.s32.totalorder %s27, 1
      %p66 = por %p64, %p65
      %p67 = scmp.ne.s32.totalorder %s58, %s59
      %p68 = scmp.eq.s32.totalorder %s27, 0
      %p69 = por %p67, %p68
      %p70 = scmp.ne.s32.totalorder %s58, %s59
      %p71 = scmp.eq.s32.totalorder %s28, 1
      %p72 = por %p70, %p71
      %p74 = scmp.ne.s32.totalorder %s59, %s73
      %p75 = scmp.eq.s32.totalorder %s28, 0
      %p76 = por %p74, %p75
      %s78 = sadd.s32 %s77, 1
      %p81 = scmp.eq.s32.totalorder %s22, 1
      %p82 = scmp.ne.s32.totalorder %s77, %s79
      %p83 = scmp.eq.s32.totalorder %s22, 0
      %p84 = por %p82, %p83
      %p85 = scmp.ne.s32.totalorder %s77, %s79
      %p86 = scmp.eq.s32.totalorder %s27, 1
      %p87 = por %p85, %p86
      %p88 = scmp.ne.s32.totalorder %s79, %s80
      %p89 = scmp.eq.s32.totalorder %s27, 0
      %p90 = por %p88, %p89
      %p91 = scmp.ne.s32.totalorder %s79, %s80
      %p92 = scmp.eq.s32.totalorder %s28, 1
      %p93 = por %p91, %p92
      %p95 = scmp.ne.s32.totalorder %s80, %s94
      %p96 = scmp.eq.s32.totalorder %s28, 0
      %p97 = por %p95, %p96
      %s99 = sadd.s32 %s98, 1
      %p102 = scmp.eq.s32.totalorder %s22, 1
      %p103 = scmp.ne.s32.totalorder %s98, %s100
      %p104 = scmp.eq.s32.totalorder %s22, 0
      %p105 = por %p103, %p104
      %p106 = scmp.ne.s32.totalorder %s98, %s100
      %p107 = scmp.eq.s32.totalorder %s27, 1
      %p108 = por %p106, %p107
      %p109 = scmp.ne.s32.totalorder %s100, %s101
      %p110 = scmp.eq.s32.totalorder %s27, 0
      %p111 = por %p109, %p110
      %p112 = scmp.ne.s32.totalorder %s100, %s101
      %p113 = scmp.eq.s32.totalorder %s28, 1
      %p114 = por %p112, %p113
      %p116 = scmp.ne.s32.totalorder %s101, %s115
      %p117 = scmp.eq.s32.totalorder %s28, 0
      %p118 = por %p116, %p117
      %s120 = sadd.s32 %s119, 1
      %p123 = scmp.eq.s32.totalorder %s22, 1
      %p124 = scmp.ne.s32.totalorder %s119, %s121
      %p125 = scmp.eq.s32.totalorder %s22, 0
      %p126 = por %p124, %p125
      %p127 = scmp.ne.s32.totalorder %s119, %s121
      %p128 = scmp.eq.s32.totalorder %s27, 1
      %p129 = por %p127, %p128
      %p130 = scmp.ne.s32.totalorder %s121, %s122
      %p131 = scmp.eq.s32.totalorder %s27, 0
      %p132 = por %p130, %p131
      %p133 = scmp.ne.s32.totalorder %s121, %s122
      %p134 = scmp.eq.s32.totalorder %s28, 1
      %p135 = por %p133, %p134
      %p137 = scmp.ne.s32.totalorder %s122, %s136
      %p138 = scmp.eq.s32.totalorder %s28, 0
      %p139 = por %p137, %p138
      %s141 = sadd.s32 %s140, 1
      %p144 = scmp.eq.s32.totalorder %s22, 1
      %p145 = scmp.ne.s32.totalorder %s140, %s142
      %p146 = scmp.eq.s32.totalorder %s22, 0
      %p147 = por %p145, %p146
      %p148 = scmp.ne.s32.totalorder %s140, %s142
      %p149 = scmp.eq.s32.totalorder %s27, 1
      %p150 = por %p148, %p149
      %p151 = scmp.ne.s32.totalorder %s142, %s143
      %p152 = scmp.eq.s32.totalorder %s27, 0
      %p153 = por %p151, %p152
      %p154 = scmp.ne.s32.totalorder %s142, %s143
      %p155 = scmp.eq.s32.totalorder %s28, 1
      %p156 = por %p154, %p155
      %p158 = scmp.ne.s32.totalorder %s143, %s157
      %p159 = scmp.eq.s32.totalorder %s28, 0
      %p160 = por %p158, %p159
      %s162 = sadd.s32 %s161, 1
      %p165 = scmp.eq.s32.totalorder %s22, 1
      %p166 = scmp.ne.s32.totalorder %s161, %s163
      %p167 = scmp.eq.s32.totalorder %s22, 0
      %p168 = por %p166, %p167
      %p169 = scmp.ne.s32.totalorder %s161, %s163
      %p170 = scmp.eq.s32.totalorder %s27, 1
      %p171 = por %p169, %p170
      %p172 = scmp.ne.s32.totalorder %s163, %s164
      %p173 = scmp.eq.s32.totalorder %s27, 0
      %p174 = por %p172, %p173
      %p175 = scmp.ne.s32.totalorder %s163, %s164
      %p176 = scmp.eq.s32.totalorder %s28, 1
      %p177 = por %p175, %p176
      %p179 = scmp.ne.s32.totalorder %s164, %s178
      %p180 = scmp.eq.s32.totalorder %s28, 0
      %p181 = por %p179, %p180
      %s183 = sadd.s32 %s182, 1
      %p186 = scmp.eq.s32.totalorder %s22, 1
      %p187 = scmp.ne.s32.totalorder %s182, %s184
      %p188 = scmp.eq.s32.totalorder %s22, 0
      %p189 = por %p187, %p188
      %p190 = scmp.ne.s32.totalorder %s182, %s184
      %p191 = scmp.eq.s32.totalorder %s27, 1
      %p192 = por %p190, %p191
      %p193 = scmp.ne.s32.totalorder %s184, %s185
      %p194 = scmp.eq.s32.totalorder %s27, 0
      %p195 = por %p193, %p194
      %p196 = scmp.ne.s32.totalorder %s184, %s185
      %p197 = scmp.eq.s32.totalorder %s28, 1
      %p198 = por %p196, %p197
      %p200 = scmp.ne.s32.totalorder %s185, %s199
      %p201 = scmp.eq.s32.totalorder %s28, 0
      %p202 = por %p200, %p201
      %s203 = ssub.s32 %s22, %s29
      %p204 = scmp.eq.s32.totalorder %s203, 0
      %s206 = sadd.s32 %s205, 1
      %s207 = scalar_select %p204, %s205, %s206
      %p210 = pneg %p204
      %p211 = scmp.eq.s32.totalorder %s22, 1
      %p212 = por %p210, %p211
      %p213 = scmp.ne.s32.totalorder %s205, %s208
      %p214 = scmp.eq.s32.totalorder %s22, 0
      %p215 = por %p213, %p214
      %p216 = scmp.ne.s32.totalorder %s205, %s208
      %p217 = scmp.eq.s32.totalorder %s27, 1
      %p218 = por %p216, %p217
      %p219 = scmp.ne.s32.totalorder %s208, %s209
      %p220 = scmp.eq.s32.totalorder %s27, 0
      %p221 = por %p219, %p220
      %p222 = scmp.ne.s32.totalorder %s208, %s209
      %p223 = scmp.eq.s32.totalorder %s28, 1
      %p224 = por %p222, %p223
      %p226 = scmp.ne.s32.totalorder %s209, %s225
      %p227 = scmp.eq.s32.totalorder %s28, 0
      %p228 = por %p226, %p227
      %p229 = scmp.le.s32.totalorder 1, %s22
      %p230 = scmp.lt.s32.totalorder %s22, 3
      %p231 = pnand %p229, %p230
      %p232 = pneg %p231
      // Predicated region
      $region9: #{tpu_custom_call.1} parent=5 // pred_check
        _
      $region10: #{tpu_custom_call.1} parent=5 // pred_check_branch
        %234 = sbr.rel (%p231) target = $region12
      $region11: #{tpu_custom_call.1} parent=5 // pred_region
        %s235 = ssub.s32 %s22, 1
        // Predicated region
        $region13: #{tpu_custom_call.1} parent=11 // pred_check
          %p236 = pneg %p69
        $region14: #{tpu_custom_call.1} parent=11 // pred_check_branch
          %238 = sbr.rel (%p236) target = $region16
        $region15: #{tpu_custom_call.1} parent=11 // pred_region
          %240 = vsyncadd [#allocation7], 0
          %s242 = sshll.u32 %s1, 4
          %s243 = int_to_ptr.hbm [resolvable:$true] %s242
          %s244 = sshll.u32 [#allocation6], 4
          %s245 = int_to_ptr.vmem [resolvable:$true] %s244
          %247 = dma.hbm_to_vmem [thread:$0]  %s243, 16, %s245, [#allocation7]
        $region16: #{tpu_custom_call.1} parent=11 // pred_fallthru
          _
        // Predicated region
        $region17: #{tpu_custom_call.1} parent=11 // pred_check
          %p248 = pneg %p90
        $region18: #{tpu_custom_call.1} parent=11 // pred_check_branch
          %250 = sbr.rel (%p248) target = $region20
        $region19: #{tpu_custom_call.1} parent=11 // pred_region
          _
        $region20: #{tpu_custom_call.1} parent=11 // pred_fallthru
          _
        // Predicated region
        $region21: #{tpu_custom_call.1} parent=11 // pred_check
          %p251 = pneg %p111
        $region22: #{tpu_custom_call.1} parent=11 // pred_check_branch
          %253 = sbr.rel (%p251) target = $region24
        $region23: #{tpu_custom_call.1} parent=11 // pred_region
          %255 = vsyncadd [#allocation7], 0
          %s256 = sshll.u32 %s3, 4
          %s257 = int_to_ptr.hbm [resolvable:$true] %s256
          %s258 = sshll.u32 [#allocation8], 4
          %s259 = int_to_ptr.vmem [resolvable:$true] %s258
          %264 = dma.hbm_to_vmem [thread:$0]  %s257, 256, %s259, [#allocation7], 64, 64, 4
        $region24: #{tpu_custom_call.1} parent=11 // pred_fallthru
          _
        // Predicated region
        $region25: #{tpu_custom_call.1} parent=11 // pred_check
          %p265 = pneg %p132
        $region26: #{tpu_custom_call.1} parent=11 // pred_check_branch
          %267 = sbr.rel (%p265) target = $region28
        $region27: #{tpu_custom_call.1} parent=11 // pred_region
          %269 = vsyncadd [#allocation10], 0
          %s270 = sshll.u32 %s4, 4
          %s271 = int_to_ptr.hbm [resolvable:$true] %s270
          %s272 = sshll.u32 [#allocation9], 4
          %s273 = int_to_ptr.vmem [resolvable:$true] %s272
          %278 = dma.hbm_to_vmem [thread:$0]  %s271, 256, %s273, [#allocation10], 64, 64, 4
        $region28: #{tpu_custom_call.1} parent=11 // pred_fallthru
          _
        // Predicated region
        $region29: #{tpu_custom_call.1} parent=11 // pred_check
          %p279 = pneg %p153
        $region30: #{tpu_custom_call.1} parent=11 // pred_check_branch
          %281 = sbr.rel (%p279) target = $region32
        $region31: #{tpu_custom_call.1} parent=11 // pred_region
          _
        $region32: #{tpu_custom_call.1} parent=11 // pred_fallthru
          _
        // Predicated region
        $region33: #{tpu_custom_call.1} parent=11 // pred_check
          %p282 = pneg %p174
        $region34: #{tpu_custom_call.1} parent=11 // pred_check_branch
          %284 = sbr.rel (%p282) target = $region36
        $region35: #{tpu_custom_call.1} parent=11 // pred_region
          %286 = vsyncadd [#allocation10], 0
          %s287 = sshll.u32 %s6, 4
          %s288 = int_to_ptr.hbm [resolvable:$true] %s287
          %s289 = sshll.u32 [#allocation11], 4
          %s290 = int_to_ptr.vmem [resolvable:$true] %s289
          %295 = dma.hbm_to_vmem [thread:$0]  %s288, 256, %s290, [#allocation10], 64, 64, 4
        $region36: #{tpu_custom_call.1} parent=11 // pred_fallthru
          _
        // Predicated region
        $region37: #{tpu_custom_call.1} parent=11 // pred_check
          %p296 = pneg %p195
        $region38: #{tpu_custom_call.1} parent=11 // pred_check_branch
          %298 = sbr.rel (%p296) target = $region40
        $region39: #{tpu_custom_call.1} parent=11 // pred_region
          _
        $region40: #{tpu_custom_call.1} parent=11 // pred_fallthru
          _
      $region12: #{tpu_custom_call.1} parent=5 // pred_fallthru
        _
      %p299 = scmp.lt.s32.totalorder %s22, 2
      // Predicated region
      $region41: #{tpu_custom_call.1} parent=5 // pred_check
        %p300 = pneg %p299
      $region42: #{tpu_custom_call.1} parent=5 // pred_check_branch
        %302 = sbr.rel (%p300) target = $region44
      $region43: #{tpu_custom_call.1} parent=5 // pred_region
        // Predicated region
        $region45: #{tpu_custom_call.1} parent=43 // pred_check
          %p303 = pneg %p42
        $region46: #{tpu_custom_call.1} parent=43 // pred_check_branch
          %305 = sbr.rel (%p303) target = $region48
        $region47: #{tpu_custom_call.1} parent=43 // pred_region
          %s306 = sand.u32 %s32, 1
          %s307 = scalar_lea.sflag [#allocation4], %s306
          %s308 = sand.u32 %s32, 1
          %s309 = smul.addr %s308, 32
          %s310 = scalar_lea.vmem [#allocation3], %s309
          %s311 = smul.u32 16, %s22
          %313 = vsyncadd %s307, 0
          %s314 = smul.addr %s311, 2
          %s315 = scalar_lea.hbm %s0, %s314
          %s316 = sshll.u32 %s315, 4
          %s317 = int_to_ptr.hbm [resolvable:$true] %s316
          %s318 = sshll.u32 %s310, 4
          %s319 = int_to_ptr.vmem [resolvable:$true] %s318
          %324 = dma.hbm_to_vmem [thread:$0]  %s317, 512, %s319, %s307, 32, 32, 2
        $region48: #{tpu_custom_call.1} parent=43 // pred_fallthru
          _
      $region44: #{tpu_custom_call.1} parent=5 // pred_fallthru
        _
      %p325 = scmp.le.s32.totalorder 1, %s22
      %p326 = scmp.lt.s32.totalorder %s22, 3
      %p327 = pnand %p325, %p326
      %p328 = pneg %p327
      // Predicated region
      $region49: #{tpu_custom_call.1} parent=5 // pred_check
        _
      $region50: #{tpu_custom_call.1} parent=5 // pred_check_branch
        %330 = sbr.rel (%p327) target = $region52
      $region51: #{tpu_custom_call.1} parent=5 // pred_region
        %s331 = ssub.s32 %s22, 1
        %s332 = sand.u32 %s35, 1
        %s333 = scalar_lea.sflag [#allocation4], %s332
        %s334 = sand.u32 %s35, 1
        %s335 = smul.addr %s334, 32
        %s336 = scalar_lea.vmem [#allocation3], %s335
        // Predicated region
        $region53: #{tpu_custom_call.1} parent=51 // pred_check
          %p337 = pneg %p48
        $region54: #{tpu_custom_call.1} parent=51 // pred_check_branch
          %339 = sbr.rel (%p337) target = $region56
        $region55: #{tpu_custom_call.1} parent=51 // pred_region
          %341 = dma.done %s333, 512
        $region56: #{tpu_custom_call.1} parent=51 // pred_fallthru
          _
        // Predicated region
        $region57: #{tpu_custom_call.1} parent=51 // pred_check
          %p342 = pneg %p69
        $region58: #{tpu_custom_call.1} parent=51 // pred_check_branch
          %344 = sbr.rel (%p342) target = $region60
        $region59: #{tpu_custom_call.1} parent=51 // pred_region
          %346 = dma.done [#allocation7], 16
        $region60: #{tpu_custom_call.1} parent=51 // pred_fallthru
          _
        // Predicated region
        $region61: #{tpu_custom_call.1} parent=51 // pred_check
          %p347 = pneg %p111
        $region62: #{tpu_custom_call.1} parent=51 // pred_check_branch
          %349 = sbr.rel (%p347) target = $region64
        $region63: #{tpu_custom_call.1} parent=51 // pred_region
          %351 = dma.done [#allocation7], 256
        $region64: #{tpu_custom_call.1} parent=51 // pred_fallthru
          _
        // Predicated region
        $region65: #{tpu_custom_call.1} parent=51 // pred_check
          %p352 = pneg %p132
        $region66: #{tpu_custom_call.1} parent=51 // pred_check_branch
          %354 = sbr.rel (%p352) target = $region68
        $region67: #{tpu_custom_call.1} parent=51 // pred_region
          %356 = dma.done [#allocation10], 256
        $region68: #{tpu_custom_call.1} parent=51 // pred_fallthru
          _
        // Predicated region
        $region69: #{tpu_custom_call.1} parent=51 // pred_check
          %p357 = pneg %p174
        $region70: #{tpu_custom_call.1} parent=51 // pred_check_branch
          %359 = sbr.rel (%p357) target = $region72
        $region71: #{tpu_custom_call.1} parent=51 // pred_region
          %361 = dma.done [#allocation10], 256
        $region72: #{tpu_custom_call.1} parent=51 // pred_fallthru
          _
        %s362 = sand.u32 %s35, 1
        %s363 = scalar_lea.sflag [#allocation4], %s362
        %s364 = sand.u32 %s35, 1
        %s365 = smul.addr %s364, 32
        %s366 = scalar_lea.vmem [#allocation3], %s365
        %p367 = pneg %p48
        %p368 = pneg %p45
        %p369 = pneg %p69
        %p370 = pneg %p66
        %p371 = pneg %p90
        %p372 = pneg %p87
        %p373 = pneg %p111
        %p374 = pneg %p108
        %p375 = pneg %p132
        %p376 = pneg %p129
        %p377 = pneg %p153
        %p378 = pneg %p150
        %p379 = pneg %p174
        %p380 = pneg %p171
        %p381 = pneg %p195
        %p382 = pneg %p192
        %p383 = pneg %p221
        %p384 = pneg %p218
        %s385 = sand.u32 %s208, 1
        %s386 = scalar_lea.sflag [#allocation5], %s385
        %s387 = sand.u32 %s208, 1
        %s388 = smul.addr %s387, 32
        %s389 = scalar_lea.vmem [#allocation12], %s388
        %s390 = smul.u32 16, %s27
        %s391 = smul.u32 16, %s27
        %v393 = vld [vmem:[%s336] sm:$0x3]
        %v394 = vld [vmem:[%s336 + $0x2] sm:$0x3]
        %v395 = vld [vmem:[%s336 + $0x4] sm:$0x3]
        %v396 = vld [vmem:[%s336 + $0x6] sm:$0x3]
        %v397 = vld [vmem:[%s336 + $0x8] sm:$0x3]
        %v398 = vld [vmem:[%s336 + $0xa] sm:$0x3]
        %v399 = vld [vmem:[%s336 + $0xc] sm:$0x3]
        %v400 = vld [vmem:[%s336 + $0xe] sm:$0x3]
        %v401 = vld [vmem:[%s336 + $0x10] sm:$0x3]
        %v402 = vld [vmem:[%s336 + $0x12] sm:$0x3]
        %v403 = vld [vmem:[%s336 + $0x14] sm:$0x3]
        %v404 = vld [vmem:[%s336 + $0x16] sm:$0x3]
        %v405 = vld [vmem:[%s336 + $0x18] sm:$0x3]
        %v406 = vld [vmem:[%s336 + $0x1a] sm:$0x3]
        %v407 = vld [vmem:[%s336 + $0x1c] sm:$0x3]
        %v408 = vld [vmem:[%s336 + $0x1e] sm:$0x3]
        %v409 = vld [vmem:[#allocation6] sm:$0x1]
        %v410 = vld [vmem:[%s2] sm:$0x1]
        %vm411 = vcmask 254976
        %v412 = vsel %vm411, %v393, 0.0
        %413 = vadd.xlane.f32.xlu0 %v412
        %v414 = vpop.xlane.xlu0 %413
        %v415 = vsel %vm411, %v394, 0.0
        %416 = vadd.xlane.f32.xlu0 %v415
        %v417 = vpop.xlane.xlu0 %416
        %v418 = vsel %vm411, %v395, 0.0
        %419 = vadd.xlane.f32.xlu0 %v418
        %v420 = vpop.xlane.xlu0 %419
        %v421 = vsel %vm411, %v396, 0.0
        %422 = vadd.xlane.f32.xlu0 %v421
        %v423 = vpop.xlane.xlu0 %422
        %v424 = vsel %vm411, %v397, 0.0
        %425 = vadd.xlane.f32.xlu0 %v424
        %v426 = vpop.xlane.xlu0 %425
        %v427 = vsel %vm411, %v398, 0.0
        %428 = vadd.xlane.f32.xlu0 %v427
        %v429 = vpop.xlane.xlu0 %428
        %v430 = vsel %vm411, %v399, 0.0
        %431 = vadd.xlane.f32.xlu0 %v430
        %v432 = vpop.xlane.xlu0 %431
        %v433 = vsel %vm411, %v400, 0.0
        %434 = vadd.xlane.f32.xlu0 %v433
        %v435 = vpop.xlane.xlu0 %434
        %v436 = vsel %vm411, %v401, 0.0
        %437 = vadd.xlane.f32.xlu0 %v436
        %v438 = vpop.xlane.xlu0 %437
        %v439 = vsel %vm411, %v402, 0.0
        %440 = vadd.xlane.f32.xlu0 %v439
        %v441 = vpop.xlane.xlu0 %440
        %v442 = vsel %vm411, %v403, 0.0
        %443 = vadd.xlane.f32.xlu0 %v442
        %v444 = vpop.xlane.xlu0 %443
        %v445 = vsel %vm411, %v404, 0.0
        %446 = vadd.xlane.f32.xlu0 %v445
        %v447 = vpop.xlane.xlu0 %446
        %v448 = vsel %vm411, %v405, 0.0
        %449 = vadd.xlane.f32.xlu0 %v448
        %v450 = vpop.xlane.xlu0 %449
        %v451 = vsel %vm411, %v406, 0.0
        %452 = vadd.xlane.f32.xlu0 %v451
        %v453 = vpop.xlane.xlu0 %452
        %v454 = vsel %vm411, %v407, 0.0
        %455 = vadd.xlane.f32.xlu0 %v454
        %v456 = vpop.xlane.xlu0 %455
        %v457 = vsel %vm411, %v408, 0.0
        %458 = vadd.xlane.f32.xlu0 %v457
        %v459 = vpop.xlane.xlu0 %458
        %v460 = vrcp.pop 32.0
        %v461 = vmul.f32 32.0, %v460
        %v462 = vsub.f32 1.0, %v461
        %v463 = vmul.f32 %v460, %v462
        %v464 = vadd.f32 %v460, %v463
        %vm465 = vweird.f32 %v460
        %v466 = vsel %vm465, %v460, %v464
        %v467 = vmul.f32 %v414, %v466
        %v468 = vmul.f32 %v417, %v466
        %v469 = vmul.f32 %v420, %v466
        %v470 = vmul.f32 %v423, %v466
        %v471 = vmul.f32 %v426, %v466
        %v472 = vmul.f32 %v429, %v466
        %v473 = vmul.f32 %v432, %v466
        %v474 = vmul.f32 %v435, %v466
        %v475 = vmul.f32 %v438, %v466
        %v476 = vmul.f32 %v441, %v466
        %v477 = vmul.f32 %v444, %v466
        %v478 = vmul.f32 %v447, %v466
        %v479 = vmul.f32 %v450, %v466
        %v480 = vmul.f32 %v453, %v466
        %v481 = vmul.f32 %v456, %v466
        %v482 = vmul.f32 %v459, %v466
        %v483 = vsub.f32 %v393, %v467
        %v484 = vsub.f32 %v394, %v468
        %v485 = vsub.f32 %v395, %v469
        %v486 = vsub.f32 %v396, %v470
        %v487 = vsub.f32 %v397, %v471
        %v488 = vsub.f32 %v398, %v472
        %v489 = vsub.f32 %v399, %v473
        %v490 = vsub.f32 %v400, %v474
        %v491 = vsub.f32 %v401, %v475
        %v492 = vsub.f32 %v402, %v476
        %v493 = vsub.f32 %v403, %v477
        %v494 = vsub.f32 %v404, %v478
        %v495 = vsub.f32 %v405, %v479
        %v496 = vsub.f32 %v406, %v480
        %v497 = vsub.f32 %v407, %v481
        %v498 = vsub.f32 %v408, %v482
        %v499 = vmul.f32 %v483, %v483
        %v500 = vmul.f32 %v484, %v484
        %v501 = vmul.f32 %v485, %v485
        %v502 = vmul.f32 %v486, %v486
        %v503 = vmul.f32 %v487, %v487
        %v504 = vmul.f32 %v488, %v488
        %v505 = vmul.f32 %v489, %v489
        %v506 = vmul.f32 %v490, %v490
        %v507 = vmul.f32 %v491, %v491
        %v508 = vmul.f32 %v492, %v492
        %v509 = vmul.f32 %v493, %v493
        %v510 = vmul.f32 %v494, %v494
        %v511 = vmul.f32 %v495, %v495
        %v512 = vmul.f32 %v496, %v496
        %v513 = vmul.f32 %v497, %v497
        %v514 = vmul.f32 %v498, %v498
        %v515 = vsel %vm411, %v499, 0.0
        %516 = vadd.xlane.f32.xlu0 %v515
        %v517 = vpop.xlane.xlu0 %516
        %v518 = vsel %vm411, %v500, 0.0
        %519 = vadd.xlane.f32.xlu0 %v518
        %v520 = vpop.xlane.xlu0 %519
        %v521 = vsel %vm411, %v501, 0.0
        %522 = vadd.xlane.f32.xlu0 %v521
        %v523 = vpop.xlane.xlu0 %522
        %v524 = vsel %vm411, %v502, 0.0
        %525 = vadd.xlane.f32.xlu0 %v524
        %v526 = vpop.xlane.xlu0 %525
        %v527 = vsel %vm411, %v503, 0.0
        %528 = vadd.xlane.f32.xlu0 %v527
        %v529 = vpop.xlane.xlu0 %528
        %v530 = vsel %vm411, %v504, 0.0
        %531 = vadd.xlane.f32.xlu0 %v530
        %v532 = vpop.xlane.xlu0 %531
        %v533 = vsel %vm411, %v505, 0.0
        %534 = vadd.xlane.f32.xlu0 %v533
        %v535 = vpop.xlane.xlu0 %534
        %v536 = vsel %vm411, %v506, 0.0
        %537 = vadd.xlane.f32.xlu0 %v536
        %v538 = vpop.xlane.xlu0 %537
        %v539 = vsel %vm411, %v507, 0.0
        %540 = vadd.xlane.f32.xlu0 %v539
        %v541 = vpop.xlane.xlu0 %540
        %v542 = vsel %vm411, %v508, 0.0
        %543 = vadd.xlane.f32.xlu0 %v542
        %v544 = vpop.xlane.xlu0 %543
        %v545 = vsel %vm411, %v509, 0.0
        %546 = vadd.xlane.f32.xlu0 %v545
        %v547 = vpop.xlane.xlu0 %546
        %v548 = vsel %vm411, %v510, 0.0
        %549 = vadd.xlane.f32.xlu0 %v548
        %v550 = vpop.xlane.xlu0 %549
        %v551 = vsel %vm411, %v511, 0.0
        %552 = vadd.xlane.f32.xlu0 %v551
        %v553 = vpop.xlane.xlu0 %552
        %v554 = vsel %vm411, %v512, 0.0
        %555 = vadd.xlane.f32.xlu0 %v554
        %v556 = vpop.xlane.xlu0 %555
        %v557 = vsel %vm411, %v513, 0.0
        %558 = vadd.xlane.f32.xlu0 %v557
        %v559 = vpop.xlane.xlu0 %558
        %v560 = vsel %vm411, %v514, 0.0
        %561 = vadd.xlane.f32.xlu0 %v560
        %v562 = vpop.xlane.xlu0 %561
        %v563 = vmul.f32 %v517, %v466
        %v564 = vmul.f32 %v520, %v466
        %v565 = vmul.f32 %v523, %v466
        %v566 = vmul.f32 %v526, %v466
        %v567 = vmul.f32 %v529, %v466
        %v568 = vmul.f32 %v532, %v466
        %v569 = vmul.f32 %v535, %v466
        %v570 = vmul.f32 %v538, %v466
        %v571 = vmul.f32 %v541, %v466
        %v572 = vmul.f32 %v544, %v466
        %v573 = vmul.f32 %v547, %v466
        %v574 = vmul.f32 %v550, %v466
        %v575 = vmul.f32 %v553, %v466
        %v576 = vmul.f32 %v556, %v466
        %v577 = vmul.f32 %v559, %v466
        %v578 = vmul.f32 %v562, %v466
        %v579 = vadd.f32 %v563, 1e-05
        %v580 = vadd.f32 %v564, 1e-05
        %v581 = vadd.f32 %v565, 1e-05
        %v582 = vadd.f32 %v566, 1e-05
        %v583 = vadd.f32 %v567, 1e-05
        %v584 = vadd.f32 %v568, 1e-05
        %v585 = vadd.f32 %v569, 1e-05
        %v586 = vadd.f32 %v570, 1e-05
        %v587 = vadd.f32 %v571, 1e-05
        %v588 = vadd.f32 %v572, 1e-05
        %v589 = vadd.f32 %v573, 1e-05
        %v590 = vadd.f32 %v574, 1e-05
        %v591 = vadd.f32 %v575, 1e-05
        %v592 = vadd.f32 %v576, 1e-05
        %v593 = vadd.f32 %v577, 1e-05
        %v594 = vadd.f32 %v578, 1e-05
        %v595 = vrsqrt.pop %v579
        %v596 = vmul.f32 %v595, %v579
        %v597 = vmul.f32 %v596, %v595
        %v598 = vmul.f32 0.5, %v597
        %v599 = vsub.f32 1.5, %v598
        %v600 = vmul.f32 %v595, %v599
        %vm601 = vweird.f32 %v579
        %vm602 = vweird.f32 %v595
        %vm603 = vmor %vm601, %vm602
        %v604 = vsel %vm603, %v595, %v600
        %v605 = vrsqrt.pop %v580
        %v606 = vmul.f32 %v605, %v580
        %v607 = vmul.f32 %v606, %v605
        %v608 = vmul.f32 0.5, %v607
        %v609 = vsub.f32 1.5, %v608
        %v610 = vmul.f32 %v605, %v609
        %vm611 = vweird.f32 %v580
        %vm612 = vweird.f32 %v605
        %vm613 = vmor %vm611, %vm612
        %v614 = vsel %vm613, %v605, %v610
        %v615 = vrsqrt.pop %v581
        %v616 = vmul.f32 %v615, %v581
        %v617 = vmul.f32 %v616, %v615
        %v618 = vmul.f32 0.5, %v617
        %v619 = vsub.f32 1.5, %v618
        %v620 = vmul.f32 %v615, %v619
        %vm621 = vweird.f32 %v581
        %vm622 = vweird.f32 %v615
        %vm623 = vmor %vm621, %vm622
        %v624 = vsel %vm623, %v615, %v620
        %v625 = vrsqrt.pop %v582
        %v626 = vmul.f32 %v625, %v582
        %v627 = vmul.f32 %v626, %v625
        %v628 = vmul.f32 0.5, %v627
        %v629 = vsub.f32 1.5, %v628
        %v630 = vmul.f32 %v625, %v629
        %vm631 = vweird.f32 %v582
        %vm632 = vweird.f32 %v625
        %vm633 = vmor %vm631, %vm632
        %v634 = vsel %vm633, %v625, %v630
        %v635 = vrsqrt.pop %v583
        %v636 = vmul.f32 %v635, %v583
        %v637 = vmul.f32 %v636, %v635
        %v638 = vmul.f32 0.5, %v637
        %v639 = vsub.f32 1.5, %v638
        %v640 = vmul.f32 %v635, %v639
        %vm641 = vweird.f32 %v583
        %vm642 = vweird.f32 %v635
        %vm643 = vmor %vm641, %vm642
        %v644 = vsel %vm643, %v635, %v640
        %v645 = vrsqrt.pop %v584
        %v646 = vmul.f32 %v645, %v584
        %v647 = vmul.f32 %v646, %v645
        %v648 = vmul.f32 0.5, %v647
        %v649 = vsub.f32 1.5, %v648
        %v650 = vmul.f32 %v645, %v649
        %vm651 = vweird.f32 %v584
        %vm652 = vweird.f32 %v645
        %vm653 = vmor %vm651, %vm652
        %v654 = vsel %vm653, %v645, %v650
        %v655 = vrsqrt.pop %v585
        %v656 = vmul.f32 %v655, %v585
        %v657 = vmul.f32 %v656, %v655
        %v658 = vmul.f32 0.5, %v657
        %v659 = vsub.f32 1.5, %v658
        %v660 = vmul.f32 %v655, %v659
        %vm661 = vweird.f32 %v585
        %vm662 = vweird.f32 %v655
        %vm663 = vmor %vm661, %vm662
        %v664 = vsel %vm663, %v655, %v660
        %v665 = vrsqrt.pop %v586
        %v666 = vmul.f32 %v665, %v586
        %v667 = vmul.f32 %v666, %v665
        %v668 = vmul.f32 0.5, %v667
        %v669 = vsub.f32 1.5, %v668
        %v670 = vmul.f32 %v665, %v669
        %vm671 = vweird.f32 %v586
        %vm672 = vweird.f32 %v665
        %vm673 = vmor %vm671, %vm672
        %v674 = vsel %vm673, %v665, %v670
        %v675 = vrsqrt.pop %v587
        %v676 = vmul.f32 %v675, %v587
        %v677 = vmul.f32 %v676, %v675
        %v678 = vmul.f32 0.5, %v677
        %v679 = vsub.f32 1.5, %v678
        %v680 = vmul.f32 %v675, %v679
        %vm681 = vweird.f32 %v587
        %vm682 = vweird.f32 %v675
        %vm683 = vmor %vm681, %vm682
        %v684 = vsel %vm683, %v675, %v680
        %v685 = vrsqrt.pop %v588
        %v686 = vmul.f32 %v685, %v588
        %v687 = vmul.f32 %v686, %v685
        %v688 = vmul.f32 0.5, %v687
        %v689 = vsub.f32 1.5, %v688
        %v690 = vmul.f32 %v685, %v689
        %vm691 = vweird.f32 %v588
        %vm692 = vweird.f32 %v685
        %vm693 = vmor %vm691, %vm692
        %v694 = vsel %vm693, %v685, %v690
        %v695 = vrsqrt.pop %v589
        %v696 = vmul.f32 %v695, %v589
        %v697 = vmul.f32 %v696, %v695
        %v698 = vmul.f32 0.5, %v697
        %v699 = vsub.f32 1.5, %v698
        %v700 = vmul.f32 %v695, %v699
        %vm701 = vweird.f32 %v589
        %vm702 = vweird.f32 %v695
        %vm703 = vmor %vm701, %vm702
        %v704 = vsel %vm703, %v695, %v700
        %v705 = vrsqrt.pop %v590
        %v706 = vmul.f32 %v705, %v590
        %v707 = vmul.f32 %v706, %v705
        %v708 = vmul.f32 0.5, %v707
        %v709 = vsub.f32 1.5, %v708
        %v710 = vmul.f32 %v705, %v709
        %vm711 = vweird.f32 %v590
        %vm712 = vweird.f32 %v705
        %vm713 = vmor %vm711, %vm712
        %v714 = vsel %vm713, %v705, %v710
        %v715 = vrsqrt.pop %v591
        %v716 = vmul.f32 %v715, %v591
        %v717 = vmul.f32 %v716, %v715
        %v718 = vmul.f32 0.5, %v717
        %v719 = vsub.f32 1.5, %v718
        %v720 = vmul.f32 %v715, %v719
        %vm721 = vweird.f32 %v591
        %vm722 = vweird.f32 %v715
        %vm723 = vmor %vm721, %vm722
        %v724 = vsel %vm723, %v715, %v720
        %v725 = vrsqrt.pop %v592
        %v726 = vmul.f32 %v725, %v592
        %v727 = vmul.f32 %v726, %v725
        %v728 = vmul.f32 0.5, %v727
        %v729 = vsub.f32 1.5, %v728
        %v730 = vmul.f32 %v725, %v729
        %vm731 = vweird.f32 %v592
        %vm732 = vweird.f32 %v725
        %vm733 = vmor %vm731, %vm732
        %v734 = vsel %vm733, %v725, %v730
        %v735 = vrsqrt.pop %v593
        %v736 = vmul.f32 %v735, %v593
        %v737 = vmul.f32 %v736, %v735
        %v738 = vmul.f32 0.5, %v737
        %v739 = vsub.f32 1.5, %v738
        %v740 = vmul.f32 %v735, %v739
        %vm741 = vweird.f32 %v593
        %vm742 = vweird.f32 %v735
        %vm743 = vmor %vm741, %vm742
        %v744 = vsel %vm743, %v735, %v740
        %v745 = vrsqrt.pop %v594
        %v746 = vmul.f32 %v745, %v594
        %v747 = vmul.f32 %v746, %v745
        %v748 = vmul.f32 0.5, %v747
        %v749 = vsub.f32 1.5, %v748
        %v750 = vmul.f32 %v745, %v749
        %vm751 = vweird.f32 %v594
        %vm752 = vweird.f32 %v745
        %vm753 = vmor %vm751, %vm752
        %v754 = vsel %vm753, %v745, %v750
        %v755 = vmul.f32 %v483, %v604
        %v756 = vmul.f32 %v484, %v614
        %v757 = vmul.f32 %v485, %v624
        %v758 = vmul.f32 %v486, %v634
        %v759 = vmul.f32 %v487, %v644
        %v760 = vmul.f32 %v488, %v654
        %v761 = vmul.f32 %v489, %v664
        %v762 = vmul.f32 %v490, %v674
        %v763 = vmul.f32 %v491, %v684
        %v764 = vmul.f32 %v492, %v694
        %v765 = vmul.f32 %v493, %v704
        %v766 = vmul.f32 %v494, %v714
        %v767 = vmul.f32 %v495, %v724
        %v768 = vmul.f32 %v496, %v734
        %v769 = vmul.f32 %v497, %v744
        %v770 = vmul.f32 %v498, %v754
        %v772 = vperm.slane %v409, 0
        %v774 = vmul.f32 %v755, %v772
        %v775 = vmul.f32 %v756, %v772
        %v776 = vmul.f32 %v757, %v772
        %v777 = vmul.f32 %v758, %v772
        %v778 = vmul.f32 %v759, %v772
        %v779 = vmul.f32 %v760, %v772
        %v780 = vmul.f32 %v761, %v772
        %v781 = vmul.f32 %v762, %v772
        %v782 = vmul.f32 %v763, %v772
        %v783 = vmul.f32 %v764, %v772
        %v784 = vmul.f32 %v765, %v772
        %v785 = vmul.f32 %v766, %v772
        %v786 = vmul.f32 %v767, %v772
        %v787 = vmul.f32 %v768, %v772
        %v788 = vmul.f32 %v769, %v772
        %v789 = vmul.f32 %v770, %v772
        %v791 = vperm.slane %v410, 0
        %v793 = vadd.f32 %v774, %v791
        %v794 = vadd.f32 %v775, %v791
        %v795 = vadd.f32 %v776, %v791
        %v796 = vadd.f32 %v777, %v791
        %v797 = vadd.f32 %v778, %v791
        %v798 = vadd.f32 %v779, %v791
        %v799 = vadd.f32 %v780, %v791
        %v800 = vadd.f32 %v781, %v791
        %v801 = vadd.f32 %v782, %v791
        %v802 = vadd.f32 %v783, %v791
        %v803 = vadd.f32 %v784, %v791
        %v804 = vadd.f32 %v785, %v791
        %v805 = vadd.f32 %v786, %v791
        %v806 = vadd.f32 %v787, %v791
        %v807 = vadd.f32 %v788, %v791
        %v808 = vadd.f32 %v789, %v791
        %v809 = vld [vmem:[#allocation8] sm:$0xf]
        %v810 = vld [vmem:[#allocation8 + $0x4] sm:$0xf]
        %v811 = vld [vmem:[#allocation8 + $0x8] sm:$0xf]
        %v812 = vld [vmem:[#allocation8 + $0xc] sm:$0xf]
        %v813 = vpack.c.bf16 %v793, %v793
        %v814 = vpack.c.bf16 %v794, %v794
        %v815 = vpack.c.bf16 %v795, %v795
        %v816 = vpack.c.bf16 %v796, %v796
        %v817 = vpack.c.bf16 %v797, %v797
        %v818 = vpack.c.bf16 %v798, %v798
        %v819 = vpack.c.bf16 %v799, %v799
        %v820 = vpack.c.bf16 %v800, %v800
        %v821 = vpack.c.bf16 %v801, %v801
        %v822 = vpack.c.bf16 %v802, %v802
        %v823 = vpack.c.bf16 %v803, %v803
        %v824 = vpack.c.bf16 %v804, %v804
        %v825 = vpack.c.bf16 %v805, %v805
        %v826 = vpack.c.bf16 %v806, %v806
        %v827 = vpack.c.bf16 %v807, %v807
        %v828 = vpack.c.bf16 %v808, %v808
        %830 = vst [vmem:[#allocation1] ss:$9 sm:$0xff] %v813
        %s832 = scalar_lea.vmem [#allocation1], 1
        %833 = vst [vmem:[%s832] ss:$9 sm:$0xff] %v814
        %s835 = scalar_lea.vmem [#allocation1], 2
        %836 = vst [vmem:[%s835] ss:$9 sm:$0xff] %v815
        %s838 = scalar_lea.vmem [#allocation1], 3
        %839 = vst [vmem:[%s838] ss:$9 sm:$0xff] %v816
        %s841 = scalar_lea.vmem [#allocation1], 4
        %842 = vst [vmem:[%s841] ss:$9 sm:$0xff] %v817
        %s844 = scalar_lea.vmem [#allocation1], 5
        %845 = vst [vmem:[%s844] ss:$9 sm:$0xff] %v818
        %s847 = scalar_lea.vmem [#allocation1], 6
        %848 = vst [vmem:[%s847] ss:$9 sm:$0xff] %v819
        %s850 = scalar_lea.vmem [#allocation1], 7
        %851 = vst [vmem:[%s850] ss:$9 sm:$0xff] %v820
        %v852 = vld [vmem:[#allocation1] sm:$0xff]
        %854 = vst [vmem:[#allocation1] ss:$9 sm:$0xff] %v821
        %856 = vst [vmem:[%s832] ss:$9 sm:$0xff] %v822
        %858 = vst [vmem:[%s835] ss:$9 sm:$0xff] %v823
        %860 = vst [vmem:[%s838] ss:$9 sm:$0xff] %v824
        %862 = vst [vmem:[%s841] ss:$9 sm:$0xff] %v825
        %864 = vst [vmem:[%s844] ss:$9 sm:$0xff] %v826
        %866 = vst [vmem:[%s847] ss:$9 sm:$0xff] %v827
        %868 = vst [vmem:[%s850] ss:$9 sm:$0xff] %v828
        %v869 = vld [vmem:[#allocation1] sm:$0xff]
        %v874 = vunpack.c.l.b16 %v809
        %v875 = vunpack.c.l.b16 %v810
        %v876 = vunpack.c.l.b16 %v811
        %v877 = vunpack.c.l.b16 %v812
        %v878 = vpack.c.b16 %v875, %v874
        %v879 = vpack.c.b16 %v877, %v876
        %vm882 = vcmask 261120
        %v883 = vsel %vm882, %v852, 0
        %v885 = vsel %vm882, %v869, 0
        %887 = vmatpush.bf16.msra.mxu0 0
        %888 = vmatpush.bf16.msra.mxu0 0
        %889 = vmatpush.bf16.msra.mxu0 0
        %890 = vmatpush.bf16.msra.mxu0 0
        %891 = vmatpush.bf16.msra.mxu0 0
        %892 = vmatpush.bf16.msra.mxu0 0
        %893 = vmatpush.bf16.msra.mxu0 %v879
        %894 = vmatpush.bf16.msra.mxu0 %v878
        %895 = vmatmul.bf16.gmra.mxu0 %v883
        %v896 = vpop.f32.mrf.mxu0
        %v897 = vadd.f32 0.0, %v896
        %v898 = vpop.f32.mrf.mxu0
        %v899 = vadd.f32 0.0, %v898
        %900 = vmatmul.bf16.gmra.mxu0 %v885
        %v901 = vpop.f32.mrf.mxu0
        %v902 = vadd.f32 0.0, %v901
        %v903 = vpop.f32.mrf.mxu0
        %v904 = vadd.f32 0.0, %v903
        %905 = vdwg.mxu0
        %v910 = vrot.slane %v897, 2
        %v911 = vrot.slane %v897, 4
        %v912 = vrot.slane %v897, 6
        %v913 = vrot.slane %v899, 2
        %v914 = vrot.slane %v899, 4
        %v915 = vrot.slane %v899, 6
        %v916 = vrot.slane %v902, 2
        %v917 = vrot.slane %v902, 4
        %v918 = vrot.slane %v902, 6
        %v919 = vrot.slane %v904, 2
        %v920 = vrot.slane %v904, 4
        %v921 = vrot.slane %v904, 6
        %v934 = vpack.c.bf16 %v897, %v897
        %v935 = vpack.c.bf16 %v910, %v910
        %v936 = vpack.c.bf16 %v911, %v911
        %v937 = vpack.c.bf16 %v912, %v912
        %v938 = vpack.c.bf16 %v899, %v899
        %v939 = vpack.c.bf16 %v913, %v913
        %v940 = vpack.c.bf16 %v914, %v914
        %v941 = vpack.c.bf16 %v915, %v915
        %v942 = vpack.c.bf16 %v902, %v902
        %v943 = vpack.c.bf16 %v916, %v916
        %v944 = vpack.c.bf16 %v917, %v917
        %v945 = vpack.c.bf16 %v918, %v918
        %v946 = vpack.c.bf16 %v904, %v904
        %v947 = vpack.c.bf16 %v919, %v919
        %v948 = vpack.c.bf16 %v920, %v920
        %v949 = vpack.c.bf16 %v921, %v921
        %v951 = vunpack.c.l.b16 %v934
        %v952 = vpack.c.b16 %v951, %v951
        %953 = vrot.lane.b32.xlu0 %v952, 96
        %v954 = vpop.permute.xlu0 %953
        %vm955 = vcmask 64512
        %v957 = vsel %vm955, %v934, 0
        %v960 = vsel %vm955, %v954, 0
        %962 = vmatpush.bf16.xpose.msra.mxu0 0
        %963 = vmatpush.bf16.xpose.msra.mxu0 0
        %964 = vmatpush.bf16.xpose.msra.mxu0 0
        %965 = vmatpush.bf16.xpose.msra.mxu0 0
        %966 = vmatpush.bf16.xpose.msra.mxu0 0
        %967 = vmatpush.bf16.xpose.msra.mxu0 0
        %968 = vmatpush.bf16.xpose.msra.mxu0 0
        %969 = vmatpush.bf16.xpose.msra.mxu0 %v960
        %970 = vmatmul.bf16.gmra.mxu0 %v957
        %v971 = vpop.f32.mrf.mxu0
        %v972 = vadd.f32 0.0, %v971
        %v973 = vpop.f32.mrf.mxu0
        %974 = vdwg.mxu0
        %v976 = vunpack.c.l.b16 %v935
        %v977 = vpack.c.b16 %v976, %v976
        %978 = vrot.lane.b32.xlu0 %v977, 96
        %v979 = vpop.permute.xlu0 %978
        %v981 = vsel %vm955, %v935, 0
        %v984 = vsel %vm955, %v979, 0
        %986 = vmatpush.bf16.xpose.msra.mxu0 0
        %987 = vmatpush.bf16.xpose.msra.mxu0 0
        %988 = vmatpush.bf16.xpose.msra.mxu0 0
        %989 = vmatpush.bf16.xpose.msra.mxu0 0
        %990 = vmatpush.bf16.xpose.msra.mxu0 0
        %991 = vmatpush.bf16.xpose.msra.mxu0 0
        %992 = vmatpush.bf16.xpose.msra.mxu0 0
        %993 = vmatpush.bf16.xpose.msra.mxu0 %v984
        %994 = vmatmul.bf16.gmra.mxu0 %v981
        %v995 = vpop.f32.mrf.mxu0
        %v996 = vadd.f32 0.0, %v995
        %v997 = vpop.f32.mrf.mxu0
        %998 = vdwg.mxu0
        %v1000 = vunpack.c.l.b16 %v936
        %v1001 = vpack.c.b16 %v1000, %v1000
        %1002 = vrot.lane.b32.xlu0 %v1001, 96
        %v1003 = vpop.permute.xlu0 %1002
        %v1005 = vsel %vm955, %v936, 0
        %v1008 = vsel %vm955, %v1003, 0
        %1010 = vmatpush.bf16.xpose.msra.mxu0 0
        %1011 = vmatpush.bf16.xpose.msra.mxu0 0
        %1012 = vmatpush.bf16.xpose.msra.mxu0 0
        %1013 = vmatpush.bf16.xpose.msra.mxu0 0
        %1014 = vmatpush.bf16.xpose.msra.mxu0 0
        %1015 = vmatpush.bf16.xpose.msra.mxu0 0
        %1016 = vmatpush.bf16.xpose.msra.mxu0 0
        %1017 = vmatpush.bf16.xpose.msra.mxu0 %v1008
        %1018 = vmatmul.bf16.gmra.mxu0 %v1005
        %v1019 = vpop.f32.mrf.mxu0
        %v1020 = vadd.f32 0.0, %v1019
        %v1021 = vpop.f32.mrf.mxu0
        %1022 = vdwg.mxu0
        %v1024 = vunpack.c.l.b16 %v937
        %v1025 = vpack.c.b16 %v1024, %v1024
        %1026 = vrot.lane.b32.xlu0 %v1025, 96
        %v1027 = vpop.permute.xlu0 %1026
        %v1029 = vsel %vm955, %v937, 0
        %v1032 = vsel %vm955, %v1027, 0
        %1034 = vmatpush.bf16.xpose.msra.mxu0 0
        %1035 = vmatpush.bf16.xpose.msra.mxu0 0
        %1036 = vmatpush.bf16.xpose.msra.mxu0 0
        %1037 = vmatpush.bf16.xpose.msra.mxu0 0
        %1038 = vmatpush.bf16.xpose.msra.mxu0 0
        %1039 = vmatpush.bf16.xpose.msra.mxu0 0
        %1040 = vmatpush.bf16.xpose.msra.mxu0 0
        %1041 = vmatpush.bf16.xpose.msra.mxu0 %v1032
        %1042 = vmatmul.bf16.gmra.mxu0 %v1029
        %v1043 = vpop.f32.mrf.mxu0
        %v1044 = vadd.f32 0.0, %v1043
        %v1045 = vpop.f32.mrf.mxu0
        %1046 = vdwg.mxu0
        %v1048 = vunpack.c.l.b16 %v938
        %v1049 = vpack.c.b16 %v1048, %v1048
        %1050 = vrot.lane.b32.xlu0 %v1049, 96
        %v1051 = vpop.permute.xlu0 %1050
        %v1053 = vsel %vm955, %v938, 0
        %v1056 = vsel %vm955, %v1051, 0
        %1058 = vmatpush.bf16.xpose.msra.mxu0 0
        %1059 = vmatpush.bf16.xpose.msra.mxu0 0
        %1060 = vmatpush.bf16.xpose.msra.mxu0 0
        %1061 = vmatpush.bf16.xpose.msra.mxu0 0
        %1062 = vmatpush.bf16.xpose.msra.mxu0 0
        %1063 = vmatpush.bf16.xpose.msra.mxu0 0
        %1064 = vmatpush.bf16.xpose.msra.mxu0 0
        %1065 = vmatpush.bf16.xpose.msra.mxu0 %v1056
        %1066 = vmatmul.bf16.gmra.mxu0 %v1053
        %v1067 = vpop.f32.mrf.mxu0
        %v1068 = vadd.f32 0.0, %v1067
        %v1069 = vpop.f32.mrf.mxu0
        %1070 = vdwg.mxu0
        %v1072 = vunpack.c.l.b16 %v939
        %v1073 = vpack.c.b16 %v1072, %v1072
        %1074 = vrot.lane.b32.xlu0 %v1073, 96
        %v1075 = vpop.permute.xlu0 %1074
        %v1077 = vsel %vm955, %v939, 0
        %v1080 = vsel %vm955, %v1075, 0
        %1082 = vmatpush.bf16.xpose.msra.mxu0 0
        %1083 = vmatpush.bf16.xpose.msra.mxu0 0
        %1084 = vmatpush.bf16.xpose.msra.mxu0 0
        %1085 = vmatpush.bf16.xpose.msra.mxu0 0
        %1086 = vmatpush.bf16.xpose.msra.mxu0 0
        %1087 = vmatpush.bf16.xpose.msra.mxu0 0
        %1088 = vmatpush.bf16.xpose.msra.mxu0 0
        %1089 = vmatpush.bf16.xpose.msra.mxu0 %v1080
        %1090 = vmatmul.bf16.gmra.mxu0 %v1077
        %v1091 = vpop.f32.mrf.mxu0
        %v1092 = vadd.f32 0.0, %v1091
        %v1093 = vpop.f32.mrf.mxu0
        %1094 = vdwg.mxu0
        %v1096 = vunpack.c.l.b16 %v940
        %v1097 = vpack.c.b16 %v1096, %v1096
        %1098 = vrot.lane.b32.xlu0 %v1097, 96
        %v1099 = vpop.permute.xlu0 %1098
        %v1101 = vsel %vm955, %v940, 0
        %v1104 = vsel %vm955, %v1099, 0
        %1106 = vmatpush.bf16.xpose.msra.mxu0 0
        %1107 = vmatpush.bf16.xpose.msra.mxu0 0
        %1108 = vmatpush.bf16.xpose.msra.mxu0 0
        %1109 = vmatpush.bf16.xpose.msra.mxu0 0
        %1110 = vmatpush.bf16.xpose.msra.mxu0 0
        %1111 = vmatpush.bf16.xpose.msra.mxu0 0
        %1112 = vmatpush.bf16.xpose.msra.mxu0 0
        %1113 = vmatpush.bf16.xpose.msra.mxu0 %v1104
        %1114 = vmatmul.bf16.gmra.mxu0 %v1101
        %v1115 = vpop.f32.mrf.mxu0
        %v1116 = vadd.f32 0.0, %v1115
        %v1117 = vpop.f32.mrf.mxu0
        %1118 = vdwg.mxu0
        %v1120 = vunpack.c.l.b16 %v941
        %v1121 = vpack.c.b16 %v1120, %v1120
        %1122 = vrot.lane.b32.xlu0 %v1121, 96
        %v1123 = vpop.permute.xlu0 %1122
        %v1125 = vsel %vm955, %v941, 0
        %v1128 = vsel %vm955, %v1123, 0
        %1130 = vmatpush.bf16.xpose.msra.mxu0 0
        %1131 = vmatpush.bf16.xpose.msra.mxu0 0
        %1132 = vmatpush.bf16.xpose.msra.mxu0 0
        %1133 = vmatpush.bf16.xpose.msra.mxu0 0
        %1134 = vmatpush.bf16.xpose.msra.mxu0 0
        %1135 = vmatpush.bf16.xpose.msra.mxu0 0
        %1136 = vmatpush.bf16.xpose.msra.mxu0 0
        %1137 = vmatpush.bf16.xpose.msra.mxu0 %v1128
        %1138 = vmatmul.bf16.gmra.mxu0 %v1125
        %v1139 = vpop.f32.mrf.mxu0
        %v1140 = vadd.f32 0.0, %v1139
        %v1141 = vpop.f32.mrf.mxu0
        %1142 = vdwg.mxu0
        %v1144 = vunpack.c.l.b16 %v942
        %v1145 = vpack.c.b16 %v1144, %v1144
        %1146 = vrot.lane.b32.xlu0 %v1145, 96
        %v1147 = vpop.permute.xlu0 %1146
        %v1149 = vsel %vm955, %v942, 0
        %v1152 = vsel %vm955, %v1147, 0
        %1154 = vmatpush.bf16.xpose.msra.mxu0 0
        %1155 = vmatpush.bf16.xpose.msra.mxu0 0
        %1156 = vmatpush.bf16.xpose.msra.mxu0 0
        %1157 = vmatpush.bf16.xpose.msra.mxu0 0
        %1158 = vmatpush.bf16.xpose.msra.mxu0 0
        %1159 = vmatpush.bf16.xpose.msra.mxu0 0
        %1160 = vmatpush.bf16.xpose.msra.mxu0 0
        %1161 = vmatpush.bf16.xpose.msra.mxu0 %v1152
        %1162 = vmatmul.bf16.gmra.mxu0 %v1149
        %v1163 = vpop.f32.mrf.mxu0
        %v1164 = vadd.f32 0.0, %v1163
        %v1165 = vpop.f32.mrf.mxu0
        %1166 = vdwg.mxu0
        %v1168 = vunpack.c.l.b16 %v943
        %v1169 = vpack.c.b16 %v1168, %v1168
        %1170 = vrot.lane.b32.xlu0 %v1169, 96
        %v1171 = vpop.permute.xlu0 %1170
        %v1173 = vsel %vm955, %v943, 0
        %v1176 = vsel %vm955, %v1171, 0
        %1178 = vmatpush.bf16.xpose.msra.mxu0 0
        %1179 = vmatpush.bf16.xpose.msra.mxu0 0
        %1180 = vmatpush.bf16.xpose.msra.mxu0 0
        %1181 = vmatpush.bf16.xpose.msra.mxu0 0
        %1182 = vmatpush.bf16.xpose.msra.mxu0 0
        %1183 = vmatpush.bf16.xpose.msra.mxu0 0
        %1184 = vmatpush.bf16.xpose.msra.mxu0 0
        %1185 = vmatpush.bf16.xpose.msra.mxu0 %v1176
        %1186 = vmatmul.bf16.gmra.mxu0 %v1173
        %v1187 = vpop.f32.mrf.mxu0
        %v1188 = vadd.f32 0.0, %v1187
        %v1189 = vpop.f32.mrf.mxu0
        %1190 = vdwg.mxu0
        %v1192 = vunpack.c.l.b16 %v944
        %v1193 = vpack.c.b16 %v1192, %v1192
        %1194 = vrot.lane.b32.xlu0 %v1193, 96
        %v1195 = vpop.permute.xlu0 %1194
        %v1197 = vsel %vm955, %v944, 0
        %v1200 = vsel %vm955, %v1195, 0
        %1202 = vmatpush.bf16.xpose.msra.mxu0 0
        %1203 = vmatpush.bf16.xpose.msra.mxu0 0
        %1204 = vmatpush.bf16.xpose.msra.mxu0 0
        %1205 = vmatpush.bf16.xpose.msra.mxu0 0
        %1206 = vmatpush.bf16.xpose.msra.mxu0 0
        %1207 = vmatpush.bf16.xpose.msra.mxu0 0
        %1208 = vmatpush.bf16.xpose.msra.mxu0 0
        %1209 = vmatpush.bf16.xpose.msra.mxu0 %v1200
        %1210 = vmatmul.bf16.gmra.mxu0 %v1197
        %v1211 = vpop.f32.mrf.mxu0
        %v1212 = vadd.f32 0.0, %v1211
        %v1213 = vpop.f32.mrf.mxu0
        %1214 = vdwg.mxu0
        %v1216 = vunpack.c.l.b16 %v945
        %v1217 = vpack.c.b16 %v1216, %v1216
        %1218 = vrot.lane.b32.xlu0 %v1217, 96
        %v1219 = vpop.permute.xlu0 %1218
        %v1221 = vsel %vm955, %v945, 0
        %v1224 = vsel %vm955, %v1219, 0
        %1226 = vmatpush.bf16.xpose.msra.mxu0 0
        %1227 = vmatpush.bf16.xpose.msra.mxu0 0
        %1228 = vmatpush.bf16.xpose.msra.mxu0 0
        %1229 = vmatpush.bf16.xpose.msra.mxu0 0
        %1230 = vmatpush.bf16.xpose.msra.mxu0 0
        %1231 = vmatpush.bf16.xpose.msra.mxu0 0
        %1232 = vmatpush.bf16.xpose.msra.mxu0 0
        %1233 = vmatpush.bf16.xpose.msra.mxu0 %v1224
        %1234 = vmatmul.bf16.gmra.mxu0 %v1221
        %v1235 = vpop.f32.mrf.mxu0
        %v1236 = vadd.f32 0.0, %v1235
        %v1237 = vpop.f32.mrf.mxu0
        %1238 = vdwg.mxu0
        %v1240 = vunpack.c.l.b16 %v946
        %v1241 = vpack.c.b16 %v1240, %v1240
        %1242 = vrot.lane.b32.xlu0 %v1241, 96
        %v1243 = vpop.permute.xlu0 %1242
        %v1245 = vsel %vm955, %v946, 0
        %v1248 = vsel %vm955, %v1243, 0
        %1250 = vmatpush.bf16.xpose.msra.mxu0 0
        %1251 = vmatpush.bf16.xpose.msra.mxu0 0
        %1252 = vmatpush.bf16.xpose.msra.mxu0 0
        %1253 = vmatpush.bf16.xpose.msra.mxu0 0
        %1254 = vmatpush.bf16.xpose.msra.mxu0 0
        %1255 = vmatpush.bf16.xpose.msra.mxu0 0
        %1256 = vmatpush.bf16.xpose.msra.mxu0 0
        %1257 = vmatpush.bf16.xpose.msra.mxu0 %v1248
        %1258 = vmatmul.bf16.gmra.mxu0 %v1245
        %v1259 = vpop.f32.mrf.mxu0
        %v1260 = vadd.f32 0.0, %v1259
        %v1261 = vpop.f32.mrf.mxu0
        %1262 = vdwg.mxu0
        %v1264 = vunpack.c.l.b16 %v947
        %v1265 = vpack.c.b16 %v1264, %v1264
        %1266 = vrot.lane.b32.xlu0 %v1265, 96
        %v1267 = vpop.permute.xlu0 %1266
        %v1269 = vsel %vm955, %v947, 0
        %v1272 = vsel %vm955, %v1267, 0
        %1274 = vmatpush.bf16.xpose.msra.mxu0 0
        %1275 = vmatpush.bf16.xpose.msra.mxu0 0
        %1276 = vmatpush.bf16.xpose.msra.mxu0 0
        %1277 = vmatpush.bf16.xpose.msra.mxu0 0
        %1278 = vmatpush.bf16.xpose.msra.mxu0 0
        %1279 = vmatpush.bf16.xpose.msra.mxu0 0
        %1280 = vmatpush.bf16.xpose.msra.mxu0 0
        %1281 = vmatpush.bf16.xpose.msra.mxu0 %v1272
        %1282 = vmatmul.bf16.gmra.mxu0 %v1269
        %v1283 = vpop.f32.mrf.mxu0
        %v1284 = vadd.f32 0.0, %v1283
        %v1285 = vpop.f32.mrf.mxu0
        %1286 = vdwg.mxu0
        %v1288 = vunpack.c.l.b16 %v948
        %v1289 = vpack.c.b16 %v1288, %v1288
        %1290 = vrot.lane.b32.xlu0 %v1289, 96
        %v1291 = vpop.permute.xlu0 %1290
        %v1293 = vsel %vm955, %v948, 0
        %v1296 = vsel %vm955, %v1291, 0
        %1298 = vmatpush.bf16.xpose.msra.mxu0 0
        %1299 = vmatpush.bf16.xpose.msra.mxu0 0
        %1300 = vmatpush.bf16.xpose.msra.mxu0 0
        %1301 = vmatpush.bf16.xpose.msra.mxu0 0
        %1302 = vmatpush.bf16.xpose.msra.mxu0 0
        %1303 = vmatpush.bf16.xpose.msra.mxu0 0
        %1304 = vmatpush.bf16.xpose.msra.mxu0 0
        %1305 = vmatpush.bf16.xpose.msra.mxu0 %v1296
        %1306 = vmatmul.bf16.gmra.mxu0 %v1293
        %v1307 = vpop.f32.mrf.mxu0
        %v1308 = vadd.f32 0.0, %v1307
        %v1309 = vpop.f32.mrf.mxu0
        %1310 = vdwg.mxu0
        %v1312 = vunpack.c.l.b16 %v949
        %v1313 = vpack.c.b16 %v1312, %v1312
        %1314 = vrot.lane.b32.xlu0 %v1313, 96
        %v1315 = vpop.permute.xlu0 %1314
        %v1317 = vsel %vm955, %v949, 0
        %v1320 = vsel %vm955, %v1315, 0
        %1322 = vmatpush.bf16.xpose.msra.mxu0 0
        %1323 = vmatpush.bf16.xpose.msra.mxu0 0
        %1324 = vmatpush.bf16.xpose.msra.mxu0 0
        %1325 = vmatpush.bf16.xpose.msra.mxu0 0
        %1326 = vmatpush.bf16.xpose.msra.mxu0 0
        %1327 = vmatpush.bf16.xpose.msra.mxu0 0
        %1328 = vmatpush.bf16.xpose.msra.mxu0 0
        %1329 = vmatpush.bf16.xpose.msra.mxu0 %v1320
        %1330 = vmatmul.bf16.gmra.mxu0 %v1317
        %v1331 = vpop.f32.mrf.mxu0
        %v1332 = vadd.f32 0.0, %v1331
        %v1333 = vpop.f32.mrf.mxu0
        %1334 = vdwg.mxu0
        %vm1335 = vcmask 9216
        %v1336 = vsel %vm1335, %v972, -inf
        %1337 = vmax.xlane.f32.xlu0 %v1336
        %v1338 = vpop.xlane.xlu0 %1337
        %v1339 = vsel %vm1335, %v996, -inf
        %1340 = vmax.xlane.f32.xlu0 %v1339
        %v1341 = vpop.xlane.xlu0 %1340
        %v1342 = vsel %vm1335, %v1020, -inf
        %1343 = vmax.xlane.f32.xlu0 %v1342
        %v1344 = vpop.xlane.xlu0 %1343
        %v1345 = vsel %vm1335, %v1044, -inf
        %1346 = vmax.xlane.f32.xlu0 %v1345
        %v1347 = vpop.xlane.xlu0 %1346
        %v1348 = vsel %vm1335, %v1068, -inf
        %1349 = vmax.xlane.f32.xlu0 %v1348
        %v1350 = vpop.xlane.xlu0 %1349
        %v1351 = vsel %vm1335, %v1092, -inf
        %1352 = vmax.xlane.f32.xlu0 %v1351
        %v1353 = vpop.xlane.xlu0 %1352
        %v1354 = vsel %vm1335, %v1116, -inf
        %1355 = vmax.xlane.f32.xlu0 %v1354
        %v1356 = vpop.xlane.xlu0 %1355
        %v1357 = vsel %vm1335, %v1140, -inf
        %1358 = vmax.xlane.f32.xlu0 %v1357
        %v1359 = vpop.xlane.xlu0 %1358
        %v1360 = vsel %vm1335, %v1164, -inf
        %1361 = vmax.xlane.f32.xlu0 %v1360
        %v1362 = vpop.xlane.xlu0 %1361
        %v1363 = vsel %vm1335, %v1188, -inf
        %1364 = vmax.xlane.f32.xlu0 %v1363
        %v1365 = vpop.xlane.xlu0 %1364
        %v1366 = vsel %vm1335, %v1212, -inf
        %1367 = vmax.xlane.f32.xlu0 %v1366
        %v1368 = vpop.xlane.xlu0 %1367
        %v1369 = vsel %vm1335, %v1236, -inf
        %1370 = vmax.xlane.f32.xlu0 %v1369
        %v1371 = vpop.xlane.xlu0 %1370
        %v1372 = vsel %vm1335, %v1260, -inf
        %1373 = vmax.xlane.f32.xlu0 %v1372
        %v1374 = vpop.xlane.xlu0 %1373
        %v1375 = vsel %vm1335, %v1284, -inf
        %1376 = vmax.xlane.f32.xlu0 %v1375
        %v1377 = vpop.xlane.xlu0 %1376
        %v1378 = vsel %vm1335, %v1308, -inf
        %1379 = vmax.xlane.f32.xlu0 %v1378
        %v1380 = vpop.xlane.xlu0 %1379
        %v1381 = vsel %vm1335, %v1332, -inf
        %1382 = vmax.xlane.f32.xlu0 %v1381
        %v1383 = vpop.xlane.xlu0 %1382
        %v1384 = vsub.f32 %v972, %v1338
        %v1385 = vsub.f32 %v996, %v1341
        %v1386 = vsub.f32 %v1020, %v1344
        %v1387 = vsub.f32 %v1044, %v1347
        %v1388 = vsub.f32 %v1068, %v1350
        %v1389 = vsub.f32 %v1092, %v1353
        %v1390 = vsub.f32 %v1116, %v1356
        %v1391 = vsub.f32 %v1140, %v1359
        %v1392 = vsub.f32 %v1164, %v1362
        %v1393 = vsub.f32 %v1188, %v1365
        %v1394 = vsub.f32 %v1212, %v1368
        %v1395 = vsub.f32 %v1236, %v1371
        %v1396 = vsub.f32 %v1260, %v1374
        %v1397 = vsub.f32 %v1284, %v1377
        %v1398 = vsub.f32 %v1308, %v1380
        %v1399 = vsub.f32 %v1332, %v1383
        %v1400 = vmul.f32 %v1384, 1.442695
        %v1401 = vpow.pop %v1400
        %v1402 = vmul.f32 %v1385, 1.442695
        %v1403 = vpow.pop %v1402
        %v1404 = vmul.f32 %v1386, 1.442695
        %v1405 = vpow.pop %v1404
        %v1406 = vmul.f32 %v1387, 1.442695
        %v1407 = vpow.pop %v1406
        %v1408 = vmul.f32 %v1388, 1.442695
        %v1409 = vpow.pop %v1408
        %v1410 = vmul.f32 %v1389, 1.442695
        %v1411 = vpow.pop %v1410
        %v1412 = vmul.f32 %v1390, 1.442695
        %v1413 = vpow.pop %v1412
        %v1414 = vmul.f32 %v1391, 1.442695
        %v1415 = vpow.pop %v1414
        %v1416 = vmul.f32 %v1392, 1.442695
        %v1417 = vpow.pop %v1416
        %v1418 = vmul.f32 %v1393, 1.442695
        %v1419 = vpow.pop %v1418
        %v1420 = vmul.f32 %v1394, 1.442695
        %v1421 = vpow.pop %v1420
        %v1422 = vmul.f32 %v1395, 1.442695
        %v1423 = vpow.pop %v1422
        %v1424 = vmul.f32 %v1396, 1.442695
        %v1425 = vpow.pop %v1424
        %v1426 = vmul.f32 %v1397, 1.442695
        %v1427 = vpow.pop %v1426
        %v1428 = vmul.f32 %v1398, 1.442695
        %v1429 = vpow.pop %v1428
        %v1430 = vmul.f32 %v1399, 1.442695
        %v1431 = vpow.pop %v1430
        %v1432 = vsel %vm1335, %v1401, 0.0
        %1433 = vadd.xlane.f32.xlu0 %v1432
        %v1434 = vpop.xlane.xlu0 %1433
        %v1435 = vsel %vm1335, %v1403, 0.0
        %1436 = vadd.xlane.f32.xlu0 %v1435
        %v1437 = vpop.xlane.xlu0 %1436
        %v1438 = vsel %vm1335, %v1405, 0.0
        %1439 = vadd.xlane.f32.xlu0 %v1438
        %v1440 = vpop.xlane.xlu0 %1439
        %v1441 = vsel %vm1335, %v1407, 0.0
        %1442 = vadd.xlane.f32.xlu0 %v1441
        %v1443 = vpop.xlane.xlu0 %1442
        %v1444 = vsel %vm1335, %v1409, 0.0
        %1445 = vadd.xlane.f32.xlu0 %v1444
        %v1446 = vpop.xlane.xlu0 %1445
        %v1447 = vsel %vm1335, %v1411, 0.0
        %1448 = vadd.xlane.f32.xlu0 %v1447
        %v1449 = vpop.xlane.xlu0 %1448
        %v1450 = vsel %vm1335, %v1413, 0.0
        %1451 = vadd.xlane.f32.xlu0 %v1450
        %v1452 = vpop.xlane.xlu0 %1451
        %v1453 = vsel %vm1335, %v1415, 0.0
        %1454 = vadd.xlane.f32.xlu0 %v1453
        %v1455 = vpop.xlane.xlu0 %1454
        %v1456 = vsel %vm1335, %v1417, 0.0
        %1457 = vadd.xlane.f32.xlu0 %v1456
        %v1458 = vpop.xlane.xlu0 %1457
        %v1459 = vsel %vm1335, %v1419, 0.0
        %1460 = vadd.xlane.f32.xlu0 %v1459
        %v1461 = vpop.xlane.xlu0 %1460
        %v1462 = vsel %vm1335, %v1421, 0.0
        %1463 = vadd.xlane.f32.xlu0 %v1462
        %v1464 = vpop.xlane.xlu0 %1463
        %v1465 = vsel %vm1335, %v1423, 0.0
        %1466 = vadd.xlane.f32.xlu0 %v1465
        %v1467 = vpop.xlane.xlu0 %1466
        %v1468 = vsel %vm1335, %v1425, 0.0
        %1469 = vadd.xlane.f32.xlu0 %v1468
        %v1470 = vpop.xlane.xlu0 %1469
        %v1471 = vsel %vm1335, %v1427, 0.0
        %1472 = vadd.xlane.f32.xlu0 %v1471
        %v1473 = vpop.xlane.xlu0 %1472
        %v1474 = vsel %vm1335, %v1429, 0.0
        %1475 = vadd.xlane.f32.xlu0 %v1474
        %v1476 = vpop.xlane.xlu0 %1475
        %v1477 = vsel %vm1335, %v1431, 0.0
        %1478 = vadd.xlane.f32.xlu0 %v1477
        %v1479 = vpop.xlane.xlu0 %1478
        %v1480 = vrcp.pop %v1434
        %v1481 = vrcp.pop %v1437
        %v1482 = vrcp.pop %v1440
        %v1483 = vrcp.pop %v1443
        %v1484 = vrcp.pop %v1446
        %v1485 = vrcp.pop %v1449
        %v1486 = vrcp.pop %v1452
        %v1487 = vrcp.pop %v1455
        %v1488 = vrcp.pop %v1458
        %v1489 = vrcp.pop %v1461
        %v1490 = vrcp.pop %v1464
        %v1491 = vrcp.pop %v1467
        %v1492 = vrcp.pop %v1470
        %v1493 = vrcp.pop %v1473
        %v1494 = vrcp.pop %v1476
        %v1495 = vrcp.pop %v1479
        %v1496 = vmul.f32 %v1401, %v1480
        %v1497 = vmul.f32 %v1403, %v1481
        %v1498 = vmul.f32 %v1405, %v1482
        %v1499 = vmul.f32 %v1407, %v1483
        %v1500 = vmul.f32 %v1409, %v1484
        %v1501 = vmul.f32 %v1411, %v1485
        %v1502 = vmul.f32 %v1413, %v1486
        %v1503 = vmul.f32 %v1415, %v1487
        %v1504 = vmul.f32 %v1417, %v1488
        %v1505 = vmul.f32 %v1419, %v1489
        %v1506 = vmul.f32 %v1421, %v1490
        %v1507 = vmul.f32 %v1423, %v1491
        %v1508 = vmul.f32 %v1425, %v1492
        %v1509 = vmul.f32 %v1427, %v1493
        %v1510 = vmul.f32 %v1429, %v1494
        %v1511 = vmul.f32 %v1431, %v1495
        %v1512 = vpack.c.bf16 %v1496, %v1496
        %v1513 = vpack.c.bf16 %v1497, %v1497
        %v1514 = vpack.c.bf16 %v1498, %v1498
        %v1515 = vpack.c.bf16 %v1499, %v1499
        %v1516 = vpack.c.bf16 %v1500, %v1500
        %v1517 = vpack.c.bf16 %v1501, %v1501
        %v1518 = vpack.c.bf16 %v1502, %v1502
        %v1519 = vpack.c.bf16 %v1503, %v1503
        %v1520 = vpack.c.bf16 %v1504, %v1504
        %v1521 = vpack.c.bf16 %v1505, %v1505
        %v1522 = vpack.c.bf16 %v1506, %v1506
        %v1523 = vpack.c.bf16 %v1507, %v1507
        %v1524 = vpack.c.bf16 %v1508, %v1508
        %v1525 = vpack.c.bf16 %v1509, %v1509
        %v1526 = vpack.c.bf16 %v1510, %v1510
        %v1527 = vpack.c.bf16 %v1511, %v1511
        %1528 = vrot.lane.b32.xlu0 %v952, 64
        %v1529 = vpop.permute.xlu0 %1528
        %vm1530 = vcmask 15360
        %v1532 = vsel %vm1530, %v1512, 0
        %vm1534 = vcmask 1040384
        %v1536 = vsel %vm1534, %v1529, 0
        %1538 = vmatpush.bf16.msra.mxu0 0
        %1539 = vmatpush.bf16.msra.mxu0 0
        %1540 = vmatpush.bf16.msra.mxu0 0
        %1541 = vmatpush.bf16.msra.mxu0 0
        %1542 = vmatpush.bf16.msra.mxu0 0
        %1543 = vmatpush.bf16.msra.mxu0 0
        %1544 = vmatpush.bf16.msra.mxu0 0
        %1545 = vmatpush.bf16.msra.mxu0 %v1536
        %1546 = vmatmul.bf16.gmra.mxu0 %v1532
        %v1547 = vpop.f32.mrf.mxu0
        %v1548 = vadd.f32 0.0, %v1547
        %v1549 = vpop.f32.mrf.mxu0
        %1550 = vdwg.mxu0
        %1551 = vrot.lane.b32.xlu0 %v977, 64
        %v1552 = vpop.permute.xlu0 %1551
        %v1554 = vsel %vm1530, %v1513, 0
        %v1557 = vsel %vm1534, %v1552, 0
        %1559 = vmatpush.bf16.msra.mxu0 0
        %1560 = vmatpush.bf16.msra.mxu0 0
        %1561 = vmatpush.bf16.msra.mxu0 0
        %1562 = vmatpush.bf16.msra.mxu0 0
        %1563 = vmatpush.bf16.msra.mxu0 0
        %1564 = vmatpush.bf16.msra.mxu0 0
        %1565 = vmatpush.bf16.msra.mxu0 0
        %1566 = vmatpush.bf16.msra.mxu0 %v1557
        %1567 = vmatmul.bf16.gmra.mxu0 %v1554
        %v1568 = vpop.f32.mrf.mxu0
        %v1569 = vadd.f32 0.0, %v1568
        %v1570 = vpop.f32.mrf.mxu0
        %1571 = vdwg.mxu0
        %1572 = vrot.lane.b32.xlu0 %v1001, 64
        %v1573 = vpop.permute.xlu0 %1572
        %v1575 = vsel %vm1530, %v1514, 0
        %v1578 = vsel %vm1534, %v1573, 0
        %1580 = vmatpush.bf16.msra.mxu0 0
        %1581 = vmatpush.bf16.msra.mxu0 0
        %1582 = vmatpush.bf16.msra.mxu0 0
        %1583 = vmatpush.bf16.msra.mxu0 0
        %1584 = vmatpush.bf16.msra.mxu0 0
        %1585 = vmatpush.bf16.msra.mxu0 0
        %1586 = vmatpush.bf16.msra.mxu0 0
        %1587 = vmatpush.bf16.msra.mxu0 %v1578
        %1588 = vmatmul.bf16.gmra.mxu0 %v1575
        %v1589 = vpop.f32.mrf.mxu0
        %v1590 = vadd.f32 0.0, %v1589
        %v1591 = vpop.f32.mrf.mxu0
        %1592 = vdwg.mxu0
        %1593 = vrot.lane.b32.xlu0 %v1025, 64
        %v1594 = vpop.permute.xlu0 %1593
        %v1596 = vsel %vm1530, %v1515, 0
        %v1599 = vsel %vm1534, %v1594, 0
        %1601 = vmatpush.bf16.msra.mxu0 0
        %1602 = vmatpush.bf16.msra.mxu0 0
        %1603 = vmatpush.bf16.msra.mxu0 0
        %1604 = vmatpush.bf16.msra.mxu0 0
        %1605 = vmatpush.bf16.msra.mxu0 0
        %1606 = vmatpush.bf16.msra.mxu0 0
        %1607 = vmatpush.bf16.msra.mxu0 0
        %1608 = vmatpush.bf16.msra.mxu0 %v1599
        %1609 = vmatmul.bf16.gmra.mxu0 %v1596
        %v1610 = vpop.f32.mrf.mxu0
        %v1611 = vadd.f32 0.0, %v1610
        %v1612 = vpop.f32.mrf.mxu0
        %1613 = vdwg.mxu0
        %1614 = vrot.lane.b32.xlu0 %v1049, 64
        %v1615 = vpop.permute.xlu0 %1614
        %v1617 = vsel %vm1530, %v1516, 0
        %v1620 = vsel %vm1534, %v1615, 0
        %1622 = vmatpush.bf16.msra.mxu0 0
        %1623 = vmatpush.bf16.msra.mxu0 0
        %1624 = vmatpush.bf16.msra.mxu0 0
        %1625 = vmatpush.bf16.msra.mxu0 0
        %1626 = vmatpush.bf16.msra.mxu0 0
        %1627 = vmatpush.bf16.msra.mxu0 0
        %1628 = vmatpush.bf16.msra.mxu0 0
        %1629 = vmatpush.bf16.msra.mxu0 %v1620
        %1630 = vmatmul.bf16.gmra.mxu0 %v1617
        %v1631 = vpop.f32.mrf.mxu0
        %v1632 = vadd.f32 0.0, %v1631
        %v1633 = vpop.f32.mrf.mxu0
        %1634 = vdwg.mxu0
        %1635 = vrot.lane.b32.xlu0 %v1073, 64
        %v1636 = vpop.permute.xlu0 %1635
        %v1638 = vsel %vm1530, %v1517, 0
        %v1641 = vsel %vm1534, %v1636, 0
        %1643 = vmatpush.bf16.msra.mxu0 0
        %1644 = vmatpush.bf16.msra.mxu0 0
        %1645 = vmatpush.bf16.msra.mxu0 0
        %1646 = vmatpush.bf16.msra.mxu0 0
        %1647 = vmatpush.bf16.msra.mxu0 0
        %1648 = vmatpush.bf16.msra.mxu0 0
        %1649 = vmatpush.bf16.msra.mxu0 0
        %1650 = vmatpush.bf16.msra.mxu0 %v1641
        %1651 = vmatmul.bf16.gmra.mxu0 %v1638
        %v1652 = vpop.f32.mrf.mxu0
        %v1653 = vadd.f32 0.0, %v1652
        %v1654 = vpop.f32.mrf.mxu0
        %1655 = vdwg.mxu0
        %1656 = vrot.lane.b32.xlu0 %v1097, 64
        %v1657 = vpop.permute.xlu0 %1656
        %v1659 = vsel %vm1530, %v1518, 0
        %v1662 = vsel %vm1534, %v1657, 0
        %1664 = vmatpush.bf16.msra.mxu0 0
        %1665 = vmatpush.bf16.msra.mxu0 0
        %1666 = vmatpush.bf16.msra.mxu0 0
        %1667 = vmatpush.bf16.msra.mxu0 0
        %1668 = vmatpush.bf16.msra.mxu0 0
        %1669 = vmatpush.bf16.msra.mxu0 0
        %1670 = vmatpush.bf16.msra.mxu0 0
        %1671 = vmatpush.bf16.msra.mxu0 %v1662
        %1672 = vmatmul.bf16.gmra.mxu0 %v1659
        %v1673 = vpop.f32.mrf.mxu0
        %v1674 = vadd.f32 0.0, %v1673
        %v1675 = vpop.f32.mrf.mxu0
        %1676 = vdwg.mxu0
        %1677 = vrot.lane.b32.xlu0 %v1121, 64
        %v1678 = vpop.permute.xlu0 %1677
        %v1680 = vsel %vm1530, %v1519, 0
        %v1683 = vsel %vm1534, %v1678, 0
        %1685 = vmatpush.bf16.msra.mxu0 0
        %1686 = vmatpush.bf16.msra.mxu0 0
        %1687 = vmatpush.bf16.msra.mxu0 0
        %1688 = vmatpush.bf16.msra.mxu0 0
        %1689 = vmatpush.bf16.msra.mxu0 0
        %1690 = vmatpush.bf16.msra.mxu0 0
        %1691 = vmatpush.bf16.msra.mxu0 0
        %1692 = vmatpush.bf16.msra.mxu0 %v1683
        %1693 = vmatmul.bf16.gmra.mxu0 %v1680
        %v1694 = vpop.f32.mrf.mxu0
        %v1695 = vadd.f32 0.0, %v1694
        %v1696 = vpop.f32.mrf.mxu0
        %1697 = vdwg.mxu0
        %1698 = vrot.lane.b32.xlu0 %v1145, 64
        %v1699 = vpop.permute.xlu0 %1698
        %v1701 = vsel %vm1530, %v1520, 0
        %v1704 = vsel %vm1534, %v1699, 0
        %1706 = vmatpush.bf16.msra.mxu0 0
        %1707 = vmatpush.bf16.msra.mxu0 0
        %1708 = vmatpush.bf16.msra.mxu0 0
        %1709 = vmatpush.bf16.msra.mxu0 0
        %1710 = vmatpush.bf16.msra.mxu0 0
        %1711 = vmatpush.bf16.msra.mxu0 0
        %1712 = vmatpush.bf16.msra.mxu0 0
        %1713 = vmatpush.bf16.msra.mxu0 %v1704
        %1714 = vmatmul.bf16.gmra.mxu0 %v1701
        %v1715 = vpop.f32.mrf.mxu0
        %v1716 = vadd.f32 0.0, %v1715
        %v1717 = vpop.f32.mrf.mxu0
        %1718 = vdwg.mxu0
        %1719 = vrot.lane.b32.xlu0 %v1169, 64
        %v1720 = vpop.permute.xlu0 %1719
        %v1722 = vsel %vm1530, %v1521, 0
        %v1725 = vsel %vm1534, %v1720, 0
        %1727 = vmatpush.bf16.msra.mxu0 0
        %1728 = vmatpush.bf16.msra.mxu0 0
        %1729 = vmatpush.bf16.msra.mxu0 0
        %1730 = vmatpush.bf16.msra.mxu0 0
        %1731 = vmatpush.bf16.msra.mxu0 0
        %1732 = vmatpush.bf16.msra.mxu0 0
        %1733 = vmatpush.bf16.msra.mxu0 0
        %1734 = vmatpush.bf16.msra.mxu0 %v1725
        %1735 = vmatmul.bf16.gmra.mxu0 %v1722
        %v1736 = vpop.f32.mrf.mxu0
        %v1737 = vadd.f32 0.0, %v1736
        %v1738 = vpop.f32.mrf.mxu0
        %1739 = vdwg.mxu0
        %1740 = vrot.lane.b32.xlu0 %v1193, 64
        %v1741 = vpop.permute.xlu0 %1740
        %v1743 = vsel %vm1530, %v1522, 0
        %v1746 = vsel %vm1534, %v1741, 0
        %1748 = vmatpush.bf16.msra.mxu0 0
        %1749 = vmatpush.bf16.msra.mxu0 0
        %1750 = vmatpush.bf16.msra.mxu0 0
        %1751 = vmatpush.bf16.msra.mxu0 0
        %1752 = vmatpush.bf16.msra.mxu0 0
        %1753 = vmatpush.bf16.msra.mxu0 0
        %1754 = vmatpush.bf16.msra.mxu0 0
        %1755 = vmatpush.bf16.msra.mxu0 %v1746
        %1756 = vmatmul.bf16.gmra.mxu0 %v1743
        %v1757 = vpop.f32.mrf.mxu0
        %v1758 = vadd.f32 0.0, %v1757
        %v1759 = vpop.f32.mrf.mxu0
        %1760 = vdwg.mxu0
        %1761 = vrot.lane.b32.xlu0 %v1217, 64
        %v1762 = vpop.permute.xlu0 %1761
        %v1764 = vsel %vm1530, %v1523, 0
        %v1767 = vsel %vm1534, %v1762, 0
        %1769 = vmatpush.bf16.msra.mxu0 0
        %1770 = vmatpush.bf16.msra.mxu0 0
        %1771 = vmatpush.bf16.msra.mxu0 0
        %1772 = vmatpush.bf16.msra.mxu0 0
        %1773 = vmatpush.bf16.msra.mxu0 0
        %1774 = vmatpush.bf16.msra.mxu0 0
        %1775 = vmatpush.bf16.msra.mxu0 0
        %1776 = vmatpush.bf16.msra.mxu0 %v1767
        %1777 = vmatmul.bf16.gmra.mxu0 %v1764
        %v1778 = vpop.f32.mrf.mxu0
        %v1779 = vadd.f32 0.0, %v1778
        %v1780 = vpop.f32.mrf.mxu0
        %1781 = vdwg.mxu0
        %1782 = vrot.lane.b32.xlu0 %v1241, 64
        %v1783 = vpop.permute.xlu0 %1782
        %v1785 = vsel %vm1530, %v1524, 0
        %v1788 = vsel %vm1534, %v1783, 0
        %1790 = vmatpush.bf16.msra.mxu0 0
        %1791 = vmatpush.bf16.msra.mxu0 0
        %1792 = vmatpush.bf16.msra.mxu0 0
        %1793 = vmatpush.bf16.msra.mxu0 0
        %1794 = vmatpush.bf16.msra.mxu0 0
        %1795 = vmatpush.bf16.msra.mxu0 0
        %1796 = vmatpush.bf16.msra.mxu0 0
        %1797 = vmatpush.bf16.msra.mxu0 %v1788
        %1798 = vmatmul.bf16.gmra.mxu0 %v1785
        %v1799 = vpop.f32.mrf.mxu0
        %v1800 = vadd.f32 0.0, %v1799
        %v1801 = vpop.f32.mrf.mxu0
        %1802 = vdwg.mxu0
        %1803 = vrot.lane.b32.xlu0 %v1265, 64
        %v1804 = vpop.permute.xlu0 %1803
        %v1806 = vsel %vm1530, %v1525, 0
        %v1809 = vsel %vm1534, %v1804, 0
        %1811 = vmatpush.bf16.msra.mxu0 0
        %1812 = vmatpush.bf16.msra.mxu0 0
        %1813 = vmatpush.bf16.msra.mxu0 0
        %1814 = vmatpush.bf16.msra.mxu0 0
        %1815 = vmatpush.bf16.msra.mxu0 0
        %1816 = vmatpush.bf16.msra.mxu0 0
        %1817 = vmatpush.bf16.msra.mxu0 0
        %1818 = vmatpush.bf16.msra.mxu0 %v1809
        %1819 = vmatmul.bf16.gmra.mxu0 %v1806
        %v1820 = vpop.f32.mrf.mxu0
        %v1821 = vadd.f32 0.0, %v1820
        %v1822 = vpop.f32.mrf.mxu0
        %1823 = vdwg.mxu0
        %1824 = vrot.lane.b32.xlu0 %v1289, 64
        %v1825 = vpop.permute.xlu0 %1824
        %v1827 = vsel %vm1530, %v1526, 0
        %v1830 = vsel %vm1534, %v1825, 0
        %1832 = vmatpush.bf16.msra.mxu0 0
        %1833 = vmatpush.bf16.msra.mxu0 0
        %1834 = vmatpush.bf16.msra.mxu0 0
        %1835 = vmatpush.bf16.msra.mxu0 0
        %1836 = vmatpush.bf16.msra.mxu0 0
        %1837 = vmatpush.bf16.msra.mxu0 0
        %1838 = vmatpush.bf16.msra.mxu0 0
        %1839 = vmatpush.bf16.msra.mxu0 %v1830
        %1840 = vmatmul.bf16.gmra.mxu0 %v1827
        %v1841 = vpop.f32.mrf.mxu0
        %v1842 = vadd.f32 0.0, %v1841
        %v1843 = vpop.f32.mrf.mxu0
        %1844 = vdwg.mxu0
        %1845 = vrot.lane.b32.xlu0 %v1313, 64
        %v1846 = vpop.permute.xlu0 %1845
        %v1848 = vsel %vm1530, %v1527, 0
        %v1851 = vsel %vm1534, %v1846, 0
        %1853 = vmatpush.bf16.msra.mxu0 0
        %1854 = vmatpush.bf16.msra.mxu0 0
        %1855 = vmatpush.bf16.msra.mxu0 0
        %1856 = vmatpush.bf16.msra.mxu0 0
        %1857 = vmatpush.bf16.msra.mxu0 0
        %1858 = vmatpush.bf16.msra.mxu0 0
        %1859 = vmatpush.bf16.msra.mxu0 0
        %1860 = vmatpush.bf16.msra.mxu0 %v1851
        %1861 = vmatmul.bf16.gmra.mxu0 %v1848
        %v1862 = vpop.f32.mrf.mxu0
        %v1863 = vadd.f32 0.0, %v1862
        %v1864 = vpop.f32.mrf.mxu0
        %1865 = vdwg.mxu0
        %vm1866 = vcmask 58368
        %1867 = vst.msk [vmem:[#allocation2] sm:$0x3] %vm1866, %v1548
        %1868 = vst.msk [vmem:[#allocation2 + $0x2] sm:$0x3] %vm1866, %v1569
        %1869 = vst.msk [vmem:[#allocation2 + $0x4] sm:$0x3] %vm1866, %v1590
        %1870 = vst.msk [vmem:[#allocation2 + $0x6] sm:$0x3] %vm1866, %v1611
        %1871 = vst.msk [vmem:[#allocation2 + $0x8] sm:$0x3] %vm1866, %v1632
        %1872 = vst.msk [vmem:[#allocation2 + $0xa] sm:$0x3] %vm1866, %v1653
        %1873 = vst.msk [vmem:[#allocation2 + $0xc] sm:$0x3] %vm1866, %v1674
        %1874 = vst.msk [vmem:[#allocation2 + $0xe] sm:$0x3] %vm1866, %v1695
        %1875 = vst.msk [vmem:[#allocation2 + $0x10] sm:$0x3] %vm1866, %v1716
        %1876 = vst.msk [vmem:[#allocation2 + $0x12] sm:$0x3] %vm1866, %v1737
        %1877 = vst.msk [vmem:[#allocation2 + $0x14] sm:$0x3] %vm1866, %v1758
        %1878 = vst.msk [vmem:[#allocation2 + $0x16] sm:$0x3] %vm1866, %v1779
        %1879 = vst.msk [vmem:[#allocation2 + $0x18] sm:$0x3] %vm1866, %v1800
        %1880 = vst.msk [vmem:[#allocation2 + $0x1a] sm:$0x3] %vm1866, %v1821
        %1881 = vst.msk [vmem:[#allocation2 + $0x1c] sm:$0x3] %vm1866, %v1842
        %1882 = vst.msk [vmem:[#allocation2 + $0x1e] sm:$0x3] %vm1866, %v1863
        %1883 = vrot.lane.b32.xlu0 %v952, 120
        %v1884 = vpop.permute.xlu0 %1883
        %1885 = vrot.lane.b32.xlu0 %v952, 88
        %v1886 = vpop.permute.xlu0 %1885
        %v1888 = vsel %vm955, %v1884, 0
        %v1891 = vsel %vm955, %v1886, 0
        %1893 = vmatpush.bf16.xpose.msra.mxu0 0
        %1894 = vmatpush.bf16.xpose.msra.mxu0 0
        %1895 = vmatpush.bf16.xpose.msra.mxu0 0
        %1896 = vmatpush.bf16.xpose.msra.mxu0 0
        %1897 = vmatpush.bf16.xpose.msra.mxu0 0
        %1898 = vmatpush.bf16.xpose.msra.mxu0 0
        %1899 = vmatpush.bf16.xpose.msra.mxu0 0
        %1900 = vmatpush.bf16.xpose.msra.mxu0 %v1891
        %1901 = vmatmul.bf16.gmra.mxu0 %v1888
        %v1902 = vpop.f32.mrf.mxu0
        %v1903 = vadd.f32 0.0, %v1902
        %v1904 = vpop.f32.mrf.mxu0
        %1905 = vdwg.mxu0
        %1906 = vrot.lane.b32.xlu0 %v977, 120
        %v1907 = vpop.permute.xlu0 %1906
        %1908 = vrot.lane.b32.xlu0 %v977, 88
        %v1909 = vpop.permute.xlu0 %1908
        %v1911 = vsel %vm955, %v1907, 0
        %v1914 = vsel %vm955, %v1909, 0
        %1916 = vmatpush.bf16.xpose.msra.mxu0 0
        %1917 = vmatpush.bf16.xpose.msra.mxu0 0
        %1918 = vmatpush.bf16.xpose.msra.mxu0 0
        %1919 = vmatpush.bf16.xpose.msra.mxu0 0
        %1920 = vmatpush.bf16.xpose.msra.mxu0 0
        %1921 = vmatpush.bf16.xpose.msra.mxu0 0
        %1922 = vmatpush.bf16.xpose.msra.mxu0 0
        %1923 = vmatpush.bf16.xpose.msra.mxu0 %v1914
        %1924 = vmatmul.bf16.gmra.mxu0 %v1911
        %v1925 = vpop.f32.mrf.mxu0
        %v1926 = vadd.f32 0.0, %v1925
        %v1927 = vpop.f32.mrf.mxu0
        %1928 = vdwg.mxu0
        %1929 = vrot.lane.b32.xlu0 %v1001, 120
        %v1930 = vpop.permute.xlu0 %1929
        %1931 = vrot.lane.b32.xlu0 %v1001, 88
        %v1932 = vpop.permute.xlu0 %1931
        %v1934 = vsel %vm955, %v1930, 0
        %v1937 = vsel %vm955, %v1932, 0
        %1939 = vmatpush.bf16.xpose.msra.mxu0 0
        %1940 = vmatpush.bf16.xpose.msra.mxu0 0
        %1941 = vmatpush.bf16.xpose.msra.mxu0 0
        %1942 = vmatpush.bf16.xpose.msra.mxu0 0
        %1943 = vmatpush.bf16.xpose.msra.mxu0 0
        %1944 = vmatpush.bf16.xpose.msra.mxu0 0
        %1945 = vmatpush.bf16.xpose.msra.mxu0 0
        %1946 = vmatpush.bf16.xpose.msra.mxu0 %v1937
        %1947 = vmatmul.bf16.gmra.mxu0 %v1934
        %v1948 = vpop.f32.mrf.mxu0
        %v1949 = vadd.f32 0.0, %v1948
        %v1950 = vpop.f32.mrf.mxu0
        %1951 = vdwg.mxu0
        %1952 = vrot.lane.b32.xlu0 %v1025, 120
        %v1953 = vpop.permute.xlu0 %1952
        %1954 = vrot.lane.b32.xlu0 %v1025, 88
        %v1955 = vpop.permute.xlu0 %1954
        %v1957 = vsel %vm955, %v1953, 0
        %v1960 = vsel %vm955, %v1955, 0
        %1962 = vmatpush.bf16.xpose.msra.mxu0 0
        %1963 = vmatpush.bf16.xpose.msra.mxu0 0
        %1964 = vmatpush.bf16.xpose.msra.mxu0 0
        %1965 = vmatpush.bf16.xpose.msra.mxu0 0
        %1966 = vmatpush.bf16.xpose.msra.mxu0 0
        %1967 = vmatpush.bf16.xpose.msra.mxu0 0
        %1968 = vmatpush.bf16.xpose.msra.mxu0 0
        %1969 = vmatpush.bf16.xpose.msra.mxu0 %v1960
        %1970 = vmatmul.bf16.gmra.mxu0 %v1957
        %v1971 = vpop.f32.mrf.mxu0
        %v1972 = vadd.f32 0.0, %v1971
        %v1973 = vpop.f32.mrf.mxu0
        %1974 = vdwg.mxu0
        %1975 = vrot.lane.b32.xlu0 %v1049, 120
        %v1976 = vpop.permute.xlu0 %1975
        %1977 = vrot.lane.b32.xlu0 %v1049, 88
        %v1978 = vpop.permute.xlu0 %1977
        %v1980 = vsel %vm955, %v1976, 0
        %v1983 = vsel %vm955, %v1978, 0
        %1985 = vmatpush.bf16.xpose.msra.mxu0 0
        %1986 = vmatpush.bf16.xpose.msra.mxu0 0
        %1987 = vmatpush.bf16.xpose.msra.mxu0 0
        %1988 = vmatpush.bf16.xpose.msra.mxu0 0
        %1989 = vmatpush.bf16.xpose.msra.mxu0 0
        %1990 = vmatpush.bf16.xpose.msra.mxu0 0
        %1991 = vmatpush.bf16.xpose.msra.mxu0 0
        %1992 = vmatpush.bf16.xpose.msra.mxu0 %v1983
        %1993 = vmatmul.bf16.gmra.mxu0 %v1980
        %v1994 = vpop.f32.mrf.mxu0
        %v1995 = vadd.f32 0.0, %v1994
        %v1996 = vpop.f32.mrf.mxu0
        %1997 = vdwg.mxu0
        %1998 = vrot.lane.b32.xlu0 %v1073, 120
        %v1999 = vpop.permute.xlu0 %1998
        %2000 = vrot.lane.b32.xlu0 %v1073, 88
        %v2001 = vpop.permute.xlu0 %2000
        %v2003 = vsel %vm955, %v1999, 0
        %v2006 = vsel %vm955, %v2001, 0
        %2008 = vmatpush.bf16.xpose.msra.mxu0 0
        %2009 = vmatpush.bf16.xpose.msra.mxu0 0
        %2010 = vmatpush.bf16.xpose.msra.mxu0 0
        %2011 = vmatpush.bf16.xpose.msra.mxu0 0
        %2012 = vmatpush.bf16.xpose.msra.mxu0 0
        %2013 = vmatpush.bf16.xpose.msra.mxu0 0
        %2014 = vmatpush.bf16.xpose.msra.mxu0 0
        %2015 = vmatpush.bf16.xpose.msra.mxu0 %v2006
        %2016 = vmatmul.bf16.gmra.mxu0 %v2003
        %v2017 = vpop.f32.mrf.mxu0
        %v2018 = vadd.f32 0.0, %v2017
        %v2019 = vpop.f32.mrf.mxu0
        %2020 = vdwg.mxu0
        %2021 = vrot.lane.b32.xlu0 %v1097, 120
        %v2022 = vpop.permute.xlu0 %2021
        %2023 = vrot.lane.b32.xlu0 %v1097, 88
        %v2024 = vpop.permute.xlu0 %2023
        %v2026 = vsel %vm955, %v2022, 0
        %v2029 = vsel %vm955, %v2024, 0
        %2031 = vmatpush.bf16.xpose.msra.mxu0 0
        %2032 = vmatpush.bf16.xpose.msra.mxu0 0
        %2033 = vmatpush.bf16.xpose.msra.mxu0 0
        %2034 = vmatpush.bf16.xpose.msra.mxu0 0
        %2035 = vmatpush.bf16.xpose.msra.mxu0 0
        %2036 = vmatpush.bf16.xpose.msra.mxu0 0
        %2037 = vmatpush.bf16.xpose.msra.mxu0 0
        %2038 = vmatpush.bf16.xpose.msra.mxu0 %v2029
        %2039 = vmatmul.bf16.gmra.mxu0 %v2026
        %v2040 = vpop.f32.mrf.mxu0
        %v2041 = vadd.f32 0.0, %v2040
        %v2042 = vpop.f32.mrf.mxu0
        %2043 = vdwg.mxu0
        %2044 = vrot.lane.b32.xlu0 %v1121, 120
        %v2045 = vpop.permute.xlu0 %2044
        %2046 = vrot.lane.b32.xlu0 %v1121, 88
        %v2047 = vpop.permute.xlu0 %2046
        %v2049 = vsel %vm955, %v2045, 0
        %v2052 = vsel %vm955, %v2047, 0
        %2054 = vmatpush.bf16.xpose.msra.mxu0 0
        %2055 = vmatpush.bf16.xpose.msra.mxu0 0
        %2056 = vmatpush.bf16.xpose.msra.mxu0 0
        %2057 = vmatpush.bf16.xpose.msra.mxu0 0
        %2058 = vmatpush.bf16.xpose.msra.mxu0 0
        %2059 = vmatpush.bf16.xpose.msra.mxu0 0
        %2060 = vmatpush.bf16.xpose.msra.mxu0 0
        %2061 = vmatpush.bf16.xpose.msra.mxu0 %v2052
        %2062 = vmatmul.bf16.gmra.mxu0 %v2049
        %v2063 = vpop.f32.mrf.mxu0
        %v2064 = vadd.f32 0.0, %v2063
        %v2065 = vpop.f32.mrf.mxu0
        %2066 = vdwg.mxu0
        %2067 = vrot.lane.b32.xlu0 %v1145, 120
        %v2068 = vpop.permute.xlu0 %2067
        %2069 = vrot.lane.b32.xlu0 %v1145, 88
        %v2070 = vpop.permute.xlu0 %2069
        %v2072 = vsel %vm955, %v2068, 0
        %v2075 = vsel %vm955, %v2070, 0
        %2077 = vmatpush.bf16.xpose.msra.mxu0 0
        %2078 = vmatpush.bf16.xpose.msra.mxu0 0
        %2079 = vmatpush.bf16.xpose.msra.mxu0 0
        %2080 = vmatpush.bf16.xpose.msra.mxu0 0
        %2081 = vmatpush.bf16.xpose.msra.mxu0 0
        %2082 = vmatpush.bf16.xpose.msra.mxu0 0
        %2083 = vmatpush.bf16.xpose.msra.mxu0 0
        %2084 = vmatpush.bf16.xpose.msra.mxu0 %v2075
        %2085 = vmatmul.bf16.gmra.mxu0 %v2072
        %v2086 = vpop.f32.mrf.mxu0
        %v2087 = vadd.f32 0.0, %v2086
        %v2088 = vpop.f32.mrf.mxu0
        %2089 = vdwg.mxu0
        %2090 = vrot.lane.b32.xlu0 %v1169, 120
        %v2091 = vpop.permute.xlu0 %2090
        %2092 = vrot.lane.b32.xlu0 %v1169, 88
        %v2093 = vpop.permute.xlu0 %2092
        %v2095 = vsel %vm955, %v2091, 0
        %v2098 = vsel %vm955, %v2093, 0
        %2100 = vmatpush.bf16.xpose.msra.mxu0 0
        %2101 = vmatpush.bf16.xpose.msra.mxu0 0
        %2102 = vmatpush.bf16.xpose.msra.mxu0 0
        %2103 = vmatpush.bf16.xpose.msra.mxu0 0
        %2104 = vmatpush.bf16.xpose.msra.mxu0 0
        %2105 = vmatpush.bf16.xpose.msra.mxu0 0
        %2106 = vmatpush.bf16.xpose.msra.mxu0 0
        %2107 = vmatpush.bf16.xpose.msra.mxu0 %v2098
        %2108 = vmatmul.bf16.gmra.mxu0 %v2095
        %v2109 = vpop.f32.mrf.mxu0
        %v2110 = vadd.f32 0.0, %v2109
        %v2111 = vpop.f32.mrf.mxu0
        %2112 = vdwg.mxu0
        %2113 = vrot.lane.b32.xlu0 %v1193, 120
        %v2114 = vpop.permute.xlu0 %2113
        %2115 = vrot.lane.b32.xlu0 %v1193, 88
        %v2116 = vpop.permute.xlu0 %2115
        %v2118 = vsel %vm955, %v2114, 0
        %v2121 = vsel %vm955, %v2116, 0
        %2123 = vmatpush.bf16.xpose.msra.mxu0 0
        %2124 = vmatpush.bf16.xpose.msra.mxu0 0
        %2125 = vmatpush.bf16.xpose.msra.mxu0 0
        %2126 = vmatpush.bf16.xpose.msra.mxu0 0
        %2127 = vmatpush.bf16.xpose.msra.mxu0 0
        %2128 = vmatpush.bf16.xpose.msra.mxu0 0
        %2129 = vmatpush.bf16.xpose.msra.mxu0 0
        %2130 = vmatpush.bf16.xpose.msra.mxu0 %v2121
        %2131 = vmatmul.bf16.gmra.mxu0 %v2118
        %v2132 = vpop.f32.mrf.mxu0
        %v2133 = vadd.f32 0.0, %v2132
        %v2134 = vpop.f32.mrf.mxu0
        %2135 = vdwg.mxu0
        %2136 = vrot.lane.b32.xlu0 %v1217, 120
        %v2137 = vpop.permute.xlu0 %2136
        %2138 = vrot.lane.b32.xlu0 %v1217, 88
        %v2139 = vpop.permute.xlu0 %2138
        %v2141 = vsel %vm955, %v2137, 0
        %v2144 = vsel %vm955, %v2139, 0
        %2146 = vmatpush.bf16.xpose.msra.mxu0 0
        %2147 = vmatpush.bf16.xpose.msra.mxu0 0
        %2148 = vmatpush.bf16.xpose.msra.mxu0 0
        %2149 = vmatpush.bf16.xpose.msra.mxu0 0
        %2150 = vmatpush.bf16.xpose.msra.mxu0 0
        %2151 = vmatpush.bf16.xpose.msra.mxu0 0
        %2152 = vmatpush.bf16.xpose.msra.mxu0 0
        %2153 = vmatpush.bf16.xpose.msra.mxu0 %v2144
        %2154 = vmatmul.bf16.gmra.mxu0 %v2141
        %v2155 = vpop.f32.mrf.mxu0
        %v2156 = vadd.f32 0.0, %v2155
        %v2157 = vpop.f32.mrf.mxu0
        %2158 = vdwg.mxu0
        %2159 = vrot.lane.b32.xlu0 %v1241, 120
        %v2160 = vpop.permute.xlu0 %2159
        %2161 = vrot.lane.b32.xlu0 %v1241, 88
        %v2162 = vpop.permute.xlu0 %2161
        %v2164 = vsel %vm955, %v2160, 0
        %v2167 = vsel %vm955, %v2162, 0
        %2169 = vmatpush.bf16.xpose.msra.mxu0 0
        %2170 = vmatpush.bf16.xpose.msra.mxu0 0
        %2171 = vmatpush.bf16.xpose.msra.mxu0 0
        %2172 = vmatpush.bf16.xpose.msra.mxu0 0
        %2173 = vmatpush.bf16.xpose.msra.mxu0 0
        %2174 = vmatpush.bf16.xpose.msra.mxu0 0
        %2175 = vmatpush.bf16.xpose.msra.mxu0 0
        %2176 = vmatpush.bf16.xpose.msra.mxu0 %v2167
        %2177 = vmatmul.bf16.gmra.mxu0 %v2164
        %v2178 = vpop.f32.mrf.mxu0
        %v2179 = vadd.f32 0.0, %v2178
        %v2180 = vpop.f32.mrf.mxu0
        %2181 = vdwg.mxu0
        %2182 = vrot.lane.b32.xlu0 %v1265, 120
        %v2183 = vpop.permute.xlu0 %2182
        %2184 = vrot.lane.b32.xlu0 %v1265, 88
        %v2185 = vpop.permute.xlu0 %2184
        %v2187 = vsel %vm955, %v2183, 0
        %v2190 = vsel %vm955, %v2185, 0
        %2192 = vmatpush.bf16.xpose.msra.mxu0 0
        %2193 = vmatpush.bf16.xpose.msra.mxu0 0
        %2194 = vmatpush.bf16.xpose.msra.mxu0 0
        %2195 = vmatpush.bf16.xpose.msra.mxu0 0
        %2196 = vmatpush.bf16.xpose.msra.mxu0 0
        %2197 = vmatpush.bf16.xpose.msra.mxu0 0
        %2198 = vmatpush.bf16.xpose.msra.mxu0 0
        %2199 = vmatpush.bf16.xpose.msra.mxu0 %v2190
        %2200 = vmatmul.bf16.gmra.mxu0 %v2187
        %v2201 = vpop.f32.mrf.mxu0
        %v2202 = vadd.f32 0.0, %v2201
        %v2203 = vpop.f32.mrf.mxu0
        %2204 = vdwg.mxu0
        %2205 = vrot.lane.b32.xlu0 %v1289, 120
        %v2206 = vpop.permute.xlu0 %2205
        %2207 = vrot.lane.b32.xlu0 %v1289, 88
        %v2208 = vpop.permute.xlu0 %2207
        %v2210 = vsel %vm955, %v2206, 0
        %v2213 = vsel %vm955, %v2208, 0
        %2215 = vmatpush.bf16.xpose.msra.mxu0 0
        %2216 = vmatpush.bf16.xpose.msra.mxu0 0
        %2217 = vmatpush.bf16.xpose.msra.mxu0 0
        %2218 = vmatpush.bf16.xpose.msra.mxu0 0
        %2219 = vmatpush.bf16.xpose.msra.mxu0 0
        %2220 = vmatpush.bf16.xpose.msra.mxu0 0
        %2221 = vmatpush.bf16.xpose.msra.mxu0 0
        %2222 = vmatpush.bf16.xpose.msra.mxu0 %v2213
        %2223 = vmatmul.bf16.gmra.mxu0 %v2210
        %v2224 = vpop.f32.mrf.mxu0
        %v2225 = vadd.f32 0.0, %v2224
        %v2226 = vpop.f32.mrf.mxu0
        %2227 = vdwg.mxu0
        %2228 = vrot.lane.b32.xlu0 %v1313, 120
        %v2229 = vpop.permute.xlu0 %2228
        %2230 = vrot.lane.b32.xlu0 %v1313, 88
        %v2231 = vpop.permute.xlu0 %2230
        %v2233 = vsel %vm955, %v2229, 0
        %v2236 = vsel %vm955, %v2231, 0
        %2238 = vmatpush.bf16.xpose.msra.mxu0 0
        %2239 = vmatpush.bf16.xpose.msra.mxu0 0
        %2240 = vmatpush.bf16.xpose.msra.mxu0 0
        %2241 = vmatpush.bf16.xpose.msra.mxu0 0
        %2242 = vmatpush.bf16.xpose.msra.mxu0 0
        %2243 = vmatpush.bf16.xpose.msra.mxu0 0
        %2244 = vmatpush.bf16.xpose.msra.mxu0 0
        %2245 = vmatpush.bf16.xpose.msra.mxu0 %v2236
        %2246 = vmatmul.bf16.gmra.mxu0 %v2233
        %v2247 = vpop.f32.mrf.mxu0
        %v2248 = vadd.f32 0.0, %v2247
        %v2249 = vpop.f32.mrf.mxu0
        %2250 = vdwg.mxu0
        %v2251 = vsel %vm1335, %v1903, -inf
        %2252 = vmax.xlane.f32.xlu0 %v2251
        %v2253 = vpop.xlane.xlu0 %2252
        %v2254 = vsel %vm1335, %v1926, -inf
        %2255 = vmax.xlane.f32.xlu0 %v2254
        %v2256 = vpop.xlane.xlu0 %2255
        %v2257 = vsel %vm1335, %v1949, -inf
        %2258 = vmax.xlane.f32.xlu0 %v2257
        %v2259 = vpop.xlane.xlu0 %2258
        %v2260 = vsel %vm1335, %v1972, -inf
        %2261 = vmax.xlane.f32.xlu0 %v2260
        %v2262 = vpop.xlane.xlu0 %2261
        %v2263 = vsel %vm1335, %v1995, -inf
        %2264 = vmax.xlane.f32.xlu0 %v2263
        %v2265 = vpop.xlane.xlu0 %2264
        %v2266 = vsel %vm1335, %v2018, -inf
        %2267 = vmax.xlane.f32.xlu0 %v2266
        %v2268 = vpop.xlane.xlu0 %2267
        %v2269 = vsel %vm1335, %v2041, -inf
        %2270 = vmax.xlane.f32.xlu0 %v2269
        %v2271 = vpop.xlane.xlu0 %2270
        %v2272 = vsel %vm1335, %v2064, -inf
        %2273 = vmax.xlane.f32.xlu0 %v2272
        %v2274 = vpop.xlane.xlu0 %2273
        %v2275 = vsel %vm1335, %v2087, -inf
        %2276 = vmax.xlane.f32.xlu0 %v2275
        %v2277 = vpop.xlane.xlu0 %2276
        %v2278 = vsel %vm1335, %v2110, -inf
        %2279 = vmax.xlane.f32.xlu0 %v2278
        %v2280 = vpop.xlane.xlu0 %2279
        %v2281 = vsel %vm1335, %v2133, -inf
        %2282 = vmax.xlane.f32.xlu0 %v2281
        %v2283 = vpop.xlane.xlu0 %2282
        %v2284 = vsel %vm1335, %v2156, -inf
        %2285 = vmax.xlane.f32.xlu0 %v2284
        %v2286 = vpop.xlane.xlu0 %2285
        %v2287 = vsel %vm1335, %v2179, -inf
        %2288 = vmax.xlane.f32.xlu0 %v2287
        %v2289 = vpop.xlane.xlu0 %2288
        %v2290 = vsel %vm1335, %v2202, -inf
        %2291 = vmax.xlane.f32.xlu0 %v2290
        %v2292 = vpop.xlane.xlu0 %2291
        %v2293 = vsel %vm1335, %v2225, -inf
        %2294 = vmax.xlane.f32.xlu0 %v2293
        %v2295 = vpop.xlane.xlu0 %2294
        %v2296 = vsel %vm1335, %v2248, -inf
        %2297 = vmax.xlane.f32.xlu0 %v2296
        %v2298 = vpop.xlane.xlu0 %2297
        %v2299 = vsub.f32 %v1903, %v2253
        %v2300 = vsub.f32 %v1926, %v2256
        %v2301 = vsub.f32 %v1949, %v2259
        %v2302 = vsub.f32 %v1972, %v2262
        %v2303 = vsub.f32 %v1995, %v2265
        %v2304 = vsub.f32 %v2018, %v2268
        %v2305 = vsub.f32 %v2041, %v2271
        %v2306 = vsub.f32 %v2064, %v2274
        %v2307 = vsub.f32 %v2087, %v2277
        %v2308 = vsub.f32 %v2110, %v2280
        %v2309 = vsub.f32 %v2133, %v2283
        %v2310 = vsub.f32 %v2156, %v2286
        %v2311 = vsub.f32 %v2179, %v2289
        %v2312 = vsub.f32 %v2202, %v2292
        %v2313 = vsub.f32 %v2225, %v2295
        %v2314 = vsub.f32 %v2248, %v2298
        %v2315 = vmul.f32 %v2299, 1.442695
        %v2316 = vpow.pop %v2315
        %v2317 = vmul.f32 %v2300, 1.442695
        %v2318 = vpow.pop %v2317
        %v2319 = vmul.f32 %v2301, 1.442695
        %v2320 = vpow.pop %v2319
        %v2321 = vmul.f32 %v2302, 1.442695
        %v2322 = vpow.pop %v2321
        %v2323 = vmul.f32 %v2303, 1.442695
        %v2324 = vpow.pop %v2323
        %v2325 = vmul.f32 %v2304, 1.442695
        %v2326 = vpow.pop %v2325
        %v2327 = vmul.f32 %v2305, 1.442695
        %v2328 = vpow.pop %v2327
        %v2329 = vmul.f32 %v2306, 1.442695
        %v2330 = vpow.pop %v2329
        %v2331 = vmul.f32 %v2307, 1.442695
        %v2332 = vpow.pop %v2331
        %v2333 = vmul.f32 %v2308, 1.442695
        %v2334 = vpow.pop %v2333
        %v2335 = vmul.f32 %v2309, 1.442695
        %v2336 = vpow.pop %v2335
        %v2337 = vmul.f32 %v2310, 1.442695
        %v2338 = vpow.pop %v2337
        %v2339 = vmul.f32 %v2311, 1.442695
        %v2340 = vpow.pop %v2339
        %v2341 = vmul.f32 %v2312, 1.442695
        %v2342 = vpow.pop %v2341
        %v2343 = vmul.f32 %v2313, 1.442695
        %v2344 = vpow.pop %v2343
        %v2345 = vmul.f32 %v2314, 1.442695
        %v2346 = vpow.pop %v2345
        %v2347 = vsel %vm1335, %v2316, 0.0
        %2348 = vadd.xlane.f32.xlu0 %v2347
        %v2349 = vpop.xlane.xlu0 %2348
        %v2350 = vsel %vm1335, %v2318, 0.0
        %2351 = vadd.xlane.f32.xlu0 %v2350
        %v2352 = vpop.xlane.xlu0 %2351
        %v2353 = vsel %vm1335, %v2320, 0.0
        %2354 = vadd.xlane.f32.xlu0 %v2353
        %v2355 = vpop.xlane.xlu0 %2354
        %v2356 = vsel %vm1335, %v2322, 0.0
        %2357 = vadd.xlane.f32.xlu0 %v2356
        %v2358 = vpop.xlane.xlu0 %2357
        %v2359 = vsel %vm1335, %v2324, 0.0
        %2360 = vadd.xlane.f32.xlu0 %v2359
        %v2361 = vpop.xlane.xlu0 %2360
        %v2362 = vsel %vm1335, %v2326, 0.0
        %2363 = vadd.xlane.f32.xlu0 %v2362
        %v2364 = vpop.xlane.xlu0 %2363
        %v2365 = vsel %vm1335, %v2328, 0.0
        %2366 = vadd.xlane.f32.xlu0 %v2365
        %v2367 = vpop.xlane.xlu0 %2366
        %v2368 = vsel %vm1335, %v2330, 0.0
        %2369 = vadd.xlane.f32.xlu0 %v2368
        %v2370 = vpop.xlane.xlu0 %2369
        %v2371 = vsel %vm1335, %v2332, 0.0
        %2372 = vadd.xlane.f32.xlu0 %v2371
        %v2373 = vpop.xlane.xlu0 %2372
        %v2374 = vsel %vm1335, %v2334, 0.0
        %2375 = vadd.xlane.f32.xlu0 %v2374
        %v2376 = vpop.xlane.xlu0 %2375
        %v2377 = vsel %vm1335, %v2336, 0.0
        %2378 = vadd.xlane.f32.xlu0 %v2377
        %v2379 = vpop.xlane.xlu0 %2378
        %v2380 = vsel %vm1335, %v2338, 0.0
        %2381 = vadd.xlane.f32.xlu0 %v2380
        %v2382 = vpop.xlane.xlu0 %2381
        %v2383 = vsel %vm1335, %v2340, 0.0
        %2384 = vadd.xlane.f32.xlu0 %v2383
        %v2385 = vpop.xlane.xlu0 %2384
        %v2386 = vsel %vm1335, %v2342, 0.0
        %2387 = vadd.xlane.f32.xlu0 %v2386
        %v2388 = vpop.xlane.xlu0 %2387
        %v2389 = vsel %vm1335, %v2344, 0.0
        %2390 = vadd.xlane.f32.xlu0 %v2389
        %v2391 = vpop.xlane.xlu0 %2390
        %v2392 = vsel %vm1335, %v2346, 0.0
        %2393 = vadd.xlane.f32.xlu0 %v2392
        %v2394 = vpop.xlane.xlu0 %2393
        %v2395 = vrcp.pop %v2349
        %v2396 = vrcp.pop %v2352
        %v2397 = vrcp.pop %v2355
        %v2398 = vrcp.pop %v2358
        %v2399 = vrcp.pop %v2361
        %v2400 = vrcp.pop %v2364
        %v2401 = vrcp.pop %v2367
        %v2402 = vrcp.pop %v2370
        %v2403 = vrcp.pop %v2373
        %v2404 = vrcp.pop %v2376
        %v2405 = vrcp.pop %v2379
        %v2406 = vrcp.pop %v2382
        %v2407 = vrcp.pop %v2385
        %v2408 = vrcp.pop %v2388
        %v2409 = vrcp.pop %v2391
        %v2410 = vrcp.pop %v2394
        %v2411 = vmul.f32 %v2316, %v2395
        %v2412 = vmul.f32 %v2318, %v2396
        %v2413 = vmul.f32 %v2320, %v2397
        %v2414 = vmul.f32 %v2322, %v2398
        %v2415 = vmul.f32 %v2324, %v2399
        %v2416 = vmul.f32 %v2326, %v2400
        %v2417 = vmul.f32 %v2328, %v2401
        %v2418 = vmul.f32 %v2330, %v2402
        %v2419 = vmul.f32 %v2332, %v2403
        %v2420 = vmul.f32 %v2334, %v2404
        %v2421 = vmul.f32 %v2336, %v2405
        %v2422 = vmul.f32 %v2338, %v2406
        %v2423 = vmul.f32 %v2340, %v2407
        %v2424 = vmul.f32 %v2342, %v2408
        %v2425 = vmul.f32 %v2344, %v2409
        %v2426 = vmul.f32 %v2346, %v2410
        %v2427 = vpack.c.bf16 %v2411, %v2411
        %v2428 = vpack.c.bf16 %v2412, %v2412
        %v2429 = vpack.c.bf16 %v2413, %v2413
        %v2430 = vpack.c.bf16 %v2414, %v2414
        %v2431 = vpack.c.bf16 %v2415, %v2415
        %v2432 = vpack.c.bf16 %v2416, %v2416
        %v2433 = vpack.c.bf16 %v2417, %v2417
        %v2434 = vpack.c.bf16 %v2418, %v2418
        %v2435 = vpack.c.bf16 %v2419, %v2419
        %v2436 = vpack.c.bf16 %v2420, %v2420
        %v2437 = vpack.c.bf16 %v2421, %v2421
        %v2438 = vpack.c.bf16 %v2422, %v2422
        %v2439 = vpack.c.bf16 %v2423, %v2423
        %v2440 = vpack.c.bf16 %v2424, %v2424
        %v2441 = vpack.c.bf16 %v2425, %v2425
        %v2442 = vpack.c.bf16 %v2426, %v2426
        %2443 = vrot.lane.b32.xlu0 %v952, 56
        %v2444 = vpop.permute.xlu0 %2443
        %v2446 = vsel %vm1530, %v2427, 0
        %v2449 = vsel %vm1534, %v2444, 0
        %2451 = vmatpush.bf16.msra.mxu0 0
        %2452 = vmatpush.bf16.msra.mxu0 0
        %2453 = vmatpush.bf16.msra.mxu0 0
        %2454 = vmatpush.bf16.msra.mxu0 0
        %2455 = vmatpush.bf16.msra.mxu0 0
        %2456 = vmatpush.bf16.msra.mxu0 0
        %2457 = vmatpush.bf16.msra.mxu0 0
        %2458 = vmatpush.bf16.msra.mxu0 %v2449
        %2459 = vmatmul.bf16.gmra.mxu0 %v2446
        %v2460 = vpop.f32.mrf.mxu0
        %v2461 = vadd.f32 0.0, %v2460
        %v2462 = vpop.f32.mrf.mxu0
        %2463 = vdwg.mxu0
        %2464 = vrot.lane.b32.xlu0 %v977, 56
        %v2465 = vpop.permute.xlu0 %2464
        %v2467 = vsel %vm1530, %v2428, 0
        %v2470 = vsel %vm1534, %v2465, 0
        %2472 = vmatpush.bf16.msra.mxu0 0
        %2473 = vmatpush.bf16.msra.mxu0 0
        %2474 = vmatpush.bf16.msra.mxu0 0
        %2475 = vmatpush.bf16.msra.mxu0 0
        %2476 = vmatpush.bf16.msra.mxu0 0
        %2477 = vmatpush.bf16.msra.mxu0 0
        %2478 = vmatpush.bf16.msra.mxu0 0
        %2479 = vmatpush.bf16.msra.mxu0 %v2470
        %2480 = vmatmul.bf16.gmra.mxu0 %v2467
        %v2481 = vpop.f32.mrf.mxu0
        %v2482 = vadd.f32 0.0, %v2481
        %v2483 = vpop.f32.mrf.mxu0
        %2484 = vdwg.mxu0
        %2485 = vrot.lane.b32.xlu0 %v1001, 56
        %v2486 = vpop.permute.xlu0 %2485
        %v2488 = vsel %vm1530, %v2429, 0
        %v2491 = vsel %vm1534, %v2486, 0
        %2493 = vmatpush.bf16.msra.mxu0 0
        %2494 = vmatpush.bf16.msra.mxu0 0
        %2495 = vmatpush.bf16.msra.mxu0 0
        %2496 = vmatpush.bf16.msra.mxu0 0
        %2497 = vmatpush.bf16.msra.mxu0 0
        %2498 = vmatpush.bf16.msra.mxu0 0
        %2499 = vmatpush.bf16.msra.mxu0 0
        %2500 = vmatpush.bf16.msra.mxu0 %v2491
        %2501 = vmatmul.bf16.gmra.mxu0 %v2488
        %v2502 = vpop.f32.mrf.mxu0
        %v2503 = vadd.f32 0.0, %v2502
        %v2504 = vpop.f32.mrf.mxu0
        %2505 = vdwg.mxu0
        %2506 = vrot.lane.b32.xlu0 %v1025, 56
        %v2507 = vpop.permute.xlu0 %2506
        %v2509 = vsel %vm1530, %v2430, 0
        %v2512 = vsel %vm1534, %v2507, 0
        %2514 = vmatpush.bf16.msra.mxu0 0
        %2515 = vmatpush.bf16.msra.mxu0 0
        %2516 = vmatpush.bf16.msra.mxu0 0
        %2517 = vmatpush.bf16.msra.mxu0 0
        %2518 = vmatpush.bf16.msra.mxu0 0
        %2519 = vmatpush.bf16.msra.mxu0 0
        %2520 = vmatpush.bf16.msra.mxu0 0
        %2521 = vmatpush.bf16.msra.mxu0 %v2512
        %2522 = vmatmul.bf16.gmra.mxu0 %v2509
        %v2523 = vpop.f32.mrf.mxu0
        %v2524 = vadd.f32 0.0, %v2523
        %v2525 = vpop.f32.mrf.mxu0
        %2526 = vdwg.mxu0
        %2527 = vrot.lane.b32.xlu0 %v1049, 56
        %v2528 = vpop.permute.xlu0 %2527
        %v2530 = vsel %vm1530, %v2431, 0
        %v2533 = vsel %vm1534, %v2528, 0
        %2535 = vmatpush.bf16.msra.mxu0 0
        %2536 = vmatpush.bf16.msra.mxu0 0
        %2537 = vmatpush.bf16.msra.mxu0 0
        %2538 = vmatpush.bf16.msra.mxu0 0
        %2539 = vmatpush.bf16.msra.mxu0 0
        %2540 = vmatpush.bf16.msra.mxu0 0
        %2541 = vmatpush.bf16.msra.mxu0 0
        %2542 = vmatpush.bf16.msra.mxu0 %v2533
        %2543 = vmatmul.bf16.gmra.mxu0 %v2530
        %v2544 = vpop.f32.mrf.mxu0
        %v2545 = vadd.f32 0.0, %v2544
        %v2546 = vpop.f32.mrf.mxu0
        %2547 = vdwg.mxu0
        %2548 = vrot.lane.b32.xlu0 %v1073, 56
        %v2549 = vpop.permute.xlu0 %2548
        %v2551 = vsel %vm1530, %v2432, 0
        %v2554 = vsel %vm1534, %v2549, 0
        %2556 = vmatpush.bf16.msra.mxu0 0
        %2557 = vmatpush.bf16.msra.mxu0 0
        %2558 = vmatpush.bf16.msra.mxu0 0
        %2559 = vmatpush.bf16.msra.mxu0 0
        %2560 = vmatpush.bf16.msra.mxu0 0
        %2561 = vmatpush.bf16.msra.mxu0 0
        %2562 = vmatpush.bf16.msra.mxu0 0
        %2563 = vmatpush.bf16.msra.mxu0 %v2554
        %2564 = vmatmul.bf16.gmra.mxu0 %v2551
        %v2565 = vpop.f32.mrf.mxu0
        %v2566 = vadd.f32 0.0, %v2565
        %v2567 = vpop.f32.mrf.mxu0
        %2568 = vdwg.mxu0
        %2569 = vrot.lane.b32.xlu0 %v1097, 56
        %v2570 = vpop.permute.xlu0 %2569
        %v2572 = vsel %vm1530, %v2433, 0
        %v2575 = vsel %vm1534, %v2570, 0
        %2577 = vmatpush.bf16.msra.mxu0 0
        %2578 = vmatpush.bf16.msra.mxu0 0
        %2579 = vmatpush.bf16.msra.mxu0 0
        %2580 = vmatpush.bf16.msra.mxu0 0
        %2581 = vmatpush.bf16.msra.mxu0 0
        %2582 = vmatpush.bf16.msra.mxu0 0
        %2583 = vmatpush.bf16.msra.mxu0 0
        %2584 = vmatpush.bf16.msra.mxu0 %v2575
        %2585 = vmatmul.bf16.gmra.mxu0 %v2572
        %v2586 = vpop.f32.mrf.mxu0
        %v2587 = vadd.f32 0.0, %v2586
        %v2588 = vpop.f32.mrf.mxu0
        %2589 = vdwg.mxu0
        %2590 = vrot.lane.b32.xlu0 %v1121, 56
        %v2591 = vpop.permute.xlu0 %2590
        %v2593 = vsel %vm1530, %v2434, 0
        %v2596 = vsel %vm1534, %v2591, 0
        %2598 = vmatpush.bf16.msra.mxu0 0
        %2599 = vmatpush.bf16.msra.mxu0 0
        %2600 = vmatpush.bf16.msra.mxu0 0
        %2601 = vmatpush.bf16.msra.mxu0 0
        %2602 = vmatpush.bf16.msra.mxu0 0
        %2603 = vmatpush.bf16.msra.mxu0 0
        %2604 = vmatpush.bf16.msra.mxu0 0
        %2605 = vmatpush.bf16.msra.mxu0 %v2596
        %2606 = vmatmul.bf16.gmra.mxu0 %v2593
        %v2607 = vpop.f32.mrf.mxu0
        %v2608 = vadd.f32 0.0, %v2607
        %v2609 = vpop.f32.mrf.mxu0
        %2610 = vdwg.mxu0
        %2611 = vrot.lane.b32.xlu0 %v1145, 56
        %v2612 = vpop.permute.xlu0 %2611
        %v2614 = vsel %vm1530, %v2435, 0
        %v2617 = vsel %vm1534, %v2612, 0
        %2619 = vmatpush.bf16.msra.mxu0 0
        %2620 = vmatpush.bf16.msra.mxu0 0
        %2621 = vmatpush.bf16.msra.mxu0 0
        %2622 = vmatpush.bf16.msra.mxu0 0
        %2623 = vmatpush.bf16.msra.mxu0 0
        %2624 = vmatpush.bf16.msra.mxu0 0
        %2625 = vmatpush.bf16.msra.mxu0 0
        %2626 = vmatpush.bf16.msra.mxu0 %v2617
        %2627 = vmatmul.bf16.gmra.mxu0 %v2614
        %v2628 = vpop.f32.mrf.mxu0
        %v2629 = vadd.f32 0.0, %v2628
        %v2630 = vpop.f32.mrf.mxu0
        %2631 = vdwg.mxu0
        %2632 = vrot.lane.b32.xlu0 %v1169, 56
        %v2633 = vpop.permute.xlu0 %2632
        %v2635 = vsel %vm1530, %v2436, 0
        %v2638 = vsel %vm1534, %v2633, 0
        %2640 = vmatpush.bf16.msra.mxu0 0
        %2641 = vmatpush.bf16.msra.mxu0 0
        %2642 = vmatpush.bf16.msra.mxu0 0
        %2643 = vmatpush.bf16.msra.mxu0 0
        %2644 = vmatpush.bf16.msra.mxu0 0
        %2645 = vmatpush.bf16.msra.mxu0 0
        %2646 = vmatpush.bf16.msra.mxu0 0
        %2647 = vmatpush.bf16.msra.mxu0 %v2638
        %2648 = vmatmul.bf16.gmra.mxu0 %v2635
        %v2649 = vpop.f32.mrf.mxu0
        %v2650 = vadd.f32 0.0, %v2649
        %v2651 = vpop.f32.mrf.mxu0
        %2652 = vdwg.mxu0
        %2653 = vrot.lane.b32.xlu0 %v1193, 56
        %v2654 = vpop.permute.xlu0 %2653
        %v2656 = vsel %vm1530, %v2437, 0
        %v2659 = vsel %vm1534, %v2654, 0
        %2661 = vmatpush.bf16.msra.mxu0 0
        %2662 = vmatpush.bf16.msra.mxu0 0
        %2663 = vmatpush.bf16.msra.mxu0 0
        %2664 = vmatpush.bf16.msra.mxu0 0
        %2665 = vmatpush.bf16.msra.mxu0 0
        %2666 = vmatpush.bf16.msra.mxu0 0
        %2667 = vmatpush.bf16.msra.mxu0 0
        %2668 = vmatpush.bf16.msra.mxu0 %v2659
        %2669 = vmatmul.bf16.gmra.mxu0 %v2656
        %v2670 = vpop.f32.mrf.mxu0
        %v2671 = vadd.f32 0.0, %v2670
        %v2672 = vpop.f32.mrf.mxu0
        %2673 = vdwg.mxu0
        %2674 = vrot.lane.b32.xlu0 %v1217, 56
        %v2675 = vpop.permute.xlu0 %2674
        %v2677 = vsel %vm1530, %v2438, 0
        %v2680 = vsel %vm1534, %v2675, 0
        %2682 = vmatpush.bf16.msra.mxu0 0
        %2683 = vmatpush.bf16.msra.mxu0 0
        %2684 = vmatpush.bf16.msra.mxu0 0
        %2685 = vmatpush.bf16.msra.mxu0 0
        %2686 = vmatpush.bf16.msra.mxu0 0
        %2687 = vmatpush.bf16.msra.mxu0 0
        %2688 = vmatpush.bf16.msra.mxu0 0
        %2689 = vmatpush.bf16.msra.mxu0 %v2680
        %2690 = vmatmul.bf16.gmra.mxu0 %v2677
        %v2691 = vpop.f32.mrf.mxu0
        %v2692 = vadd.f32 0.0, %v2691
        %v2693 = vpop.f32.mrf.mxu0
        %2694 = vdwg.mxu0
        %2695 = vrot.lane.b32.xlu0 %v1241, 56
        %v2696 = vpop.permute.xlu0 %2695
        %v2698 = vsel %vm1530, %v2439, 0
        %v2701 = vsel %vm1534, %v2696, 0
        %2703 = vmatpush.bf16.msra.mxu0 0
        %2704 = vmatpush.bf16.msra.mxu0 0
        %2705 = vmatpush.bf16.msra.mxu0 0
        %2706 = vmatpush.bf16.msra.mxu0 0
        %2707 = vmatpush.bf16.msra.mxu0 0
        %2708 = vmatpush.bf16.msra.mxu0 0
        %2709 = vmatpush.bf16.msra.mxu0 0
        %2710 = vmatpush.bf16.msra.mxu0 %v2701
        %2711 = vmatmul.bf16.gmra.mxu0 %v2698
        %v2712 = vpop.f32.mrf.mxu0
        %v2713 = vadd.f32 0.0, %v2712
        %v2714 = vpop.f32.mrf.mxu0
        %2715 = vdwg.mxu0
        %2716 = vrot.lane.b32.xlu0 %v1265, 56
        %v2717 = vpop.permute.xlu0 %2716
        %v2719 = vsel %vm1530, %v2440, 0
        %v2722 = vsel %vm1534, %v2717, 0
        %2724 = vmatpush.bf16.msra.mxu0 0
        %2725 = vmatpush.bf16.msra.mxu0 0
        %2726 = vmatpush.bf16.msra.mxu0 0
        %2727 = vmatpush.bf16.msra.mxu0 0
        %2728 = vmatpush.bf16.msra.mxu0 0
        %2729 = vmatpush.bf16.msra.mxu0 0
        %2730 = vmatpush.bf16.msra.mxu0 0
        %2731 = vmatpush.bf16.msra.mxu0 %v2722
        %2732 = vmatmul.bf16.gmra.mxu0 %v2719
        %v2733 = vpop.f32.mrf.mxu0
        %v2734 = vadd.f32 0.0, %v2733
        %v2735 = vpop.f32.mrf.mxu0
        %2736 = vdwg.mxu0
        %2737 = vrot.lane.b32.xlu0 %v1289, 56
        %v2738 = vpop.permute.xlu0 %2737
        %v2740 = vsel %vm1530, %v2441, 0
        %v2743 = vsel %vm1534, %v2738, 0
        %2745 = vmatpush.bf16.msra.mxu0 0
        %2746 = vmatpush.bf16.msra.mxu0 0
        %2747 = vmatpush.bf16.msra.mxu0 0
        %2748 = vmatpush.bf16.msra.mxu0 0
        %2749 = vmatpush.bf16.msra.mxu0 0
        %2750 = vmatpush.bf16.msra.mxu0 0
        %2751 = vmatpush.bf16.msra.mxu0 0
        %2752 = vmatpush.bf16.msra.mxu0 %v2743
        %2753 = vmatmul.bf16.gmra.mxu0 %v2740
        %v2754 = vpop.f32.mrf.mxu0
        %v2755 = vadd.f32 0.0, %v2754
        %v2756 = vpop.f32.mrf.mxu0
        %2757 = vdwg.mxu0
        %2758 = vrot.lane.b32.xlu0 %v1313, 56
        %v2759 = vpop.permute.xlu0 %2758
        %v2761 = vsel %vm1530, %v2442, 0
        %v2764 = vsel %vm1534, %v2759, 0
        %2766 = vmatpush.bf16.msra.mxu0 0
        %2767 = vmatpush.bf16.msra.mxu0 0
        %2768 = vmatpush.bf16.msra.mxu0 0
        %2769 = vmatpush.bf16.msra.mxu0 0
        %2770 = vmatpush.bf16.msra.mxu0 0
        %2771 = vmatpush.bf16.msra.mxu0 0
        %2772 = vmatpush.bf16.msra.mxu0 0
        %2773 = vmatpush.bf16.msra.mxu0 %v2764
        %2774 = vmatmul.bf16.gmra.mxu0 %v2761
        %v2775 = vpop.f32.mrf.mxu0
        %v2776 = vadd.f32 0.0, %v2775
        %v2777 = vpop.f32.mrf.mxu0
        %2778 = vdwg.mxu0
        %2795 = vrot.lane.b32.xlu0 %v2461, 8
        %v2796 = vpop.permute.xlu0 %2795
        %2797 = vrot.lane.b32.xlu0 %v2482, 8
        %v2798 = vpop.permute.xlu0 %2797
        %2799 = vrot.lane.b32.xlu0 %v2503, 8
        %v2800 = vpop.permute.xlu0 %2799
        %2801 = vrot.lane.b32.xlu0 %v2524, 8
        %v2802 = vpop.permute.xlu0 %2801
        %2803 = vrot.lane.b32.xlu0 %v2545, 8
        %v2804 = vpop.permute.xlu0 %2803
        %2805 = vrot.lane.b32.xlu0 %v2566, 8
        %v2806 = vpop.permute.xlu0 %2805
        %2807 = vrot.lane.b32.xlu0 %v2587, 8
        %v2808 = vpop.permute.xlu0 %2807
        %2809 = vrot.lane.b32.xlu0 %v2608, 8
        %v2810 = vpop.permute.xlu0 %2809
        %2811 = vrot.lane.b32.xlu0 %v2629, 8
        %v2812 = vpop.permute.xlu0 %2811
        %2813 = vrot.lane.b32.xlu0 %v2650, 8
        %v2814 = vpop.permute.xlu0 %2813
        %2815 = vrot.lane.b32.xlu0 %v2671, 8
        %v2816 = vpop.permute.xlu0 %2815
        %2817 = vrot.lane.b32.xlu0 %v2692, 8
        %v2818 = vpop.permute.xlu0 %2817
        %2819 = vrot.lane.b32.xlu0 %v2713, 8
        %v2820 = vpop.permute.xlu0 %2819
        %2821 = vrot.lane.b32.xlu0 %v2734, 8
        %v2822 = vpop.permute.xlu0 %2821
        %2823 = vrot.lane.b32.xlu0 %v2755, 8
        %v2824 = vpop.permute.xlu0 %2823
        %2825 = vrot.lane.b32.xlu0 %v2776, 8
        %v2826 = vpop.permute.xlu0 %2825
        %vm2843 = vcmask 123968
        %2844 = vst.msk [vmem:[#allocation2] sm:$0x3] %vm2843, %v2796
        %2845 = vst.msk [vmem:[#allocation2 + $0x2] sm:$0x3] %vm2843, %v2798
        %2846 = vst.msk [vmem:[#allocation2 + $0x4] sm:$0x3] %vm2843, %v2800
        %2847 = vst.msk [vmem:[#allocation2 + $0x6] sm:$0x3] %vm2843, %v2802
        %2848 = vst.msk [vmem:[#allocation2 + $0x8] sm:$0x3] %vm2843, %v2804
        %2849 = vst.msk [vmem:[#allocation2 + $0xa] sm:$0x3] %vm2843, %v2806
        %2850 = vst.msk [vmem:[#allocation2 + $0xc] sm:$0x3] %vm2843, %v2808
        %2851 = vst.msk [vmem:[#allocation2 + $0xe] sm:$0x3] %vm2843, %v2810
        %2852 = vst.msk [vmem:[#allocation2 + $0x10] sm:$0x3] %vm2843, %v2812
        %2853 = vst.msk [vmem:[#allocation2 + $0x12] sm:$0x3] %vm2843, %v2814
        %2854 = vst.msk [vmem:[#allocation2 + $0x14] sm:$0x3] %vm2843, %v2816
        %2855 = vst.msk [vmem:[#allocation2 + $0x16] sm:$0x3] %vm2843, %v2818
        %2856 = vst.msk [vmem:[#allocation2 + $0x18] sm:$0x3] %vm2843, %v2820
        %2857 = vst.msk [vmem:[#allocation2 + $0x1a] sm:$0x3] %vm2843, %v2822
        %2858 = vst.msk [vmem:[#allocation2 + $0x1c] sm:$0x3] %vm2843, %v2824
        %2859 = vst.msk [vmem:[#allocation2 + $0x1e] sm:$0x3] %vm2843, %v2826
        %2860 = vrot.lane.b32.xlu0 %v952, 112
        %v2861 = vpop.permute.xlu0 %2860
        %2862 = vrot.lane.b32.xlu0 %v952, 80
        %v2863 = vpop.permute.xlu0 %2862
        %v2865 = vsel %vm955, %v2861, 0
        %v2868 = vsel %vm955, %v2863, 0
        %2870 = vmatpush.bf16.xpose.msra.mxu0 0
        %2871 = vmatpush.bf16.xpose.msra.mxu0 0
        %2872 = vmatpush.bf16.xpose.msra.mxu0 0
        %2873 = vmatpush.bf16.xpose.msra.mxu0 0
        %2874 = vmatpush.bf16.xpose.msra.mxu0 0
        %2875 = vmatpush.bf16.xpose.msra.mxu0 0
        %2876 = vmatpush.bf16.xpose.msra.mxu0 0
        %2877 = vmatpush.bf16.xpose.msra.mxu0 %v2868
        %2878 = vmatmul.bf16.gmra.mxu0 %v2865
        %v2879 = vpop.f32.mrf.mxu0
        %v2880 = vadd.f32 0.0, %v2879
        %v2881 = vpop.f32.mrf.mxu0
        %2882 = vdwg.mxu0
        %2883 = vrot.lane.b32.xlu0 %v977, 112
        %v2884 = vpop.permute.xlu0 %2883
        %2885 = vrot.lane.b32.xlu0 %v977, 80
        %v2886 = vpop.permute.xlu0 %2885
        %v2888 = vsel %vm955, %v2884, 0
        %v2891 = vsel %vm955, %v2886, 0
        %2893 = vmatpush.bf16.xpose.msra.mxu0 0
        %2894 = vmatpush.bf16.xpose.msra.mxu0 0
        %2895 = vmatpush.bf16.xpose.msra.mxu0 0
        %2896 = vmatpush.bf16.xpose.msra.mxu0 0
        %2897 = vmatpush.bf16.xpose.msra.mxu0 0
        %2898 = vmatpush.bf16.xpose.msra.mxu0 0
        %2899 = vmatpush.bf16.xpose.msra.mxu0 0
        %2900 = vmatpush.bf16.xpose.msra.mxu0 %v2891
        %2901 = vmatmul.bf16.gmra.mxu0 %v2888
        %v2902 = vpop.f32.mrf.mxu0
        %v2903 = vadd.f32 0.0, %v2902
        %v2904 = vpop.f32.mrf.mxu0
        %2905 = vdwg.mxu0
        %2906 = vrot.lane.b32.xlu0 %v1001, 112
        %v2907 = vpop.permute.xlu0 %2906
        %2908 = vrot.lane.b32.xlu0 %v1001, 80
        %v2909 = vpop.permute.xlu0 %2908
        %v2911 = vsel %vm955, %v2907, 0
        %v2914 = vsel %vm955, %v2909, 0
        %2916 = vmatpush.bf16.xpose.msra.mxu0 0
        %2917 = vmatpush.bf16.xpose.msra.mxu0 0
        %2918 = vmatpush.bf16.xpose.msra.mxu0 0
        %2919 = vmatpush.bf16.xpose.msra.mxu0 0
        %2920 = vmatpush.bf16.xpose.msra.mxu0 0
        %2921 = vmatpush.bf16.xpose.msra.mxu0 0
        %2922 = vmatpush.bf16.xpose.msra.mxu0 0
        %2923 = vmatpush.bf16.xpose.msra.mxu0 %v2914
        %2924 = vmatmul.bf16.gmra.mxu0 %v2911
        %v2925 = vpop.f32.mrf.mxu0
        %v2926 = vadd.f32 0.0, %v2925
        %v2927 = vpop.f32.mrf.mxu0
        %2928 = vdwg.mxu0
        %2929 = vrot.lane.b32.xlu0 %v1025, 112
        %v2930 = vpop.permute.xlu0 %2929
        %2931 = vrot.lane.b32.xlu0 %v1025, 80
        %v2932 = vpop.permute.xlu0 %2931
        %v2934 = vsel %vm955, %v2930, 0
        %v2937 = vsel %vm955, %v2932, 0
        %2939 = vmatpush.bf16.xpose.msra.mxu0 0
        %2940 = vmatpush.bf16.xpose.msra.mxu0 0
        %2941 = vmatpush.bf16.xpose.msra.mxu0 0
        %2942 = vmatpush.bf16.xpose.msra.mxu0 0
        %2943 = vmatpush.bf16.xpose.msra.mxu0 0
        %2944 = vmatpush.bf16.xpose.msra.mxu0 0
        %2945 = vmatpush.bf16.xpose.msra.mxu0 0
        %2946 = vmatpush.bf16.xpose.msra.mxu0 %v2937
        %2947 = vmatmul.bf16.gmra.mxu0 %v2934
        %v2948 = vpop.f32.mrf.mxu0
        %v2949 = vadd.f32 0.0, %v2948
        %v2950 = vpop.f32.mrf.mxu0
        %2951 = vdwg.mxu0
        %2952 = vrot.lane.b32.xlu0 %v1049, 112
        %v2953 = vpop.permute.xlu0 %2952
        %2954 = vrot.lane.b32.xlu0 %v1049, 80
        %v2955 = vpop.permute.xlu0 %2954
        %v2957 = vsel %vm955, %v2953, 0
        %v2960 = vsel %vm955, %v2955, 0
        %2962 = vmatpush.bf16.xpose.msra.mxu0 0
        %2963 = vmatpush.bf16.xpose.msra.mxu0 0
        %2964 = vmatpush.bf16.xpose.msra.mxu0 0
        %2965 = vmatpush.bf16.xpose.msra.mxu0 0
        %2966 = vmatpush.bf16.xpose.msra.mxu0 0
        %2967 = vmatpush.bf16.xpose.msra.mxu0 0
        %2968 = vmatpush.bf16.xpose.msra.mxu0 0
        %2969 = vmatpush.bf16.xpose.msra.mxu0 %v2960
        %2970 = vmatmul.bf16.gmra.mxu0 %v2957
        %v2971 = vpop.f32.mrf.mxu0
        %v2972 = vadd.f32 0.0, %v2971
        %v2973 = vpop.f32.mrf.mxu0
        %2974 = vdwg.mxu0
        %2975 = vrot.lane.b32.xlu0 %v1073, 112
        %v2976 = vpop.permute.xlu0 %2975
        %2977 = vrot.lane.b32.xlu0 %v1073, 80
        %v2978 = vpop.permute.xlu0 %2977
        %v2980 = vsel %vm955, %v2976, 0
        %v2983 = vsel %vm955, %v2978, 0
        %2985 = vmatpush.bf16.xpose.msra.mxu0 0
        %2986 = vmatpush.bf16.xpose.msra.mxu0 0
        %2987 = vmatpush.bf16.xpose.msra.mxu0 0
        %2988 = vmatpush.bf16.xpose.msra.mxu0 0
        %2989 = vmatpush.bf16.xpose.msra.mxu0 0
        %2990 = vmatpush.bf16.xpose.msra.mxu0 0
        %2991 = vmatpush.bf16.xpose.msra.mxu0 0
        %2992 = vmatpush.bf16.xpose.msra.mxu0 %v2983
        %2993 = vmatmul.bf16.gmra.mxu0 %v2980
        %v2994 = vpop.f32.mrf.mxu0
        %v2995 = vadd.f32 0.0, %v2994
        %v2996 = vpop.f32.mrf.mxu0
        %2997 = vdwg.mxu0
        %2998 = vrot.lane.b32.xlu0 %v1097, 112
        %v2999 = vpop.permute.xlu0 %2998
        %3000 = vrot.lane.b32.xlu0 %v1097, 80
        %v3001 = vpop.permute.xlu0 %3000
        %v3003 = vsel %vm955, %v2999, 0
        %v3006 = vsel %vm955, %v3001, 0
        %3008 = vmatpush.bf16.xpose.msra.mxu0 0
        %3009 = vmatpush.bf16.xpose.msra.mxu0 0
        %3010 = vmatpush.bf16.xpose.msra.mxu0 0
        %3011 = vmatpush.bf16.xpose.msra.mxu0 0
        %3012 = vmatpush.bf16.xpose.msra.mxu0 0
        %3013 = vmatpush.bf16.xpose.msra.mxu0 0
        %3014 = vmatpush.bf16.xpose.msra.mxu0 0
        %3015 = vmatpush.bf16.xpose.msra.mxu0 %v3006
        %3016 = vmatmul.bf16.gmra.mxu0 %v3003
        %v3017 = vpop.f32.mrf.mxu0
        %v3018 = vadd.f32 0.0, %v3017
        %v3019 = vpop.f32.mrf.mxu0
        %3020 = vdwg.mxu0
        %3021 = vrot.lane.b32.xlu0 %v1121, 112
        %v3022 = vpop.permute.xlu0 %3021
        %3023 = vrot.lane.b32.xlu0 %v1121, 80
        %v3024 = vpop.permute.xlu0 %3023
        %v3026 = vsel %vm955, %v3022, 0
        %v3029 = vsel %vm955, %v3024, 0
        %3031 = vmatpush.bf16.xpose.msra.mxu0 0
        %3032 = vmatpush.bf16.xpose.msra.mxu0 0
        %3033 = vmatpush.bf16.xpose.msra.mxu0 0
        %3034 = vmatpush.bf16.xpose.msra.mxu0 0
        %3035 = vmatpush.bf16.xpose.msra.mxu0 0
        %3036 = vmatpush.bf16.xpose.msra.mxu0 0
        %3037 = vmatpush.bf16.xpose.msra.mxu0 0
        %3038 = vmatpush.bf16.xpose.msra.mxu0 %v3029
        %3039 = vmatmul.bf16.gmra.mxu0 %v3026
        %v3040 = vpop.f32.mrf.mxu0
        %v3041 = vadd.f32 0.0, %v3040
        %v3042 = vpop.f32.mrf.mxu0
        %3043 = vdwg.mxu0
        %3044 = vrot.lane.b32.xlu0 %v1145, 112
        %v3045 = vpop.permute.xlu0 %3044
        %3046 = vrot.lane.b32.xlu0 %v1145, 80
        %v3047 = vpop.permute.xlu0 %3046
        %v3049 = vsel %vm955, %v3045, 0
        %v3052 = vsel %vm955, %v3047, 0
        %3054 = vmatpush.bf16.xpose.msra.mxu0 0
        %3055 = vmatpush.bf16.xpose.msra.mxu0 0
        %3056 = vmatpush.bf16.xpose.msra.mxu0 0
        %3057 = vmatpush.bf16.xpose.msra.mxu0 0
        %3058 = vmatpush.bf16.xpose.msra.mxu0 0
        %3059 = vmatpush.bf16.xpose.msra.mxu0 0
        %3060 = vmatpush.bf16.xpose.msra.mxu0 0
        %3061 = vmatpush.bf16.xpose.msra.mxu0 %v3052
        %3062 = vmatmul.bf16.gmra.mxu0 %v3049
        %v3063 = vpop.f32.mrf.mxu0
        %v3064 = vadd.f32 0.0, %v3063
        %v3065 = vpop.f32.mrf.mxu0
        %3066 = vdwg.mxu0
        %3067 = vrot.lane.b32.xlu0 %v1169, 112
        %v3068 = vpop.permute.xlu0 %3067
        %3069 = vrot.lane.b32.xlu0 %v1169, 80
        %v3070 = vpop.permute.xlu0 %3069
        %v3072 = vsel %vm955, %v3068, 0
        %v3075 = vsel %vm955, %v3070, 0
        %3077 = vmatpush.bf16.xpose.msra.mxu0 0
        %3078 = vmatpush.bf16.xpose.msra.mxu0 0
        %3079 = vmatpush.bf16.xpose.msra.mxu0 0
        %3080 = vmatpush.bf16.xpose.msra.mxu0 0
        %3081 = vmatpush.bf16.xpose.msra.mxu0 0
        %3082 = vmatpush.bf16.xpose.msra.mxu0 0
        %3083 = vmatpush.bf16.xpose.msra.mxu0 0
        %3084 = vmatpush.bf16.xpose.msra.mxu0 %v3075
        %3085 = vmatmul.bf16.gmra.mxu0 %v3072
        %v3086 = vpop.f32.mrf.mxu0
        %v3087 = vadd.f32 0.0, %v3086
        %v3088 = vpop.f32.mrf.mxu0
        %3089 = vdwg.mxu0
        %3090 = vrot.lane.b32.xlu0 %v1193, 112
        %v3091 = vpop.permute.xlu0 %3090
        %3092 = vrot.lane.b32.xlu0 %v1193, 80
        %v3093 = vpop.permute.xlu0 %3092
        %v3095 = vsel %vm955, %v3091, 0
        %v3098 = vsel %vm955, %v3093, 0
        %3100 = vmatpush.bf16.xpose.msra.mxu0 0
        %3101 = vmatpush.bf16.xpose.msra.mxu0 0
        %3102 = vmatpush.bf16.xpose.msra.mxu0 0
        %3103 = vmatpush.bf16.xpose.msra.mxu0 0
        %3104 = vmatpush.bf16.xpose.msra.mxu0 0
        %3105 = vmatpush.bf16.xpose.msra.mxu0 0
        %3106 = vmatpush.bf16.xpose.msra.mxu0 0
        %3107 = vmatpush.bf16.xpose.msra.mxu0 %v3098
        %3108 = vmatmul.bf16.gmra.mxu0 %v3095
        %v3109 = vpop.f32.mrf.mxu0
        %v3110 = vadd.f32 0.0, %v3109
        %v3111 = vpop.f32.mrf.mxu0
        %3112 = vdwg.mxu0
        %3113 = vrot.lane.b32.xlu0 %v1217, 112
        %v3114 = vpop.permute.xlu0 %3113
        %3115 = vrot.lane.b32.xlu0 %v1217, 80
        %v3116 = vpop.permute.xlu0 %3115
        %v3118 = vsel %vm955, %v3114, 0
        %v3121 = vsel %vm955, %v3116, 0
        %3123 = vmatpush.bf16.xpose.msra.mxu0 0
        %3124 = vmatpush.bf16.xpose.msra.mxu0 0
        %3125 = vmatpush.bf16.xpose.msra.mxu0 0
        %3126 = vmatpush.bf16.xpose.msra.mxu0 0
        %3127 = vmatpush.bf16.xpose.msra.mxu0 0
        %3128 = vmatpush.bf16.xpose.msra.mxu0 0
        %3129 = vmatpush.bf16.xpose.msra.mxu0 0
        %3130 = vmatpush.bf16.xpose.msra.mxu0 %v3121
        %3131 = vmatmul.bf16.gmra.mxu0 %v3118
        %v3132 = vpop.f32.mrf.mxu0
        %v3133 = vadd.f32 0.0, %v3132
        %v3134 = vpop.f32.mrf.mxu0
        %3135 = vdwg.mxu0
        %3136 = vrot.lane.b32.xlu0 %v1241, 112
        %v3137 = vpop.permute.xlu0 %3136
        %3138 = vrot.lane.b32.xlu0 %v1241, 80
        %v3139 = vpop.permute.xlu0 %3138
        %v3141 = vsel %vm955, %v3137, 0
        %v3144 = vsel %vm955, %v3139, 0
        %3146 = vmatpush.bf16.xpose.msra.mxu0 0
        %3147 = vmatpush.bf16.xpose.msra.mxu0 0
        %3148 = vmatpush.bf16.xpose.msra.mxu0 0
        %3149 = vmatpush.bf16.xpose.msra.mxu0 0
        %3150 = vmatpush.bf16.xpose.msra.mxu0 0
        %3151 = vmatpush.bf16.xpose.msra.mxu0 0
        %3152 = vmatpush.bf16.xpose.msra.mxu0 0
        %3153 = vmatpush.bf16.xpose.msra.mxu0 %v3144
        %3154 = vmatmul.bf16.gmra.mxu0 %v3141
        %v3155 = vpop.f32.mrf.mxu0
        %v3156 = vadd.f32 0.0, %v3155
        %v3157 = vpop.f32.mrf.mxu0
        %3158 = vdwg.mxu0
        %3159 = vrot.lane.b32.xlu0 %v1265, 112
        %v3160 = vpop.permute.xlu0 %3159
        %3161 = vrot.lane.b32.xlu0 %v1265, 80
        %v3162 = vpop.permute.xlu0 %3161
        %v3164 = vsel %vm955, %v3160, 0
        %v3167 = vsel %vm955, %v3162, 0
        %3169 = vmatpush.bf16.xpose.msra.mxu0 0
        %3170 = vmatpush.bf16.xpose.msra.mxu0 0
        %3171 = vmatpush.bf16.xpose.msra.mxu0 0
        %3172 = vmatpush.bf16.xpose.msra.mxu0 0
        %3173 = vmatpush.bf16.xpose.msra.mxu0 0
        %3174 = vmatpush.bf16.xpose.msra.mxu0 0
        %3175 = vmatpush.bf16.xpose.msra.mxu0 0
        %3176 = vmatpush.bf16.xpose.msra.mxu0 %v3167
        %3177 = vmatmul.bf16.gmra.mxu0 %v3164
        %v3178 = vpop.f32.mrf.mxu0
        %v3179 = vadd.f32 0.0, %v3178
        %v3180 = vpop.f32.mrf.mxu0
        %3181 = vdwg.mxu0
        %3182 = vrot.lane.b32.xlu0 %v1289, 112
        %v3183 = vpop.permute.xlu0 %3182
        %3184 = vrot.lane.b32.xlu0 %v1289, 80
        %v3185 = vpop.permute.xlu0 %3184
        %v3187 = vsel %vm955, %v3183, 0
        %v3190 = vsel %vm955, %v3185, 0
        %3192 = vmatpush.bf16.xpose.msra.mxu0 0
        %3193 = vmatpush.bf16.xpose.msra.mxu0 0
        %3194 = vmatpush.bf16.xpose.msra.mxu0 0
        %3195 = vmatpush.bf16.xpose.msra.mxu0 0
        %3196 = vmatpush.bf16.xpose.msra.mxu0 0
        %3197 = vmatpush.bf16.xpose.msra.mxu0 0
        %3198 = vmatpush.bf16.xpose.msra.mxu0 0
        %3199 = vmatpush.bf16.xpose.msra.mxu0 %v3190
        %3200 = vmatmul.bf16.gmra.mxu0 %v3187
        %v3201 = vpop.f32.mrf.mxu0
        %v3202 = vadd.f32 0.0, %v3201
        %v3203 = vpop.f32.mrf.mxu0
        %3204 = vdwg.mxu0
        %3205 = vrot.lane.b32.xlu0 %v1313, 112
        %v3206 = vpop.permute.xlu0 %3205
        %3207 = vrot.lane.b32.xlu0 %v1313, 80
        %v3208 = vpop.permute.xlu0 %3207
        %v3210 = vsel %vm955, %v3206, 0
        %v3213 = vsel %vm955, %v3208, 0
        %3215 = vmatpush.bf16.xpose.msra.mxu0 0
        %3216 = vmatpush.bf16.xpose.msra.mxu0 0
        %3217 = vmatpush.bf16.xpose.msra.mxu0 0
        %3218 = vmatpush.bf16.xpose.msra.mxu0 0
        %3219 = vmatpush.bf16.xpose.msra.mxu0 0
        %3220 = vmatpush.bf16.xpose.msra.mxu0 0
        %3221 = vmatpush.bf16.xpose.msra.mxu0 0
        %3222 = vmatpush.bf16.xpose.msra.mxu0 %v3213
        %3223 = vmatmul.bf16.gmra.mxu0 %v3210
        %v3224 = vpop.f32.mrf.mxu0
        %v3225 = vadd.f32 0.0, %v3224
        %v3226 = vpop.f32.mrf.mxu0
        %3227 = vdwg.mxu0
        %v3228 = vsel %vm1335, %v2880, -inf
        %3229 = vmax.xlane.f32.xlu0 %v3228
        %v3230 = vpop.xlane.xlu0 %3229
        %v3231 = vsel %vm1335, %v2903, -inf
        %3232 = vmax.xlane.f32.xlu0 %v3231
        %v3233 = vpop.xlane.xlu0 %3232
        %v3234 = vsel %vm1335, %v2926, -inf
        %3235 = vmax.xlane.f32.xlu0 %v3234
        %v3236 = vpop.xlane.xlu0 %3235
        %v3237 = vsel %vm1335, %v2949, -inf
        %3238 = vmax.xlane.f32.xlu0 %v3237
        %v3239 = vpop.xlane.xlu0 %3238
        %v3240 = vsel %vm1335, %v2972, -inf
        %3241 = vmax.xlane.f32.xlu0 %v3240
        %v3242 = vpop.xlane.xlu0 %3241
        %v3243 = vsel %vm1335, %v2995, -inf
        %3244 = vmax.xlane.f32.xlu0 %v3243
        %v3245 = vpop.xlane.xlu0 %3244
        %v3246 = vsel %vm1335, %v3018, -inf
        %3247 = vmax.xlane.f32.xlu0 %v3246
        %v3248 = vpop.xlane.xlu0 %3247
        %v3249 = vsel %vm1335, %v3041, -inf
        %3250 = vmax.xlane.f32.xlu0 %v3249
        %v3251 = vpop.xlane.xlu0 %3250
        %v3252 = vsel %vm1335, %v3064, -inf
        %3253 = vmax.xlane.f32.xlu0 %v3252
        %v3254 = vpop.xlane.xlu0 %3253
        %v3255 = vsel %vm1335, %v3087, -inf
        %3256 = vmax.xlane.f32.xlu0 %v3255
        %v3257 = vpop.xlane.xlu0 %3256
        %v3258 = vsel %vm1335, %v3110, -inf
        %3259 = vmax.xlane.f32.xlu0 %v3258
        %v3260 = vpop.xlane.xlu0 %3259
        %v3261 = vsel %vm1335, %v3133, -inf
        %3262 = vmax.xlane.f32.xlu0 %v3261
        %v3263 = vpop.xlane.xlu0 %3262
        %v3264 = vsel %vm1335, %v3156, -inf
        %3265 = vmax.xlane.f32.xlu0 %v3264
        %v3266 = vpop.xlane.xlu0 %3265
        %v3267 = vsel %vm1335, %v3179, -inf
        %3268 = vmax.xlane.f32.xlu0 %v3267
        %v3269 = vpop.xlane.xlu0 %3268
        %v3270 = vsel %vm1335, %v3202, -inf
        %3271 = vmax.xlane.f32.xlu0 %v3270
        %v3272 = vpop.xlane.xlu0 %3271
        %v3273 = vsel %vm1335, %v3225, -inf
        %3274 = vmax.xlane.f32.xlu0 %v3273
        %v3275 = vpop.xlane.xlu0 %3274
        %v3276 = vsub.f32 %v2880, %v3230
        %v3277 = vsub.f32 %v2903, %v3233
        %v3278 = vsub.f32 %v2926, %v3236
        %v3279 = vsub.f32 %v2949, %v3239
        %v3280 = vsub.f32 %v2972, %v3242
        %v3281 = vsub.f32 %v2995, %v3245
        %v3282 = vsub.f32 %v3018, %v3248
        %v3283 = vsub.f32 %v3041, %v3251
        %v3284 = vsub.f32 %v3064, %v3254
        %v3285 = vsub.f32 %v3087, %v3257
        %v3286 = vsub.f32 %v3110, %v3260
        %v3287 = vsub.f32 %v3133, %v3263
        %v3288 = vsub.f32 %v3156, %v3266
        %v3289 = vsub.f32 %v3179, %v3269
        %v3290 = vsub.f32 %v3202, %v3272
        %v3291 = vsub.f32 %v3225, %v3275
        %v3292 = vmul.f32 %v3276, 1.442695
        %v3293 = vpow.pop %v3292
        %v3294 = vmul.f32 %v3277, 1.442695
        %v3295 = vpow.pop %v3294
        %v3296 = vmul.f32 %v3278, 1.442695
        %v3297 = vpow.pop %v3296
        %v3298 = vmul.f32 %v3279, 1.442695
        %v3299 = vpow.pop %v3298
        %v3300 = vmul.f32 %v3280, 1.442695
        %v3301 = vpow.pop %v3300
        %v3302 = vmul.f32 %v3281, 1.442695
        %v3303 = vpow.pop %v3302
        %v3304 = vmul.f32 %v3282, 1.442695
        %v3305 = vpow.pop %v3304
        %v3306 = vmul.f32 %v3283, 1.442695
        %v3307 = vpow.pop %v3306
        %v3308 = vmul.f32 %v3284, 1.442695
        %v3309 = vpow.pop %v3308
        %v3310 = vmul.f32 %v3285, 1.442695
        %v3311 = vpow.pop %v3310
        %v3312 = vmul.f32 %v3286, 1.442695
        %v3313 = vpow.pop %v3312
        %v3314 = vmul.f32 %v3287, 1.442695
        %v3315 = vpow.pop %v3314
        %v3316 = vmul.f32 %v3288, 1.442695
        %v3317 = vpow.pop %v3316
        %v3318 = vmul.f32 %v3289, 1.442695
        %v3319 = vpow.pop %v3318
        %v3320 = vmul.f32 %v3290, 1.442695
        %v3321 = vpow.pop %v3320
        %v3322 = vmul.f32 %v3291, 1.442695
        %v3323 = vpow.pop %v3322
        %v3324 = vsel %vm1335, %v3293, 0.0
        %3325 = vadd.xlane.f32.xlu0 %v3324
        %v3326 = vpop.xlane.xlu0 %3325
        %v3327 = vsel %vm1335, %v3295, 0.0
        %3328 = vadd.xlane.f32.xlu0 %v3327
        %v3329 = vpop.xlane.xlu0 %3328
        %v3330 = vsel %vm1335, %v3297, 0.0
        %3331 = vadd.xlane.f32.xlu0 %v3330
        %v3332 = vpop.xlane.xlu0 %3331
        %v3333 = vsel %vm1335, %v3299, 0.0
        %3334 = vadd.xlane.f32.xlu0 %v3333
        %v3335 = vpop.xlane.xlu0 %3334
        %v3336 = vsel %vm1335, %v3301, 0.0
        %3337 = vadd.xlane.f32.xlu0 %v3336
        %v3338 = vpop.xlane.xlu0 %3337
        %v3339 = vsel %vm1335, %v3303, 0.0
        %3340 = vadd.xlane.f32.xlu0 %v3339
        %v3341 = vpop.xlane.xlu0 %3340
        %v3342 = vsel %vm1335, %v3305, 0.0
        %3343 = vadd.xlane.f32.xlu0 %v3342
        %v3344 = vpop.xlane.xlu0 %3343
        %v3345 = vsel %vm1335, %v3307, 0.0
        %3346 = vadd.xlane.f32.xlu0 %v3345
        %v3347 = vpop.xlane.xlu0 %3346
        %v3348 = vsel %vm1335, %v3309, 0.0
        %3349 = vadd.xlane.f32.xlu0 %v3348
        %v3350 = vpop.xlane.xlu0 %3349
        %v3351 = vsel %vm1335, %v3311, 0.0
        %3352 = vadd.xlane.f32.xlu0 %v3351
        %v3353 = vpop.xlane.xlu0 %3352
        %v3354 = vsel %vm1335, %v3313, 0.0
        %3355 = vadd.xlane.f32.xlu0 %v3354
        %v3356 = vpop.xlane.xlu0 %3355
        %v3357 = vsel %vm1335, %v3315, 0.0
        %3358 = vadd.xlane.f32.xlu0 %v3357
        %v3359 = vpop.xlane.xlu0 %3358
        %v3360 = vsel %vm1335, %v3317, 0.0
        %3361 = vadd.xlane.f32.xlu0 %v3360
        %v3362 = vpop.xlane.xlu0 %3361
        %v3363 = vsel %vm1335, %v3319, 0.0
        %3364 = vadd.xlane.f32.xlu0 %v3363
        %v3365 = vpop.xlane.xlu0 %3364
        %v3366 = vsel %vm1335, %v3321, 0.0
        %3367 = vadd.xlane.f32.xlu0 %v3366
        %v3368 = vpop.xlane.xlu0 %3367
        %v3369 = vsel %vm1335, %v3323, 0.0
        %3370 = vadd.xlane.f32.xlu0 %v3369
        %v3371 = vpop.xlane.xlu0 %3370
        %v3372 = vrcp.pop %v3326
        %v3373 = vrcp.pop %v3329
        %v3374 = vrcp.pop %v3332
        %v3375 = vrcp.pop %v3335
        %v3376 = vrcp.pop %v3338
        %v3377 = vrcp.pop %v3341
        %v3378 = vrcp.pop %v3344
        %v3379 = vrcp.pop %v3347
        %v3380 = vrcp.pop %v3350
        %v3381 = vrcp.pop %v3353
        %v3382 = vrcp.pop %v3356
        %v3383 = vrcp.pop %v3359
        %v3384 = vrcp.pop %v3362
        %v3385 = vrcp.pop %v3365
        %v3386 = vrcp.pop %v3368
        %v3387 = vrcp.pop %v3371
        %v3388 = vmul.f32 %v3293, %v3372
        %v3389 = vmul.f32 %v3295, %v3373
        %v3390 = vmul.f32 %v3297, %v3374
        %v3391 = vmul.f32 %v3299, %v3375
        %v3392 = vmul.f32 %v3301, %v3376
        %v3393 = vmul.f32 %v3303, %v3377
        %v3394 = vmul.f32 %v3305, %v3378
        %v3395 = vmul.f32 %v3307, %v3379
        %v3396 = vmul.f32 %v3309, %v3380
        %v3397 = vmul.f32 %v3311, %v3381
        %v3398 = vmul.f32 %v3313, %v3382
        %v3399 = vmul.f32 %v3315, %v3383
        %v3400 = vmul.f32 %v3317, %v3384
        %v3401 = vmul.f32 %v3319, %v3385
        %v3402 = vmul.f32 %v3321, %v3386
        %v3403 = vmul.f32 %v3323, %v3387
        %v3404 = vpack.c.bf16 %v3388, %v3388
        %v3405 = vpack.c.bf16 %v3389, %v3389
        %v3406 = vpack.c.bf16 %v3390, %v3390
        %v3407 = vpack.c.bf16 %v3391, %v3391
        %v3408 = vpack.c.bf16 %v3392, %v3392
        %v3409 = vpack.c.bf16 %v3393, %v3393
        %v3410 = vpack.c.bf16 %v3394, %v3394
        %v3411 = vpack.c.bf16 %v3395, %v3395
        %v3412 = vpack.c.bf16 %v3396, %v3396
        %v3413 = vpack.c.bf16 %v3397, %v3397
        %v3414 = vpack.c.bf16 %v3398, %v3398
        %v3415 = vpack.c.bf16 %v3399, %v3399
        %v3416 = vpack.c.bf16 %v3400, %v3400
        %v3417 = vpack.c.bf16 %v3401, %v3401
        %v3418 = vpack.c.bf16 %v3402, %v3402
        %v3419 = vpack.c.bf16 %v3403, %v3403
        %3420 = vrot.lane.b32.xlu0 %v952, 48
        %v3421 = vpop.permute.xlu0 %3420
        %v3423 = vsel %vm1530, %v3404, 0
        %v3426 = vsel %vm1534, %v3421, 0
        %3428 = vmatpush.bf16.msra.mxu0 0
        %3429 = vmatpush.bf16.msra.mxu0 0
        %3430 = vmatpush.bf16.msra.mxu0 0
        %3431 = vmatpush.bf16.msra.mxu0 0
        %3432 = vmatpush.bf16.msra.mxu0 0
        %3433 = vmatpush.bf16.msra.mxu0 0
        %3434 = vmatpush.bf16.msra.mxu0 0
        %3435 = vmatpush.bf16.msra.mxu0 %v3426
        %3436 = vmatmul.bf16.gmra.mxu0 %v3423
        %v3437 = vpop.f32.mrf.mxu0
        %v3438 = vadd.f32 0.0, %v3437
        %v3439 = vpop.f32.mrf.mxu0
        %3440 = vdwg.mxu0
        %3441 = vrot.lane.b32.xlu0 %v977, 48
        %v3442 = vpop.permute.xlu0 %3441
        %v3444 = vsel %vm1530, %v3405, 0
        %v3447 = vsel %vm1534, %v3442, 0
        %3449 = vmatpush.bf16.msra.mxu0 0
        %3450 = vmatpush.bf16.msra.mxu0 0
        %3451 = vmatpush.bf16.msra.mxu0 0
        %3452 = vmatpush.bf16.msra.mxu0 0
        %3453 = vmatpush.bf16.msra.mxu0 0
        %3454 = vmatpush.bf16.msra.mxu0 0
        %3455 = vmatpush.bf16.msra.mxu0 0
        %3456 = vmatpush.bf16.msra.mxu0 %v3447
        %3457 = vmatmul.bf16.gmra.mxu0 %v3444
        %v3458 = vpop.f32.mrf.mxu0
        %v3459 = vadd.f32 0.0, %v3458
        %v3460 = vpop.f32.mrf.mxu0
        %3461 = vdwg.mxu0
        %3462 = vrot.lane.b32.xlu0 %v1001, 48
        %v3463 = vpop.permute.xlu0 %3462
        %v3465 = vsel %vm1530, %v3406, 0
        %v3468 = vsel %vm1534, %v3463, 0
        %3470 = vmatpush.bf16.msra.mxu0 0
        %3471 = vmatpush.bf16.msra.mxu0 0
        %3472 = vmatpush.bf16.msra.mxu0 0
        %3473 = vmatpush.bf16.msra.mxu0 0
        %3474 = vmatpush.bf16.msra.mxu0 0
        %3475 = vmatpush.bf16.msra.mxu0 0
        %3476 = vmatpush.bf16.msra.mxu0 0
        %3477 = vmatpush.bf16.msra.mxu0 %v3468
        %3478 = vmatmul.bf16.gmra.mxu0 %v3465
        %v3479 = vpop.f32.mrf.mxu0
        %v3480 = vadd.f32 0.0, %v3479
        %v3481 = vpop.f32.mrf.mxu0
        %3482 = vdwg.mxu0
        %3483 = vrot.lane.b32.xlu0 %v1025, 48
        %v3484 = vpop.permute.xlu0 %3483
        %v3486 = vsel %vm1530, %v3407, 0
        %v3489 = vsel %vm1534, %v3484, 0
        %3491 = vmatpush.bf16.msra.mxu0 0
        %3492 = vmatpush.bf16.msra.mxu0 0
        %3493 = vmatpush.bf16.msra.mxu0 0
        %3494 = vmatpush.bf16.msra.mxu0 0
        %3495 = vmatpush.bf16.msra.mxu0 0
        %3496 = vmatpush.bf16.msra.mxu0 0
        %3497 = vmatpush.bf16.msra.mxu0 0
        %3498 = vmatpush.bf16.msra.mxu0 %v3489
        %3499 = vmatmul.bf16.gmra.mxu0 %v3486
        %v3500 = vpop.f32.mrf.mxu0
        %v3501 = vadd.f32 0.0, %v3500
        %v3502 = vpop.f32.mrf.mxu0
        %3503 = vdwg.mxu0
        %3504 = vrot.lane.b32.xlu0 %v1049, 48
        %v3505 = vpop.permute.xlu0 %3504
        %v3507 = vsel %vm1530, %v3408, 0
        %v3510 = vsel %vm1534, %v3505, 0
        %3512 = vmatpush.bf16.msra.mxu0 0
        %3513 = vmatpush.bf16.msra.mxu0 0
        %3514 = vmatpush.bf16.msra.mxu0 0
        %3515 = vmatpush.bf16.msra.mxu0 0
        %3516 = vmatpush.bf16.msra.mxu0 0
        %3517 = vmatpush.bf16.msra.mxu0 0
        %3518 = vmatpush.bf16.msra.mxu0 0
        %3519 = vmatpush.bf16.msra.mxu0 %v3510
        %3520 = vmatmul.bf16.gmra.mxu0 %v3507
        %v3521 = vpop.f32.mrf.mxu0
        %v3522 = vadd.f32 0.0, %v3521
        %v3523 = vpop.f32.mrf.mxu0
        %3524 = vdwg.mxu0
        %3525 = vrot.lane.b32.xlu0 %v1073, 48
        %v3526 = vpop.permute.xlu0 %3525
        %v3528 = vsel %vm1530, %v3409, 0
        %v3531 = vsel %vm1534, %v3526, 0
        %3533 = vmatpush.bf16.msra.mxu0 0
        %3534 = vmatpush.bf16.msra.mxu0 0
        %3535 = vmatpush.bf16.msra.mxu0 0
        %3536 = vmatpush.bf16.msra.mxu0 0
        %3537 = vmatpush.bf16.msra.mxu0 0
        %3538 = vmatpush.bf16.msra.mxu0 0
        %3539 = vmatpush.bf16.msra.mxu0 0
        %3540 = vmatpush.bf16.msra.mxu0 %v3531
        %3541 = vmatmul.bf16.gmra.mxu0 %v3528
        %v3542 = vpop.f32.mrf.mxu0
        %v3543 = vadd.f32 0.0, %v3542
        %v3544 = vpop.f32.mrf.mxu0
        %3545 = vdwg.mxu0
        %3546 = vrot.lane.b32.xlu0 %v1097, 48
        %v3547 = vpop.permute.xlu0 %3546
        %v3549 = vsel %vm1530, %v3410, 0
        %v3552 = vsel %vm1534, %v3547, 0
        %3554 = vmatpush.bf16.msra.mxu0 0
        %3555 = vmatpush.bf16.msra.mxu0 0
        %3556 = vmatpush.bf16.msra.mxu0 0
        %3557 = vmatpush.bf16.msra.mxu0 0
        %3558 = vmatpush.bf16.msra.mxu0 0
        %3559 = vmatpush.bf16.msra.mxu0 0
        %3560 = vmatpush.bf16.msra.mxu0 0
        %3561 = vmatpush.bf16.msra.mxu0 %v3552
        %3562 = vmatmul.bf16.gmra.mxu0 %v3549
        %v3563 = vpop.f32.mrf.mxu0
        %v3564 = vadd.f32 0.0, %v3563
        %v3565 = vpop.f32.mrf.mxu0
        %3566 = vdwg.mxu0
        %3567 = vrot.lane.b32.xlu0 %v1121, 48
        %v3568 = vpop.permute.xlu0 %3567
        %v3570 = vsel %vm1530, %v3411, 0
        %v3573 = vsel %vm1534, %v3568, 0
        %3575 = vmatpush.bf16.msra.mxu0 0
        %3576 = vmatpush.bf16.msra.mxu0 0
        %3577 = vmatpush.bf16.msra.mxu0 0
        %3578 = vmatpush.bf16.msra.mxu0 0
        %3579 = vmatpush.bf16.msra.mxu0 0
        %3580 = vmatpush.bf16.msra.mxu0 0
        %3581 = vmatpush.bf16.msra.mxu0 0
        %3582 = vmatpush.bf16.msra.mxu0 %v3573
        %3583 = vmatmul.bf16.gmra.mxu0 %v3570
        %v3584 = vpop.f32.mrf.mxu0
        %v3585 = vadd.f32 0.0, %v3584
        %v3586 = vpop.f32.mrf.mxu0
        %3587 = vdwg.mxu0
        %3588 = vrot.lane.b32.xlu0 %v1145, 48
        %v3589 = vpop.permute.xlu0 %3588
        %v3591 = vsel %vm1530, %v3412, 0
        %v3594 = vsel %vm1534, %v3589, 0
        %3596 = vmatpush.bf16.msra.mxu0 0
        %3597 = vmatpush.bf16.msra.mxu0 0
        %3598 = vmatpush.bf16.msra.mxu0 0
        %3599 = vmatpush.bf16.msra.mxu0 0
        %3600 = vmatpush.bf16.msra.mxu0 0
        %3601 = vmatpush.bf16.msra.mxu0 0
        %3602 = vmatpush.bf16.msra.mxu0 0
        %3603 = vmatpush.bf16.msra.mxu0 %v3594
        %3604 = vmatmul.bf16.gmra.mxu0 %v3591
        %v3605 = vpop.f32.mrf.mxu0
        %v3606 = vadd.f32 0.0, %v3605
        %v3607 = vpop.f32.mrf.mxu0
        %3608 = vdwg.mxu0
        %3609 = vrot.lane.b32.xlu0 %v1169, 48
        %v3610 = vpop.permute.xlu0 %3609
        %v3612 = vsel %vm1530, %v3413, 0
        %v3615 = vsel %vm1534, %v3610, 0
        %3617 = vmatpush.bf16.msra.mxu0 0
        %3618 = vmatpush.bf16.msra.mxu0 0
        %3619 = vmatpush.bf16.msra.mxu0 0
        %3620 = vmatpush.bf16.msra.mxu0 0
        %3621 = vmatpush.bf16.msra.mxu0 0
        %3622 = vmatpush.bf16.msra.mxu0 0
        %3623 = vmatpush.bf16.msra.mxu0 0
        %3624 = vmatpush.bf16.msra.mxu0 %v3615
        %3625 = vmatmul.bf16.gmra.mxu0 %v3612
        %v3626 = vpop.f32.mrf.mxu0
        %v3627 = vadd.f32 0.0, %v3626
        %v3628 = vpop.f32.mrf.mxu0
        %3629 = vdwg.mxu0
        %3630 = vrot.lane.b32.xlu0 %v1193, 48
        %v3631 = vpop.permute.xlu0 %3630
        %v3633 = vsel %vm1530, %v3414, 0
        %v3636 = vsel %vm1534, %v3631, 0
        %3638 = vmatpush.bf16.msra.mxu0 0
        %3639 = vmatpush.bf16.msra.mxu0 0
        %3640 = vmatpush.bf16.msra.mxu0 0
        %3641 = vmatpush.bf16.msra.mxu0 0
        %3642 = vmatpush.bf16.msra.mxu0 0
        %3643 = vmatpush.bf16.msra.mxu0 0
        %3644 = vmatpush.bf16.msra.mxu0 0
        %3645 = vmatpush.bf16.msra.mxu0 %v3636
        %3646 = vmatmul.bf16.gmra.mxu0 %v3633
        %v3647 = vpop.f32.mrf.mxu0
        %v3648 = vadd.f32 0.0, %v3647
        %v3649 = vpop.f32.mrf.mxu0
        %3650 = vdwg.mxu0
        %3651 = vrot.lane.b32.xlu0 %v1217, 48
        %v3652 = vpop.permute.xlu0 %3651
        %v3654 = vsel %vm1530, %v3415, 0
        %v3657 = vsel %vm1534, %v3652, 0
        %3659 = vmatpush.bf16.msra.mxu0 0
        %3660 = vmatpush.bf16.msra.mxu0 0
        %3661 = vmatpush.bf16.msra.mxu0 0
        %3662 = vmatpush.bf16.msra.mxu0 0
        %3663 = vmatpush.bf16.msra.mxu0 0
        %3664 = vmatpush.bf16.msra.mxu0 0
        %3665 = vmatpush.bf16.msra.mxu0 0
        %3666 = vmatpush.bf16.msra.mxu0 %v3657
        %3667 = vmatmul.bf16.gmra.mxu0 %v3654
        %v3668 = vpop.f32.mrf.mxu0
        %v3669 = vadd.f32 0.0, %v3668
        %v3670 = vpop.f32.mrf.mxu0
        %3671 = vdwg.mxu0
        %3672 = vrot.lane.b32.xlu0 %v1241, 48
        %v3673 = vpop.permute.xlu0 %3672
        %v3675 = vsel %vm1530, %v3416, 0
        %v3678 = vsel %vm1534, %v3673, 0
        %3680 = vmatpush.bf16.msra.mxu0 0
        %3681 = vmatpush.bf16.msra.mxu0 0
        %3682 = vmatpush.bf16.msra.mxu0 0
        %3683 = vmatpush.bf16.msra.mxu0 0
        %3684 = vmatpush.bf16.msra.mxu0 0
        %3685 = vmatpush.bf16.msra.mxu0 0
        %3686 = vmatpush.bf16.msra.mxu0 0
        %3687 = vmatpush.bf16.msra.mxu0 %v3678
        %3688 = vmatmul.bf16.gmra.mxu0 %v3675
        %v3689 = vpop.f32.mrf.mxu0
        %v3690 = vadd.f32 0.0, %v3689
        %v3691 = vpop.f32.mrf.mxu0
        %3692 = vdwg.mxu0
        %3693 = vrot.lane.b32.xlu0 %v1265, 48
        %v3694 = vpop.permute.xlu0 %3693
        %v3696 = vsel %vm1530, %v3417, 0
        %v3699 = vsel %vm1534, %v3694, 0
        %3701 = vmatpush.bf16.msra.mxu0 0
        %3702 = vmatpush.bf16.msra.mxu0 0
        %3703 = vmatpush.bf16.msra.mxu0 0
        %3704 = vmatpush.bf16.msra.mxu0 0
        %3705 = vmatpush.bf16.msra.mxu0 0
        %3706 = vmatpush.bf16.msra.mxu0 0
        %3707 = vmatpush.bf16.msra.mxu0 0
        %3708 = vmatpush.bf16.msra.mxu0 %v3699
        %3709 = vmatmul.bf16.gmra.mxu0 %v3696
        %v3710 = vpop.f32.mrf.mxu0
        %v3711 = vadd.f32 0.0, %v3710
        %v3712 = vpop.f32.mrf.mxu0
        %3713 = vdwg.mxu0
        %3714 = vrot.lane.b32.xlu0 %v1289, 48
        %v3715 = vpop.permute.xlu0 %3714
        %v3717 = vsel %vm1530, %v3418, 0
        %v3720 = vsel %vm1534, %v3715, 0
        %3722 = vmatpush.bf16.msra.mxu0 0
        %3723 = vmatpush.bf16.msra.mxu0 0
        %3724 = vmatpush.bf16.msra.mxu0 0
        %3725 = vmatpush.bf16.msra.mxu0 0
        %3726 = vmatpush.bf16.msra.mxu0 0
        %3727 = vmatpush.bf16.msra.mxu0 0
        %3728 = vmatpush.bf16.msra.mxu0 0
        %3729 = vmatpush.bf16.msra.mxu0 %v3720
        %3730 = vmatmul.bf16.gmra.mxu0 %v3717
        %v3731 = vpop.f32.mrf.mxu0
        %v3732 = vadd.f32 0.0, %v3731
        %v3733 = vpop.f32.mrf.mxu0
        %3734 = vdwg.mxu0
        %3735 = vrot.lane.b32.xlu0 %v1313, 48
        %v3736 = vpop.permute.xlu0 %3735
        %v3738 = vsel %vm1530, %v3419, 0
        %v3741 = vsel %vm1534, %v3736, 0
        %3743 = vmatpush.bf16.msra.mxu0 0
        %3744 = vmatpush.bf16.msra.mxu0 0
        %3745 = vmatpush.bf16.msra.mxu0 0
        %3746 = vmatpush.bf16.msra.mxu0 0
        %3747 = vmatpush.bf16.msra.mxu0 0
        %3748 = vmatpush.bf16.msra.mxu0 0
        %3749 = vmatpush.bf16.msra.mxu0 0
        %3750 = vmatpush.bf16.msra.mxu0 %v3741
        %3751 = vmatmul.bf16.gmra.mxu0 %v3738
        %v3752 = vpop.f32.mrf.mxu0
        %v3753 = vadd.f32 0.0, %v3752
        %v3754 = vpop.f32.mrf.mxu0
        %3755 = vdwg.mxu0
        %3772 = vrot.lane.b32.xlu0 %v3438, 16
        %v3773 = vpop.permute.xlu0 %3772
        %3774 = vrot.lane.b32.xlu0 %v3459, 16
        %v3775 = vpop.permute.xlu0 %3774
        %3776 = vrot.lane.b32.xlu0 %v3480, 16
        %v3777 = vpop.permute.xlu0 %3776
        %3778 = vrot.lane.b32.xlu0 %v3501, 16
        %v3779 = vpop.permute.xlu0 %3778
        %3780 = vrot.lane.b32.xlu0 %v3522, 16
        %v3781 = vpop.permute.xlu0 %3780
        %3782 = vrot.lane.b32.xlu0 %v3543, 16
        %v3783 = vpop.permute.xlu0 %3782
        %3784 = vrot.lane.b32.xlu0 %v3564, 16
        %v3785 = vpop.permute.xlu0 %3784
        %3786 = vrot.lane.b32.xlu0 %v3585, 16
        %v3787 = vpop.permute.xlu0 %3786
        %3788 = vrot.lane.b32.xlu0 %v3606, 16
        %v3789 = vpop.permute.xlu0 %3788
        %3790 = vrot.lane.b32.xlu0 %v3627, 16
        %v3791 = vpop.permute.xlu0 %3790
        %3792 = vrot.lane.b32.xlu0 %v3648, 16
        %v3793 = vpop.permute.xlu0 %3792
        %3794 = vrot.lane.b32.xlu0 %v3669, 16
        %v3795 = vpop.permute.xlu0 %3794
        %3796 = vrot.lane.b32.xlu0 %v3690, 16
        %v3797 = vpop.permute.xlu0 %3796
        %3798 = vrot.lane.b32.xlu0 %v3711, 16
        %v3799 = vpop.permute.xlu0 %3798
        %3800 = vrot.lane.b32.xlu0 %v3732, 16
        %v3801 = vpop.permute.xlu0 %3800
        %3802 = vrot.lane.b32.xlu0 %v3753, 16
        %v3803 = vpop.permute.xlu0 %3802
        %vm3820 = vcmask 189568
        %3821 = vst.msk [vmem:[#allocation2] sm:$0x3] %vm3820, %v3773
        %3822 = vst.msk [vmem:[#allocation2 + $0x2] sm:$0x3] %vm3820, %v3775
        %3823 = vst.msk [vmem:[#allocation2 + $0x4] sm:$0x3] %vm3820, %v3777
        %3824 = vst.msk [vmem:[#allocation2 + $0x6] sm:$0x3] %vm3820, %v3779
        %3825 = vst.msk [vmem:[#allocation2 + $0x8] sm:$0x3] %vm3820, %v3781
        %3826 = vst.msk [vmem:[#allocation2 + $0xa] sm:$0x3] %vm3820, %v3783
        %3827 = vst.msk [vmem:[#allocation2 + $0xc] sm:$0x3] %vm3820, %v3785
        %3828 = vst.msk [vmem:[#allocation2 + $0xe] sm:$0x3] %vm3820, %v3787
        %3829 = vst.msk [vmem:[#allocation2 + $0x10] sm:$0x3] %vm3820, %v3789
        %3830 = vst.msk [vmem:[#allocation2 + $0x12] sm:$0x3] %vm3820, %v3791
        %3831 = vst.msk [vmem:[#allocation2 + $0x14] sm:$0x3] %vm3820, %v3793
        %3832 = vst.msk [vmem:[#allocation2 + $0x16] sm:$0x3] %vm3820, %v3795
        %3833 = vst.msk [vmem:[#allocation2 + $0x18] sm:$0x3] %vm3820, %v3797
        %3834 = vst.msk [vmem:[#allocation2 + $0x1a] sm:$0x3] %vm3820, %v3799
        %3835 = vst.msk [vmem:[#allocation2 + $0x1c] sm:$0x3] %vm3820, %v3801
        %3836 = vst.msk [vmem:[#allocation2 + $0x1e] sm:$0x3] %vm3820, %v3803
        %3837 = vrot.lane.b32.xlu0 %v952, 104
        %v3838 = vpop.permute.xlu0 %3837
        %3839 = vrot.lane.b32.xlu0 %v952, 72
        %v3840 = vpop.permute.xlu0 %3839
        %v3842 = vsel %vm955, %v3838, 0
        %v3845 = vsel %vm955, %v3840, 0
        %3847 = vmatpush.bf16.xpose.msra.mxu0 0
        %3848 = vmatpush.bf16.xpose.msra.mxu0 0
        %3849 = vmatpush.bf16.xpose.msra.mxu0 0
        %3850 = vmatpush.bf16.xpose.msra.mxu0 0
        %3851 = vmatpush.bf16.xpose.msra.mxu0 0
        %3852 = vmatpush.bf16.xpose.msra.mxu0 0
        %3853 = vmatpush.bf16.xpose.msra.mxu0 0
        %3854 = vmatpush.bf16.xpose.msra.mxu0 %v3845
        %3855 = vmatmul.bf16.gmra.mxu0 %v3842
        %v3856 = vpop.f32.mrf.mxu0
        %v3857 = vadd.f32 0.0, %v3856
        %v3858 = vpop.f32.mrf.mxu0
        %3859 = vdwg.mxu0
        %3860 = vrot.lane.b32.xlu0 %v977, 104
        %v3861 = vpop.permute.xlu0 %3860
        %3862 = vrot.lane.b32.xlu0 %v977, 72
        %v3863 = vpop.permute.xlu0 %3862
        %v3865 = vsel %vm955, %v3861, 0
        %v3868 = vsel %vm955, %v3863, 0
        %3870 = vmatpush.bf16.xpose.msra.mxu0 0
        %3871 = vmatpush.bf16.xpose.msra.mxu0 0
        %3872 = vmatpush.bf16.xpose.msra.mxu0 0
        %3873 = vmatpush.bf16.xpose.msra.mxu0 0
        %3874 = vmatpush.bf16.xpose.msra.mxu0 0
        %3875 = vmatpush.bf16.xpose.msra.mxu0 0
        %3876 = vmatpush.bf16.xpose.msra.mxu0 0
        %3877 = vmatpush.bf16.xpose.msra.mxu0 %v3868
        %3878 = vmatmul.bf16.gmra.mxu0 %v3865
        %v3879 = vpop.f32.mrf.mxu0
        %v3880 = vadd.f32 0.0, %v3879
        %v3881 = vpop.f32.mrf.mxu0
        %3882 = vdwg.mxu0
        %3883 = vrot.lane.b32.xlu0 %v1001, 104
        %v3884 = vpop.permute.xlu0 %3883
        %3885 = vrot.lane.b32.xlu0 %v1001, 72
        %v3886 = vpop.permute.xlu0 %3885
        %v3888 = vsel %vm955, %v3884, 0
        %v3891 = vsel %vm955, %v3886, 0
        %3893 = vmatpush.bf16.xpose.msra.mxu0 0
        %3894 = vmatpush.bf16.xpose.msra.mxu0 0
        %3895 = vmatpush.bf16.xpose.msra.mxu0 0
        %3896 = vmatpush.bf16.xpose.msra.mxu0 0
        %3897 = vmatpush.bf16.xpose.msra.mxu0 0
        %3898 = vmatpush.bf16.xpose.msra.mxu0 0
        %3899 = vmatpush.bf16.xpose.msra.mxu0 0
        %3900 = vmatpush.bf16.xpose.msra.mxu0 %v3891
        %3901 = vmatmul.bf16.gmra.mxu0 %v3888
        %v3902 = vpop.f32.mrf.mxu0
        %v3903 = vadd.f32 0.0, %v3902
        %v3904 = vpop.f32.mrf.mxu0
        %3905 = vdwg.mxu0
        %3906 = vrot.lane.b32.xlu0 %v1025, 104
        %v3907 = vpop.permute.xlu0 %3906
        %3908 = vrot.lane.b32.xlu0 %v1025, 72
        %v3909 = vpop.permute.xlu0 %3908
        %v3911 = vsel %vm955, %v3907, 0
        %v3914 = vsel %vm955, %v3909, 0
        %3916 = vmatpush.bf16.xpose.msra.mxu0 0
        %3917 = vmatpush.bf16.xpose.msra.mxu0 0
        %3918 = vmatpush.bf16.xpose.msra.mxu0 0
        %3919 = vmatpush.bf16.xpose.msra.mxu0 0
        %3920 = vmatpush.bf16.xpose.msra.mxu0 0
        %3921 = vmatpush.bf16.xpose.msra.mxu0 0
        %3922 = vmatpush.bf16.xpose.msra.mxu0 0
        %3923 = vmatpush.bf16.xpose.msra.mxu0 %v3914
        %3924 = vmatmul.bf16.gmra.mxu0 %v3911
        %v3925 = vpop.f32.mrf.mxu0
        %v3926 = vadd.f32 0.0, %v3925
        %v3927 = vpop.f32.mrf.mxu0
        %3928 = vdwg.mxu0
        %3929 = vrot.lane.b32.xlu0 %v1049, 104
        %v3930 = vpop.permute.xlu0 %3929
        %3931 = vrot.lane.b32.xlu0 %v1049, 72
        %v3932 = vpop.permute.xlu0 %3931
        %v3934 = vsel %vm955, %v3930, 0
        %v3937 = vsel %vm955, %v3932, 0
        %3939 = vmatpush.bf16.xpose.msra.mxu0 0
        %3940 = vmatpush.bf16.xpose.msra.mxu0 0
        %3941 = vmatpush.bf16.xpose.msra.mxu0 0
        %3942 = vmatpush.bf16.xpose.msra.mxu0 0
        %3943 = vmatpush.bf16.xpose.msra.mxu0 0
        %3944 = vmatpush.bf16.xpose.msra.mxu0 0
        %3945 = vmatpush.bf16.xpose.msra.mxu0 0
        %3946 = vmatpush.bf16.xpose.msra.mxu0 %v3937
        %3947 = vmatmul.bf16.gmra.mxu0 %v3934
        %v3948 = vpop.f32.mrf.mxu0
        %v3949 = vadd.f32 0.0, %v3948
        %v3950 = vpop.f32.mrf.mxu0
        %3951 = vdwg.mxu0
        %3952 = vrot.lane.b32.xlu0 %v1073, 104
        %v3953 = vpop.permute.xlu0 %3952
        %3954 = vrot.lane.b32.xlu0 %v1073, 72
        %v3955 = vpop.permute.xlu0 %3954
        %v3957 = vsel %vm955, %v3953, 0
        %v3960 = vsel %vm955, %v3955, 0
        %3962 = vmatpush.bf16.xpose.msra.mxu0 0
        %3963 = vmatpush.bf16.xpose.msra.mxu0 0
        %3964 = vmatpush.bf16.xpose.msra.mxu0 0
        %3965 = vmatpush.bf16.xpose.msra.mxu0 0
        %3966 = vmatpush.bf16.xpose.msra.mxu0 0
        %3967 = vmatpush.bf16.xpose.msra.mxu0 0
        %3968 = vmatpush.bf16.xpose.msra.mxu0 0
        %3969 = vmatpush.bf16.xpose.msra.mxu0 %v3960
        %3970 = vmatmul.bf16.gmra.mxu0 %v3957
        %v3971 = vpop.f32.mrf.mxu0
        %v3972 = vadd.f32 0.0, %v3971
        %v3973 = vpop.f32.mrf.mxu0
        %3974 = vdwg.mxu0
        %3975 = vrot.lane.b32.xlu0 %v1097, 104
        %v3976 = vpop.permute.xlu0 %3975
        %3977 = vrot.lane.b32.xlu0 %v1097, 72
        %v3978 = vpop.permute.xlu0 %3977
        %v3980 = vsel %vm955, %v3976, 0
        %v3983 = vsel %vm955, %v3978, 0
        %3985 = vmatpush.bf16.xpose.msra.mxu0 0
        %3986 = vmatpush.bf16.xpose.msra.mxu0 0
        %3987 = vmatpush.bf16.xpose.msra.mxu0 0
        %3988 = vmatpush.bf16.xpose.msra.mxu0 0
        %3989 = vmatpush.bf16.xpose.msra.mxu0 0
        %3990 = vmatpush.bf16.xpose.msra.mxu0 0
        %3991 = vmatpush.bf16.xpose.msra.mxu0 0
        %3992 = vmatpush.bf16.xpose.msra.mxu0 %v3983
        %3993 = vmatmul.bf16.gmra.mxu0 %v3980
        %v3994 = vpop.f32.mrf.mxu0
        %v3995 = vadd.f32 0.0, %v3994
        %v3996 = vpop.f32.mrf.mxu0
        %3997 = vdwg.mxu0
        %3998 = vrot.lane.b32.xlu0 %v1121, 104
        %v3999 = vpop.permute.xlu0 %3998
        %4000 = vrot.lane.b32.xlu0 %v1121, 72
        %v4001 = vpop.permute.xlu0 %4000
        %v4003 = vsel %vm955, %v3999, 0
        %v4006 = vsel %vm955, %v4001, 0
        %4008 = vmatpush.bf16.xpose.msra.mxu0 0
        %4009 = vmatpush.bf16.xpose.msra.mxu0 0
        %4010 = vmatpush.bf16.xpose.msra.mxu0 0
        %4011 = vmatpush.bf16.xpose.msra.mxu0 0
        %4012 = vmatpush.bf16.xpose.msra.mxu0 0
        %4013 = vmatpush.bf16.xpose.msra.mxu0 0
        %4014 = vmatpush.bf16.xpose.msra.mxu0 0
        %4015 = vmatpush.bf16.xpose.msra.mxu0 %v4006
        %4016 = vmatmul.bf16.gmra.mxu0 %v4003
        %v4017 = vpop.f32.mrf.mxu0
        %v4018 = vadd.f32 0.0, %v4017
        %v4019 = vpop.f32.mrf.mxu0
        %4020 = vdwg.mxu0
        %4021 = vrot.lane.b32.xlu0 %v1145, 104
        %v4022 = vpop.permute.xlu0 %4021
        %4023 = vrot.lane.b32.xlu0 %v1145, 72
        %v4024 = vpop.permute.xlu0 %4023
        %v4026 = vsel %vm955, %v4022, 0
        %v4029 = vsel %vm955, %v4024, 0
        %4031 = vmatpush.bf16.xpose.msra.mxu0 0
        %4032 = vmatpush.bf16.xpose.msra.mxu0 0
        %4033 = vmatpush.bf16.xpose.msra.mxu0 0
        %4034 = vmatpush.bf16.xpose.msra.mxu0 0
        %4035 = vmatpush.bf16.xpose.msra.mxu0 0
        %4036 = vmatpush.bf16.xpose.msra.mxu0 0
        %4037 = vmatpush.bf16.xpose.msra.mxu0 0
        %4038 = vmatpush.bf16.xpose.msra.mxu0 %v4029
        %4039 = vmatmul.bf16.gmra.mxu0 %v4026
        %v4040 = vpop.f32.mrf.mxu0
        %v4041 = vadd.f32 0.0, %v4040
        %v4042 = vpop.f32.mrf.mxu0
        %4043 = vdwg.mxu0
        %4044 = vrot.lane.b32.xlu0 %v1169, 104
        %v4045 = vpop.permute.xlu0 %4044
        %4046 = vrot.lane.b32.xlu0 %v1169, 72
        %v4047 = vpop.permute.xlu0 %4046
        %v4049 = vsel %vm955, %v4045, 0
        %v4052 = vsel %vm955, %v4047, 0
        %4054 = vmatpush.bf16.xpose.msra.mxu0 0
        %4055 = vmatpush.bf16.xpose.msra.mxu0 0
        %4056 = vmatpush.bf16.xpose.msra.mxu0 0
        %4057 = vmatpush.bf16.xpose.msra.mxu0 0
        %4058 = vmatpush.bf16.xpose.msra.mxu0 0
        %4059 = vmatpush.bf16.xpose.msra.mxu0 0
        %4060 = vmatpush.bf16.xpose.msra.mxu0 0
        %4061 = vmatpush.bf16.xpose.msra.mxu0 %v4052
        %4062 = vmatmul.bf16.gmra.mxu0 %v4049
        %v4063 = vpop.f32.mrf.mxu0
        %v4064 = vadd.f32 0.0, %v4063
        %v4065 = vpop.f32.mrf.mxu0
        %4066 = vdwg.mxu0
        %4067 = vrot.lane.b32.xlu0 %v1193, 104
        %v4068 = vpop.permute.xlu0 %4067
        %4069 = vrot.lane.b32.xlu0 %v1193, 72
        %v4070 = vpop.permute.xlu0 %4069
        %v4072 = vsel %vm955, %v4068, 0
        %v4075 = vsel %vm955, %v4070, 0
        %4077 = vmatpush.bf16.xpose.msra.mxu0 0
        %4078 = vmatpush.bf16.xpose.msra.mxu0 0
        %4079 = vmatpush.bf16.xpose.msra.mxu0 0
        %4080 = vmatpush.bf16.xpose.msra.mxu0 0
        %4081 = vmatpush.bf16.xpose.msra.mxu0 0
        %4082 = vmatpush.bf16.xpose.msra.mxu0 0
        %4083 = vmatpush.bf16.xpose.msra.mxu0 0
        %4084 = vmatpush.bf16.xpose.msra.mxu0 %v4075
        %4085 = vmatmul.bf16.gmra.mxu0 %v4072
        %v4086 = vpop.f32.mrf.mxu0
        %v4087 = vadd.f32 0.0, %v4086
        %v4088 = vpop.f32.mrf.mxu0
        %4089 = vdwg.mxu0
        %4090 = vrot.lane.b32.xlu0 %v1217, 104
        %v4091 = vpop.permute.xlu0 %4090
        %4092 = vrot.lane.b32.xlu0 %v1217, 72
        %v4093 = vpop.permute.xlu0 %4092
        %v4095 = vsel %vm955, %v4091, 0
        %v4098 = vsel %vm955, %v4093, 0
        %4100 = vmatpush.bf16.xpose.msra.mxu0 0
        %4101 = vmatpush.bf16.xpose.msra.mxu0 0
        %4102 = vmatpush.bf16.xpose.msra.mxu0 0
        %4103 = vmatpush.bf16.xpose.msra.mxu0 0
        %4104 = vmatpush.bf16.xpose.msra.mxu0 0
        %4105 = vmatpush.bf16.xpose.msra.mxu0 0
        %4106 = vmatpush.bf16.xpose.msra.mxu0 0
        %4107 = vmatpush.bf16.xpose.msra.mxu0 %v4098
        %4108 = vmatmul.bf16.gmra.mxu0 %v4095
        %v4109 = vpop.f32.mrf.mxu0
        %v4110 = vadd.f32 0.0, %v4109
        %v4111 = vpop.f32.mrf.mxu0
        %4112 = vdwg.mxu0
        %4113 = vrot.lane.b32.xlu0 %v1241, 104
        %v4114 = vpop.permute.xlu0 %4113
        %4115 = vrot.lane.b32.xlu0 %v1241, 72
        %v4116 = vpop.permute.xlu0 %4115
        %v4118 = vsel %vm955, %v4114, 0
        %v4121 = vsel %vm955, %v4116, 0
        %4123 = vmatpush.bf16.xpose.msra.mxu0 0
        %4124 = vmatpush.bf16.xpose.msra.mxu0 0
        %4125 = vmatpush.bf16.xpose.msra.mxu0 0
        %4126 = vmatpush.bf16.xpose.msra.mxu0 0
        %4127 = vmatpush.bf16.xpose.msra.mxu0 0
        %4128 = vmatpush.bf16.xpose.msra.mxu0 0
        %4129 = vmatpush.bf16.xpose.msra.mxu0 0
        %4130 = vmatpush.bf16.xpose.msra.mxu0 %v4121
        %4131 = vmatmul.bf16.gmra.mxu0 %v4118
        %v4132 = vpop.f32.mrf.mxu0
        %v4133 = vadd.f32 0.0, %v4132
        %v4134 = vpop.f32.mrf.mxu0
        %4135 = vdwg.mxu0
        %4136 = vrot.lane.b32.xlu0 %v1265, 104
        %v4137 = vpop.permute.xlu0 %4136
        %4138 = vrot.lane.b32.xlu0 %v1265, 72
        %v4139 = vpop.permute.xlu0 %4138
        %v4141 = vsel %vm955, %v4137, 0
        %v4144 = vsel %vm955, %v4139, 0
        %4146 = vmatpush.bf16.xpose.msra.mxu0 0
        %4147 = vmatpush.bf16.xpose.msra.mxu0 0
        %4148 = vmatpush.bf16.xpose.msra.mxu0 0
        %4149 = vmatpush.bf16.xpose.msra.mxu0 0
        %4150 = vmatpush.bf16.xpose.msra.mxu0 0
        %4151 = vmatpush.bf16.xpose.msra.mxu0 0
        %4152 = vmatpush.bf16.xpose.msra.mxu0 0
        %4153 = vmatpush.bf16.xpose.msra.mxu0 %v4144
        %4154 = vmatmul.bf16.gmra.mxu0 %v4141
        %v4155 = vpop.f32.mrf.mxu0
        %v4156 = vadd.f32 0.0, %v4155
        %v4157 = vpop.f32.mrf.mxu0
        %4158 = vdwg.mxu0
        %4159 = vrot.lane.b32.xlu0 %v1289, 104
        %v4160 = vpop.permute.xlu0 %4159
        %4161 = vrot.lane.b32.xlu0 %v1289, 72
        %v4162 = vpop.permute.xlu0 %4161
        %v4164 = vsel %vm955, %v4160, 0
        %v4167 = vsel %vm955, %v4162, 0
        %4169 = vmatpush.bf16.xpose.msra.mxu0 0
        %4170 = vmatpush.bf16.xpose.msra.mxu0 0
        %4171 = vmatpush.bf16.xpose.msra.mxu0 0
        %4172 = vmatpush.bf16.xpose.msra.mxu0 0
        %4173 = vmatpush.bf16.xpose.msra.mxu0 0
        %4174 = vmatpush.bf16.xpose.msra.mxu0 0
        %4175 = vmatpush.bf16.xpose.msra.mxu0 0
        %4176 = vmatpush.bf16.xpose.msra.mxu0 %v4167
        %4177 = vmatmul.bf16.gmra.mxu0 %v4164
        %v4178 = vpop.f32.mrf.mxu0
        %v4179 = vadd.f32 0.0, %v4178
        %v4180 = vpop.f32.mrf.mxu0
        %4181 = vdwg.mxu0
        %4182 = vrot.lane.b32.xlu0 %v1313, 104
        %v4183 = vpop.permute.xlu0 %4182
        %4184 = vrot.lane.b32.xlu0 %v1313, 72
        %v4185 = vpop.permute.xlu0 %4184
        %v4187 = vsel %vm955, %v4183, 0
        %v4190 = vsel %vm955, %v4185, 0
        %4192 = vmatpush.bf16.xpose.msra.mxu0 0
        %4193 = vmatpush.bf16.xpose.msra.mxu0 0
        %4194 = vmatpush.bf16.xpose.msra.mxu0 0
        %4195 = vmatpush.bf16.xpose.msra.mxu0 0
        %4196 = vmatpush.bf16.xpose.msra.mxu0 0
        %4197 = vmatpush.bf16.xpose.msra.mxu0 0
        %4198 = vmatpush.bf16.xpose.msra.mxu0 0
        %4199 = vmatpush.bf16.xpose.msra.mxu0 %v4190
        %4200 = vmatmul.bf16.gmra.mxu0 %v4187
        %v4201 = vpop.f32.mrf.mxu0
        %v4202 = vadd.f32 0.0, %v4201
        %v4203 = vpop.f32.mrf.mxu0
        %4204 = vdwg.mxu0
        %v4205 = vsel %vm1335, %v3857, -inf
        %4206 = vmax.xlane.f32.xlu0 %v4205
        %v4207 = vpop.xlane.xlu0 %4206
        %v4208 = vsel %vm1335, %v3880, -inf
        %4209 = vmax.xlane.f32.xlu0 %v4208
        %v4210 = vpop.xlane.xlu0 %4209
        %v4211 = vsel %vm1335, %v3903, -inf
        %4212 = vmax.xlane.f32.xlu0 %v4211
        %v4213 = vpop.xlane.xlu0 %4212
        %v4214 = vsel %vm1335, %v3926, -inf
        %4215 = vmax.xlane.f32.xlu0 %v4214
        %v4216 = vpop.xlane.xlu0 %4215
        %v4217 = vsel %vm1335, %v3949, -inf
        %4218 = vmax.xlane.f32.xlu0 %v4217
        %v4219 = vpop.xlane.xlu0 %4218
        %v4220 = vsel %vm1335, %v3972, -inf
        %4221 = vmax.xlane.f32.xlu0 %v4220
        %v4222 = vpop.xlane.xlu0 %4221
        %v4223 = vsel %vm1335, %v3995, -inf
        %4224 = vmax.xlane.f32.xlu0 %v4223
        %v4225 = vpop.xlane.xlu0 %4224
        %v4226 = vsel %vm1335, %v4018, -inf
        %4227 = vmax.xlane.f32.xlu0 %v4226
        %v4228 = vpop.xlane.xlu0 %4227
        %v4229 = vsel %vm1335, %v4041, -inf
        %4230 = vmax.xlane.f32.xlu0 %v4229
        %v4231 = vpop.xlane.xlu0 %4230
        %v4232 = vsel %vm1335, %v4064, -inf
        %4233 = vmax.xlane.f32.xlu0 %v4232
        %v4234 = vpop.xlane.xlu0 %4233
        %v4235 = vsel %vm1335, %v4087, -inf
        %4236 = vmax.xlane.f32.xlu0 %v4235
        %v4237 = vpop.xlane.xlu0 %4236
        %v4238 = vsel %vm1335, %v4110, -inf
        %4239 = vmax.xlane.f32.xlu0 %v4238
        %v4240 = vpop.xlane.xlu0 %4239
        %v4241 = vsel %vm1335, %v4133, -inf
        %4242 = vmax.xlane.f32.xlu0 %v4241
        %v4243 = vpop.xlane.xlu0 %4242
        %v4244 = vsel %vm1335, %v4156, -inf
        %4245 = vmax.xlane.f32.xlu0 %v4244
        %v4246 = vpop.xlane.xlu0 %4245
        %v4247 = vsel %vm1335, %v4179, -inf
        %4248 = vmax.xlane.f32.xlu0 %v4247
        %v4249 = vpop.xlane.xlu0 %4248
        %v4250 = vsel %vm1335, %v4202, -inf
        %4251 = vmax.xlane.f32.xlu0 %v4250
        %v4252 = vpop.xlane.xlu0 %4251
        %v4253 = vsub.f32 %v3857, %v4207
        %v4254 = vsub.f32 %v3880, %v4210
        %v4255 = vsub.f32 %v3903, %v4213
        %v4256 = vsub.f32 %v3926, %v4216
        %v4257 = vsub.f32 %v3949, %v4219
        %v4258 = vsub.f32 %v3972, %v4222
        %v4259 = vsub.f32 %v3995, %v4225
        %v4260 = vsub.f32 %v4018, %v4228
        %v4261 = vsub.f32 %v4041, %v4231
        %v4262 = vsub.f32 %v4064, %v4234
        %v4263 = vsub.f32 %v4087, %v4237
        %v4264 = vsub.f32 %v4110, %v4240
        %v4265 = vsub.f32 %v4133, %v4243
        %v4266 = vsub.f32 %v4156, %v4246
        %v4267 = vsub.f32 %v4179, %v4249
        %v4268 = vsub.f32 %v4202, %v4252
        %v4269 = vmul.f32 %v4253, 1.442695
        %v4270 = vpow.pop %v4269
        %v4271 = vmul.f32 %v4254, 1.442695
        %v4272 = vpow.pop %v4271
        %v4273 = vmul.f32 %v4255, 1.442695
        %v4274 = vpow.pop %v4273
        %v4275 = vmul.f32 %v4256, 1.442695
        %v4276 = vpow.pop %v4275
        %v4277 = vmul.f32 %v4257, 1.442695
        %v4278 = vpow.pop %v4277
        %v4279 = vmul.f32 %v4258, 1.442695
        %v4280 = vpow.pop %v4279
        %v4281 = vmul.f32 %v4259, 1.442695
        %v4282 = vpow.pop %v4281
        %v4283 = vmul.f32 %v4260, 1.442695
        %v4284 = vpow.pop %v4283
        %v4285 = vmul.f32 %v4261, 1.442695
        %v4286 = vpow.pop %v4285
        %v4287 = vmul.f32 %v4262, 1.442695
        %v4288 = vpow.pop %v4287
        %v4289 = vmul.f32 %v4263, 1.442695
        %v4290 = vpow.pop %v4289
        %v4291 = vmul.f32 %v4264, 1.442695
        %v4292 = vpow.pop %v4291
        %v4293 = vmul.f32 %v4265, 1.442695
        %v4294 = vpow.pop %v4293
        %v4295 = vmul.f32 %v4266, 1.442695
        %v4296 = vpow.pop %v4295
        %v4297 = vmul.f32 %v4267, 1.442695
        %v4298 = vpow.pop %v4297
        %v4299 = vmul.f32 %v4268, 1.442695
        %v4300 = vpow.pop %v4299
        %v4301 = vsel %vm1335, %v4270, 0.0
        %4302 = vadd.xlane.f32.xlu0 %v4301
        %v4303 = vpop.xlane.xlu0 %4302
        %v4304 = vsel %vm1335, %v4272, 0.0
        %4305 = vadd.xlane.f32.xlu0 %v4304
        %v4306 = vpop.xlane.xlu0 %4305
        %v4307 = vsel %vm1335, %v4274, 0.0
        %4308 = vadd.xlane.f32.xlu0 %v4307
        %v4309 = vpop.xlane.xlu0 %4308
        %v4310 = vsel %vm1335, %v4276, 0.0
        %4311 = vadd.xlane.f32.xlu0 %v4310
        %v4312 = vpop.xlane.xlu0 %4311
        %v4313 = vsel %vm1335, %v4278, 0.0
        %4314 = vadd.xlane.f32.xlu0 %v4313
        %v4315 = vpop.xlane.xlu0 %4314
        %v4316 = vsel %vm1335, %v4280, 0.0
        %4317 = vadd.xlane.f32.xlu0 %v4316
        %v4318 = vpop.xlane.xlu0 %4317
        %v4319 = vsel %vm1335, %v4282, 0.0
        %4320 = vadd.xlane.f32.xlu0 %v4319
        %v4321 = vpop.xlane.xlu0 %4320
        %v4322 = vsel %vm1335, %v4284, 0.0
        %4323 = vadd.xlane.f32.xlu0 %v4322
        %v4324 = vpop.xlane.xlu0 %4323
        %v4325 = vsel %vm1335, %v4286, 0.0
        %4326 = vadd.xlane.f32.xlu0 %v4325
        %v4327 = vpop.xlane.xlu0 %4326
        %v4328 = vsel %vm1335, %v4288, 0.0
        %4329 = vadd.xlane.f32.xlu0 %v4328
        %v4330 = vpop.xlane.xlu0 %4329
        %v4331 = vsel %vm1335, %v4290, 0.0
        %4332 = vadd.xlane.f32.xlu0 %v4331
        %v4333 = vpop.xlane.xlu0 %4332
        %v4334 = vsel %vm1335, %v4292, 0.0
        %4335 = vadd.xlane.f32.xlu0 %v4334
        %v4336 = vpop.xlane.xlu0 %4335
        %v4337 = vsel %vm1335, %v4294, 0.0
        %4338 = vadd.xlane.f32.xlu0 %v4337
        %v4339 = vpop.xlane.xlu0 %4338
        %v4340 = vsel %vm1335, %v4296, 0.0
        %4341 = vadd.xlane.f32.xlu0 %v4340
        %v4342 = vpop.xlane.xlu0 %4341
        %v4343 = vsel %vm1335, %v4298, 0.0
        %4344 = vadd.xlane.f32.xlu0 %v4343
        %v4345 = vpop.xlane.xlu0 %4344
        %v4346 = vsel %vm1335, %v4300, 0.0
        %4347 = vadd.xlane.f32.xlu0 %v4346
        %v4348 = vpop.xlane.xlu0 %4347
        %v4349 = vrcp.pop %v4303
        %v4350 = vrcp.pop %v4306
        %v4351 = vrcp.pop %v4309
        %v4352 = vrcp.pop %v4312
        %v4353 = vrcp.pop %v4315
        %v4354 = vrcp.pop %v4318
        %v4355 = vrcp.pop %v4321
        %v4356 = vrcp.pop %v4324
        %v4357 = vrcp.pop %v4327
        %v4358 = vrcp.pop %v4330
        %v4359 = vrcp.pop %v4333
        %v4360 = vrcp.pop %v4336
        %v4361 = vrcp.pop %v4339
        %v4362 = vrcp.pop %v4342
        %v4363 = vrcp.pop %v4345
        %v4364 = vrcp.pop %v4348
        %v4365 = vmul.f32 %v4270, %v4349
        %v4366 = vmul.f32 %v4272, %v4350
        %v4367 = vmul.f32 %v4274, %v4351
        %v4368 = vmul.f32 %v4276, %v4352
        %v4369 = vmul.f32 %v4278, %v4353
        %v4370 = vmul.f32 %v4280, %v4354
        %v4371 = vmul.f32 %v4282, %v4355
        %v4372 = vmul.f32 %v4284, %v4356
        %v4373 = vmul.f32 %v4286, %v4357
        %v4374 = vmul.f32 %v4288, %v4358
        %v4375 = vmul.f32 %v4290, %v4359
        %v4376 = vmul.f32 %v4292, %v4360
        %v4377 = vmul.f32 %v4294, %v4361
        %v4378 = vmul.f32 %v4296, %v4362
        %v4379 = vmul.f32 %v4298, %v4363
        %v4380 = vmul.f32 %v4300, %v4364
        %v4381 = vpack.c.bf16 %v4365, %v4365
        %v4382 = vpack.c.bf16 %v4366, %v4366
        %v4383 = vpack.c.bf16 %v4367, %v4367
        %v4384 = vpack.c.bf16 %v4368, %v4368
        %v4385 = vpack.c.bf16 %v4369, %v4369
        %v4386 = vpack.c.bf16 %v4370, %v4370
        %v4387 = vpack.c.bf16 %v4371, %v4371
        %v4388 = vpack.c.bf16 %v4372, %v4372
        %v4389 = vpack.c.bf16 %v4373, %v4373
        %v4390 = vpack.c.bf16 %v4374, %v4374
        %v4391 = vpack.c.bf16 %v4375, %v4375
        %v4392 = vpack.c.bf16 %v4376, %v4376
        %v4393 = vpack.c.bf16 %v4377, %v4377
        %v4394 = vpack.c.bf16 %v4378, %v4378
        %v4395 = vpack.c.bf16 %v4379, %v4379
        %v4396 = vpack.c.bf16 %v4380, %v4380
        %4397 = vrot.lane.b32.xlu0 %v952, 40
        %v4398 = vpop.permute.xlu0 %4397
        %v4400 = vsel %vm1530, %v4381, 0
        %v4403 = vsel %vm1534, %v4398, 0
        %4405 = vmatpush.bf16.msra.mxu0 0
        %4406 = vmatpush.bf16.msra.mxu0 0
        %4407 = vmatpush.bf16.msra.mxu0 0
        %4408 = vmatpush.bf16.msra.mxu0 0
        %4409 = vmatpush.bf16.msra.mxu0 0
        %4410 = vmatpush.bf16.msra.mxu0 0
        %4411 = vmatpush.bf16.msra.mxu0 0
        %4412 = vmatpush.bf16.msra.mxu0 %v4403
        %4413 = vmatmul.bf16.gmra.mxu0 %v4400
        %v4414 = vpop.f32.mrf.mxu0
        %v4415 = vadd.f32 0.0, %v4414
        %v4416 = vpop.f32.mrf.mxu0
        %4417 = vdwg.mxu0
        %4418 = vrot.lane.b32.xlu0 %v977, 40
        %v4419 = vpop.permute.xlu0 %4418
        %v4421 = vsel %vm1530, %v4382, 0
        %v4424 = vsel %vm1534, %v4419, 0
        %4426 = vmatpush.bf16.msra.mxu0 0
        %4427 = vmatpush.bf16.msra.mxu0 0
        %4428 = vmatpush.bf16.msra.mxu0 0
        %4429 = vmatpush.bf16.msra.mxu0 0
        %4430 = vmatpush.bf16.msra.mxu0 0
        %4431 = vmatpush.bf16.msra.mxu0 0
        %4432 = vmatpush.bf16.msra.mxu0 0
        %4433 = vmatpush.bf16.msra.mxu0 %v4424
        %4434 = vmatmul.bf16.gmra.mxu0 %v4421
        %v4435 = vpop.f32.mrf.mxu0
        %v4436 = vadd.f32 0.0, %v4435
        %v4437 = vpop.f32.mrf.mxu0
        %4438 = vdwg.mxu0
        %4439 = vrot.lane.b32.xlu0 %v1001, 40
        %v4440 = vpop.permute.xlu0 %4439
        %v4442 = vsel %vm1530, %v4383, 0
        %v4445 = vsel %vm1534, %v4440, 0
        %4447 = vmatpush.bf16.msra.mxu0 0
        %4448 = vmatpush.bf16.msra.mxu0 0
        %4449 = vmatpush.bf16.msra.mxu0 0
        %4450 = vmatpush.bf16.msra.mxu0 0
        %4451 = vmatpush.bf16.msra.mxu0 0
        %4452 = vmatpush.bf16.msra.mxu0 0
        %4453 = vmatpush.bf16.msra.mxu0 0
        %4454 = vmatpush.bf16.msra.mxu0 %v4445
        %4455 = vmatmul.bf16.gmra.mxu0 %v4442
        %v4456 = vpop.f32.mrf.mxu0
        %v4457 = vadd.f32 0.0, %v4456
        %v4458 = vpop.f32.mrf.mxu0
        %4459 = vdwg.mxu0
        %4460 = vrot.lane.b32.xlu0 %v1025, 40
        %v4461 = vpop.permute.xlu0 %4460
        %v4463 = vsel %vm1530, %v4384, 0
        %v4466 = vsel %vm1534, %v4461, 0
        %4468 = vmatpush.bf16.msra.mxu0 0
        %4469 = vmatpush.bf16.msra.mxu0 0
        %4470 = vmatpush.bf16.msra.mxu0 0
        %4471 = vmatpush.bf16.msra.mxu0 0
        %4472 = vmatpush.bf16.msra.mxu0 0
        %4473 = vmatpush.bf16.msra.mxu0 0
        %4474 = vmatpush.bf16.msra.mxu0 0
        %4475 = vmatpush.bf16.msra.mxu0 %v4466
        %4476 = vmatmul.bf16.gmra.mxu0 %v4463
        %v4477 = vpop.f32.mrf.mxu0
        %v4478 = vadd.f32 0.0, %v4477
        %v4479 = vpop.f32.mrf.mxu0
        %4480 = vdwg.mxu0
        %4481 = vrot.lane.b32.xlu0 %v1049, 40
        %v4482 = vpop.permute.xlu0 %4481
        %v4484 = vsel %vm1530, %v4385, 0
        %v4487 = vsel %vm1534, %v4482, 0
        %4489 = vmatpush.bf16.msra.mxu0 0
        %4490 = vmatpush.bf16.msra.mxu0 0
        %4491 = vmatpush.bf16.msra.mxu0 0
        %4492 = vmatpush.bf16.msra.mxu0 0
        %4493 = vmatpush.bf16.msra.mxu0 0
        %4494 = vmatpush.bf16.msra.mxu0 0
        %4495 = vmatpush.bf16.msra.mxu0 0
        %4496 = vmatpush.bf16.msra.mxu0 %v4487
        %4497 = vmatmul.bf16.gmra.mxu0 %v4484
        %v4498 = vpop.f32.mrf.mxu0
        %v4499 = vadd.f32 0.0, %v4498
        %v4500 = vpop.f32.mrf.mxu0
        %4501 = vdwg.mxu0
        %4502 = vrot.lane.b32.xlu0 %v1073, 40
        %v4503 = vpop.permute.xlu0 %4502
        %v4505 = vsel %vm1530, %v4386, 0
        %v4508 = vsel %vm1534, %v4503, 0
        %4510 = vmatpush.bf16.msra.mxu0 0
        %4511 = vmatpush.bf16.msra.mxu0 0
        %4512 = vmatpush.bf16.msra.mxu0 0
        %4513 = vmatpush.bf16.msra.mxu0 0
        %4514 = vmatpush.bf16.msra.mxu0 0
        %4515 = vmatpush.bf16.msra.mxu0 0
        %4516 = vmatpush.bf16.msra.mxu0 0
        %4517 = vmatpush.bf16.msra.mxu0 %v4508
        %4518 = vmatmul.bf16.gmra.mxu0 %v4505
        %v4519 = vpop.f32.mrf.mxu0
        %v4520 = vadd.f32 0.0, %v4519
        %v4521 = vpop.f32.mrf.mxu0
        %4522 = vdwg.mxu0
        %4523 = vrot.lane.b32.xlu0 %v1097, 40
        %v4524 = vpop.permute.xlu0 %4523
        %v4526 = vsel %vm1530, %v4387, 0
        %v4529 = vsel %vm1534, %v4524, 0
        %4531 = vmatpush.bf16.msra.mxu0 0
        %4532 = vmatpush.bf16.msra.mxu0 0
        %4533 = vmatpush.bf16.msra.mxu0 0
        %4534 = vmatpush.bf16.msra.mxu0 0
        %4535 = vmatpush.bf16.msra.mxu0 0
        %4536 = vmatpush.bf16.msra.mxu0 0
        %4537 = vmatpush.bf16.msra.mxu0 0
        %4538 = vmatpush.bf16.msra.mxu0 %v4529
        %4539 = vmatmul.bf16.gmra.mxu0 %v4526
        %v4540 = vpop.f32.mrf.mxu0
        %v4541 = vadd.f32 0.0, %v4540
        %v4542 = vpop.f32.mrf.mxu0
        %4543 = vdwg.mxu0
        %4544 = vrot.lane.b32.xlu0 %v1121, 40
        %v4545 = vpop.permute.xlu0 %4544
        %v4547 = vsel %vm1530, %v4388, 0
        %v4550 = vsel %vm1534, %v4545, 0
        %4552 = vmatpush.bf16.msra.mxu0 0
        %4553 = vmatpush.bf16.msra.mxu0 0
        %4554 = vmatpush.bf16.msra.mxu0 0
        %4555 = vmatpush.bf16.msra.mxu0 0
        %4556 = vmatpush.bf16.msra.mxu0 0
        %4557 = vmatpush.bf16.msra.mxu0 0
        %4558 = vmatpush.bf16.msra.mxu0 0
        %4559 = vmatpush.bf16.msra.mxu0 %v4550
        %4560 = vmatmul.bf16.gmra.mxu0 %v4547
        %v4561 = vpop.f32.mrf.mxu0
        %v4562 = vadd.f32 0.0, %v4561
        %v4563 = vpop.f32.mrf.mxu0
        %4564 = vdwg.mxu0
        %4565 = vrot.lane.b32.xlu0 %v1145, 40
        %v4566 = vpop.permute.xlu0 %4565
        %v4568 = vsel %vm1530, %v4389, 0
        %v4571 = vsel %vm1534, %v4566, 0
        %4573 = vmatpush.bf16.msra.mxu0 0
        %4574 = vmatpush.bf16.msra.mxu0 0
        %4575 = vmatpush.bf16.msra.mxu0 0
        %4576 = vmatpush.bf16.msra.mxu0 0
        %4577 = vmatpush.bf16.msra.mxu0 0
        %4578 = vmatpush.bf16.msra.mxu0 0
        %4579 = vmatpush.bf16.msra.mxu0 0
        %4580 = vmatpush.bf16.msra.mxu0 %v4571
        %4581 = vmatmul.bf16.gmra.mxu0 %v4568
        %v4582 = vpop.f32.mrf.mxu0
        %v4583 = vadd.f32 0.0, %v4582
        %v4584 = vpop.f32.mrf.mxu0
        %4585 = vdwg.mxu0
        %4586 = vrot.lane.b32.xlu0 %v1169, 40
        %v4587 = vpop.permute.xlu0 %4586
        %v4589 = vsel %vm1530, %v4390, 0
        %v4592 = vsel %vm1534, %v4587, 0
        %4594 = vmatpush.bf16.msra.mxu0 0
        %4595 = vmatpush.bf16.msra.mxu0 0
        %4596 = vmatpush.bf16.msra.mxu0 0
        %4597 = vmatpush.bf16.msra.mxu0 0
        %4598 = vmatpush.bf16.msra.mxu0 0
        %4599 = vmatpush.bf16.msra.mxu0 0
        %4600 = vmatpush.bf16.msra.mxu0 0
        %4601 = vmatpush.bf16.msra.mxu0 %v4592
        %4602 = vmatmul.bf16.gmra.mxu0 %v4589
        %v4603 = vpop.f32.mrf.mxu0
        %v4604 = vadd.f32 0.0, %v4603
        %v4605 = vpop.f32.mrf.mxu0
        %4606 = vdwg.mxu0
        %4607 = vrot.lane.b32.xlu0 %v1193, 40
        %v4608 = vpop.permute.xlu0 %4607
        %v4610 = vsel %vm1530, %v4391, 0
        %v4613 = vsel %vm1534, %v4608, 0
        %4615 = vmatpush.bf16.msra.mxu0 0
        %4616 = vmatpush.bf16.msra.mxu0 0
        %4617 = vmatpush.bf16.msra.mxu0 0
        %4618 = vmatpush.bf16.msra.mxu0 0
        %4619 = vmatpush.bf16.msra.mxu0 0
        %4620 = vmatpush.bf16.msra.mxu0 0
        %4621 = vmatpush.bf16.msra.mxu0 0
        %4622 = vmatpush.bf16.msra.mxu0 %v4613
        %4623 = vmatmul.bf16.gmra.mxu0 %v4610
        %v4624 = vpop.f32.mrf.mxu0
        %v4625 = vadd.f32 0.0, %v4624
        %v4626 = vpop.f32.mrf.mxu0
        %4627 = vdwg.mxu0
        %4628 = vrot.lane.b32.xlu0 %v1217, 40
        %v4629 = vpop.permute.xlu0 %4628
        %v4631 = vsel %vm1530, %v4392, 0
        %v4634 = vsel %vm1534, %v4629, 0
        %4636 = vmatpush.bf16.msra.mxu0 0
        %4637 = vmatpush.bf16.msra.mxu0 0
        %4638 = vmatpush.bf16.msra.mxu0 0
        %4639 = vmatpush.bf16.msra.mxu0 0
        %4640 = vmatpush.bf16.msra.mxu0 0
        %4641 = vmatpush.bf16.msra.mxu0 0
        %4642 = vmatpush.bf16.msra.mxu0 0
        %4643 = vmatpush.bf16.msra.mxu0 %v4634
        %4644 = vmatmul.bf16.gmra.mxu0 %v4631
        %v4645 = vpop.f32.mrf.mxu0
        %v4646 = vadd.f32 0.0, %v4645
        %v4647 = vpop.f32.mrf.mxu0
        %4648 = vdwg.mxu0
        %4649 = vrot.lane.b32.xlu0 %v1241, 40
        %v4650 = vpop.permute.xlu0 %4649
        %v4652 = vsel %vm1530, %v4393, 0
        %v4655 = vsel %vm1534, %v4650, 0
        %4657 = vmatpush.bf16.msra.mxu0 0
        %4658 = vmatpush.bf16.msra.mxu0 0
        %4659 = vmatpush.bf16.msra.mxu0 0
        %4660 = vmatpush.bf16.msra.mxu0 0
        %4661 = vmatpush.bf16.msra.mxu0 0
        %4662 = vmatpush.bf16.msra.mxu0 0
        %4663 = vmatpush.bf16.msra.mxu0 0
        %4664 = vmatpush.bf16.msra.mxu0 %v4655
        %4665 = vmatmul.bf16.gmra.mxu0 %v4652
        %v4666 = vpop.f32.mrf.mxu0
        %v4667 = vadd.f32 0.0, %v4666
        %v4668 = vpop.f32.mrf.mxu0
        %4669 = vdwg.mxu0
        %4670 = vrot.lane.b32.xlu0 %v1265, 40
        %v4671 = vpop.permute.xlu0 %4670
        %v4673 = vsel %vm1530, %v4394, 0
        %v4676 = vsel %vm1534, %v4671, 0
        %4678 = vmatpush.bf16.msra.mxu0 0
        %4679 = vmatpush.bf16.msra.mxu0 0
        %4680 = vmatpush.bf16.msra.mxu0 0
        %4681 = vmatpush.bf16.msra.mxu0 0
        %4682 = vmatpush.bf16.msra.mxu0 0
        %4683 = vmatpush.bf16.msra.mxu0 0
        %4684 = vmatpush.bf16.msra.mxu0 0
        %4685 = vmatpush.bf16.msra.mxu0 %v4676
        %4686 = vmatmul.bf16.gmra.mxu0 %v4673
        %v4687 = vpop.f32.mrf.mxu0
        %v4688 = vadd.f32 0.0, %v4687
        %v4689 = vpop.f32.mrf.mxu0
        %4690 = vdwg.mxu0
        %4691 = vrot.lane.b32.xlu0 %v1289, 40
        %v4692 = vpop.permute.xlu0 %4691
        %v4694 = vsel %vm1530, %v4395, 0
        %v4697 = vsel %vm1534, %v4692, 0
        %4699 = vmatpush.bf16.msra.mxu0 0
        %4700 = vmatpush.bf16.msra.mxu0 0
        %4701 = vmatpush.bf16.msra.mxu0 0
        %4702 = vmatpush.bf16.msra.mxu0 0
        %4703 = vmatpush.bf16.msra.mxu0 0
        %4704 = vmatpush.bf16.msra.mxu0 0
        %4705 = vmatpush.bf16.msra.mxu0 0
        %4706 = vmatpush.bf16.msra.mxu0 %v4697
        %4707 = vmatmul.bf16.gmra.mxu0 %v4694
        %v4708 = vpop.f32.mrf.mxu0
        %v4709 = vadd.f32 0.0, %v4708
        %v4710 = vpop.f32.mrf.mxu0
        %4711 = vdwg.mxu0
        %4712 = vrot.lane.b32.xlu0 %v1313, 40
        %v4713 = vpop.permute.xlu0 %4712
        %v4715 = vsel %vm1530, %v4396, 0
        %v4718 = vsel %vm1534, %v4713, 0
        %4720 = vmatpush.bf16.msra.mxu0 0
        %4721 = vmatpush.bf16.msra.mxu0 0
        %4722 = vmatpush.bf16.msra.mxu0 0
        %4723 = vmatpush.bf16.msra.mxu0 0
        %4724 = vmatpush.bf16.msra.mxu0 0
        %4725 = vmatpush.bf16.msra.mxu0 0
        %4726 = vmatpush.bf16.msra.mxu0 0
        %4727 = vmatpush.bf16.msra.mxu0 %v4718
        %4728 = vmatmul.bf16.gmra.mxu0 %v4715
        %v4729 = vpop.f32.mrf.mxu0
        %v4730 = vadd.f32 0.0, %v4729
        %v4731 = vpop.f32.mrf.mxu0
        %4732 = vdwg.mxu0
        %4749 = vrot.lane.b32.xlu0 %v4415, 24
        %v4750 = vpop.permute.xlu0 %4749
        %4751 = vrot.lane.b32.xlu0 %v4436, 24
        %v4752 = vpop.permute.xlu0 %4751
        %4753 = vrot.lane.b32.xlu0 %v4457, 24
        %v4754 = vpop.permute.xlu0 %4753
        %4755 = vrot.lane.b32.xlu0 %v4478, 24
        %v4756 = vpop.permute.xlu0 %4755
        %4757 = vrot.lane.b32.xlu0 %v4499, 24
        %v4758 = vpop.permute.xlu0 %4757
        %4759 = vrot.lane.b32.xlu0 %v4520, 24
        %v4760 = vpop.permute.xlu0 %4759
        %4761 = vrot.lane.b32.xlu0 %v4541, 24
        %v4762 = vpop.permute.xlu0 %4761
        %4763 = vrot.lane.b32.xlu0 %v4562, 24
        %v4764 = vpop.permute.xlu0 %4763
        %4765 = vrot.lane.b32.xlu0 %v4583, 24
        %v4766 = vpop.permute.xlu0 %4765
        %4767 = vrot.lane.b32.xlu0 %v4604, 24
        %v4768 = vpop.permute.xlu0 %4767
        %4769 = vrot.lane.b32.xlu0 %v4625, 24
        %v4770 = vpop.permute.xlu0 %4769
        %4771 = vrot.lane.b32.xlu0 %v4646, 24
        %v4772 = vpop.permute.xlu0 %4771
        %4773 = vrot.lane.b32.xlu0 %v4667, 24
        %v4774 = vpop.permute.xlu0 %4773
        %4775 = vrot.lane.b32.xlu0 %v4688, 24
        %v4776 = vpop.permute.xlu0 %4775
        %4777 = vrot.lane.b32.xlu0 %v4709, 24
        %v4778 = vpop.permute.xlu0 %4777
        %4779 = vrot.lane.b32.xlu0 %v4730, 24
        %v4780 = vpop.permute.xlu0 %4779
        %vm4797 = vcmask 255168
        %4798 = vst.msk [vmem:[#allocation2] sm:$0x3] %vm4797, %v4750
        %4799 = vst.msk [vmem:[#allocation2 + $0x2] sm:$0x3] %vm4797, %v4752
        %4800 = vst.msk [vmem:[#allocation2 + $0x4] sm:$0x3] %vm4797, %v4754
        %4801 = vst.msk [vmem:[#allocation2 + $0x6] sm:$0x3] %vm4797, %v4756
        %4802 = vst.msk [vmem:[#allocation2 + $0x8] sm:$0x3] %vm4797, %v4758
        %4803 = vst.msk [vmem:[#allocation2 + $0xa] sm:$0x3] %vm4797, %v4760
        %4804 = vst.msk [vmem:[#allocation2 + $0xc] sm:$0x3] %vm4797, %v4762
        %4805 = vst.msk [vmem:[#allocation2 + $0xe] sm:$0x3] %vm4797, %v4764
        %4806 = vst.msk [vmem:[#allocation2 + $0x10] sm:$0x3] %vm4797, %v4766
        %4807 = vst.msk [vmem:[#allocation2 + $0x12] sm:$0x3] %vm4797, %v4768
        %4808 = vst.msk [vmem:[#allocation2 + $0x14] sm:$0x3] %vm4797, %v4770
        %4809 = vst.msk [vmem:[#allocation2 + $0x16] sm:$0x3] %vm4797, %v4772
        %4810 = vst.msk [vmem:[#allocation2 + $0x18] sm:$0x3] %vm4797, %v4774
        %4811 = vst.msk [vmem:[#allocation2 + $0x1a] sm:$0x3] %vm4797, %v4776
        %4812 = vst.msk [vmem:[#allocation2 + $0x1c] sm:$0x3] %vm4797, %v4778
        %4813 = vst.msk [vmem:[#allocation2 + $0x1e] sm:$0x3] %vm4797, %v4780
        %v4814 = vld [vmem:[#allocation9] sm:$0xf]
        %v4815 = vld [vmem:[#allocation9 + $0x4] sm:$0xf]
        %v4816 = vld [vmem:[#allocation9 + $0x8] sm:$0xf]
        %v4817 = vld [vmem:[#allocation9 + $0xc] sm:$0xf]
        %v4818 = vld [vmem:[%s5] sm:$0x1]
        %v4819 = vld [vmem:[#allocation2] sm:$0x3]
        %v4820 = vld [vmem:[#allocation2 + $0x2] sm:$0x3]
        %v4821 = vld [vmem:[#allocation2 + $0x4] sm:$0x3]
        %v4822 = vld [vmem:[#allocation2 + $0x6] sm:$0x3]
        %v4823 = vld [vmem:[#allocation2 + $0x8] sm:$0x3]
        %v4824 = vld [vmem:[#allocation2 + $0xa] sm:$0x3]
        %v4825 = vld [vmem:[#allocation2 + $0xc] sm:$0x3]
        %v4826 = vld [vmem:[#allocation2 + $0xe] sm:$0x3]
        %v4827 = vld [vmem:[#allocation2 + $0x10] sm:$0x3]
        %v4828 = vld [vmem:[#allocation2 + $0x12] sm:$0x3]
        %v4829 = vld [vmem:[#allocation2 + $0x14] sm:$0x3]
        %v4830 = vld [vmem:[#allocation2 + $0x16] sm:$0x3]
        %v4831 = vld [vmem:[#allocation2 + $0x18] sm:$0x3]
        %v4832 = vld [vmem:[#allocation2 + $0x1a] sm:$0x3]
        %v4833 = vld [vmem:[#allocation2 + $0x1c] sm:$0x3]
        %v4834 = vld [vmem:[#allocation2 + $0x1e] sm:$0x3]
        %v4835 = vpack.c.bf16 %v4819, %v4819
        %v4836 = vpack.c.bf16 %v4820, %v4820
        %v4837 = vpack.c.bf16 %v4821, %v4821
        %v4838 = vpack.c.bf16 %v4822, %v4822
        %v4839 = vpack.c.bf16 %v4823, %v4823
        %v4840 = vpack.c.bf16 %v4824, %v4824
        %v4841 = vpack.c.bf16 %v4825, %v4825
        %v4842 = vpack.c.bf16 %v4826, %v4826
        %v4843 = vpack.c.bf16 %v4827, %v4827
        %v4844 = vpack.c.bf16 %v4828, %v4828
        %v4845 = vpack.c.bf16 %v4829, %v4829
        %v4846 = vpack.c.bf16 %v4830, %v4830
        %v4847 = vpack.c.bf16 %v4831, %v4831
        %v4848 = vpack.c.bf16 %v4832, %v4832
        %v4849 = vpack.c.bf16 %v4833, %v4833
        %v4850 = vpack.c.bf16 %v4834, %v4834
        %v4852 = vperm.slane %v4818, 0
        %4854 = vst [vmem:[#allocation1] ss:$9 sm:$0xff] %v4835
        %s4856 = scalar_lea.vmem [#allocation1], 1
        %4857 = vst [vmem:[%s4856] ss:$9 sm:$0xff] %v4836
        %s4859 = scalar_lea.vmem [#allocation1], 2
        %4860 = vst [vmem:[%s4859] ss:$9 sm:$0xff] %v4837
        %s4862 = scalar_lea.vmem [#allocation1], 3
        %4863 = vst [vmem:[%s4862] ss:$9 sm:$0xff] %v4838
        %s4865 = scalar_lea.vmem [#allocation1], 4
        %4866 = vst [vmem:[%s4865] ss:$9 sm:$0xff] %v4839
        %s4868 = scalar_lea.vmem [#allocation1], 5
        %4869 = vst [vmem:[%s4868] ss:$9 sm:$0xff] %v4840
        %s4871 = scalar_lea.vmem [#allocation1], 6
        %4872 = vst [vmem:[%s4871] ss:$9 sm:$0xff] %v4841
        %s4874 = scalar_lea.vmem [#allocation1], 7
        %4875 = vst [vmem:[%s4874] ss:$9 sm:$0xff] %v4842
        %v4876 = vld [vmem:[#allocation1] sm:$0xff]
        %4878 = vst [vmem:[#allocation1] ss:$9 sm:$0xff] %v4843
        %4880 = vst [vmem:[%s4856] ss:$9 sm:$0xff] %v4844
        %4882 = vst [vmem:[%s4859] ss:$9 sm:$0xff] %v4845
        %4884 = vst [vmem:[%s4862] ss:$9 sm:$0xff] %v4846
        %4886 = vst [vmem:[%s4865] ss:$9 sm:$0xff] %v4847
        %4888 = vst [vmem:[%s4868] ss:$9 sm:$0xff] %v4848
        %4890 = vst [vmem:[%s4871] ss:$9 sm:$0xff] %v4849
        %4892 = vst [vmem:[%s4874] ss:$9 sm:$0xff] %v4850
        %v4893 = vld [vmem:[#allocation1] sm:$0xff]
        %v4898 = vunpack.c.l.b16 %v4814
        %v4899 = vunpack.c.l.b16 %v4815
        %v4900 = vunpack.c.l.b16 %v4816
        %v4901 = vunpack.c.l.b16 %v4817
        %v4902 = vpack.c.b16 %v4899, %v4898
        %v4903 = vpack.c.b16 %v4901, %v4900
        %4906 = vst [vmem:[#allocation1] ss:$4 sm:$0xff] %v4852
        %s4907 = scalar_lea.vmem [#allocation1], 1
        %4908 = vst [vmem:[%s4907] ss:$4 sm:$0xff] %v4852
        %s4909 = scalar_lea.vmem [#allocation1], 2
        %4910 = vst [vmem:[%s4909] ss:$4 sm:$0xff] %v4852
        %s4911 = scalar_lea.vmem [#allocation1], 3
        %4912 = vst [vmem:[%s4911] ss:$4 sm:$0xff] %v4852
        %s4913 = scalar_lea.vmem [#allocation1], 32
        %4914 = vst [vmem:[%s4913] ss:$4 sm:$0xff] %v4852
        %s4915 = scalar_lea.vmem [#allocation1], 33
        %4916 = vst [vmem:[%s4915] ss:$4 sm:$0xff] %v4852
        %s4917 = scalar_lea.vmem [#allocation1], 34
        %4918 = vst [vmem:[%s4917] ss:$4 sm:$0xff] %v4852
        %s4919 = scalar_lea.vmem [#allocation1], 35
        %4920 = vst [vmem:[%s4919] ss:$4 sm:$0xff] %v4852
        %v4921 = vld.sshfl [vmem:[#allocation1] sm:$0xff pattern:$0x73625140]
        %v4922 = vld.sshfl [vmem:[#allocation1 + $0x20] sm:$0xff pattern:$0x73625140]
        %4923 = vst [vmem:[#allocation1] ss:$4 sm:$0xff] %v4852
        %4924 = vst [vmem:[%s4907] ss:$4 sm:$0xff] %v4852
        %4925 = vst [vmem:[%s4909] ss:$4 sm:$0xff] %v4852
        %4926 = vst [vmem:[%s4911] ss:$4 sm:$0xff] %v4852
        %4927 = vst [vmem:[%s4913] ss:$4 sm:$0xff] %v4852
        %4928 = vst [vmem:[%s4915] ss:$4 sm:$0xff] %v4852
        %4929 = vst [vmem:[%s4917] ss:$4 sm:$0xff] %v4852
        %4930 = vst [vmem:[%s4919] ss:$4 sm:$0xff] %v4852
        %v4931 = vld.sshfl [vmem:[#allocation1] sm:$0xff pattern:$0x73625140]
        %v4932 = vld.sshfl [vmem:[#allocation1 + $0x20] sm:$0xff pattern:$0x73625140]
        %v4937 = vsel %vm882, %v4876, 0
        %v4939 = vsel %vm882, %v4893, 0
        %4941 = vmatpush.bf16.msra.mxu0 0
        %4942 = vmatpush.bf16.msra.mxu0 0
        %4943 = vmatpush.bf16.msra.mxu0 0
        %4944 = vmatpush.bf16.msra.mxu0 0
        %4945 = vmatpush.bf16.msra.mxu0 0
        %4946 = vmatpush.bf16.msra.mxu0 0
        %4947 = vmatpush.bf16.msra.mxu0 %v4903
        %4948 = vmatpush.bf16.msra.mxu0 %v4902
        %4949 = vmatmul.bf16.gmra.mxu0 %v4937
        %v4950 = vpop.f32.mrf.mxu0
        %v4951 = vadd.f32 %v4921, %v4950
        %v4952 = vpop.f32.mrf.mxu0
        %v4953 = vadd.f32 %v4922, %v4952
        %4954 = vmatmul.bf16.gmra.mxu0 %v4939
        %v4955 = vpop.f32.mrf.mxu0
        %v4956 = vadd.f32 %v4931, %v4955
        %v4957 = vpop.f32.mrf.mxu0
        %v4958 = vadd.f32 %v4932, %v4957
        %4959 = vdwg.mxu0
        %v4964 = vrot.slane %v4951, 2
        %v4965 = vrot.slane %v4951, 4
        %v4966 = vrot.slane %v4951, 6
        %v4967 = vrot.slane %v4953, 2
        %v4968 = vrot.slane %v4953, 4
        %v4969 = vrot.slane %v4953, 6
        %v4970 = vrot.slane %v4956, 2
        %v4971 = vrot.slane %v4956, 4
        %v4972 = vrot.slane %v4956, 6
        %v4973 = vrot.slane %v4958, 2
        %v4974 = vrot.slane %v4958, 4
        %v4975 = vrot.slane %v4958, 6
        %v4988 = vpack.c.bf16 %v4951, %v4951
        %v4989 = vpack.c.bf16 %v4964, %v4964
        %v4990 = vpack.c.bf16 %v4965, %v4965
        %v4991 = vpack.c.bf16 %v4966, %v4966
        %v4992 = vpack.c.bf16 %v4953, %v4953
        %v4993 = vpack.c.bf16 %v4967, %v4967
        %v4994 = vpack.c.bf16 %v4968, %v4968
        %v4995 = vpack.c.bf16 %v4969, %v4969
        %v4996 = vpack.c.bf16 %v4956, %v4956
        %v4997 = vpack.c.bf16 %v4970, %v4970
        %v4998 = vpack.c.bf16 %v4971, %v4971
        %v4999 = vpack.c.bf16 %v4972, %v4972
        %v5000 = vpack.c.bf16 %v4958, %v4958
        %v5001 = vpack.c.bf16 %v4973, %v4973
        %v5002 = vpack.c.bf16 %v4974, %v4974
        %v5003 = vpack.c.bf16 %v4975, %v4975
        %v5004 = vld [vmem:[#allocation11] sm:$0xf]
        %v5005 = vld [vmem:[#allocation11 + $0x4] sm:$0xf]
        %v5006 = vld [vmem:[#allocation11 + $0x8] sm:$0xf]
        %v5007 = vld [vmem:[#allocation11 + $0xc] sm:$0xf]
        %v5008 = vld [vmem:[%s7] sm:$0x1]
        %v5010 = vperm.slane %v5008, 0
        %5012 = vst [vmem:[#allocation1] ss:$9 sm:$0xff] %v4988
        %s5014 = scalar_lea.vmem [#allocation1], 1
        %5015 = vst [vmem:[%s5014] ss:$9 sm:$0xff] %v4989
        %s5017 = scalar_lea.vmem [#allocation1], 2
        %5018 = vst [vmem:[%s5017] ss:$9 sm:$0xff] %v4990
        %s5020 = scalar_lea.vmem [#allocation1], 3
        %5021 = vst [vmem:[%s5020] ss:$9 sm:$0xff] %v4991
        %s5023 = scalar_lea.vmem [#allocation1], 4
        %5024 = vst [vmem:[%s5023] ss:$9 sm:$0xff] %v4992
        %s5026 = scalar_lea.vmem [#allocation1], 5
        %5027 = vst [vmem:[%s5026] ss:$9 sm:$0xff] %v4993
        %s5029 = scalar_lea.vmem [#allocation1], 6
        %5030 = vst [vmem:[%s5029] ss:$9 sm:$0xff] %v4994
        %s5032 = scalar_lea.vmem [#allocation1], 7
        %5033 = vst [vmem:[%s5032] ss:$9 sm:$0xff] %v4995
        %v5034 = vld [vmem:[#allocation1] sm:$0xff]
        %5036 = vst [vmem:[#allocation1] ss:$9 sm:$0xff] %v4996
        %5038 = vst [vmem:[%s5014] ss:$9 sm:$0xff] %v4997
        %5040 = vst [vmem:[%s5017] ss:$9 sm:$0xff] %v4998
        %5042 = vst [vmem:[%s5020] ss:$9 sm:$0xff] %v4999
        %5044 = vst [vmem:[%s5023] ss:$9 sm:$0xff] %v5000
        %5046 = vst [vmem:[%s5026] ss:$9 sm:$0xff] %v5001
        %5048 = vst [vmem:[%s5029] ss:$9 sm:$0xff] %v5002
        %5050 = vst [vmem:[%s5032] ss:$9 sm:$0xff] %v5003
        %v5051 = vld [vmem:[#allocation1] sm:$0xff]
        %v5056 = vunpack.c.l.b16 %v5004
        %v5057 = vunpack.c.l.b16 %v5005
        %v5058 = vunpack.c.l.b16 %v5006
        %v5059 = vunpack.c.l.b16 %v5007
        %v5060 = vpack.c.b16 %v5057, %v5056
        %v5061 = vpack.c.b16 %v5059, %v5058
        %5064 = vst [vmem:[#allocation1] ss:$4 sm:$0xff] %v5010
        %s5065 = scalar_lea.vmem [#allocation1], 1
        %5066 = vst [vmem:[%s5065] ss:$4 sm:$0xff] %v5010
        %s5067 = scalar_lea.vmem [#allocation1], 2
        %5068 = vst [vmem:[%s5067] ss:$4 sm:$0xff] %v5010
        %s5069 = scalar_lea.vmem [#allocation1], 3
        %5070 = vst [vmem:[%s5069] ss:$4 sm:$0xff] %v5010
        %s5071 = scalar_lea.vmem [#allocation1], 32
        %5072 = vst [vmem:[%s5071] ss:$4 sm:$0xff] %v5010
        %s5073 = scalar_lea.vmem [#allocation1], 33
        %5074 = vst [vmem:[%s5073] ss:$4 sm:$0xff] %v5010
        %s5075 = scalar_lea.vmem [#allocation1], 34
        %5076 = vst [vmem:[%s5075] ss:$4 sm:$0xff] %v5010
        %s5077 = scalar_lea.vmem [#allocation1], 35
        %5078 = vst [vmem:[%s5077] ss:$4 sm:$0xff] %v5010
        %v5079 = vld.sshfl [vmem:[#allocation1] sm:$0xff pattern:$0x73625140]
        %v5080 = vld.sshfl [vmem:[#allocation1 + $0x20] sm:$0xff pattern:$0x73625140]
        %5081 = vst [vmem:[#allocation1] ss:$4 sm:$0xff] %v5010
        %5082 = vst [vmem:[%s5065] ss:$4 sm:$0xff] %v5010
        %5083 = vst [vmem:[%s5067] ss:$4 sm:$0xff] %v5010
        %5084 = vst [vmem:[%s5069] ss:$4 sm:$0xff] %v5010
        %5085 = vst [vmem:[%s5071] ss:$4 sm:$0xff] %v5010
        %5086 = vst [vmem:[%s5073] ss:$4 sm:$0xff] %v5010
        %5087 = vst [vmem:[%s5075] ss:$4 sm:$0xff] %v5010
        %5088 = vst [vmem:[%s5077] ss:$4 sm:$0xff] %v5010
        %v5089 = vld.sshfl [vmem:[#allocation1] sm:$0xff pattern:$0x73625140]
        %v5090 = vld.sshfl [vmem:[#allocation1 + $0x20] sm:$0xff pattern:$0x73625140]
        %v5095 = vsel %vm882, %v5034, 0
        %v5097 = vsel %vm882, %v5051, 0
        %5099 = vmatpush.bf16.msra.mxu0 0
        %5100 = vmatpush.bf16.msra.mxu0 0
        %5101 = vmatpush.bf16.msra.mxu0 0
        %5102 = vmatpush.bf16.msra.mxu0 0
        %5103 = vmatpush.bf16.msra.mxu0 0
        %5104 = vmatpush.bf16.msra.mxu0 0
        %5105 = vmatpush.bf16.msra.mxu0 %v5061
        %5106 = vmatpush.bf16.msra.mxu0 %v5060
        %5107 = vmatmul.bf16.gmra.mxu0 %v5095
        %v5108 = vpop.f32.mrf.mxu0
        %v5109 = vadd.f32 %v5079, %v5108
        %v5110 = vpop.f32.mrf.mxu0
        %v5111 = vadd.f32 %v5080, %v5110
        %5112 = vmatmul.bf16.gmra.mxu0 %v5097
        %v5113 = vpop.f32.mrf.mxu0
        %v5114 = vadd.f32 %v5089, %v5113
        %v5115 = vpop.f32.mrf.mxu0
        %v5116 = vadd.f32 %v5090, %v5115
        %5117 = vdwg.mxu0
        %v5122 = vrot.slane %v5109, 2
        %v5123 = vrot.slane %v5109, 4
        %v5124 = vrot.slane %v5109, 6
        %v5125 = vrot.slane %v5111, 2
        %v5126 = vrot.slane %v5111, 4
        %v5127 = vrot.slane %v5111, 6
        %v5128 = vrot.slane %v5114, 2
        %v5129 = vrot.slane %v5114, 4
        %v5130 = vrot.slane %v5114, 6
        %v5131 = vrot.slane %v5116, 2
        %v5132 = vrot.slane %v5116, 4
        %v5133 = vrot.slane %v5116, 6
        %v5146 = vadd.f32 %v393, %v5109
        %v5147 = vadd.f32 %v394, %v5122
        %v5148 = vadd.f32 %v395, %v5123
        %v5149 = vadd.f32 %v396, %v5124
        %v5150 = vadd.f32 %v397, %v5111
        %v5151 = vadd.f32 %v398, %v5125
        %v5152 = vadd.f32 %v399, %v5126
        %v5153 = vadd.f32 %v400, %v5127
        %v5154 = vadd.f32 %v401, %v5114
        %v5155 = vadd.f32 %v402, %v5128
        %v5156 = vadd.f32 %v403, %v5129
        %v5157 = vadd.f32 %v404, %v5130
        %v5158 = vadd.f32 %v405, %v5116
        %v5159 = vadd.f32 %v406, %v5131
        %v5160 = vadd.f32 %v407, %v5132
        %v5161 = vadd.f32 %v408, %v5133
        %5162 = vst.msk [vmem:[%s389] sm:$0x3] %vm411, %v5146
        %5163 = vst.msk [vmem:[%s389 + $0x2] sm:$0x3] %vm411, %v5147
        %5164 = vst.msk [vmem:[%s389 + $0x4] sm:$0x3] %vm411, %v5148
        %5165 = vst.msk [vmem:[%s389 + $0x6] sm:$0x3] %vm411, %v5149
        %5166 = vst.msk [vmem:[%s389 + $0x8] sm:$0x3] %vm411, %v5150
        %5167 = vst.msk [vmem:[%s389 + $0xa] sm:$0x3] %vm411, %v5151
        %5168 = vst.msk [vmem:[%s389 + $0xc] sm:$0x3] %vm411, %v5152
        %5169 = vst.msk [vmem:[%s389 + $0xe] sm:$0x3] %vm411, %v5153
        %5170 = vst.msk [vmem:[%s389 + $0x10] sm:$0x3] %vm411, %v5154
        %5171 = vst.msk [vmem:[%s389 + $0x12] sm:$0x3] %vm411, %v5155
        %5172 = vst.msk [vmem:[%s389 + $0x14] sm:$0x3] %vm411, %v5156
        %5173 = vst.msk [vmem:[%s389 + $0x16] sm:$0x3] %vm411, %v5157
        %5174 = vst.msk [vmem:[%s389 + $0x18] sm:$0x3] %vm411, %v5158
        %5175 = vst.msk [vmem:[%s389 + $0x1a] sm:$0x3] %vm411, %v5159
        %5176 = vst.msk [vmem:[%s389 + $0x1c] sm:$0x3] %vm411, %v5160
        %5177 = vst.msk [vmem:[%s389 + $0x1e] sm:$0x3] %vm411, %v5161
        %s5178 = sand.u32 %s208, 1
        %s5179 = scalar_lea.sflag [#allocation5], %s5178
        %s5180 = sand.u32 %s208, 1
        %s5181 = smul.addr %s5180, 32
        %s5182 = scalar_lea.vmem [#allocation12], %s5181
        // Predicated region
        $region73: #{tpu_custom_call.1} parent=51 // pred_check
          %p5183 = pneg %p218
        $region74: #{tpu_custom_call.1} parent=51 // pred_check_branch
          %5185 = sbr.rel (%p5183) target = $region76
        $region75: #{tpu_custom_call.1} parent=51 // pred_region
          %s5186 = smul.u32 16, %s27
          %5188 = vsyncadd %s5179, 0
          %s5189 = smul.addr %s5186, 2
          %s5190 = scalar_lea.hbm %s8, %s5189
          %s5191 = sshll.u32 %s5182, 4
          %s5192 = int_to_ptr.vmem [resolvable:$true] %s5191
          %s5193 = sshll.u32 %s5190, 4
          %s5194 = int_to_ptr.hbm [resolvable:$true] %s5193
          %5199 = dma.vmem_to_hbm [thread:$0]  %s5192, 512, %s5194, %s5179, 32, 32, 2
        $region76: #{tpu_custom_call.1} parent=51 // pred_fallthru
          _
      $region52: #{tpu_custom_call.1} parent=5 // pred_fallthru
        _
      %p5200 = scmp.le.s32.totalorder 2, %s22
      // Predicated region
      $region77: #{tpu_custom_call.1} parent=5 // pred_check
        %p5201 = pneg %p5200
      $region78: #{tpu_custom_call.1} parent=5 // pred_check_branch
        %5203 = sbr.rel (%p5201) target = $region80
      $region79: #{tpu_custom_call.1} parent=5 // pred_region
        %s5204 = ssub.s32 %s22, 2
        // Predicated region
        $region81: #{tpu_custom_call.1} parent=79 // pred_check
          %p5205 = pneg %p224
        $region82: #{tpu_custom_call.1} parent=79 // pred_check_branch
          %5207 = sbr.rel (%p5205) target = $region84
        $region83: #{tpu_custom_call.1} parent=79 // pred_region
          %s5208 = sand.u32 %s209, 1
          %s5209 = scalar_lea.sflag [#allocation5], %s5208
          %s5210 = sand.u32 %s209, 1
          %s5211 = smul.addr %s5210, 32
          %s5212 = scalar_lea.vmem [#allocation12], %s5211
          %5214 = dma.done %s5209, 512
        $region84: #{tpu_custom_call.1} parent=79 // pred_fallthru
          _
      $region80: #{tpu_custom_call.1} parent=5 // pred_fallthru
        _
    $region6: #{tpu_custom_call.1} parent=1 // loop_footer
      %s26 = sadd.s32 1, %s22
    $region7: #{tpu_custom_call.1} parent=1 // loop_footer_branch
      %21 = sbr.rel target = $region3
    $region8: #{tpu_custom_call.1} parent=1 // loop_exit
      _
    %5215 = vsyncpa [#allocation4], 1
    %s5216 = scalar_lea.sflag [#allocation4], 1
    %5217 = vsyncpa %s5216, 1
    %5218 = vsyncpa [#allocation7], 1
    %5219 = vsyncpa [#allocation10], 1
    %5220 = vsyncpa [#allocation5], 1
    %s5221 = scalar_lea.sflag [#allocation5], 1
    %5222 = vsyncpa %s5221, 1

</llo_original>
